<compile_context>
chip_gen: v7x
topology: tpu7x:2x2x1
jax: 0.10.0
libtpu: 0.0.40
codegen_flags: <defaults>
</compile_context>

<pallas_src>
import functools

import jax
import jax.numpy as jnp
from jax.experimental import pallas as pl
from jax.experimental.pallas import tpu as pltpu

TM = 512    # row tile for fused pointwise MLP-chain kernels
TMG = 128   # row tile (center points) for the fused stage kernel
LANE = 128


def _round_up(v, m):
    return pl.cdiv(v, m) * m


def _row_tile(rows, tmax):
    """Pick a row tile: single block when small, tmax otherwise (rows padded)."""
    if rows <= tmax:
        rp = _round_up(rows, 8)
        return rp, rp
    rp = _round_up(rows, tmax)
    return rp, tmax


# --------------------------------------------------------------------------
# Pallas kernels
# --------------------------------------------------------------------------
def _mlp_chain_kernel(*refs, n_inputs, n_layers, relus):
    """Fused pointwise-MLP chain.

    refs = (x_0..x_{n_inputs-1}, W0_0..W0_{n_inputs-1}, b0,
            W1, b1, ..., W_{L-1}, b_{L-1}, o_ref)
    Layer 0 sums the matmuls of all inputs (== concat along channels).
    All intermediates live in VMEM/vregs; accumulation in f32, matmuls in bf16.
    """
    xs = refs[:n_inputs]
    w0s = refs[n_inputs:2 * n_inputs]
    b0 = refs[2 * n_inputs]

    y = jnp.dot(xs[0][...], w0s[0][...], preferred_element_type=jnp.float32)
    for j in range(1, n_inputs):
        y = y + jnp.dot(xs[j][...], w0s[j][...], preferred_element_type=jnp.float32)
    y = y + b0[...]
    if relus[0]:
        y = jnp.maximum(y, 0.0)

    idx = 2 * n_inputs + 1
    for li in range(1, n_layers):
        w_ref, b_ref = refs[idx], refs[idx + 1]
        idx += 2
        y = jnp.dot(y.astype(w_ref.dtype), w_ref[...],
                    preferred_element_type=jnp.float32) + b_ref[...]
        if relus[li]:
            y = jnp.maximum(y, 0.0)

    o_ref = refs[idx]
    o_ref[...] = y.astype(o_ref.dtype)


def _stage_kernel(gf_ref, gx_ref, wf_ref, wx_ref, bsa_ref,
                  w1_ref, b1_ref, w2_ref, b2_ref, o_ref, *, nsample):
    """Fused set-abstraction + InvResMLP.

    gf_ref: (tile*nsample, Cf_pad)  grouped (gathered) features, bf16
    gx_ref: (tile*nsample, Cx_pad)  grouped relative coordinates, bf16
    sa  = max_over_neighbors(relu(gf @ Wf + gx @ Wx + b))
    out = relu(sa + W2 relu(W1 sa))
    Everything (sa, hidden) stays in VMEM; only `out` goes back to HBM.
    """
    y = jnp.dot(gf_ref[...], wf_ref[...], preferred_element_type=jnp.float32)
    y = y + jnp.dot(gx_ref[...], wx_ref[...], preferred_element_type=jnp.float32)
    y = jnp.maximum(y + bsa_ref[...], 0.0)
    rows = y.shape[0] // nsample
    sa = y.reshape(rows, nsample, -1).max(axis=1)              # [tile, Cout_pad] f32

    h = jnp.dot(sa.astype(w1_ref.dtype), w1_ref[...],
                preferred_element_type=jnp.float32) + b1_ref[...]
    h = jnp.maximum(h, 0.0)
    out = jnp.dot(h.astype(w2_ref.dtype), w2_ref[...],
                  preferred_element_type=jnp.float32) + b2_ref[...] + sa
    out = jnp.maximum(out, 0.0)
    o_ref[...] = out.astype(o_ref.dtype)


# --------------------------------------------------------------------------
# Kernel wrappers
# --------------------------------------------------------------------------
_PARALLEL = pltpu.CompilerParams(dimension_semantics=("parallel",))


def mlp_chain(inputs, w0s, b0, layers, relus, out_dtype=jnp.bfloat16):
    """Fused chain of 1x1 convs over rows.  inputs: list of [R, Cin_i]."""
    rows = inputs[0].shape[0]
    cout = layers[-1][0].shape[1] if layers else w0s[0].shape[1]
    rp, tile = _row_tile(rows, TM)
    if rp != rows:
        inputs = [jnp.pad(x, ((0, rp - rows), (0, 0))) for x in inputs]

    in_specs, args = [], []
    for x in inputs:
        in_specs.append(pl.BlockSpec((tile, x.shape[1]), lambda i: (i, 0)))
        args.append(x)
    for w in w0s:
        in_specs.append(pl.BlockSpec(w.shape, lambda i: (0, 0)))
        args.append(w)
    in_specs.append(pl.BlockSpec(b0.shape, lambda i: (0, 0)))
    args.append(b0)
    for w, b in layers:
        in_specs.append(pl.BlockSpec(w.shape, lambda i: (0, 0)))
        args.append(w)
        in_specs.append(pl.BlockSpec(b.shape, lambda i: (0, 0)))
        args.append(b)

    out = pl.pallas_call(
        functools.partial(_mlp_chain_kernel, n_inputs=len(inputs),
                          n_layers=1 + len(layers), relus=tuple(relus)),
        out_shape=jax.ShapeDtypeStruct((rp, cout), out_dtype),
        grid=(rp // tile,),
        in_specs=in_specs,
        out_specs=pl.BlockSpec((tile, cout), lambda i: (i, 0)),
        compiler_params=_PARALLEL,
    )(*args)
    return out[:rows] if rp != rows else out


def stage_fused(g_feat, g_xyz, p, nsample):
    """g_feat: [R, S, Cf_pad] bf16, g_xyz: [R, S, Cx_pad] bf16 -> [R, Cout_pad] bf16."""
    R, S, Cf = g_feat.shape
    Cx = g_xyz.shape[-1]
    Cout = p['wf'].shape[1]
    rp, tile = _row_tile(R, TMG)
    if rp != R:
        g_feat = jnp.pad(g_feat, ((0, rp - R), (0, 0), (0, 0)))
        g_xyz = jnp.pad(g_xyz, ((0, rp - R), (0, 0), (0, 0)))
    gf = g_feat.reshape(rp * S, Cf)     # wrapper-side reshape: free, lane-dense
    gx = g_xyz.reshape(rp * S, Cx)

    out = pl.pallas_call(
        functools.partial(_stage_kernel, nsample=nsample),
        out_shape=jax.ShapeDtypeStruct((rp, Cout), jnp.bfloat16),
        grid=(rp // tile,),
        in_specs=[
            pl.BlockSpec((tile * S, Cf), lambda i: (i, 0)),
            pl.BlockSpec((tile * S, Cx), lambda i: (i, 0)),
            pl.BlockSpec(p['wf'].shape, lambda i: (0, 0)),
            pl.BlockSpec(p['wx'].shape, lambda i: (0, 0)),
            pl.BlockSpec(p['b_sa'].shape, lambda i: (0, 0)),
            pl.BlockSpec(p['w1'].shape, lambda i: (0, 0)),
            pl.BlockSpec(p['b1'].shape, lambda i: (0, 0)),
            pl.BlockSpec(p['w2'].shape, lambda i: (0, 0)),
            pl.BlockSpec(p['b2'].shape, lambda i: (0, 0)),
        ],
        out_specs=pl.BlockSpec((tile, Cout), lambda i: (i, 0)),
        compiler_params=_PARALLEL,
    )(gf, gx, p['wf'], p['wx'], p['b_sa'], p['w1'], p['b1'], p['w2'], p['b2'])
    return out[:R] if rp != R else out


# --------------------------------------------------------------------------
# Plain-JAX glue: index building / gathers
# --------------------------------------------------------------------------
def _gather_points(points, idx):
    # points: [B, N, C], idx: [B, S, K] -> [B, S, K, C]
    return jax.vmap(lambda p, i: p[i])(points, idx)


def ball_query(radius, nsample, xyz, new_xyz):
    # xyz: [B, N, 3], new_xyz: [B, S, 3] -> [B, S, nsample] int32
    B, N, _ = xyz.shape
    sqrdists = jnp.sum((new_xyz[:, :, None, :] - xyz[:, None, :, :]) ** 2, axis=-1)
    arange_n = jnp.arange(N, dtype=jnp.int32)
    group_idx = jnp.where(sqrdists > radius ** 2, N, arange_n)      # [B, S, N]
    # nsample smallest indices == first nsample in-radius points (index order),
    # via top_k of negated indices instead of a full O(N log N) sort.
    neg_vals, _ = jax.lax.top_k(-group_idx, nsample)
    group_idx = -neg_vals                                           # ascending
    group_first = group_idx[:, :, :1]
    group_first = jnp.where(group_first == N, 0, group_first)
    return jnp.where(group_idx == N, group_first, group_idx)


def three_interpolate(xyz1, xyz2, points2):
    # inverse-distance weighted 3-NN interpolation: [B,N2,C] -> [B,N1,C]
    N2 = xyz2.shape[1]
    d = jnp.sum((xyz1[:, :, None, :] - xyz2[:, None, :, :]) ** 2, axis=-1)
    k = min(3, N2)
    neg_d, idx = jax.lax.top_k(-d, k)
    dist = jnp.maximum(-neg_d, 1e-10)
    w = 1.0 / dist
    w = w / jnp.sum(w, axis=-1, keepdims=True)
    gathered = _gather_points(points2, idx)          # [B, N1, k, C]
    return jnp.sum(w[..., None] * gathered, axis=2)  # [B, N1, C] (f32)


# --------------------------------------------------------------------------
# Modules
# --------------------------------------------------------------------------
def stage_forward(p, xyz, feat, npoint, radius, nsample, coor_dim):
    """Set abstraction (group + MLP + max) fused with the inverted-residual MLP."""
    B, N, _ = xyz.shape
    stride = max(N // npoint, 1)
    new_xyz = xyz[:, ::stride, :][:, :npoint, :]     # TODO(synk): FPS -> strided subsample
    idx = ball_query(radius, nsample, xyz, new_xyz)
    xyz_pad = _round_up(coor_dim, 8)
    g_xyz = (_gather_points(xyz, idx) - new_xyz[:, :, None, :]) / radius
    g_xyz = jnp.pad(g_xyz, ((0, 0), (0, 0), (0, 0), (0, xyz_pad - coor_dim)))
    g_xyz = g_xyz.astype(jnp.bfloat16)
    g_feat = _gather_points(feat, idx)               # [B, npoint, S, C_pad] bf16

    out = stage_fused(g_feat.reshape(B * npoint, nsample, -1),
                      g_xyz.reshape(B * npoint, nsample, xyz_pad),
                      p, nsample)                    # [B*npoint, Cout_pad]
    return new_xyz, out.reshape(B, npoint, -1)


def fp_forward(p, xyz1, xyz2, feat1, feat2):
    """Feature propagation: 3-NN interpolation + skip "concat" (split matmuls) + fused 2-layer MLP."""
    B, N1, _ = xyz1.shape
    interp = three_interpolate(xyz1, xyz2, feat2).astype(jnp.bfloat16)
    rows_a = interp.reshape(B * N1, -1)
    rows_b = feat1.reshape(B * N1, -1)
    h = mlp_chain([rows_a, rows_b], [p['w1a'], p['w1b']], p['b1'],
                  [(p['w2'], p['b2'])], relus=(True, True),
                  out_dtype=jnp.bfloat16)
    return h.reshape(B, N1, -1)


def head_forward(p, feat):
    B, N, C = feat.shape
    rows = feat.reshape(B * N, C)
    all_layers = list(p['layers']) + [p['final']]
    relus = tuple([True] * len(p['layers']) + [False])
    w0, b0 = all_layers[0]
    out = mlp_chain([rows], [w0], b0, all_layers[1:], relus, out_dtype=jnp.float32)
    return out.reshape(B, N, -1)


def pointnext_forward(params, cfg, x):
    """x: [B, C, N] (PyTorch NCW).  Returns [B, num_class, N] (segmentation)."""
    coor_dim = cfg['coor_dim']
    in_ch = coor_dim + coor_dim * cfg['normal']
    B, _, N = x.shape
    l0_xyz = jnp.transpose(x[:, :coor_dim, :], (0, 2, 1))            # [B, N, 3] f32
    l0_in = jnp.transpose(x[:, :in_ch, :], (0, 2, 1))                # [B, N, in_ch]
    in_pad = _round_up(in_ch, 8)
    l0_in = jnp.pad(l0_in, ((0, 0), (0, 0), (0, in_pad - in_ch))).astype(jnp.bfloat16)

    l0_feat = mlp_chain([l0_in.reshape(B * N, in_pad)],
                        [params['mlp_w']], params['mlp_b'],
                        [], relus=(False,),
                        out_dtype=jnp.bfloat16).reshape(B, N, -1)

    record = [[l0_xyz, l0_feat]]
    for si, sp in enumerate(params['stages']):
        xyz, feat = record[-1]
        record.append(list(stage_forward(
            sp, xyz, feat, cfg['npoint'][si],
            cfg['radius_list'][si][0], cfg['nsample_list'][si][0], coor_dim)))

    if cfg['type'] != 'classification':
        for i, dp in enumerate(params['decoders']):
            record[-i - 2][1] = fp_forward(dp, record[-i - 2][0], record[-i - 1][0],
                                           record[-i - 2][1], record[-i - 1][1])
        out = head_forward(params['head'], record[0][1])
    else:
        out = head_forward(params['head'], record[-1][1])

    num_out = 1 if cfg['type'] == 'regression' else cfg['num_class']
    out = out[..., :num_out]                       # single slice of padded lanes
    return jnp.transpose(out, (0, 2, 1))           # back to [B, num_class, N]


# --------------------------------------------------------------------------
# Deterministic parameter init (PyTorch Conv1d-style uniform(-1/sqrt(fan_in), ...))
# Weights zero-padded to lane-dense (multiples of 128) shapes, stored bf16.
# --------------------------------------------------------------------------
def init_params(cfg, key):
    coor_dim = cfg['coor_dim']
    in_ch = coor_dim + coor_dim * cfg['normal']
    width = cfg['width']
    keys = iter(jax.random.split(key, 256))

    def conv(cin, cout):
        k1, k2 = jax.random.split(next(keys))
        s = 1.0 / (cin ** 0.5)
        return (jax.random.uniform(k1, (cin, cout), jnp.float32, -s, s),
                jax.random.uniform(k2, (cout,), jnp.float32, -s, s))

    def pad_w(w, rpad, cpad):
        return jnp.pad(w, ((0, rpad - w.shape[0]),
                           (0, cpad - w.shape[1]))).astype(jnp.bfloat16)

    def pad_b(b, cpad):
        return jnp.pad(b, (0, cpad - b.shape[0])).astype(jnp.float32).reshape(1, cpad)

    params = {}
    in_pad = _round_up(in_ch, 8)
    xyz_pad = _round_up(coor_dim, 8)
    w_pad = _round_up(width, LANE)
    w, b = conv(in_ch, width)
    params['mlp_w'] = pad_w(w, in_pad, w_pad)
    params['mlp_b'] = pad_b(b, w_pad)

    params['stages'] = []
    cur, cur_pad = width, w_pad
    for _ in range(len(cfg['npoint'])):
        cout = cur * 2
        cout_pad = _round_up(cout, LANE)
        hid = cout * cfg['expansion']
        hid_pad = _round_up(hid, LANE)
        sw, sb = conv(cur + coor_dim, cout)          # split into feat / xyz blocks
        w1, b1 = conv(cout, hid)
        w2, b2 = conv(hid, cout)
        params['stages'].append(dict(
            wf=pad_w(sw[:cur], cur_pad, cout_pad),
            wx=pad_w(sw[cur:], xyz_pad, cout_pad),
            b_sa=pad_b(sb, cout_pad),
            w1=pad_w(w1, cout_pad, hid_pad), b1=pad_b(b1, hid_pad),
            w2=pad_w(w2, hid_pad, cout_pad), b2=pad_b(b2, cout_pad)))
        cur, cur_pad = cout, cout_pad

    if cfg['type'] != 'classification':
        params['decoders'] = []
        for _ in range(len(cfg['npoint'])):
            skip = cur // 2
            skip_pad = _round_up(skip, LANE)
            mlp_c = cur // 2
            mlp_pad = _round_up(mlp_c, LANE)
            w1, b1 = conv(cur + skip, mlp_c)          # split: [interp | skip] rows
            w2, b2 = conv(mlp_c, mlp_c)
            params['decoders'].append(dict(
                w1a=pad_w(w1[:cur], cur_pad, mlp_pad),
                w1b=pad_w(w1[cur:], skip_pad, mlp_pad),
                b1=pad_b(b1, mlp_pad),
                w2=pad_w(w2, mlp_pad, mlp_pad), b2=pad_b(b2, mlp_pad)))
            cur, cur_pad = mlp_c, mlp_pad

    layers = []
    c, c_pad = cur, cur_pad
    for h in cfg['head']:
        h_pad = _round_up(h, LANE)
        w, b = conv(c, h)
        layers.append((pad_w(w, c_pad, h_pad), pad_b(b, h_pad)))
        c, c_pad = h, h_pad
    num_out = 1 if cfg['type'] == 'regression' else cfg['num_class']
    out_pad = _round_up(num_out, LANE)
    w, b = conv(c, num_out)
    params['head'] = dict(layers=layers, final=(pad_w(w, c_pad, out_pad), pad_b(b, out_pad)))
    return params


# --------------------------------------------------------------------------
if __name__ == "__main__":
    cfg = dict(
        type='segmentation',
        num_class=4,
        coor_dim=3,
        normal=1,
        width=32,
        npoint=[64, 16],
        radius_list=[[0.2], [0.4]],
        nsample_list=[[8], [8]],
        expansion=4,
        head=[32],
    )
    B, N = 2, 128
    in_ch = cfg['coor_dim'] + cfg['coor_dim'] * cfg['normal']   # 6

    key = jax.random.PRNGKey(0)
    k_x, k_p = jax.random.split(key)
    x = jax.random.uniform(k_x, (B, in_ch, N), dtype=jnp.float32)  # xyz in [0,1]^3
    params = init_params(cfg, k_p)

    fwd = jax.jit(lambda p, inp: pointnext_forward(p, cfg, inp))
    out = fwd(params, x)
    out = jax.block_until_ready(out)

    assert out.shape == (B, cfg['num_class'], N), out.shape
    assert jnp.all(jnp.isfinite(out))
    print("KERNEL_OK")
</pallas_src>

<mosaic_0001>
module attributes {stable_mosaic.version = 11 : i64} {
  func.func @_mlp_chain_kernel(%arg0: i32, %arg1: memref<256x8xbf16, #tpu.memory_space<vmem>>, %arg2: memref<8x128xbf16, #tpu.memory_space<vmem>>, %arg3: memref<1x128xf32, #tpu.memory_space<vmem>>, %arg4: memref<256x128xbf16, #tpu.memory_space<vmem>>) attributes {dimension_semantics = [#tpu.dimension_semantics<parallel>], iteration_bounds = array<i64: 1>, scalar_prefetch = 0 : i64, scratch_operands = 0 : i64, tpu.core_type = #tpu.core_type<tc>, window_params = [{transform_indices = @transform_0, window_bounds = array<i64: 256, 8>}, {pipeline_mode = #tpu.pipeline_mode<synchronous>, transform_indices = @transform_1, window_bounds = array<i64: 8, 128>}, {pipeline_mode = #tpu.pipeline_mode<synchronous>, transform_indices = @transform_2, window_bounds = array<i64: 1, 128>}, {transform_indices = @transform_3, window_bounds = array<i64: 256, 128>}]} {
    %c0 = arith.constant 0 : index
    %c0_0 = arith.constant 0 : index
    %0 = vector.load %arg1[%c0, %c0_0] : memref<256x8xbf16, #tpu.memory_space<vmem>>, vector<256x8xbf16>
    %c0_1 = arith.constant 0 : index
    %c0_2 = arith.constant 0 : index
    %1 = vector.load %arg2[%c0_1, %c0_2] : memref<8x128xbf16, #tpu.memory_space<vmem>>, vector<8x128xbf16>
    %cst = arith.constant dense<0.000000e+00> : vector<256x128xf32>
    %2 = tpu.matmul %0, %1, %cst {dimension_numbers = #tpu.dot_dimension_numbers<[1], [0], [0], [1], [0, 0, 1, 1], [], []>} : vector<256x8xbf16>, vector<8x128xbf16>, vector<256x128xf32> -> vector<256x128xf32>
    %c0_3 = arith.constant 0 : index
    %c0_4 = arith.constant 0 : index
    %3 = vector.load %arg3[%c0_3, %c0_4] : memref<1x128xf32, #tpu.memory_space<vmem>>, vector<1x128xf32>
    %4 = vector.broadcast %3 : vector<1x128xf32> to vector<256x128xf32>
    %5 = arith.addf %2, %4 : vector<256x128xf32>
    %6 = arith.truncf %5 : vector<256x128xf32> to vector<256x128xbf16>
    %c0_5 = arith.constant 0 : index
    %c0_6 = arith.constant 0 : index
    %7 = vector.load %arg4[%c0_5, %c0_6] : memref<256x128xbf16, #tpu.memory_space<vmem>>, vector<256x128xbf16>
    tpu.vector_store %arg4[%c0_5, %c0_6], %6 {strides = array<i32>} : memref<256x128xbf16, #tpu.memory_space<vmem>>, vector<256x128xbf16>,
    return
  }
  func.func @transform_0(%arg0: i32) -> (i32, i32) {
    %c0_i32 = arith.constant 0 : i32
    %c0_i32_0 = arith.constant 0 : i32
    return %arg0, %c0_i32 : i32, i32
  }
  func.func @transform_1(%arg0: i32) -> (i32, i32) {
    %c0_i32 = arith.constant 0 : i32
    %c0_i32_0 = arith.constant 0 : i32
    %c0_i32_1 = arith.constant 0 : i32
    return %c0_i32, %c0_i32_0 : i32, i32
  }
  func.func @transform_2(%arg0: i32) -> (i32, i32) {
    %c0_i32 = arith.constant 0 : i32
    %c0_i32_0 = arith.constant 0 : i32
    %c0_i32_1 = arith.constant 0 : i32
    return %c0_i32, %c0_i32_0 : i32, i32
  }
  func.func @transform_3(%arg0: i32) -> (i32, i32) {
    %c0_i32 = arith.constant 0 : i32
    %c0_i32_0 = arith.constant 0 : i32
    return %arg0, %c0_i32 : i32, i32
  }
}

module attributes {stable_mosaic.version = 11 : i64} {
  func.func @_stage_kernel(%arg0: i32, %arg1: memref<1024x128xbf16, #tpu.memory_space<vmem>>, %arg2: memref<1024x8xbf16, #tpu.memory_space<vmem>>, %arg3: memref<128x128xbf16, #tpu.memory_space<vmem>>, %arg4: memref<8x128xbf16, #tpu.memory_space<vmem>>, %arg5: memref<1x128xf32, #tpu.memory_space<vmem>>, %arg6: memref<128x256xbf16, #tpu.memory_space<vmem>>, %arg7: memref<1x256xf32, #tpu.memory_space<vmem>>, %arg8: memref<256x128xbf16, #tpu.memory_space<vmem>>, %arg9: memref<1x128xf32, #tpu.memory_space<vmem>>, %arg10: memref<128x128xbf16, #tpu.memory_space<vmem>>) attributes {dimension_semantics = [#tpu.dimension_semantics<parallel>], iteration_bounds = array<i64: 1>, scalar_prefetch = 0 : i64, scratch_operands = 0 : i64, tpu.core_type = #tpu.core_type<tc>, window_params = [{transform_indices = @transform_0, window_bounds = array<i64: 1024, 128>}, {transform_indices = @transform_1, window_bounds = array<i64: 1024, 8>}, {pipeline_mode = #tpu.pipeline_mode<synchronous>, transform_indices = @transform_2, window_bounds = array<i64: 128, 128>}, {pipeline_mode = #tpu.pipeline_mode<synchronous>, transform_indices = @transform_3, window_bounds = array<i64: 8, 128>}, {pipeline_mode = #tpu.pipeline_mode<synchronous>, transform_indices = @transform_4, window_bounds = array<i64: 1, 128>}, {pipeline_mode = #tpu.pipeline_mode<synchronous>, transform_indices = @transform_5, window_bounds = array<i64: 128, 256>}, {pipeline_mode = #tpu.pipeline_mode<synchronous>, transform_indices = @transform_6, window_bounds = array<i64: 1, 256>}, {pipeline_mode = #tpu.pipeline_mode<synchronous>, transform_indices = @transform_7, window_bounds = array<i64: 256, 128>}, {pipeline_mode = #tpu.pipeline_mode<synchronous>, transform_indices = @transform_8, window_bounds = array<i64: 1, 128>}, {transform_indices = @transform_9, window_bounds = array<i64: 128, 128>}]} {
    %c0 = arith.constant 0 : index
    %c0_0 = arith.constant 0 : index
    %0 = vector.load %arg1[%c0, %c0_0] : memref<1024x128xbf16, #tpu.memory_space<vmem>>, vector<1024x128xbf16>
    %c0_1 = arith.constant 0 : index
    %c0_2 = arith.constant 0 : index
    %1 = vector.load %arg3[%c0_1, %c0_2] : memref<128x128xbf16, #tpu.memory_space<vmem>>, vector<128x128xbf16>
    %cst = arith.constant dense<0.000000e+00> : vector<1024x128xf32>
    %2 = tpu.matmul %0, %1, %cst {dimension_numbers = #tpu.dot_dimension_numbers<[1], [0], [0], [1], [0, 0, 1, 1], [], []>} : vector<1024x128xbf16>, vector<128x128xbf16>, vector<1024x128xf32> -> vector<1024x128xf32>
    %c0_3 = arith.constant 0 : index
    %c0_4 = arith.constant 0 : index
    %3 = vector.load %arg2[%c0_3, %c0_4] : memref<1024x8xbf16, #tpu.memory_space<vmem>>, vector<1024x8xbf16>
    %c0_5 = arith.constant 0 : index
    %c0_6 = arith.constant 0 : index
    %4 = vector.load %arg4[%c0_5, %c0_6] : memref<8x128xbf16, #tpu.memory_space<vmem>>, vector<8x128xbf16>
    %cst_7 = arith.constant dense<0.000000e+00> : vector<1024x128xf32>
    %5 = tpu.matmul %3, %4, %cst_7 {dimension_numbers = #tpu.dot_dimension_numbers<[1], [0], [0], [1], [0, 0, 1, 1], [], []>} : vector<1024x8xbf16>, vector<8x128xbf16>, vector<1024x128xf32> -> vector<1024x128xf32>
    %6 = arith.addf %2, %5 : vector<1024x128xf32>
    %c0_8 = arith.constant 0 : index
    %c0_9 = arith.constant 0 : index
    %7 = vector.load %arg5[%c0_8, %c0_9] : memref<1x128xf32, #tpu.memory_space<vmem>>, vector<1x128xf32>
    %8 = vector.broadcast %7 : vector<1x128xf32> to vector<1024x128xf32>
    %9 = arith.addf %6, %8 : vector<1024x128xf32>
    %cst_10 = arith.constant 0.000000e+00 : f32
    %10 = vector.broadcast %cst_10 : f32 to vector<1024x128xf32>
    %11 = arith.maximumf %9, %10 : vector<1024x128xf32>
    %12 = vector.shape_cast %11 : vector<1024x128xf32> to vector<128x8x128xf32>
    %cst_11 = arith.constant dense<0xFF800000> : vector<128x128xf32>
    %13 = vector.multi_reduction <maximumf>, %12, %cst_11 [1] : vector<128x8x128xf32> to vector<128x128xf32>
    %14 = arith.truncf %13 : vector<128x128xf32> to vector<128x128xbf16>
    %c0_12 = arith.constant 0 : index
    %c0_13 = arith.constant 0 : index
    %15 = vector.load %arg6[%c0_12, %c0_13] : memref<128x256xbf16, #tpu.memory_space<vmem>>, vector<128x256xbf16>
    %cst_14 = arith.constant dense<0.000000e+00> : vector<128x256xf32>
    %16 = tpu.matmul %14, %15, %cst_14 {dimension_numbers = #tpu.dot_dimension_numbers<[1], [0], [0], [1], [0, 0, 1, 1], [], []>} : vector<128x128xbf16>, vector<128x256xbf16>, vector<128x256xf32> -> vector<128x256xf32>
    %c0_15 = arith.constant 0 : index
    %c0_16 = arith.constant 0 : index
    %17 = vector.load %arg7[%c0_15, %c0_16] : memref<1x256xf32, #tpu.memory_space<vmem>>, vector<1x256xf32>
    %18 = vector.broadcast %17 : vector<1x256xf32> to vector<128x256xf32>
    %19 = arith.addf %16, %18 : vector<128x256xf32>
    %cst_17 = arith.constant 0.000000e+00 : f32
    %20 = vector.broadcast %cst_17 : f32 to vector<128x256xf32>
    %21 = arith.maximumf %19, %20 : vector<128x256xf32>
    %22 = arith.truncf %21 : vector<128x256xf32> to vector<128x256xbf16>
    %c0_18 = arith.constant 0 : index
    %c0_19 = arith.constant 0 : index
    %23 = vector.load %arg8[%c0_18, %c0_19] : memref<256x128xbf16, #tpu.memory_space<vmem>>, vector<256x128xbf16>
    %cst_20 = arith.constant dense<0.000000e+00> : vector<128x128xf32>
    %24 = tpu.matmul %22, %23, %cst_20 {dimension_numbers = #tpu.dot_dimension_numbers<[1], [0], [0], [1], [0, 0, 1, 1], [], []>} : vector<128x256xbf16>, vector<256x128xbf16>, vector<128x128xf32> -> vector<128x128xf32>
    %c0_21 = arith.constant 0 : index
    %c0_22 = arith.constant 0 : index
    %25 = vector.load %arg9[%c0_21, %c0_22] : memref<1x128xf32, #tpu.memory_space<vmem>>, vector<1x128xf32>
    %26 = vector.broadcast %25 : vector<1x128xf32> to vector<128x128xf32>
    %27 = arith.addf %24, %26 : vector<128x128xf32>
    %28 = arith.addf %27, %13 : vector<128x128xf32>
    %cst_23 = arith.constant 0.000000e+00 : f32
    %29 = vector.broadcast %cst_23 : f32 to vector<128x128xf32>
    %30 = arith.maximumf %28, %29 : vector<128x128xf32>
    %31 = arith.truncf %30 : vector<128x128xf32> to vector<128x128xbf16>
    %c0_24 = arith.constant 0 : index
    %c0_25 = arith.constant 0 : index
    %32 = vector.load %arg10[%c0_24, %c0_25] : memref<128x128xbf16, #tpu.memory_space<vmem>>, vector<128x128xbf16>
    tpu.vector_store %arg10[%c0_24, %c0_25], %31 {strides = array<i32>} : memref<128x128xbf16, #tpu.memory_space<vmem>>, vector<128x128xbf16>,
    return
  }
  func.func @transform_0(%arg0: i32) -> (i32, i32) {
    %c0_i32 = arith.constant 0 : i32
    %c0_i32_0 = arith.constant 0 : i32
    return %arg0, %c0_i32 : i32, i32
  }
  func.func @transform_1(%arg0: i32) -> (i32, i32) {
    %c0_i32 = arith.constant 0 : i32
    %c0_i32_0 = arith.constant 0 : i32
    return %arg0, %c0_i32 : i32, i32
  }
  func.func @transform_2(%arg0: i32) -> (i32, i32) {
    %c0_i32 = arith.constant 0 : i32
    %c0_i32_0 = arith.constant 0 : i32
    %c0_i32_1 = arith.constant 0 : i32
    return %c0_i32, %c0_i32_0 : i32, i32
  }
  func.func @transform_3(%arg0: i32) -> (i32, i32) {
    %c0_i32 = arith.constant 0 : i32
    %c0_i32_0 = arith.constant 0 : i32
    %c0_i32_1 = arith.constant 0 : i32
    return %c0_i32, %c0_i32_0 : i32, i32
  }
  func.func @transform_4(%arg0: i32) -> (i32, i32) {
    %c0_i32 = arith.constant 0 : i32
    %c0_i32_0 = arith.constant 0 : i32
    %c0_i32_1 = arith.constant 0 : i32
    return %c0_i32, %c0_i32_0 : i32, i32
  }
  func.func @transform_5(%arg0: i32) -> (i32, i32) {
    %c0_i32 = arith.constant 0 : i32
    %c0_i32_0 = arith.constant 0 : i32
    %c0_i32_1 = arith.constant 0 : i32
    return %c0_i32, %c0_i32_0 : i32, i32
  }
  func.func @transform_6(%arg0: i32) -> (i32, i32) {
    %c0_i32 = arith.constant 0 : i32
    %c0_i32_0 = arith.constant 0 : i32
    %c0_i32_1 = arith.constant 0 : i32
    return %c0_i32, %c0_i32_0 : i32, i32
  }
  func.func @transform_7(%arg0: i32) -> (i32, i32) {
    %c0_i32 = arith.constant 0 : i32
    %c0_i32_0 = arith.constant 0 : i32
    %c0_i32_1 = arith.constant 0 : i32
    return %c0_i32, %c0_i32_0 : i32, i32
  }
  func.func @transform_8(%arg0: i32) -> (i32, i32) {
    %c0_i32 = arith.constant 0 : i32
    %c0_i32_0 = arith.constant 0 : i32
    %c0_i32_1 = arith.constant 0 : i32
    return %c0_i32, %c0_i32_0 : i32, i32
  }
  func.func @transform_9(%arg0: i32) -> (i32, i32) {
    %c0_i32 = arith.constant 0 : i32
    %c0_i32_0 = arith.constant 0 : i32
    return %arg0, %c0_i32 : i32, i32
  }
}

module attributes {stable_mosaic.version = 11 : i64} {
  func.func @_stage_kernel(%arg0: i32, %arg1: memref<256x128xbf16, #tpu.memory_space<vmem>>, %arg2: memref<256x8xbf16, #tpu.memory_space<vmem>>, %arg3: memref<128x128xbf16, #tpu.memory_space<vmem>>, %arg4: memref<8x128xbf16, #tpu.memory_space<vmem>>, %arg5: memref<1x128xf32, #tpu.memory_space<vmem>>, %arg6: memref<128x512xbf16, #tpu.memory_space<vmem>>, %arg7: memref<1x512xf32, #tpu.memory_space<vmem>>, %arg8: memref<512x128xbf16, #tpu.memory_space<vmem>>, %arg9: memref<1x128xf32, #tpu.memory_space<vmem>>, %arg10: memref<32x128xbf16, #tpu.memory_space<vmem>>) attributes {dimension_semantics = [#tpu.dimension_semantics<parallel>], iteration_bounds = array<i64: 1>, scalar_prefetch = 0 : i64, scratch_operands = 0 : i64, tpu.core_type = #tpu.core_type<tc>, window_params = [{transform_indices = @transform_0, window_bounds = array<i64: 256, 128>}, {transform_indices = @transform_1, window_bounds = array<i64: 256, 8>}, {pipeline_mode = #tpu.pipeline_mode<synchronous>, transform_indices = @transform_2, window_bounds = array<i64: 128, 128>}, {pipeline_mode = #tpu.pipeline_mode<synchronous>, transform_indices = @transform_3, window_bounds = array<i64: 8, 128>}, {pipeline_mode = #tpu.pipeline_mode<synchronous>, transform_indices = @transform_4, window_bounds = array<i64: 1, 128>}, {pipeline_mode = #tpu.pipeline_mode<synchronous>, transform_indices = @transform_5, window_bounds = array<i64: 128, 512>}, {pipeline_mode = #tpu.pipeline_mode<synchronous>, transform_indices = @transform_6, window_bounds = array<i64: 1, 512>}, {pipeline_mode = #tpu.pipeline_mode<synchronous>, transform_indices = @transform_7, window_bounds = array<i64: 512, 128>}, {pipeline_mode = #tpu.pipeline_mode<synchronous>, transform_indices = @transform_8, window_bounds = array<i64: 1, 128>}, {transform_indices = @transform_9, window_bounds = array<i64: 32, 128>}]} {
    %c0 = arith.constant 0 : index
    %c0_0 = arith.constant 0 : index
    %0 = vector.load %arg1[%c0, %c0_0] : memref<256x128xbf16, #tpu.memory_space<vmem>>, vector<256x128xbf16>
    %c0_1 = arith.constant 0 : index
    %c0_2 = arith.constant 0 : index
    %1 = vector.load %arg3[%c0_1, %c0_2] : memref<128x128xbf16, #tpu.memory_space<vmem>>, vector<128x128xbf16>
    %cst = arith.constant dense<0.000000e+00> : vector<256x128xf32>
    %2 = tpu.matmul %0, %1, %cst {dimension_numbers = #tpu.dot_dimension_numbers<[1], [0], [0], [1], [0, 0, 1, 1], [], []>} : vector<256x128xbf16>, vector<128x128xbf16>, vector<256x128xf32> -> vector<256x128xf32>
    %c0_3 = arith.constant 0 : index
    %c0_4 = arith.constant 0 : index
    %3 = vector.load %arg2[%c0_3, %c0_4] : memref<256x8xbf16, #tpu.memory_space<vmem>>, vector<256x8xbf16>
    %c0_5 = arith.constant 0 : index
    %c0_6 = arith.constant 0 : index
    %4 = vector.load %arg4[%c0_5, %c0_6] : memref<8x128xbf16, #tpu.memory_space<vmem>>, vector<8x128xbf16>
    %cst_7 = arith.constant dense<0.000000e+00> : vector<256x128xf32>
    %5 = tpu.matmul %3, %4, %cst_7 {dimension_numbers = #tpu.dot_dimension_numbers<[1], [0], [0], [1], [0, 0, 1, 1], [], []>} : vector<256x8xbf16>, vector<8x128xbf16>, vector<256x128xf32> -> vector<256x128xf32>
    %6 = arith.addf %2, %5 : vector<256x128xf32>
    %c0_8 = arith.constant 0 : index
    %c0_9 = arith.constant 0 : index
    %7 = vector.load %arg5[%c0_8, %c0_9] : memref<1x128xf32, #tpu.memory_space<vmem>>, vector<1x128xf32>
    %8 = vector.broadcast %7 : vector<1x128xf32> to vector<256x128xf32>
    %9 = arith.addf %6, %8 : vector<256x128xf32>
    %cst_10 = arith.constant 0.000000e+00 : f32
    %10 = vector.broadcast %cst_10 : f32 to vector<256x128xf32>
    %11 = arith.maximumf %9, %10 : vector<256x128xf32>
    %12 = vector.shape_cast %11 : vector<256x128xf32> to vector<32x8x128xf32>
    %cst_11 = arith.constant dense<0xFF800000> : vector<32x128xf32>
    %13 = vector.multi_reduction <maximumf>, %12, %cst_11 [1] : vector<32x8x128xf32> to vector<32x128xf32>
    %14 = arith.truncf %13 : vector<32x128xf32> to vector<32x128xbf16>
    %c0_12 = arith.constant 0 : index
    %c0_13 = arith.constant 0 : index
    %15 = vector.load %arg6[%c0_12, %c0_13] : memref<128x512xbf16, #tpu.memory_space<vmem>>, vector<128x512xbf16>
    %cst_14 = arith.constant dense<0.000000e+00> : vector<32x512xf32>
    %16 = tpu.matmul %14, %15, %cst_14 {dimension_numbers = #tpu.dot_dimension_numbers<[1], [0], [0], [1], [0, 0, 1, 1], [], []>} : vector<32x128xbf16>, vector<128x512xbf16>, vector<32x512xf32> -> vector<32x512xf32>
    %c0_15 = arith.constant 0 : index
    %c0_16 = arith.constant 0 : index
    %17 = vector.load %arg7[%c0_15, %c0_16] : memref<1x512xf32, #tpu.memory_space<vmem>>, vector<1x512xf32>
    %18 = vector.broadcast %17 : vector<1x512xf32> to vector<32x512xf32>
    %19 = arith.addf %16, %18 : vector<32x512xf32>
    %cst_17 = arith.constant 0.000000e+00 : f32
    %20 = vector.broadcast %cst_17 : f32 to vector<32x512xf32>
    %21 = arith.maximumf %19, %20 : vector<32x512xf32>
    %22 = arith.truncf %21 : vector<32x512xf32> to vector<32x512xbf16>
    %c0_18 = arith.constant 0 : index
    %c0_19 = arith.constant 0 : index
    %23 = vector.load %arg8[%c0_18, %c0_19] : memref<512x128xbf16, #tpu.memory_space<vmem>>, vector<512x128xbf16>
    %cst_20 = arith.constant dense<0.000000e+00> : vector<32x128xf32>
    %24 = tpu.matmul %22, %23, %cst_20 {dimension_numbers = #tpu.dot_dimension_numbers<[1], [0], [0], [1], [0, 0, 1, 1], [], []>} : vector<32x512xbf16>, vector<512x128xbf16>, vector<32x128xf32> -> vector<32x128xf32>
    %c0_21 = arith.constant 0 : index
    %c0_22 = arith.constant 0 : index
    %25 = vector.load %arg9[%c0_21, %c0_22] : memref<1x128xf32, #tpu.memory_space<vmem>>, vector<1x128xf32>
    %26 = vector.broadcast %25 : vector<1x128xf32> to vector<32x128xf32>
    %27 = arith.addf %24, %26 : vector<32x128xf32>
    %28 = arith.addf %27, %13 : vector<32x128xf32>
    %cst_23 = arith.constant 0.000000e+00 : f32
    %29 = vector.broadcast %cst_23 : f32 to vector<32x128xf32>
    %30 = arith.maximumf %28, %29 : vector<32x128xf32>
    %31 = arith.truncf %30 : vector<32x128xf32> to vector<32x128xbf16>
    %c0_24 = arith.constant 0 : index
    %c0_25 = arith.constant 0 : index
    %32 = vector.load %arg10[%c0_24, %c0_25] : memref<32x128xbf16, #tpu.memory_space<vmem>>, vector<32x128xbf16>
    tpu.vector_store %arg10[%c0_24, %c0_25], %31 {strides = array<i32>} : memref<32x128xbf16, #tpu.memory_space<vmem>>, vector<32x128xbf16>,
    return
  }
  func.func @transform_0(%arg0: i32) -> (i32, i32) {
    %c0_i32 = arith.constant 0 : i32
    %c0_i32_0 = arith.constant 0 : i32
    return %arg0, %c0_i32 : i32, i32
  }
  func.func @transform_1(%arg0: i32) -> (i32, i32) {
    %c0_i32 = arith.constant 0 : i32
    %c0_i32_0 = arith.constant 0 : i32
    return %arg0, %c0_i32 : i32, i32
  }
  func.func @transform_2(%arg0: i32) -> (i32, i32) {
    %c0_i32 = arith.constant 0 : i32
    %c0_i32_0 = arith.constant 0 : i32
    %c0_i32_1 = arith.constant 0 : i32
    return %c0_i32, %c0_i32_0 : i32, i32
  }
  func.func @transform_3(%arg0: i32) -> (i32, i32) {
    %c0_i32 = arith.constant 0 : i32
    %c0_i32_0 = arith.constant 0 : i32
    %c0_i32_1 = arith.constant 0 : i32
    return %c0_i32, %c0_i32_0 : i32, i32
  }
  func.func @transform_4(%arg0: i32) -> (i32, i32) {
    %c0_i32 = arith.constant 0 : i32
    %c0_i32_0 = arith.constant 0 : i32
    %c0_i32_1 = arith.constant 0 : i32
    return %c0_i32, %c0_i32_0 : i32, i32
  }
  func.func @transform_5(%arg0: i32) -> (i32, i32) {
    %c0_i32 = arith.constant 0 : i32
    %c0_i32_0 = arith.constant 0 : i32
    %c0_i32_1 = arith.constant 0 : i32
    return %c0_i32, %c0_i32_0 : i32, i32
  }
  func.func @transform_6(%arg0: i32) -> (i32, i32) {
    %c0_i32 = arith.constant 0 : i32
    %c0_i32_0 = arith.constant 0 : i32
    %c0_i32_1 = arith.constant 0 : i32
    return %c0_i32, %c0_i32_0 : i32, i32
  }
  func.func @transform_7(%arg0: i32) -> (i32, i32) {
    %c0_i32 = arith.constant 0 : i32
    %c0_i32_0 = arith.constant 0 : i32
    %c0_i32_1 = arith.constant 0 : i32
    return %c0_i32, %c0_i32_0 : i32, i32
  }
  func.func @transform_8(%arg0: i32) -> (i32, i32) {
    %c0_i32 = arith.constant 0 : i32
    %c0_i32_0 = arith.constant 0 : i32
    %c0_i32_1 = arith.constant 0 : i32
    return %c0_i32, %c0_i32_0 : i32, i32
  }
  func.func @transform_9(%arg0: i32) -> (i32, i32) {
    %c0_i32 = arith.constant 0 : i32
    %c0_i32_0 = arith.constant 0 : i32
    return %arg0, %c0_i32 : i32, i32
  }
}

module attributes {stable_mosaic.version = 11 : i64} {
  func.func @_mlp_chain_kernel(%arg0: i32, %arg1: memref<128x128xbf16, #tpu.memory_space<vmem>>, %arg2: memref<128x128xbf16, #tpu.memory_space<vmem>>, %arg3: memref<128x128xbf16, #tpu.memory_space<vmem>>, %arg4: memref<128x128xbf16, #tpu.memory_space<vmem>>, %arg5: memref<1x128xf32, #tpu.memory_space<vmem>>, %arg6: memref<128x128xbf16, #tpu.memory_space<vmem>>, %arg7: memref<1x128xf32, #tpu.memory_space<vmem>>, %arg8: memref<128x128xbf16, #tpu.memory_space<vmem>>) attributes {dimension_semantics = [#tpu.dimension_semantics<parallel>], iteration_bounds = array<i64: 1>, scalar_prefetch = 0 : i64, scratch_operands = 0 : i64, tpu.core_type = #tpu.core_type<tc>, window_params = [{transform_indices = @transform_0, window_bounds = array<i64: 128, 128>}, {transform_indices = @transform_1, window_bounds = array<i64: 128, 128>}, {pipeline_mode = #tpu.pipeline_mode<synchronous>, transform_indices = @transform_2, window_bounds = array<i64: 128, 128>}, {pipeline_mode = #tpu.pipeline_mode<synchronous>, transform_indices = @transform_3, window_bounds = array<i64: 128, 128>}, {pipeline_mode = #tpu.pipeline_mode<synchronous>, transform_indices = @transform_4, window_bounds = array<i64: 1, 128>}, {pipeline_mode = #tpu.pipeline_mode<synchronous>, transform_indices = @transform_5, window_bounds = array<i64: 128, 128>}, {pipeline_mode = #tpu.pipeline_mode<synchronous>, transform_indices = @transform_6, window_bounds = array<i64: 1, 128>}, {transform_indices = @transform_7, window_bounds = array<i64: 128, 128>}]} {
    %c0 = arith.constant 0 : index
    %c0_0 = arith.constant 0 : index
    %0 = vector.load %arg1[%c0, %c0_0] : memref<128x128xbf16, #tpu.memory_space<vmem>>, vector<128x128xbf16>
    %c0_1 = arith.constant 0 : index
    %c0_2 = arith.constant 0 : index
    %1 = vector.load %arg3[%c0_1, %c0_2] : memref<128x128xbf16, #tpu.memory_space<vmem>>, vector<128x128xbf16>
    %cst = arith.constant dense<0.000000e+00> : vector<128x128xf32>
    %2 = tpu.matmul %0, %1, %cst {dimension_numbers = #tpu.dot_dimension_numbers<[1], [0], [0], [1], [0, 0, 1, 1], [], []>} : vector<128x128xbf16>, vector<128x128xbf16>, vector<128x128xf32> -> vector<128x128xf32>
    %c0_3 = arith.constant 0 : index
    %c0_4 = arith.constant 0 : index
    %3 = vector.load %arg2[%c0_3, %c0_4] : memref<128x128xbf16, #tpu.memory_space<vmem>>, vector<128x128xbf16>
    %c0_5 = arith.constant 0 : index
    %c0_6 = arith.constant 0 : index
    %4 = vector.load %arg4[%c0_5, %c0_6] : memref<128x128xbf16, #tpu.memory_space<vmem>>, vector<128x128xbf16>
    %cst_7 = arith.constant dense<0.000000e+00> : vector<128x128xf32>
    %5 = tpu.matmul %3, %4, %cst_7 {dimension_numbers = #tpu.dot_dimension_numbers<[1], [0], [0], [1], [0, 0, 1, 1], [], []>} : vector<128x128xbf16>, vector<128x128xbf16>, vector<128x128xf32> -> vector<128x128xf32>
    %6 = arith.addf %2, %5 : vector<128x128xf32>
    %c0_8 = arith.constant 0 : index
    %c0_9 = arith.constant 0 : index
    %7 = vector.load %arg5[%c0_8, %c0_9] : memref<1x128xf32, #tpu.memory_space<vmem>>, vector<1x128xf32>
    %8 = vector.broadcast %7 : vector<1x128xf32> to vector<128x128xf32>
    %9 = arith.addf %6, %8 : vector<128x128xf32>
    %cst_10 = arith.constant 0.000000e+00 : f32
    %10 = vector.broadcast %cst_10 : f32 to vector<128x128xf32>
    %11 = arith.maximumf %9, %10 : vector<128x128xf32>
    %12 = arith.truncf %11 : vector<128x128xf32> to vector<128x128xbf16>
    %c0_11 = arith.constant 0 : index
    %c0_12 = arith.constant 0 : index
    %13 = vector.load %arg6[%c0_11, %c0_12] : memref<128x128xbf16, #tpu.memory_space<vmem>>, vector<128x128xbf16>
    %cst_13 = arith.constant dense<0.000000e+00> : vector<128x128xf32>
    %14 = tpu.matmul %12, %13, %cst_13 {dimension_numbers = #tpu.dot_dimension_numbers<[1], [0], [0], [1], [0, 0, 1, 1], [], []>} : vector<128x128xbf16>, vector<128x128xbf16>, vector<128x128xf32> -> vector<128x128xf32>
    %c0_14 = arith.constant 0 : index
    %c0_15 = arith.constant 0 : index
    %15 = vector.load %arg7[%c0_14, %c0_15] : memref<1x128xf32, #tpu.memory_space<vmem>>, vector<1x128xf32>
    %16 = vector.broadcast %15 : vector<1x128xf32> to vector<128x128xf32>
    %17 = arith.addf %14, %16 : vector<128x128xf32>
    %cst_16 = arith.constant 0.000000e+00 : f32
    %18 = vector.broadcast %cst_16 : f32 to vector<128x128xf32>
    %19 = arith.maximumf %17, %18 : vector<128x128xf32>
    %20 = arith.truncf %19 : vector<128x128xf32> to vector<128x128xbf16>
    %c0_17 = arith.constant 0 : index
    %c0_18 = arith.constant 0 : index
    %21 = vector.load %arg8[%c0_17, %c0_18] : memref<128x128xbf16, #tpu.memory_space<vmem>>, vector<128x128xbf16>
    tpu.vector_store %arg8[%c0_17, %c0_18], %20 {strides = array<i32>} : memref<128x128xbf16, #tpu.memory_space<vmem>>, vector<128x128xbf16>,
    return
  }
  func.func @transform_0(%arg0: i32) -> (i32, i32) {
    %c0_i32 = arith.constant 0 : i32
    %c0_i32_0 = arith.constant 0 : i32
    return %arg0, %c0_i32 : i32, i32
  }
  func.func @transform_1(%arg0: i32) -> (i32, i32) {
    %c0_i32 = arith.constant 0 : i32
    %c0_i32_0 = arith.constant 0 : i32
    return %arg0, %c0_i32 : i32, i32
  }
  func.func @transform_2(%arg0: i32) -> (i32, i32) {
    %c0_i32 = arith.constant 0 : i32
    %c0_i32_0 = arith.constant 0 : i32
    %c0_i32_1 = arith.constant 0 : i32
    return %c0_i32, %c0_i32_0 : i32, i32
  }
  func.func @transform_3(%arg0: i32) -> (i32, i32) {
    %c0_i32 = arith.constant 0 : i32
    %c0_i32_0 = arith.constant 0 : i32
    %c0_i32_1 = arith.constant 0 : i32
    return %c0_i32, %c0_i32_0 : i32, i32
  }
  func.func @transform_4(%arg0: i32) -> (i32, i32) {
    %c0_i32 = arith.constant 0 : i32
    %c0_i32_0 = arith.constant 0 : i32
    %c0_i32_1 = arith.constant 0 : i32
    return %c0_i32, %c0_i32_0 : i32, i32
  }
  func.func @transform_5(%arg0: i32) -> (i32, i32) {
    %c0_i32 = arith.constant 0 : i32
    %c0_i32_0 = arith.constant 0 : i32
    %c0_i32_1 = arith.constant 0 : i32
    return %c0_i32, %c0_i32_0 : i32, i32
  }
  func.func @transform_6(%arg0: i32) -> (i32, i32) {
    %c0_i32 = arith.constant 0 : i32
    %c0_i32_0 = arith.constant 0 : i32
    %c0_i32_1 = arith.constant 0 : i32
    return %c0_i32, %c0_i32_0 : i32, i32
  }
  func.func @transform_7(%arg0: i32) -> (i32, i32) {
    %c0_i32 = arith.constant 0 : i32
    %c0_i32_0 = arith.constant 0 : i32
    return %arg0, %c0_i32 : i32, i32
  }
}

module attributes {stable_mosaic.version = 11 : i64} {
  func.func @_mlp_chain_kernel(%arg0: i32, %arg1: memref<256x128xbf16, #tpu.memory_space<vmem>>, %arg2: memref<256x128xbf16, #tpu.memory_space<vmem>>, %arg3: memref<128x128xbf16, #tpu.memory_space<vmem>>, %arg4: memref<128x128xbf16, #tpu.memory_space<vmem>>, %arg5: memref<1x128xf32, #tpu.memory_space<vmem>>, %arg6: memref<128x128xbf16, #tpu.memory_space<vmem>>, %arg7: memref<1x128xf32, #tpu.memory_space<vmem>>, %arg8: memref<256x128xbf16, #tpu.memory_space<vmem>>) attributes {dimension_semantics = [#tpu.dimension_semantics<parallel>], iteration_bounds = array<i64: 1>, scalar_prefetch = 0 : i64, scratch_operands = 0 : i64, tpu.core_type = #tpu.core_type<tc>, window_params = [{transform_indices = @transform_0, window_bounds = array<i64: 256, 128>}, {transform_indices = @transform_1, window_bounds = array<i64: 256, 128>}, {pipeline_mode = #tpu.pipeline_mode<synchronous>, transform_indices = @transform_2, window_bounds = array<i64: 128, 128>}, {pipeline_mode = #tpu.pipeline_mode<synchronous>, transform_indices = @transform_3, window_bounds = array<i64: 128, 128>}, {pipeline_mode = #tpu.pipeline_mode<synchronous>, transform_indices = @transform_4, window_bounds = array<i64: 1, 128>}, {pipeline_mode = #tpu.pipeline_mode<synchronous>, transform_indices = @transform_5, window_bounds = array<i64: 128, 128>}, {pipeline_mode = #tpu.pipeline_mode<synchronous>, transform_indices = @transform_6, window_bounds = array<i64: 1, 128>}, {transform_indices = @transform_7, window_bounds = array<i64: 256, 128>}]} {
    %c0 = arith.constant 0 : index
    %c0_0 = arith.constant 0 : index
    %0 = vector.load %arg1[%c0, %c0_0] : memref<256x128xbf16, #tpu.memory_space<vmem>>, vector<256x128xbf16>
    %c0_1 = arith.constant 0 : index
    %c0_2 = arith.constant 0 : index
    %1 = vector.load %arg3[%c0_1, %c0_2] : memref<128x128xbf16, #tpu.memory_space<vmem>>, vector<128x128xbf16>
    %cst = arith.constant dense<0.000000e+00> : vector<256x128xf32>
    %2 = tpu.matmul %0, %1, %cst {dimension_numbers = #tpu.dot_dimension_numbers<[1], [0], [0], [1], [0, 0, 1, 1], [], []>} : vector<256x128xbf16>, vector<128x128xbf16>, vector<256x128xf32> -> vector<256x128xf32>
    %c0_3 = arith.constant 0 : index
    %c0_4 = arith.constant 0 : index
    %3 = vector.load %arg2[%c0_3, %c0_4] : memref<256x128xbf16, #tpu.memory_space<vmem>>, vector<256x128xbf16>
    %c0_5 = arith.constant 0 : index
    %c0_6 = arith.constant 0 : index
    %4 = vector.load %arg4[%c0_5, %c0_6] : memref<128x128xbf16, #tpu.memory_space<vmem>>, vector<128x128xbf16>
    %cst_7 = arith.constant dense<0.000000e+00> : vector<256x128xf32>
    %5 = tpu.matmul %3, %4, %cst_7 {dimension_numbers = #tpu.dot_dimension_numbers<[1], [0], [0], [1], [0, 0, 1, 1], [], []>} : vector<256x128xbf16>, vector<128x128xbf16>, vector<256x128xf32> -> vector<256x128xf32>
    %6 = arith.addf %2, %5 : vector<256x128xf32>
    %c0_8 = arith.constant 0 : index
    %c0_9 = arith.constant 0 : index
    %7 = vector.load %arg5[%c0_8, %c0_9] : memref<1x128xf32, #tpu.memory_space<vmem>>, vector<1x128xf32>
    %8 = vector.broadcast %7 : vector<1x128xf32> to vector<256x128xf32>
    %9 = arith.addf %6, %8 : vector<256x128xf32>
    %cst_10 = arith.constant 0.000000e+00 : f32
    %10 = vector.broadcast %cst_10 : f32 to vector<256x128xf32>
    %11 = arith.maximumf %9, %10 : vector<256x128xf32>
    %12 = arith.truncf %11 : vector<256x128xf32> to vector<256x128xbf16>
    %c0_11 = arith.constant 0 : index
    %c0_12 = arith.constant 0 : index
    %13 = vector.load %arg6[%c0_11, %c0_12] : memref<128x128xbf16, #tpu.memory_space<vmem>>, vector<128x128xbf16>
    %cst_13 = arith.constant dense<0.000000e+00> : vector<256x128xf32>
    %14 = tpu.matmul %12, %13, %cst_13 {dimension_numbers = #tpu.dot_dimension_numbers<[1], [0], [0], [1], [0, 0, 1, 1], [], []>} : vector<256x128xbf16>, vector<128x128xbf16>, vector<256x128xf32> -> vector<256x128xf32>
    %c0_14 = arith.constant 0 : index
    %c0_15 = arith.constant 0 : index
    %15 = vector.load %arg7[%c0_14, %c0_15] : memref<1x128xf32, #tpu.memory_space<vmem>>, vector<1x128xf32>
    %16 = vector.broadcast %15 : vector<1x128xf32> to vector<256x128xf32>
    %17 = arith.addf %14, %16 : vector<256x128xf32>
    %cst_16 = arith.constant 0.000000e+00 : f32
    %18 = vector.broadcast %cst_16 : f32 to vector<256x128xf32>
    %19 = arith.maximumf %17, %18 : vector<256x128xf32>
    %20 = arith.truncf %19 : vector<256x128xf32> to vector<256x128xbf16>
    %c0_17 = arith.constant 0 : index
    %c0_18 = arith.constant 0 : index
    %21 = vector.load %arg8[%c0_17, %c0_18] : memref<256x128xbf16, #tpu.memory_space<vmem>>, vector<256x128xbf16>
    tpu.vector_store %arg8[%c0_17, %c0_18], %20 {strides = array<i32>} : memref<256x128xbf16, #tpu.memory_space<vmem>>, vector<256x128xbf16>,
    return
  }
  func.func @transform_0(%arg0: i32) -> (i32, i32) {
    %c0_i32 = arith.constant 0 : i32
    %c0_i32_0 = arith.constant 0 : i32
    return %arg0, %c0_i32 : i32, i32
  }
  func.func @transform_1(%arg0: i32) -> (i32, i32) {
    %c0_i32 = arith.constant 0 : i32
    %c0_i32_0 = arith.constant 0 : i32
    return %arg0, %c0_i32 : i32, i32
  }
  func.func @transform_2(%arg0: i32) -> (i32, i32) {
    %c0_i32 = arith.constant 0 : i32
    %c0_i32_0 = arith.constant 0 : i32
    %c0_i32_1 = arith.constant 0 : i32
    return %c0_i32, %c0_i32_0 : i32, i32
  }
  func.func @transform_3(%arg0: i32) -> (i32, i32) {
    %c0_i32 = arith.constant 0 : i32
    %c0_i32_0 = arith.constant 0 : i32
    %c0_i32_1 = arith.constant 0 : i32
    return %c0_i32, %c0_i32_0 : i32, i32
  }
  func.func @transform_4(%arg0: i32) -> (i32, i32) {
    %c0_i32 = arith.constant 0 : i32
    %c0_i32_0 = arith.constant 0 : i32
    %c0_i32_1 = arith.constant 0 : i32
    return %c0_i32, %c0_i32_0 : i32, i32
  }
  func.func @transform_5(%arg0: i32) -> (i32, i32) {
    %c0_i32 = arith.constant 0 : i32
    %c0_i32_0 = arith.constant 0 : i32
    %c0_i32_1 = arith.constant 0 : i32
    return %c0_i32, %c0_i32_0 : i32, i32
  }
  func.func @transform_6(%arg0: i32) -> (i32, i32) {
    %c0_i32 = arith.constant 0 : i32
    %c0_i32_0 = arith.constant 0 : i32
    %c0_i32_1 = arith.constant 0 : i32
    return %c0_i32, %c0_i32_0 : i32, i32
  }
  func.func @transform_7(%arg0: i32) -> (i32, i32) {
    %c0_i32 = arith.constant 0 : i32
    %c0_i32_0 = arith.constant 0 : i32
    return %arg0, %c0_i32 : i32, i32
  }
}

module attributes {stable_mosaic.version = 11 : i64} {
  func.func @_mlp_chain_kernel(%arg0: i32, %arg1: memref<256x128xbf16, #tpu.memory_space<vmem>>, %arg2: memref<128x128xbf16, #tpu.memory_space<vmem>>, %arg3: memref<1x128xf32, #tpu.memory_space<vmem>>, %arg4: memref<128x128xbf16, #tpu.memory_space<vmem>>, %arg5: memref<1x128xf32, #tpu.memory_space<vmem>>, %arg6: memref<256x128xf32, #tpu.memory_space<vmem>>) attributes {dimension_semantics = [#tpu.dimension_semantics<parallel>], iteration_bounds = array<i64: 1>, scalar_prefetch = 0 : i64, scratch_operands = 0 : i64, tpu.core_type = #tpu.core_type<tc>, window_params = [{transform_indices = @transform_0, window_bounds = array<i64: 256, 128>}, {pipeline_mode = #tpu.pipeline_mode<synchronous>, transform_indices = @transform_1, window_bounds = array<i64: 128, 128>}, {pipeline_mode = #tpu.pipeline_mode<synchronous>, transform_indices = @transform_2, window_bounds = array<i64: 1, 128>}, {pipeline_mode = #tpu.pipeline_mode<synchronous>, transform_indices = @transform_3, window_bounds = array<i64: 128, 128>}, {pipeline_mode = #tpu.pipeline_mode<synchronous>, transform_indices = @transform_4, window_bounds = array<i64: 1, 128>}, {transform_indices = @transform_5, window_bounds = array<i64: 256, 128>}]} {
    %c0 = arith.constant 0 : index
    %c0_0 = arith.constant 0 : index
    %0 = vector.load %arg1[%c0, %c0_0] : memref<256x128xbf16, #tpu.memory_space<vmem>>, vector<256x128xbf16>
    %c0_1 = arith.constant 0 : index
    %c0_2 = arith.constant 0 : index
    %1 = vector.load %arg2[%c0_1, %c0_2] : memref<128x128xbf16, #tpu.memory_space<vmem>>, vector<128x128xbf16>
    %cst = arith.constant dense<0.000000e+00> : vector<256x128xf32>
    %2 = tpu.matmul %0, %1, %cst {dimension_numbers = #tpu.dot_dimension_numbers<[1], [0], [0], [1], [0, 0, 1, 1], [], []>} : vector<256x128xbf16>, vector<128x128xbf16>, vector<256x128xf32> -> vector<256x128xf32>
    %c0_3 = arith.constant 0 : index
    %c0_4 = arith.constant 0 : index
    %3 = vector.load %arg3[%c0_3, %c0_4] : memref<1x128xf32, #tpu.memory_space<vmem>>, vector<1x128xf32>
    %4 = vector.broadcast %3 : vector<1x128xf32> to vector<256x128xf32>
    %5 = arith.addf %2, %4 : vector<256x128xf32>
    %cst_5 = arith.constant 0.000000e+00 : f32
    %6 = vector.broadcast %cst_5 : f32 to vector<256x128xf32>
    %7 = arith.maximumf %5, %6 : vector<256x128xf32>
    %8 = arith.truncf %7 : vector<256x128xf32> to vector<256x128xbf16>
    %c0_6 = arith.constant 0 : index
    %c0_7 = arith.constant 0 : index
    %9 = vector.load %arg4[%c0_6, %c0_7] : memref<128x128xbf16, #tpu.memory_space<vmem>>, vector<128x128xbf16>
    %cst_8 = arith.constant dense<0.000000e+00> : vector<256x128xf32>
    %10 = tpu.matmul %8, %9, %cst_8 {dimension_numbers = #tpu.dot_dimension_numbers<[1], [0], [0], [1], [0, 0, 1, 1], [], []>} : vector<256x128xbf16>, vector<128x128xbf16>, vector<256x128xf32> -> vector<256x128xf32>
    %c0_9 = arith.constant 0 : index
    %c0_10 = arith.constant 0 : index
    %11 = vector.load %arg5[%c0_9, %c0_10] : memref<1x128xf32, #tpu.memory_space<vmem>>, vector<1x128xf32>
    %12 = vector.broadcast %11 : vector<1x128xf32> to vector<256x128xf32>
    %13 = arith.addf %10, %12 : vector<256x128xf32>
    %c0_11 = arith.constant 0 : index
    %c0_12 = arith.constant 0 : index
    %14 = vector.load %arg6[%c0_11, %c0_12] : memref<256x128xf32, #tpu.memory_space<vmem>>, vector<256x128xf32>
    tpu.vector_store %arg6[%c0_11, %c0_12], %13 {strides = array<i32>} : memref<256x128xf32, #tpu.memory_space<vmem>>, vector<256x128xf32>,
    return
  }
  func.func @transform_0(%arg0: i32) -> (i32, i32) {
    %c0_i32 = arith.constant 0 : i32
    %c0_i32_0 = arith.constant 0 : i32
    return %arg0, %c0_i32 : i32, i32
  }
  func.func @transform_1(%arg0: i32) -> (i32, i32) {
    %c0_i32 = arith.constant 0 : i32
    %c0_i32_0 = arith.constant 0 : i32
    %c0_i32_1 = arith.constant 0 : i32
    return %c0_i32, %c0_i32_0 : i32, i32
  }
  func.func @transform_2(%arg0: i32) -> (i32, i32) {
    %c0_i32 = arith.constant 0 : i32
    %c0_i32_0 = arith.constant 0 : i32
    %c0_i32_1 = arith.constant 0 : i32
    return %c0_i32, %c0_i32_0 : i32, i32
  }
  func.func @transform_3(%arg0: i32) -> (i32, i32) {
    %c0_i32 = arith.constant 0 : i32
    %c0_i32_0 = arith.constant 0 : i32
    %c0_i32_1 = arith.constant 0 : i32
    return %c0_i32, %c0_i32_0 : i32, i32
  }
  func.func @transform_4(%arg0: i32) -> (i32, i32) {
    %c0_i32 = arith.constant 0 : i32
    %c0_i32_0 = arith.constant 0 : i32
    %c0_i32_1 = arith.constant 0 : i32
    return %c0_i32, %c0_i32_0 : i32, i32
  }
  func.func @transform_5(%arg0: i32) -> (i32, i32) {
    %c0_i32 = arith.constant 0 : i32
    %c0_i32_0 = arith.constant 0 : i32
    return %arg0, %c0_i32 : i32, i32
  }
}

</mosaic_0001>

<llo_original>
// kernel: _lambda_.6
$region0: #{_lambda_.6}
  #allocation0 [shape = 'u32[]', space=smem, size = 0x4, offset = 0x4, fixed_abs, tag = 'smem constant byte address 0x4 - core index']
  #allocation1 [shape = 'u32[144,128]{1,0:T(1,128)}', space=vmem, size = 0x12000, scoped, tag = 'internal scratch']
  %s0 = inlined_call_operand.vmem [shape: bf16[256,8], index: 0, kind: input, shape index: {}]
  %s1 = inlined_call_operand.vmem [shape: bf16[8,128], index: 1, kind: input, shape index: {}]
  %s2 = inlined_call_operand.vmem [shape: f32[1,128], index: 2, kind: input, shape index: {}]
  %s3 = inlined_call_operand.vmem [shape: bf16[256,128], index: 3, kind: output, shape index: {}]
  %s4 = sld [smem:[#allocation0]]
  $region22: #{_lambda_.6} parent=0
    _
  %s6 = ssub.s32 1, %s4
  %s7 = scalar_select 0, %s6, %s4
  // Predicated region
  $region2: #{_lambda_.6} parent=0 // pred_check
    _
  $region3: #{_lambda_.6} parent=0 // pred_check_branch
    %9 = sbr.rel (0) target = $region5
  $region4: #{_lambda_.6} parent=0 // pred_region
    _
  $region5: #{_lambda_.6} parent=0 // pred_fallthru
    _
  // Predicated region
  $region6: #{_lambda_.6} parent=0 // pred_check
    _
  $region7: #{_lambda_.6} parent=0 // pred_check_branch
    %11 = sbr.rel (0) target = $region9
  $region8: #{_lambda_.6} parent=0 // pred_region
    _
  $region9: #{_lambda_.6} parent=0 // pred_fallthru
    _
  // Predicated region
  $region10: #{_lambda_.6} parent=0 // pred_check
    _
  $region11: #{_lambda_.6} parent=0 // pred_check_branch
    %13 = sbr.rel (0) target = $region13
  $region12: #{_lambda_.6} parent=0 // pred_region
    _
  $region13: #{_lambda_.6} parent=0 // pred_fallthru
    _
  %v15 = vld [vmem:[%s0] sm:$0xf]
  %v16 = vld [vmem:[%s0 + $0x4] sm:$0xf]
  %v17 = vld [vmem:[%s0 + $0x8] sm:$0xf]
  %v18 = vld [vmem:[%s0 + $0xc] sm:$0xf]
  %v19 = vld [vmem:[%s0 + $0x10] sm:$0xf]
  %v20 = vld [vmem:[%s0 + $0x14] sm:$0xf]
  %v21 = vld [vmem:[%s0 + $0x18] sm:$0xf]
  %v22 = vld [vmem:[%s0 + $0x1c] sm:$0xf]
  %v23 = vld [vmem:[%s0 + $0x20] sm:$0xf]
  %v24 = vld [vmem:[%s0 + $0x24] sm:$0xf]
  %v25 = vld [vmem:[%s0 + $0x28] sm:$0xf]
  %v26 = vld [vmem:[%s0 + $0x2c] sm:$0xf]
  %v27 = vld [vmem:[%s0 + $0x30] sm:$0xf]
  %v28 = vld [vmem:[%s0 + $0x34] sm:$0xf]
  %v29 = vld [vmem:[%s0 + $0x38] sm:$0xf]
  %v30 = vld [vmem:[%s0 + $0x3c] sm:$0xf]
  %v31 = vld [vmem:[%s0 + $0x40] sm:$0xf]
  %v32 = vld [vmem:[%s0 + $0x44] sm:$0xf]
  %v33 = vld [vmem:[%s0 + $0x48] sm:$0xf]
  %v34 = vld [vmem:[%s0 + $0x4c] sm:$0xf]
  %v35 = vld [vmem:[%s0 + $0x50] sm:$0xf]
  %v36 = vld [vmem:[%s0 + $0x54] sm:$0xf]
  %v37 = vld [vmem:[%s0 + $0x58] sm:$0xf]
  %v38 = vld [vmem:[%s0 + $0x5c] sm:$0xf]
  %v39 = vld [vmem:[%s0 + $0x60] sm:$0xf]
  %v40 = vld [vmem:[%s0 + $0x64] sm:$0xf]
  %v41 = vld [vmem:[%s0 + $0x68] sm:$0xf]
  %v42 = vld [vmem:[%s0 + $0x6c] sm:$0xf]
  %v43 = vld [vmem:[%s0 + $0x70] sm:$0xf]
  %v44 = vld [vmem:[%s0 + $0x74] sm:$0xf]
  %v45 = vld [vmem:[%s0 + $0x78] sm:$0xf]
  %v46 = vld [vmem:[%s0 + $0x7c] sm:$0xf]
  %v47 = vld [vmem:[%s1] sm:$0xf]
  %v48 = vld [vmem:[%s2] sm:$0x1]
  %v50 = vlaneseq
  %v51 = vshrl.u32 %v50, 7
  %v52 = vsub.s32 0, %v51
  %v53 = vrot.slane %v48, %v52
  %v87 = vunpack.c.l.b16 %v15
  %v88 = vunpack.c.l.b16 %v16
  %v89 = vunpack.c.l.b16 %v17
  %v90 = vunpack.c.l.b16 %v18
  %v91 = vunpack.c.l.b16 %v19
  %v92 = vunpack.c.l.b16 %v20
  %v93 = vunpack.c.l.b16 %v21
  %v94 = vunpack.c.l.b16 %v22
  %v95 = vunpack.c.l.b16 %v23
  %v96 = vunpack.c.l.b16 %v24
  %v97 = vunpack.c.l.b16 %v25
  %v98 = vunpack.c.l.b16 %v26
  %v99 = vunpack.c.l.b16 %v27
  %v100 = vunpack.c.l.b16 %v28
  %v101 = vunpack.c.l.b16 %v29
  %v102 = vunpack.c.l.b16 %v30
  %v103 = vunpack.c.l.b16 %v31
  %v104 = vunpack.c.l.b16 %v32
  %v105 = vunpack.c.l.b16 %v33
  %v106 = vunpack.c.l.b16 %v34
  %v107 = vunpack.c.l.b16 %v35
  %v108 = vunpack.c.l.b16 %v36
  %v109 = vunpack.c.l.b16 %v37
  %v110 = vunpack.c.l.b16 %v38
  %v111 = vunpack.c.l.b16 %v39
  %v112 = vunpack.c.l.b16 %v40
  %v113 = vunpack.c.l.b16 %v41
  %v114 = vunpack.c.l.b16 %v42
  %v115 = vunpack.c.l.b16 %v43
  %v116 = vunpack.c.l.b16 %v44
  %v117 = vunpack.c.l.b16 %v45
  %v118 = vunpack.c.l.b16 %v46
  %v119 = vpack.c.b16 %v88, %v87
  %v120 = vpack.c.b16 %v90, %v89
  %v121 = vpack.c.b16 %v92, %v91
  %v122 = vpack.c.b16 %v94, %v93
  %v123 = vpack.c.b16 %v96, %v95
  %v124 = vpack.c.b16 %v98, %v97
  %v125 = vpack.c.b16 %v100, %v99
  %v126 = vpack.c.b16 %v102, %v101
  %v127 = vpack.c.b16 %v104, %v103
  %v128 = vpack.c.b16 %v106, %v105
  %v129 = vpack.c.b16 %v108, %v107
  %v130 = vpack.c.b16 %v110, %v109
  %v131 = vpack.c.b16 %v112, %v111
  %v132 = vpack.c.b16 %v114, %v113
  %v133 = vpack.c.b16 %v116, %v115
  %v134 = vpack.c.b16 %v118, %v117
  %vm135 = vcmask 64512
  %v137 = vsel %vm135, %v119, 0
  %v140 = vsel %vm135, %v120, 0
  %v143 = vsel %vm135, %v121, 0
  %v146 = vsel %vm135, %v122, 0
  %v149 = vsel %vm135, %v123, 0
  %v152 = vsel %vm135, %v124, 0
  %v155 = vsel %vm135, %v125, 0
  %v158 = vsel %vm135, %v126, 0
  %v161 = vsel %vm135, %v127, 0
  %v164 = vsel %vm135, %v128, 0
  %v167 = vsel %vm135, %v129, 0
  %v170 = vsel %vm135, %v130, 0
  %v173 = vsel %vm135, %v131, 0
  %v176 = vsel %vm135, %v132, 0
  %v179 = vsel %vm135, %v133, 0
  %v182 = vsel %vm135, %v134, 0
  %vm184 = vcmask 1043456
  %v186 = vsel %vm184, %v47, 0
  %188 = vmatprep.subr.bf16.mxu0 0
  %189 = vmatpush1.bf16.msra.mxu0 %v186
  %190 = vmatprep.subr.bf16.mxu0 0
  %191 = vmatpush1.bf16.msra.mxu0 0
  %192 = vmatprep.subr.bf16.mxu0 0
  %193 = vmatpush1.bf16.msra.mxu0 0
  %194 = vmatprep.subr.bf16.mxu0 0
  %195 = vmatpush1.bf16.msra.mxu0 0
  %196 = vmatprep.subr.bf16.mxu0 0
  %197 = vmatpush1.bf16.msra.mxu0 0
  %198 = vmatprep.subr.bf16.mxu0 0
  %199 = vmatpush1.bf16.msra.mxu0 0
  %200 = vmatprep.subr.bf16.mxu0 0
  %201 = vmatpush1.bf16.msra.mxu0 0
  %202 = vmatprep.subr.bf16.mxu0 0
  %203 = vmatpush1.bf16.msra.mxu0 0
  %204 = vmatprep.subr.bf16.mxu0 0
  %205 = vmatpush1.bf16.msra.mxu0 0
  %206 = vmatprep.subr.bf16.mxu0 0
  %207 = vmatpush1.bf16.msra.mxu0 0
  %208 = vmatprep.subr.bf16.mxu0 0
  %209 = vmatpush1.bf16.msra.mxu0 0
  %210 = vmatprep.subr.bf16.mxu0 0
  %211 = vmatpush1.bf16.msra.mxu0 0
  %212 = vmatprep.subr.bf16.mxu0 0
  %213 = vmatpush1.bf16.msra.mxu0 0
  %214 = vmatprep.subr.bf16.mxu0 0
  %215 = vmatpush1.bf16.msra.mxu0 0
  %216 = vmatprep.subr.bf16.mxu0 0
  %217 = vmatpush1.bf16.msra.mxu0 0
  %218 = vmatprep.subr.bf16.mxu0 0
  %219 = vmatpush1.bf16.msra.mxu0 0
  %220 = vmatprep.mubr.bf16.mxu0 0
  %221 = vmatmul.mubr.bf16.gmra.mrb[0].mxu0 %v137
  %v222 = vpop.f32.mrb[0].mxu0
  %v223 = vadd.f32 %v53, %v222
  %v224 = vpop.f32.mrb[0].mxu0
  %v225 = vpop.f32.mrb[0].mxu0
  %v226 = vadd.f32 %v53, %v225
  %v227 = vpop.f32.mrb[0].mxu0
  %228 = vmatprep.mubr.bf16.mxu0 0
  %229 = vmatmul.mubr.bf16.gmra.mrb[0].mxu0 %v140
  %v230 = vpop.f32.mrb[0].mxu0
  %v231 = vadd.f32 %v53, %v230
  %v232 = vpop.f32.mrb[0].mxu0
  %v233 = vpop.f32.mrb[0].mxu0
  %v234 = vadd.f32 %v53, %v233
  %v235 = vpop.f32.mrb[0].mxu0
  %236 = vmatprep.mubr.bf16.mxu0 0
  %237 = vmatmul.mubr.bf16.gmra.mrb[0].mxu0 %v143
  %v238 = vpop.f32.mrb[0].mxu0
  %v239 = vadd.f32 %v53, %v238
  %v240 = vpop.f32.mrb[0].mxu0
  %v241 = vpop.f32.mrb[0].mxu0
  %v242 = vadd.f32 %v53, %v241
  %v243 = vpop.f32.mrb[0].mxu0
  %244 = vmatprep.mubr.bf16.mxu0 0
  %245 = vmatmul.mubr.bf16.gmra.mrb[0].mxu0 %v146
  %v246 = vpop.f32.mrb[0].mxu0
  %v247 = vadd.f32 %v53, %v246
  %v248 = vpop.f32.mrb[0].mxu0
  %v249 = vpop.f32.mrb[0].mxu0
  %v250 = vadd.f32 %v53, %v249
  %v251 = vpop.f32.mrb[0].mxu0
  %252 = vmatprep.mubr.bf16.mxu0 0
  %253 = vmatmul.mubr.bf16.gmra.mrb[0].mxu0 %v149
  %v254 = vpop.f32.mrb[0].mxu0
  %v255 = vadd.f32 %v53, %v254
  %v256 = vpop.f32.mrb[0].mxu0
  %v257 = vpop.f32.mrb[0].mxu0
  %v258 = vadd.f32 %v53, %v257
  %v259 = vpop.f32.mrb[0].mxu0
  %260 = vmatprep.mubr.bf16.mxu0 0
  %261 = vmatmul.mubr.bf16.gmra.mrb[0].mxu0 %v152
  %v262 = vpop.f32.mrb[0].mxu0
  %v263 = vadd.f32 %v53, %v262
  %v264 = vpop.f32.mrb[0].mxu0
  %v265 = vpop.f32.mrb[0].mxu0
  %v266 = vadd.f32 %v53, %v265
  %v267 = vpop.f32.mrb[0].mxu0
  %268 = vmatprep.mubr.bf16.mxu0 0
  %269 = vmatmul.mubr.bf16.gmra.mrb[0].mxu0 %v155
  %v270 = vpop.f32.mrb[0].mxu0
  %v271 = vadd.f32 %v53, %v270
  %v272 = vpop.f32.mrb[0].mxu0
  %v273 = vpop.f32.mrb[0].mxu0
  %v274 = vadd.f32 %v53, %v273
  %v275 = vpop.f32.mrb[0].mxu0
  %276 = vmatprep.mubr.bf16.mxu0 0
  %277 = vmatmul.mubr.bf16.gmra.mrb[0].mxu0 %v158
  %v278 = vpop.f32.mrb[0].mxu0
  %v279 = vadd.f32 %v53, %v278
  %v280 = vpop.f32.mrb[0].mxu0
  %v281 = vpop.f32.mrb[0].mxu0
  %v282 = vadd.f32 %v53, %v281
  %v283 = vpop.f32.mrb[0].mxu0
  %284 = vmatprep.mubr.bf16.mxu0 0
  %285 = vmatmul.mubr.bf16.gmra.mrb[0].mxu0 %v161
  %v286 = vpop.f32.mrb[0].mxu0
  %v287 = vadd.f32 %v53, %v286
  %v288 = vpop.f32.mrb[0].mxu0
  %v289 = vpop.f32.mrb[0].mxu0
  %v290 = vadd.f32 %v53, %v289
  %v291 = vpop.f32.mrb[0].mxu0
  %292 = vmatprep.mubr.bf16.mxu0 0
  %293 = vmatmul.mubr.bf16.gmra.mrb[0].mxu0 %v164
  %v294 = vpop.f32.mrb[0].mxu0
  %v295 = vadd.f32 %v53, %v294
  %v296 = vpop.f32.mrb[0].mxu0
  %v297 = vpop.f32.mrb[0].mxu0
  %v298 = vadd.f32 %v53, %v297
  %v299 = vpop.f32.mrb[0].mxu0
  %300 = vmatprep.mubr.bf16.mxu0 0
  %301 = vmatmul.mubr.bf16.gmra.mrb[0].mxu0 %v167
  %v302 = vpop.f32.mrb[0].mxu0
  %v303 = vadd.f32 %v53, %v302
  %v304 = vpop.f32.mrb[0].mxu0
  %v305 = vpop.f32.mrb[0].mxu0
  %v306 = vadd.f32 %v53, %v305
  %v307 = vpop.f32.mrb[0].mxu0
  %308 = vmatprep.mubr.bf16.mxu0 0
  %309 = vmatmul.mubr.bf16.gmra.mrb[0].mxu0 %v170
  %v310 = vpop.f32.mrb[0].mxu0
  %v311 = vadd.f32 %v53, %v310
  %v312 = vpop.f32.mrb[0].mxu0
  %v313 = vpop.f32.mrb[0].mxu0
  %v314 = vadd.f32 %v53, %v313
  %v315 = vpop.f32.mrb[0].mxu0
  %316 = vmatprep.mubr.bf16.mxu0 0
  %317 = vmatmul.mubr.bf16.gmra.mrb[0].mxu0 %v173
  %v318 = vpop.f32.mrb[0].mxu0
  %v319 = vadd.f32 %v53, %v318
  %v320 = vpop.f32.mrb[0].mxu0
  %v321 = vpop.f32.mrb[0].mxu0
  %v322 = vadd.f32 %v53, %v321
  %v323 = vpop.f32.mrb[0].mxu0
  %324 = vmatprep.mubr.bf16.mxu0 0
  %325 = vmatmul.mubr.bf16.gmra.mrb[0].mxu0 %v176
  %v326 = vpop.f32.mrb[0].mxu0
  %v327 = vadd.f32 %v53, %v326
  %v328 = vpop.f32.mrb[0].mxu0
  %v329 = vpop.f32.mrb[0].mxu0
  %v330 = vadd.f32 %v53, %v329
  %v331 = vpop.f32.mrb[0].mxu0
  %332 = vmatprep.mubr.bf16.mxu0 0
  %333 = vmatmul.mubr.bf16.gmra.mrb[0].mxu0 %v179
  %v334 = vpop.f32.mrb[0].mxu0
  %v335 = vadd.f32 %v53, %v334
  %v336 = vpop.f32.mrb[0].mxu0
  %v337 = vpop.f32.mrb[0].mxu0
  %v338 = vadd.f32 %v53, %v337
  %v339 = vpop.f32.mrb[0].mxu0
  %340 = vmatprep.mubr.bf16.mxu0 0
  %341 = vmatmul.mubr.bf16.gmra.mrb[0].mxu0 %v182
  %v342 = vpop.f32.mrb[0].mxu0
  %v343 = vadd.f32 %v53, %v342
  %v344 = vpop.f32.mrb[0].mxu0
  %v345 = vpop.f32.mrb[0].mxu0
  %v346 = vadd.f32 %v53, %v345
  %v347 = vpop.f32.mrb[0].mxu0
  %348 = vdwg.mxu0
  %v349 = vpack.c.bf16 %v226, %v223
  %v350 = vpack.c.bf16 %v234, %v231
  %v351 = vpack.c.bf16 %v242, %v239
  %v352 = vpack.c.bf16 %v250, %v247
  %v353 = vpack.c.bf16 %v258, %v255
  %v354 = vpack.c.bf16 %v266, %v263
  %v355 = vpack.c.bf16 %v274, %v271
  %v356 = vpack.c.bf16 %v282, %v279
  %v357 = vpack.c.bf16 %v290, %v287
  %v358 = vpack.c.bf16 %v298, %v295
  %v359 = vpack.c.bf16 %v306, %v303
  %v360 = vpack.c.bf16 %v314, %v311
  %v361 = vpack.c.bf16 %v322, %v319
  %v362 = vpack.c.bf16 %v330, %v327
  %v363 = vpack.c.bf16 %v338, %v335
  %v364 = vpack.c.bf16 %v346, %v343
  %v381 = vunpack.c.l.b16 %v349
  %v382 = vunpack.c.h.b16 %v349
  %v383 = vunpack.c.l.b16 %v350
  %v384 = vunpack.c.h.b16 %v350
  %v385 = vunpack.c.l.b16 %v351
  %v386 = vunpack.c.h.b16 %v351
  %v387 = vunpack.c.l.b16 %v352
  %v388 = vunpack.c.h.b16 %v352
  %v389 = vunpack.c.l.b16 %v353
  %v390 = vunpack.c.h.b16 %v353
  %v391 = vunpack.c.l.b16 %v354
  %v392 = vunpack.c.h.b16 %v354
  %v393 = vunpack.c.l.b16 %v355
  %v394 = vunpack.c.h.b16 %v355
  %v395 = vunpack.c.l.b16 %v356
  %v396 = vunpack.c.h.b16 %v356
  %v397 = vunpack.c.l.b16 %v357
  %v398 = vunpack.c.h.b16 %v357
  %v399 = vunpack.c.l.b16 %v358
  %v400 = vunpack.c.h.b16 %v358
  %v401 = vunpack.c.l.b16 %v359
  %v402 = vunpack.c.h.b16 %v359
  %v403 = vunpack.c.l.b16 %v360
  %v404 = vunpack.c.h.b16 %v360
  %v405 = vunpack.c.l.b16 %v361
  %v406 = vunpack.c.h.b16 %v361
  %v407 = vunpack.c.l.b16 %v362
  %v408 = vunpack.c.h.b16 %v362
  %v409 = vunpack.c.l.b16 %v363
  %v410 = vunpack.c.h.b16 %v363
  %v411 = vunpack.c.l.b16 %v364
  %v412 = vunpack.c.h.b16 %v364
  %v413 = vpack.c.b16 %v381, %v381
  %v414 = vpack.c.b16 %v382, %v382
  %v415 = vpack.c.b16 %v383, %v383
  %v416 = vpack.c.b16 %v384, %v384
  %v417 = vpack.c.b16 %v385, %v385
  %v418 = vpack.c.b16 %v386, %v386
  %v419 = vpack.c.b16 %v387, %v387
  %v420 = vpack.c.b16 %v388, %v388
  %v421 = vpack.c.b16 %v389, %v389
  %v422 = vpack.c.b16 %v390, %v390
  %v423 = vpack.c.b16 %v391, %v391
  %v424 = vpack.c.b16 %v392, %v392
  %v425 = vpack.c.b16 %v393, %v393
  %v426 = vpack.c.b16 %v394, %v394
  %v427 = vpack.c.b16 %v395, %v395
  %v428 = vpack.c.b16 %v396, %v396
  %v429 = vpack.c.b16 %v397, %v397
  %v430 = vpack.c.b16 %v398, %v398
  %v431 = vpack.c.b16 %v399, %v399
  %v432 = vpack.c.b16 %v400, %v400
  %v433 = vpack.c.b16 %v401, %v401
  %v434 = vpack.c.b16 %v402, %v402
  %v435 = vpack.c.b16 %v403, %v403
  %v436 = vpack.c.b16 %v404, %v404
  %v437 = vpack.c.b16 %v405, %v405
  %v438 = vpack.c.b16 %v406, %v406
  %v439 = vpack.c.b16 %v407, %v407
  %v440 = vpack.c.b16 %v408, %v408
  %v441 = vpack.c.b16 %v409, %v409
  %v442 = vpack.c.b16 %v410, %v410
  %v443 = vpack.c.b16 %v411, %v411
  %v444 = vpack.c.b16 %v412, %v412
  %477 = vst [vmem:[%s3] sm:$0xf] %v413
  %478 = vst [vmem:[%s3 + $0x4] sm:$0xf] %v414
  %479 = vst [vmem:[%s3 + $0x8] sm:$0xf] %v415
  %480 = vst [vmem:[%s3 + $0xc] sm:$0xf] %v416
  %481 = vst [vmem:[%s3 + $0x10] sm:$0xf] %v417
  %482 = vst [vmem:[%s3 + $0x14] sm:$0xf] %v418
  %483 = vst [vmem:[%s3 + $0x18] sm:$0xf] %v419
  %484 = vst [vmem:[%s3 + $0x1c] sm:$0xf] %v420
  %485 = vst [vmem:[%s3 + $0x20] sm:$0xf] %v421
  %486 = vst [vmem:[%s3 + $0x24] sm:$0xf] %v422
  %487 = vst [vmem:[%s3 + $0x28] sm:$0xf] %v423
  %488 = vst [vmem:[%s3 + $0x2c] sm:$0xf] %v424
  %489 = vst [vmem:[%s3 + $0x30] sm:$0xf] %v425
  %490 = vst [vmem:[%s3 + $0x34] sm:$0xf] %v426
  %491 = vst [vmem:[%s3 + $0x38] sm:$0xf] %v427
  %492 = vst [vmem:[%s3 + $0x3c] sm:$0xf] %v428
  %493 = vst [vmem:[%s3 + $0x40] sm:$0xf] %v429
  %494 = vst [vmem:[%s3 + $0x44] sm:$0xf] %v430
  %495 = vst [vmem:[%s3 + $0x48] sm:$0xf] %v431
  %496 = vst [vmem:[%s3 + $0x4c] sm:$0xf] %v432
  %497 = vst [vmem:[%s3 + $0x50] sm:$0xf] %v433
  %498 = vst [vmem:[%s3 + $0x54] sm:$0xf] %v434
  %499 = vst [vmem:[%s3 + $0x58] sm:$0xf] %v435
  %500 = vst [vmem:[%s3 + $0x5c] sm:$0xf] %v436
  %501 = vst [vmem:[%s3 + $0x60] sm:$0xf] %v437
  %502 = vst [vmem:[%s3 + $0x64] sm:$0xf] %v438
  %503 = vst [vmem:[%s3 + $0x68] sm:$0xf] %v439
  %504 = vst [vmem:[%s3 + $0x6c] sm:$0xf] %v440
  %505 = vst [vmem:[%s3 + $0x70] sm:$0xf] %v441
  %506 = vst [vmem:[%s3 + $0x74] sm:$0xf] %v442
  %507 = vst [vmem:[%s3 + $0x78] sm:$0xf] %v443
  %508 = vst [vmem:[%s3 + $0x7c] sm:$0xf] %v444
  // Predicated region
  $region14: #{_lambda_.6} parent=0 // pred_check
    _
  $region15: #{_lambda_.6} parent=0 // pred_check_branch
    %510 = sbr.rel (0) target = $region17
  $region16: #{_lambda_.6} parent=0 // pred_region
    _
  $region17: #{_lambda_.6} parent=0 // pred_fallthru
    _
  // Predicated region
  $region18: #{_lambda_.6} parent=0 // pred_check
    _
  $region19: #{_lambda_.6} parent=0 // pred_check_branch
    %512 = sbr.rel (0) target = $region21
  $region20: #{_lambda_.6} parent=0 // pred_region
    _
  $region21: #{_lambda_.6} parent=0 // pred_fallthru
    _

// kernel: _lambda_.7
$region0: #{_lambda_.7}
  #allocation0 [shape = 'u32[]', space=smem, size = 0x4, offset = 0x4, fixed_abs, tag = 'smem constant byte address 0x4 - core index']
  #allocation1 [shape = 'u32[144,128]{1,0:T(1,128)}', space=vmem, size = 0x12000, scoped, tag = 'internal scratch']
  %s0 = inlined_call_operand.vmem [shape: bf16[1024,128], index: 0, kind: input, shape index: {}]
  %s1 = inlined_call_operand.vmem [shape: bf16[1024,8], index: 1, kind: input, shape index: {}]
  %s2 = inlined_call_operand.vmem [shape: bf16[128,128], index: 2, kind: input, shape index: {}]
  %s3 = inlined_call_operand.vmem [shape: bf16[8,128], index: 3, kind: input, shape index: {}]
  %s4 = inlined_call_operand.vmem [shape: f32[1,128], index: 4, kind: input, shape index: {}]
  %s5 = inlined_call_operand.vmem [shape: bf16[128,256], index: 5, kind: input, shape index: {}]
  %s6 = inlined_call_operand.vmem [shape: f32[1,256], index: 6, kind: input, shape index: {}]
  %s7 = inlined_call_operand.vmem [shape: bf16[256,128], index: 7, kind: input, shape index: {}]
  %s8 = inlined_call_operand.vmem [shape: f32[1,128], index: 8, kind: input, shape index: {}]
  %s9 = inlined_call_operand.vmem [shape: bf16[128,128], index: 9, kind: output, shape index: {}]
  %s10 = sld [smem:[#allocation0]]
  $region46: #{_lambda_.7} parent=0
    _
  %s12 = ssub.s32 1, %s10
  %s13 = scalar_select 0, %s12, %s10
  // Predicated region
  $region2: #{_lambda_.7} parent=0 // pred_check
    _
  $region3: #{_lambda_.7} parent=0 // pred_check_branch
    %15 = sbr.rel (0) target = $region5
  $region4: #{_lambda_.7} parent=0 // pred_region
    _
  $region5: #{_lambda_.7} parent=0 // pred_fallthru
    _
  // Predicated region
  $region6: #{_lambda_.7} parent=0 // pred_check
    _
  $region7: #{_lambda_.7} parent=0 // pred_check_branch
    %17 = sbr.rel (0) target = $region9
  $region8: #{_lambda_.7} parent=0 // pred_region
    _
  $region9: #{_lambda_.7} parent=0 // pred_fallthru
    _
  // Predicated region
  $region10: #{_lambda_.7} parent=0 // pred_check
    _
  $region11: #{_lambda_.7} parent=0 // pred_check_branch
    %19 = sbr.rel (0) target = $region13
  $region12: #{_lambda_.7} parent=0 // pred_region
    _
  $region13: #{_lambda_.7} parent=0 // pred_fallthru
    _
  // Predicated region
  $region14: #{_lambda_.7} parent=0 // pred_check
    _
  $region15: #{_lambda_.7} parent=0 // pred_check_branch
    %21 = sbr.rel (0) target = $region17
  $region16: #{_lambda_.7} parent=0 // pred_region
    _
  $region17: #{_lambda_.7} parent=0 // pred_fallthru
    _
  // Predicated region
  $region18: #{_lambda_.7} parent=0 // pred_check
    _
  $region19: #{_lambda_.7} parent=0 // pred_check_branch
    %23 = sbr.rel (0) target = $region21
  $region20: #{_lambda_.7} parent=0 // pred_region
    _
  $region21: #{_lambda_.7} parent=0 // pred_fallthru
    _
  // Predicated region
  $region22: #{_lambda_.7} parent=0 // pred_check
    _
  $region23: #{_lambda_.7} parent=0 // pred_check_branch
    %25 = sbr.rel (0) target = $region25
  $region24: #{_lambda_.7} parent=0 // pred_region
    _
  $region25: #{_lambda_.7} parent=0 // pred_fallthru
    _
  // Predicated region
  $region26: #{_lambda_.7} parent=0 // pred_check
    _
  $region27: #{_lambda_.7} parent=0 // pred_check_branch
    %27 = sbr.rel (0) target = $region29
  $region28: #{_lambda_.7} parent=0 // pred_region
    _
  $region29: #{_lambda_.7} parent=0 // pred_fallthru
    _
  // Predicated region
  $region30: #{_lambda_.7} parent=0 // pred_check
    _
  $region31: #{_lambda_.7} parent=0 // pred_check_branch
    %29 = sbr.rel (0) target = $region33
  $region32: #{_lambda_.7} parent=0 // pred_region
    _
  $region33: #{_lambda_.7} parent=0 // pred_fallthru
    _
  // Predicated region
  $region34: #{_lambda_.7} parent=0 // pred_check
    _
  $region35: #{_lambda_.7} parent=0 // pred_check_branch
    %31 = sbr.rel (0) target = $region37
  $region36: #{_lambda_.7} parent=0 // pred_region
    _
  $region37: #{_lambda_.7} parent=0 // pred_fallthru
    _
  %v33 = vld [vmem:[%s0] sm:$0xf]
  %v34 = vld [vmem:[%s0 + $0x4] sm:$0xf]
  %v35 = vld [vmem:[%s0 + $0x8] sm:$0xf]
  %v36 = vld [vmem:[%s0 + $0xc] sm:$0xf]
  %v37 = vld [vmem:[%s0 + $0x10] sm:$0xf]
  %v38 = vld [vmem:[%s0 + $0x14] sm:$0xf]
  %v39 = vld [vmem:[%s0 + $0x18] sm:$0xf]
  %v40 = vld [vmem:[%s0 + $0x1c] sm:$0xf]
  %v41 = vld [vmem:[%s0 + $0x20] sm:$0xf]
  %v42 = vld [vmem:[%s0 + $0x24] sm:$0xf]
  %v43 = vld [vmem:[%s0 + $0x28] sm:$0xf]
  %v44 = vld [vmem:[%s0 + $0x2c] sm:$0xf]
  %v45 = vld [vmem:[%s0 + $0x30] sm:$0xf]
  %v46 = vld [vmem:[%s0 + $0x34] sm:$0xf]
  %v47 = vld [vmem:[%s0 + $0x38] sm:$0xf]
  %v48 = vld [vmem:[%s0 + $0x3c] sm:$0xf]
  %v49 = vld [vmem:[%s0 + $0x40] sm:$0xf]
  %v50 = vld [vmem:[%s0 + $0x44] sm:$0xf]
  %v51 = vld [vmem:[%s0 + $0x48] sm:$0xf]
  %v52 = vld [vmem:[%s0 + $0x4c] sm:$0xf]
  %v53 = vld [vmem:[%s0 + $0x50] sm:$0xf]
  %v54 = vld [vmem:[%s0 + $0x54] sm:$0xf]
  %v55 = vld [vmem:[%s0 + $0x58] sm:$0xf]
  %v56 = vld [vmem:[%s0 + $0x5c] sm:$0xf]
  %v57 = vld [vmem:[%s0 + $0x60] sm:$0xf]
  %v58 = vld [vmem:[%s0 + $0x64] sm:$0xf]
  %v59 = vld [vmem:[%s0 + $0x68] sm:$0xf]
  %v60 = vld [vmem:[%s0 + $0x6c] sm:$0xf]
  %v61 = vld [vmem:[%s0 + $0x70] sm:$0xf]
  %v62 = vld [vmem:[%s0 + $0x74] sm:$0xf]
  %v63 = vld [vmem:[%s0 + $0x78] sm:$0xf]
  %v64 = vld [vmem:[%s0 + $0x7c] sm:$0xf]
  %v65 = vld [vmem:[%s0 + $0x80] sm:$0xf]
  %v66 = vld [vmem:[%s0 + $0x84] sm:$0xf]
  %v67 = vld [vmem:[%s0 + $0x88] sm:$0xf]
  %v68 = vld [vmem:[%s0 + $0x8c] sm:$0xf]
  %v69 = vld [vmem:[%s0 + $0x90] sm:$0xf]
  %v70 = vld [vmem:[%s0 + $0x94] sm:$0xf]
  %v71 = vld [vmem:[%s0 + $0x98] sm:$0xf]
  %v72 = vld [vmem:[%s0 + $0x9c] sm:$0xf]
  %v73 = vld [vmem:[%s0 + $0xa0] sm:$0xf]
  %v74 = vld [vmem:[%s0 + $0xa4] sm:$0xf]
  %v75 = vld [vmem:[%s0 + $0xa8] sm:$0xf]
  %v76 = vld [vmem:[%s0 + $0xac] sm:$0xf]
  %v77 = vld [vmem:[%s0 + $0xb0] sm:$0xf]
  %v78 = vld [vmem:[%s0 + $0xb4] sm:$0xf]
  %v79 = vld [vmem:[%s0 + $0xb8] sm:$0xf]
  %v80 = vld [vmem:[%s0 + $0xbc] sm:$0xf]
  %v81 = vld [vmem:[%s0 + $0xc0] sm:$0xf]
  %v82 = vld [vmem:[%s0 + $0xc4] sm:$0xf]
  %v83 = vld [vmem:[%s0 + $0xc8] sm:$0xf]
  %v84 = vld [vmem:[%s0 + $0xcc] sm:$0xf]
  %v85 = vld [vmem:[%s0 + $0xd0] sm:$0xf]
  %v86 = vld [vmem:[%s0 + $0xd4] sm:$0xf]
  %v87 = vld [vmem:[%s0 + $0xd8] sm:$0xf]
  %v88 = vld [vmem:[%s0 + $0xdc] sm:$0xf]
  %v89 = vld [vmem:[%s0 + $0xe0] sm:$0xf]
  %v90 = vld [vmem:[%s0 + $0xe4] sm:$0xf]
  %v91 = vld [vmem:[%s0 + $0xe8] sm:$0xf]
  %v92 = vld [vmem:[%s0 + $0xec] sm:$0xf]
  %v93 = vld [vmem:[%s0 + $0xf0] sm:$0xf]
  %v94 = vld [vmem:[%s0 + $0xf4] sm:$0xf]
  %v95 = vld [vmem:[%s0 + $0xf8] sm:$0xf]
  %v96 = vld [vmem:[%s0 + $0xfc] sm:$0xf]
  %v97 = vld [vmem:[%s0 + $0x100] sm:$0xf]
  %v98 = vld [vmem:[%s0 + $0x104] sm:$0xf]
  %v99 = vld [vmem:[%s0 + $0x108] sm:$0xf]
  %v100 = vld [vmem:[%s0 + $0x10c] sm:$0xf]
  %v101 = vld [vmem:[%s0 + $0x110] sm:$0xf]
  %v102 = vld [vmem:[%s0 + $0x114] sm:$0xf]
  %v103 = vld [vmem:[%s0 + $0x118] sm:$0xf]
  %v104 = vld [vmem:[%s0 + $0x11c] sm:$0xf]
  %v105 = vld [vmem:[%s0 + $0x120] sm:$0xf]
  %v106 = vld [vmem:[%s0 + $0x124] sm:$0xf]
  %v107 = vld [vmem:[%s0 + $0x128] sm:$0xf]
  %v108 = vld [vmem:[%s0 + $0x12c] sm:$0xf]
  %v109 = vld [vmem:[%s0 + $0x130] sm:$0xf]
  %v110 = vld [vmem:[%s0 + $0x134] sm:$0xf]
  %v111 = vld [vmem:[%s0 + $0x138] sm:$0xf]
  %v112 = vld [vmem:[%s0 + $0x13c] sm:$0xf]
  %v113 = vld [vmem:[%s0 + $0x140] sm:$0xf]
  %v114 = vld [vmem:[%s0 + $0x144] sm:$0xf]
  %v115 = vld [vmem:[%s0 + $0x148] sm:$0xf]
  %v116 = vld [vmem:[%s0 + $0x14c] sm:$0xf]
  %v117 = vld [vmem:[%s0 + $0x150] sm:$0xf]
  %v118 = vld [vmem:[%s0 + $0x154] sm:$0xf]
  %v119 = vld [vmem:[%s0 + $0x158] sm:$0xf]
  %v120 = vld [vmem:[%s0 + $0x15c] sm:$0xf]
  %v121 = vld [vmem:[%s0 + $0x160] sm:$0xf]
  %v122 = vld [vmem:[%s0 + $0x164] sm:$0xf]
  %v123 = vld [vmem:[%s0 + $0x168] sm:$0xf]
  %v124 = vld [vmem:[%s0 + $0x16c] sm:$0xf]
  %v125 = vld [vmem:[%s0 + $0x170] sm:$0xf]
  %v126 = vld [vmem:[%s0 + $0x174] sm:$0xf]
  %v127 = vld [vmem:[%s0 + $0x178] sm:$0xf]
  %v128 = vld [vmem:[%s0 + $0x17c] sm:$0xf]
  %v129 = vld [vmem:[%s0 + $0x180] sm:$0xf]
  %v130 = vld [vmem:[%s0 + $0x184] sm:$0xf]
  %v131 = vld [vmem:[%s0 + $0x188] sm:$0xf]
  %v132 = vld [vmem:[%s0 + $0x18c] sm:$0xf]
  %v133 = vld [vmem:[%s0 + $0x190] sm:$0xf]
  %v134 = vld [vmem:[%s0 + $0x194] sm:$0xf]
  %v135 = vld [vmem:[%s0 + $0x198] sm:$0xf]
  %v136 = vld [vmem:[%s0 + $0x19c] sm:$0xf]
  %v137 = vld [vmem:[%s0 + $0x1a0] sm:$0xf]
  %v138 = vld [vmem:[%s0 + $0x1a4] sm:$0xf]
  %v139 = vld [vmem:[%s0 + $0x1a8] sm:$0xf]
  %v140 = vld [vmem:[%s0 + $0x1ac] sm:$0xf]
  %v141 = vld [vmem:[%s0 + $0x1b0] sm:$0xf]
  %v142 = vld [vmem:[%s0 + $0x1b4] sm:$0xf]
  %v143 = vld [vmem:[%s0 + $0x1b8] sm:$0xf]
  %v144 = vld [vmem:[%s0 + $0x1bc] sm:$0xf]
  %v145 = vld [vmem:[%s0 + $0x1c0] sm:$0xf]
  %v146 = vld [vmem:[%s0 + $0x1c4] sm:$0xf]
  %v147 = vld [vmem:[%s0 + $0x1c8] sm:$0xf]
  %v148 = vld [vmem:[%s0 + $0x1cc] sm:$0xf]
  %v149 = vld [vmem:[%s0 + $0x1d0] sm:$0xf]
  %v150 = vld [vmem:[%s0 + $0x1d4] sm:$0xf]
  %v151 = vld [vmem:[%s0 + $0x1d8] sm:$0xf]
  %v152 = vld [vmem:[%s0 + $0x1dc] sm:$0xf]
  %v153 = vld [vmem:[%s0 + $0x1e0] sm:$0xf]
  %v154 = vld [vmem:[%s0 + $0x1e4] sm:$0xf]
  %v155 = vld [vmem:[%s0 + $0x1e8] sm:$0xf]
  %v156 = vld [vmem:[%s0 + $0x1ec] sm:$0xf]
  %v157 = vld [vmem:[%s0 + $0x1f0] sm:$0xf]
  %v158 = vld [vmem:[%s0 + $0x1f4] sm:$0xf]
  %v159 = vld [vmem:[%s0 + $0x1f8] sm:$0xf]
  %v160 = vld [vmem:[%s0 + $0x1fc] sm:$0xf]
  %v161 = vld [vmem:[%s2] sm:$0xf]
  %v162 = vld [vmem:[%s2 + $0x4] sm:$0xf]
  %v163 = vld [vmem:[%s2 + $0x8] sm:$0xf]
  %v164 = vld [vmem:[%s2 + $0xc] sm:$0xf]
  %v165 = vld [vmem:[%s2 + $0x10] sm:$0xf]
  %v166 = vld [vmem:[%s2 + $0x14] sm:$0xf]
  %v167 = vld [vmem:[%s2 + $0x18] sm:$0xf]
  %v168 = vld [vmem:[%s2 + $0x1c] sm:$0xf]
  %v169 = vld [vmem:[%s2 + $0x20] sm:$0xf]
  %v170 = vld [vmem:[%s2 + $0x24] sm:$0xf]
  %v171 = vld [vmem:[%s2 + $0x28] sm:$0xf]
  %v172 = vld [vmem:[%s2 + $0x2c] sm:$0xf]
  %v173 = vld [vmem:[%s2 + $0x30] sm:$0xf]
  %v174 = vld [vmem:[%s2 + $0x34] sm:$0xf]
  %v175 = vld [vmem:[%s2 + $0x38] sm:$0xf]
  %v176 = vld [vmem:[%s2 + $0x3c] sm:$0xf]
  %v177 = vld [vmem:[%s1] sm:$0xf]
  %v178 = vld [vmem:[%s1 + $0x4] sm:$0xf]
  %v179 = vld [vmem:[%s1 + $0x8] sm:$0xf]
  %v180 = vld [vmem:[%s1 + $0xc] sm:$0xf]
  %v181 = vld [vmem:[%s1 + $0x10] sm:$0xf]
  %v182 = vld [vmem:[%s1 + $0x14] sm:$0xf]
  %v183 = vld [vmem:[%s1 + $0x18] sm:$0xf]
  %v184 = vld [vmem:[%s1 + $0x1c] sm:$0xf]
  %v185 = vld [vmem:[%s1 + $0x20] sm:$0xf]
  %v186 = vld [vmem:[%s1 + $0x24] sm:$0xf]
  %v187 = vld [vmem:[%s1 + $0x28] sm:$0xf]
  %v188 = vld [vmem:[%s1 + $0x2c] sm:$0xf]
  %v189 = vld [vmem:[%s1 + $0x30] sm:$0xf]
  %v190 = vld [vmem:[%s1 + $0x34] sm:$0xf]
  %v191 = vld [vmem:[%s1 + $0x38] sm:$0xf]
  %v192 = vld [vmem:[%s1 + $0x3c] sm:$0xf]
  %v193 = vld [vmem:[%s1 + $0x40] sm:$0xf]
  %v194 = vld [vmem:[%s1 + $0x44] sm:$0xf]
  %v195 = vld [vmem:[%s1 + $0x48] sm:$0xf]
  %v196 = vld [vmem:[%s1 + $0x4c] sm:$0xf]
  %v197 = vld [vmem:[%s1 + $0x50] sm:$0xf]
  %v198 = vld [vmem:[%s1 + $0x54] sm:$0xf]
  %v199 = vld [vmem:[%s1 + $0x58] sm:$0xf]
  %v200 = vld [vmem:[%s1 + $0x5c] sm:$0xf]
  %v201 = vld [vmem:[%s1 + $0x60] sm:$0xf]
  %v202 = vld [vmem:[%s1 + $0x64] sm:$0xf]
  %v203 = vld [vmem:[%s1 + $0x68] sm:$0xf]
  %v204 = vld [vmem:[%s1 + $0x6c] sm:$0xf]
  %v205 = vld [vmem:[%s1 + $0x70] sm:$0xf]
  %v206 = vld [vmem:[%s1 + $0x74] sm:$0xf]
  %v207 = vld [vmem:[%s1 + $0x78] sm:$0xf]
  %v208 = vld [vmem:[%s1 + $0x7c] sm:$0xf]
  %v209 = vld [vmem:[%s1 + $0x80] sm:$0xf]
  %v210 = vld [vmem:[%s1 + $0x84] sm:$0xf]
  %v211 = vld [vmem:[%s1 + $0x88] sm:$0xf]
  %v212 = vld [vmem:[%s1 + $0x8c] sm:$0xf]
  %v213 = vld [vmem:[%s1 + $0x90] sm:$0xf]
  %v214 = vld [vmem:[%s1 + $0x94] sm:$0xf]
  %v215 = vld [vmem:[%s1 + $0x98] sm:$0xf]
  %v216 = vld [vmem:[%s1 + $0x9c] sm:$0xf]
  %v217 = vld [vmem:[%s1 + $0xa0] sm:$0xf]
  %v218 = vld [vmem:[%s1 + $0xa4] sm:$0xf]
  %v219 = vld [vmem:[%s1 + $0xa8] sm:$0xf]
  %v220 = vld [vmem:[%s1 + $0xac] sm:$0xf]
  %v221 = vld [vmem:[%s1 + $0xb0] sm:$0xf]
  %v222 = vld [vmem:[%s1 + $0xb4] sm:$0xf]
  %v223 = vld [vmem:[%s1 + $0xb8] sm:$0xf]
  %v224 = vld [vmem:[%s1 + $0xbc] sm:$0xf]
  %v225 = vld [vmem:[%s1 + $0xc0] sm:$0xf]
  %v226 = vld [vmem:[%s1 + $0xc4] sm:$0xf]
  %v227 = vld [vmem:[%s1 + $0xc8] sm:$0xf]
  %v228 = vld [vmem:[%s1 + $0xcc] sm:$0xf]
  %v229 = vld [vmem:[%s1 + $0xd0] sm:$0xf]
  %v230 = vld [vmem:[%s1 + $0xd4] sm:$0xf]
  %v231 = vld [vmem:[%s1 + $0xd8] sm:$0xf]
  %v232 = vld [vmem:[%s1 + $0xdc] sm:$0xf]
  %v233 = vld [vmem:[%s1 + $0xe0] sm:$0xf]
  %v234 = vld [vmem:[%s1 + $0xe4] sm:$0xf]
  %v235 = vld [vmem:[%s1 + $0xe8] sm:$0xf]
  %v236 = vld [vmem:[%s1 + $0xec] sm:$0xf]
  %v237 = vld [vmem:[%s1 + $0xf0] sm:$0xf]
  %v238 = vld [vmem:[%s1 + $0xf4] sm:$0xf]
  %v239 = vld [vmem:[%s1 + $0xf8] sm:$0xf]
  %v240 = vld [vmem:[%s1 + $0xfc] sm:$0xf]
  %v241 = vld [vmem:[%s1 + $0x100] sm:$0xf]
  %v242 = vld [vmem:[%s1 + $0x104] sm:$0xf]
  %v243 = vld [vmem:[%s1 + $0x108] sm:$0xf]
  %v244 = vld [vmem:[%s1 + $0x10c] sm:$0xf]
  %v245 = vld [vmem:[%s1 + $0x110] sm:$0xf]
  %v246 = vld [vmem:[%s1 + $0x114] sm:$0xf]
  %v247 = vld [vmem:[%s1 + $0x118] sm:$0xf]
  %v248 = vld [vmem:[%s1 + $0x11c] sm:$0xf]
  %v249 = vld [vmem:[%s1 + $0x120] sm:$0xf]
  %v250 = vld [vmem:[%s1 + $0x124] sm:$0xf]
  %v251 = vld [vmem:[%s1 + $0x128] sm:$0xf]
  %v252 = vld [vmem:[%s1 + $0x12c] sm:$0xf]
  %v253 = vld [vmem:[%s1 + $0x130] sm:$0xf]
  %v254 = vld [vmem:[%s1 + $0x134] sm:$0xf]
  %v255 = vld [vmem:[%s1 + $0x138] sm:$0xf]
  %v256 = vld [vmem:[%s1 + $0x13c] sm:$0xf]
  %v257 = vld [vmem:[%s1 + $0x140] sm:$0xf]
  %v258 = vld [vmem:[%s1 + $0x144] sm:$0xf]
  %v259 = vld [vmem:[%s1 + $0x148] sm:$0xf]
  %v260 = vld [vmem:[%s1 + $0x14c] sm:$0xf]
  %v261 = vld [vmem:[%s1 + $0x150] sm:$0xf]
  %v262 = vld [vmem:[%s1 + $0x154] sm:$0xf]
  %v263 = vld [vmem:[%s1 + $0x158] sm:$0xf]
  %v264 = vld [vmem:[%s1 + $0x15c] sm:$0xf]
  %v265 = vld [vmem:[%s1 + $0x160] sm:$0xf]
  %v266 = vld [vmem:[%s1 + $0x164] sm:$0xf]
  %v267 = vld [vmem:[%s1 + $0x168] sm:$0xf]
  %v268 = vld [vmem:[%s1 + $0x16c] sm:$0xf]
  %v269 = vld [vmem:[%s1 + $0x170] sm:$0xf]
  %v270 = vld [vmem:[%s1 + $0x174] sm:$0xf]
  %v271 = vld [vmem:[%s1 + $0x178] sm:$0xf]
  %v272 = vld [vmem:[%s1 + $0x17c] sm:$0xf]
  %v273 = vld [vmem:[%s1 + $0x180] sm:$0xf]
  %v274 = vld [vmem:[%s1 + $0x184] sm:$0xf]
  %v275 = vld [vmem:[%s1 + $0x188] sm:$0xf]
  %v276 = vld [vmem:[%s1 + $0x18c] sm:$0xf]
  %v277 = vld [vmem:[%s1 + $0x190] sm:$0xf]
  %v278 = vld [vmem:[%s1 + $0x194] sm:$0xf]
  %v279 = vld [vmem:[%s1 + $0x198] sm:$0xf]
  %v280 = vld [vmem:[%s1 + $0x19c] sm:$0xf]
  %v281 = vld [vmem:[%s1 + $0x1a0] sm:$0xf]
  %v282 = vld [vmem:[%s1 + $0x1a4] sm:$0xf]
  %v283 = vld [vmem:[%s1 + $0x1a8] sm:$0xf]
  %v284 = vld [vmem:[%s1 + $0x1ac] sm:$0xf]
  %v285 = vld [vmem:[%s1 + $0x1b0] sm:$0xf]
  %v286 = vld [vmem:[%s1 + $0x1b4] sm:$0xf]
  %v287 = vld [vmem:[%s1 + $0x1b8] sm:$0xf]
  %v288 = vld [vmem:[%s1 + $0x1bc] sm:$0xf]
  %v289 = vld [vmem:[%s1 + $0x1c0] sm:$0xf]
  %v290 = vld [vmem:[%s1 + $0x1c4] sm:$0xf]
  %v291 = vld [vmem:[%s1 + $0x1c8] sm:$0xf]
  %v292 = vld [vmem:[%s1 + $0x1cc] sm:$0xf]
  %v293 = vld [vmem:[%s1 + $0x1d0] sm:$0xf]
  %v294 = vld [vmem:[%s1 + $0x1d4] sm:$0xf]
  %v295 = vld [vmem:[%s1 + $0x1d8] sm:$0xf]
  %v296 = vld [vmem:[%s1 + $0x1dc] sm:$0xf]
  %v297 = vld [vmem:[%s1 + $0x1e0] sm:$0xf]
  %v298 = vld [vmem:[%s1 + $0x1e4] sm:$0xf]
  %v299 = vld [vmem:[%s1 + $0x1e8] sm:$0xf]
  %v300 = vld [vmem:[%s1 + $0x1ec] sm:$0xf]
  %v301 = vld [vmem:[%s1 + $0x1f0] sm:$0xf]
  %v302 = vld [vmem:[%s1 + $0x1f4] sm:$0xf]
  %v303 = vld [vmem:[%s1 + $0x1f8] sm:$0xf]
  %v304 = vld [vmem:[%s1 + $0x1fc] sm:$0xf]
  %v305 = vld [vmem:[%s3] sm:$0xf]
  %v434 = vunpack.c.l.b16 %v177
  %v435 = vunpack.c.l.b16 %v178
  %v436 = vunpack.c.l.b16 %v179
  %v437 = vunpack.c.l.b16 %v180
  %v438 = vunpack.c.l.b16 %v181
  %v439 = vunpack.c.l.b16 %v182
  %v440 = vunpack.c.l.b16 %v183
  %v441 = vunpack.c.l.b16 %v184
  %v442 = vunpack.c.l.b16 %v185
  %v443 = vunpack.c.l.b16 %v186
  %v444 = vunpack.c.l.b16 %v187
  %v445 = vunpack.c.l.b16 %v188
  %v446 = vunpack.c.l.b16 %v189
  %v447 = vunpack.c.l.b16 %v190
  %v448 = vunpack.c.l.b16 %v191
  %v449 = vunpack.c.l.b16 %v192
  %v450 = vunpack.c.l.b16 %v193
  %v451 = vunpack.c.l.b16 %v194
  %v452 = vunpack.c.l.b16 %v195
  %v453 = vunpack.c.l.b16 %v196
  %v454 = vunpack.c.l.b16 %v197
  %v455 = vunpack.c.l.b16 %v198
  %v456 = vunpack.c.l.b16 %v199
  %v457 = vunpack.c.l.b16 %v200
  %v458 = vunpack.c.l.b16 %v201
  %v459 = vunpack.c.l.b16 %v202
  %v460 = vunpack.c.l.b16 %v203
  %v461 = vunpack.c.l.b16 %v204
  %v462 = vunpack.c.l.b16 %v205
  %v463 = vunpack.c.l.b16 %v206
  %v464 = vunpack.c.l.b16 %v207
  %v465 = vunpack.c.l.b16 %v208
  %v466 = vunpack.c.l.b16 %v209
  %v467 = vunpack.c.l.b16 %v210
  %v468 = vunpack.c.l.b16 %v211
  %v469 = vunpack.c.l.b16 %v212
  %v470 = vunpack.c.l.b16 %v213
  %v471 = vunpack.c.l.b16 %v214
  %v472 = vunpack.c.l.b16 %v215
  %v473 = vunpack.c.l.b16 %v216
  %v474 = vunpack.c.l.b16 %v217
  %v475 = vunpack.c.l.b16 %v218
  %v476 = vunpack.c.l.b16 %v219
  %v477 = vunpack.c.l.b16 %v220
  %v478 = vunpack.c.l.b16 %v221
  %v479 = vunpack.c.l.b16 %v222
  %v480 = vunpack.c.l.b16 %v223
  %v481 = vunpack.c.l.b16 %v224
  %v482 = vunpack.c.l.b16 %v225
  %v483 = vunpack.c.l.b16 %v226
  %v484 = vunpack.c.l.b16 %v227
  %v485 = vunpack.c.l.b16 %v228
  %v486 = vunpack.c.l.b16 %v229
  %v487 = vunpack.c.l.b16 %v230
  %v488 = vunpack.c.l.b16 %v231
  %v489 = vunpack.c.l.b16 %v232
  %v490 = vunpack.c.l.b16 %v233
  %v491 = vunpack.c.l.b16 %v234
  %v492 = vunpack.c.l.b16 %v235
  %v493 = vunpack.c.l.b16 %v236
  %v494 = vunpack.c.l.b16 %v237
  %v495 = vunpack.c.l.b16 %v238
  %v496 = vunpack.c.l.b16 %v239
  %v497 = vunpack.c.l.b16 %v240
  %v498 = vunpack.c.l.b16 %v241
  %v499 = vunpack.c.l.b16 %v242
  %v500 = vunpack.c.l.b16 %v243
  %v501 = vunpack.c.l.b16 %v244
  %v502 = vunpack.c.l.b16 %v245
  %v503 = vunpack.c.l.b16 %v246
  %v504 = vunpack.c.l.b16 %v247
  %v505 = vunpack.c.l.b16 %v248
  %v506 = vunpack.c.l.b16 %v249
  %v507 = vunpack.c.l.b16 %v250
  %v508 = vunpack.c.l.b16 %v251
  %v509 = vunpack.c.l.b16 %v252
  %v510 = vunpack.c.l.b16 %v253
  %v511 = vunpack.c.l.b16 %v254
  %v512 = vunpack.c.l.b16 %v255
  %v513 = vunpack.c.l.b16 %v256
  %v514 = vunpack.c.l.b16 %v257
  %v515 = vunpack.c.l.b16 %v258
  %v516 = vunpack.c.l.b16 %v259
  %v517 = vunpack.c.l.b16 %v260
  %v518 = vunpack.c.l.b16 %v261
  %v519 = vunpack.c.l.b16 %v262
  %v520 = vunpack.c.l.b16 %v263
  %v521 = vunpack.c.l.b16 %v264
  %v522 = vunpack.c.l.b16 %v265
  %v523 = vunpack.c.l.b16 %v266
  %v524 = vunpack.c.l.b16 %v267
  %v525 = vunpack.c.l.b16 %v268
  %v526 = vunpack.c.l.b16 %v269
  %v527 = vunpack.c.l.b16 %v270
  %v528 = vunpack.c.l.b16 %v271
  %v529 = vunpack.c.l.b16 %v272
  %v530 = vunpack.c.l.b16 %v273
  %v531 = vunpack.c.l.b16 %v274
  %v532 = vunpack.c.l.b16 %v275
  %v533 = vunpack.c.l.b16 %v276
  %v534 = vunpack.c.l.b16 %v277
  %v535 = vunpack.c.l.b16 %v278
  %v536 = vunpack.c.l.b16 %v279
  %v537 = vunpack.c.l.b16 %v280
  %v538 = vunpack.c.l.b16 %v281
  %v539 = vunpack.c.l.b16 %v282
  %v540 = vunpack.c.l.b16 %v283
  %v541 = vunpack.c.l.b16 %v284
  %v542 = vunpack.c.l.b16 %v285
  %v543 = vunpack.c.l.b16 %v286
  %v544 = vunpack.c.l.b16 %v287
  %v545 = vunpack.c.l.b16 %v288
  %v546 = vunpack.c.l.b16 %v289
  %v547 = vunpack.c.l.b16 %v290
  %v548 = vunpack.c.l.b16 %v291
  %v549 = vunpack.c.l.b16 %v292
  %v550 = vunpack.c.l.b16 %v293
  %v551 = vunpack.c.l.b16 %v294
  %v552 = vunpack.c.l.b16 %v295
  %v553 = vunpack.c.l.b16 %v296
  %v554 = vunpack.c.l.b16 %v297
  %v555 = vunpack.c.l.b16 %v298
  %v556 = vunpack.c.l.b16 %v299
  %v557 = vunpack.c.l.b16 %v300
  %v558 = vunpack.c.l.b16 %v301
  %v559 = vunpack.c.l.b16 %v302
  %v560 = vunpack.c.l.b16 %v303
  %v561 = vunpack.c.l.b16 %v304
  %v562 = vpack.c.b16 %v435, %v434
  %v563 = vpack.c.b16 %v437, %v436
  %v564 = vpack.c.b16 %v439, %v438
  %v565 = vpack.c.b16 %v441, %v440
  %v566 = vpack.c.b16 %v443, %v442
  %v567 = vpack.c.b16 %v445, %v444
  %v568 = vpack.c.b16 %v447, %v446
  %v569 = vpack.c.b16 %v449, %v448
  %v570 = vpack.c.b16 %v451, %v450
  %v571 = vpack.c.b16 %v453, %v452
  %v572 = vpack.c.b16 %v455, %v454
  %v573 = vpack.c.b16 %v457, %v456
  %v574 = vpack.c.b16 %v459, %v458
  %v575 = vpack.c.b16 %v461, %v460
  %v576 = vpack.c.b16 %v463, %v462
  %v577 = vpack.c.b16 %v465, %v464
  %v578 = vpack.c.b16 %v467, %v466
  %v579 = vpack.c.b16 %v469, %v468
  %v580 = vpack.c.b16 %v471, %v470
  %v581 = vpack.c.b16 %v473, %v472
  %v582 = vpack.c.b16 %v475, %v474
  %v583 = vpack.c.b16 %v477, %v476
  %v584 = vpack.c.b16 %v479, %v478
  %v585 = vpack.c.b16 %v481, %v480
  %v586 = vpack.c.b16 %v483, %v482
  %v587 = vpack.c.b16 %v485, %v484
  %v588 = vpack.c.b16 %v487, %v486
  %v589 = vpack.c.b16 %v489, %v488
  %v590 = vpack.c.b16 %v491, %v490
  %v591 = vpack.c.b16 %v493, %v492
  %v592 = vpack.c.b16 %v495, %v494
  %v593 = vpack.c.b16 %v497, %v496
  %v594 = vpack.c.b16 %v499, %v498
  %v595 = vpack.c.b16 %v501, %v500
  %v596 = vpack.c.b16 %v503, %v502
  %v597 = vpack.c.b16 %v505, %v504
  %v598 = vpack.c.b16 %v507, %v506
  %v599 = vpack.c.b16 %v509, %v508
  %v600 = vpack.c.b16 %v511, %v510
  %v601 = vpack.c.b16 %v513, %v512
  %v602 = vpack.c.b16 %v515, %v514
  %v603 = vpack.c.b16 %v517, %v516
  %v604 = vpack.c.b16 %v519, %v518
  %v605 = vpack.c.b16 %v521, %v520
  %v606 = vpack.c.b16 %v523, %v522
  %v607 = vpack.c.b16 %v525, %v524
  %v608 = vpack.c.b16 %v527, %v526
  %v609 = vpack.c.b16 %v529, %v528
  %v610 = vpack.c.b16 %v531, %v530
  %v611 = vpack.c.b16 %v533, %v532
  %v612 = vpack.c.b16 %v535, %v534
  %v613 = vpack.c.b16 %v537, %v536
  %v614 = vpack.c.b16 %v539, %v538
  %v615 = vpack.c.b16 %v541, %v540
  %v616 = vpack.c.b16 %v543, %v542
  %v617 = vpack.c.b16 %v545, %v544
  %v618 = vpack.c.b16 %v547, %v546
  %v619 = vpack.c.b16 %v549, %v548
  %v620 = vpack.c.b16 %v551, %v550
  %v621 = vpack.c.b16 %v553, %v552
  %v622 = vpack.c.b16 %v555, %v554
  %v623 = vpack.c.b16 %v557, %v556
  %v624 = vpack.c.b16 %v559, %v558
  %v625 = vpack.c.b16 %v561, %v560
  %vm626 = vcmask 64512
  %v628 = vsel %vm626, %v562, 0
  %v631 = vsel %vm626, %v563, 0
  %v634 = vsel %vm626, %v564, 0
  %v637 = vsel %vm626, %v565, 0
  %v640 = vsel %vm626, %v566, 0
  %v643 = vsel %vm626, %v567, 0
  %v646 = vsel %vm626, %v568, 0
  %v649 = vsel %vm626, %v569, 0
  %v652 = vsel %vm626, %v570, 0
  %v655 = vsel %vm626, %v571, 0
  %v658 = vsel %vm626, %v572, 0
  %v661 = vsel %vm626, %v573, 0
  %v664 = vsel %vm626, %v574, 0
  %v667 = vsel %vm626, %v575, 0
  %v670 = vsel %vm626, %v576, 0
  %v673 = vsel %vm626, %v577, 0
  %v676 = vsel %vm626, %v578, 0
  %v679 = vsel %vm626, %v579, 0
  %v682 = vsel %vm626, %v580, 0
  %v685 = vsel %vm626, %v581, 0
  %v688 = vsel %vm626, %v582, 0
  %v691 = vsel %vm626, %v583, 0
  %v694 = vsel %vm626, %v584, 0
  %v697 = vsel %vm626, %v585, 0
  %v700 = vsel %vm626, %v586, 0
  %v703 = vsel %vm626, %v587, 0
  %v706 = vsel %vm626, %v588, 0
  %v709 = vsel %vm626, %v589, 0
  %v712 = vsel %vm626, %v590, 0
  %v715 = vsel %vm626, %v591, 0
  %v718 = vsel %vm626, %v592, 0
  %v721 = vsel %vm626, %v593, 0
  %v724 = vsel %vm626, %v594, 0
  %v727 = vsel %vm626, %v595, 0
  %v730 = vsel %vm626, %v596, 0
  %v733 = vsel %vm626, %v597, 0
  %v736 = vsel %vm626, %v598, 0
  %v739 = vsel %vm626, %v599, 0
  %v742 = vsel %vm626, %v600, 0
  %v745 = vsel %vm626, %v601, 0
  %v748 = vsel %vm626, %v602, 0
  %v751 = vsel %vm626, %v603, 0
  %v754 = vsel %vm626, %v604, 0
  %v757 = vsel %vm626, %v605, 0
  %v760 = vsel %vm626, %v606, 0
  %v763 = vsel %vm626, %v607, 0
  %v766 = vsel %vm626, %v608, 0
  %v769 = vsel %vm626, %v609, 0
  %v772 = vsel %vm626, %v610, 0
  %v775 = vsel %vm626, %v611, 0
  %v778 = vsel %vm626, %v612, 0
  %v781 = vsel %vm626, %v613, 0
  %v784 = vsel %vm626, %v614, 0
  %v787 = vsel %vm626, %v615, 0
  %v790 = vsel %vm626, %v616, 0
  %v793 = vsel %vm626, %v617, 0
  %v796 = vsel %vm626, %v618, 0
  %v799 = vsel %vm626, %v619, 0
  %v802 = vsel %vm626, %v620, 0
  %v805 = vsel %vm626, %v621, 0
  %v808 = vsel %vm626, %v622, 0
  %v811 = vsel %vm626, %v623, 0
  %v814 = vsel %vm626, %v624, 0
  %v817 = vsel %vm626, %v625, 0
  %vm819 = vcmask 1043456
  %v821 = vsel %vm819, %v305, 0
  %823 = vmatprep.subr.bf16.mxu0 0
  %824 = vmatpush1.bf16.msra.mxu0 %v821
  %825 = vmatprep.subr.bf16.mxu0 0
  %826 = vmatpush1.bf16.msra.mxu0 0
  %827 = vmatprep.subr.bf16.mxu0 0
  %828 = vmatpush1.bf16.msra.mxu0 0
  %829 = vmatprep.subr.bf16.mxu0 0
  %830 = vmatpush1.bf16.msra.mxu0 0
  %831 = vmatprep.subr.bf16.mxu0 0
  %832 = vmatpush1.bf16.msra.mxu0 0
  %833 = vmatprep.subr.bf16.mxu0 0
  %834 = vmatpush1.bf16.msra.mxu0 0
  %835 = vmatprep.subr.bf16.mxu0 0
  %836 = vmatpush1.bf16.msra.mxu0 0
  %837 = vmatprep.subr.bf16.mxu0 0
  %838 = vmatpush1.bf16.msra.mxu0 0
  %839 = vmatprep.subr.bf16.mxu0 0
  %840 = vmatpush1.bf16.msra.mxu0 0
  %841 = vmatprep.subr.bf16.mxu0 0
  %842 = vmatpush1.bf16.msra.mxu0 0
  %843 = vmatprep.subr.bf16.mxu0 0
  %844 = vmatpush1.bf16.msra.mxu0 0
  %845 = vmatprep.subr.bf16.mxu0 0
  %846 = vmatpush1.bf16.msra.mxu0 0
  %847 = vmatprep.subr.bf16.mxu0 0
  %848 = vmatpush1.bf16.msra.mxu0 0
  %849 = vmatprep.subr.bf16.mxu0 0
  %850 = vmatpush1.bf16.msra.mxu0 0
  %851 = vmatprep.subr.bf16.mxu0 0
  %852 = vmatpush1.bf16.msra.mxu0 0
  %853 = vmatprep.subr.bf16.mxu0 0
  %854 = vmatpush1.bf16.msra.mxu0 0
  %855 = vmatprep.mubr.bf16.mxu0 0
  %856 = vmatmul.mubr.bf16.gmra.mrb[0].mxu0 %v628
  %v857 = vpop.f32.mrb[0].mxu0
  %v858 = vadd.f32 0.0, %v857
  %v859 = vpop.f32.mrb[0].mxu0
  %v860 = vpop.f32.mrb[0].mxu0
  %v861 = vadd.f32 0.0, %v860
  %v862 = vpop.f32.mrb[0].mxu0
  %863 = vmatprep.mubr.bf16.mxu0 0
  %864 = vmatmul.mubr.bf16.gmra.mrb[0].mxu0 %v631
  %v865 = vpop.f32.mrb[0].mxu0
  %v866 = vadd.f32 0.0, %v865
  %v867 = vpop.f32.mrb[0].mxu0
  %v868 = vpop.f32.mrb[0].mxu0
  %v869 = vadd.f32 0.0, %v868
  %v870 = vpop.f32.mrb[0].mxu0
  %871 = vmatprep.mubr.bf16.mxu0 0
  %872 = vmatmul.mubr.bf16.gmra.mrb[0].mxu0 %v634
  %v873 = vpop.f32.mrb[0].mxu0
  %v874 = vadd.f32 0.0, %v873
  %v875 = vpop.f32.mrb[0].mxu0
  %v876 = vpop.f32.mrb[0].mxu0
  %v877 = vadd.f32 0.0, %v876
  %v878 = vpop.f32.mrb[0].mxu0
  %879 = vmatprep.mubr.bf16.mxu0 0
  %880 = vmatmul.mubr.bf16.gmra.mrb[0].mxu0 %v637
  %v881 = vpop.f32.mrb[0].mxu0
  %v882 = vadd.f32 0.0, %v881
  %v883 = vpop.f32.mrb[0].mxu0
  %v884 = vpop.f32.mrb[0].mxu0
  %v885 = vadd.f32 0.0, %v884
  %v886 = vpop.f32.mrb[0].mxu0
  %887 = vmatprep.mubr.bf16.mxu0 0
  %888 = vmatmul.mubr.bf16.gmra.mrb[0].mxu0 %v640
  %v889 = vpop.f32.mrb[0].mxu0
  %v890 = vadd.f32 0.0, %v889
  %v891 = vpop.f32.mrb[0].mxu0
  %v892 = vpop.f32.mrb[0].mxu0
  %v893 = vadd.f32 0.0, %v892
  %v894 = vpop.f32.mrb[0].mxu0
  %895 = vmatprep.mubr.bf16.mxu0 0
  %896 = vmatmul.mubr.bf16.gmra.mrb[0].mxu0 %v643
  %v897 = vpop.f32.mrb[0].mxu0
  %v898 = vadd.f32 0.0, %v897
  %v899 = vpop.f32.mrb[0].mxu0
  %v900 = vpop.f32.mrb[0].mxu0
  %v901 = vadd.f32 0.0, %v900
  %v902 = vpop.f32.mrb[0].mxu0
  %903 = vmatprep.mubr.bf16.mxu0 0
  %904 = vmatmul.mubr.bf16.gmra.mrb[0].mxu0 %v646
  %v905 = vpop.f32.mrb[0].mxu0
  %v906 = vadd.f32 0.0, %v905
  %v907 = vpop.f32.mrb[0].mxu0
  %v908 = vpop.f32.mrb[0].mxu0
  %v909 = vadd.f32 0.0, %v908
  %v910 = vpop.f32.mrb[0].mxu0
  %911 = vmatprep.mubr.bf16.mxu0 0
  %912 = vmatmul.mubr.bf16.gmra.mrb[0].mxu0 %v649
  %v913 = vpop.f32.mrb[0].mxu0
  %v914 = vadd.f32 0.0, %v913
  %v915 = vpop.f32.mrb[0].mxu0
  %v916 = vpop.f32.mrb[0].mxu0
  %v917 = vadd.f32 0.0, %v916
  %v918 = vpop.f32.mrb[0].mxu0
  %919 = vmatprep.mubr.bf16.mxu0 0
  %920 = vmatmul.mubr.bf16.gmra.mrb[0].mxu0 %v652
  %v921 = vpop.f32.mrb[0].mxu0
  %v922 = vadd.f32 0.0, %v921
  %v923 = vpop.f32.mrb[0].mxu0
  %v924 = vpop.f32.mrb[0].mxu0
  %v925 = vadd.f32 0.0, %v924
  %v926 = vpop.f32.mrb[0].mxu0
  %927 = vmatprep.mubr.bf16.mxu0 0
  %928 = vmatmul.mubr.bf16.gmra.mrb[0].mxu0 %v655
  %v929 = vpop.f32.mrb[0].mxu0
  %v930 = vadd.f32 0.0, %v929
  %v931 = vpop.f32.mrb[0].mxu0
  %v932 = vpop.f32.mrb[0].mxu0
  %v933 = vadd.f32 0.0, %v932
  %v934 = vpop.f32.mrb[0].mxu0
  %935 = vmatprep.mubr.bf16.mxu0 0
  %936 = vmatmul.mubr.bf16.gmra.mrb[0].mxu0 %v658
  %v937 = vpop.f32.mrb[0].mxu0
  %v938 = vadd.f32 0.0, %v937
  %v939 = vpop.f32.mrb[0].mxu0
  %v940 = vpop.f32.mrb[0].mxu0
  %v941 = vadd.f32 0.0, %v940
  %v942 = vpop.f32.mrb[0].mxu0
  %943 = vmatprep.mubr.bf16.mxu0 0
  %944 = vmatmul.mubr.bf16.gmra.mrb[0].mxu0 %v661
  %v945 = vpop.f32.mrb[0].mxu0
  %v946 = vadd.f32 0.0, %v945
  %v947 = vpop.f32.mrb[0].mxu0
  %v948 = vpop.f32.mrb[0].mxu0
  %v949 = vadd.f32 0.0, %v948
  %v950 = vpop.f32.mrb[0].mxu0
  %951 = vmatprep.mubr.bf16.mxu0 0
  %952 = vmatmul.mubr.bf16.gmra.mrb[0].mxu0 %v664
  %v953 = vpop.f32.mrb[0].mxu0
  %v954 = vadd.f32 0.0, %v953
  %v955 = vpop.f32.mrb[0].mxu0
  %v956 = vpop.f32.mrb[0].mxu0
  %v957 = vadd.f32 0.0, %v956
  %v958 = vpop.f32.mrb[0].mxu0
  %959 = vmatprep.mubr.bf16.mxu0 0
  %960 = vmatmul.mubr.bf16.gmra.mrb[0].mxu0 %v667
  %v961 = vpop.f32.mrb[0].mxu0
  %v962 = vadd.f32 0.0, %v961
  %v963 = vpop.f32.mrb[0].mxu0
  %v964 = vpop.f32.mrb[0].mxu0
  %v965 = vadd.f32 0.0, %v964
  %v966 = vpop.f32.mrb[0].mxu0
  %967 = vmatprep.mubr.bf16.mxu0 0
  %968 = vmatmul.mubr.bf16.gmra.mrb[0].mxu0 %v670
  %v969 = vpop.f32.mrb[0].mxu0
  %v970 = vadd.f32 0.0, %v969
  %v971 = vpop.f32.mrb[0].mxu0
  %v972 = vpop.f32.mrb[0].mxu0
  %v973 = vadd.f32 0.0, %v972
  %v974 = vpop.f32.mrb[0].mxu0
  %975 = vmatprep.mubr.bf16.mxu0 0
  %976 = vmatmul.mubr.bf16.gmra.mrb[0].mxu0 %v673
  %v977 = vpop.f32.mrb[0].mxu0
  %v978 = vadd.f32 0.0, %v977
  %v979 = vpop.f32.mrb[0].mxu0
  %v980 = vpop.f32.mrb[0].mxu0
  %v981 = vadd.f32 0.0, %v980
  %v982 = vpop.f32.mrb[0].mxu0
  %983 = vmatprep.mubr.bf16.mxu0 0
  %984 = vmatmul.mubr.bf16.gmra.mrb[0].mxu0 %v676
  %v985 = vpop.f32.mrb[0].mxu0
  %v986 = vadd.f32 0.0, %v985
  %v987 = vpop.f32.mrb[0].mxu0
  %v988 = vpop.f32.mrb[0].mxu0
  %v989 = vadd.f32 0.0, %v988
  %v990 = vpop.f32.mrb[0].mxu0
  %991 = vmatprep.mubr.bf16.mxu0 0
  %992 = vmatmul.mubr.bf16.gmra.mrb[0].mxu0 %v679
  %v993 = vpop.f32.mrb[0].mxu0
  %v994 = vadd.f32 0.0, %v993
  %v995 = vpop.f32.mrb[0].mxu0
  %v996 = vpop.f32.mrb[0].mxu0
  %v997 = vadd.f32 0.0, %v996
  %v998 = vpop.f32.mrb[0].mxu0
  %999 = vmatprep.mubr.bf16.mxu0 0
  %1000 = vmatmul.mubr.bf16.gmra.mrb[0].mxu0 %v682
  %v1001 = vpop.f32.mrb[0].mxu0
  %v1002 = vadd.f32 0.0, %v1001
  %v1003 = vpop.f32.mrb[0].mxu0
  %v1004 = vpop.f32.mrb[0].mxu0
  %v1005 = vadd.f32 0.0, %v1004
  %v1006 = vpop.f32.mrb[0].mxu0
  %1007 = vmatprep.mubr.bf16.mxu0 0
  %1008 = vmatmul.mubr.bf16.gmra.mrb[0].mxu0 %v685
  %v1009 = vpop.f32.mrb[0].mxu0
  %v1010 = vadd.f32 0.0, %v1009
  %v1011 = vpop.f32.mrb[0].mxu0
  %v1012 = vpop.f32.mrb[0].mxu0
  %v1013 = vadd.f32 0.0, %v1012
  %v1014 = vpop.f32.mrb[0].mxu0
  %1015 = vmatprep.mubr.bf16.mxu0 0
  %1016 = vmatmul.mubr.bf16.gmra.mrb[0].mxu0 %v688
  %v1017 = vpop.f32.mrb[0].mxu0
  %v1018 = vadd.f32 0.0, %v1017
  %v1019 = vpop.f32.mrb[0].mxu0
  %v1020 = vpop.f32.mrb[0].mxu0
  %v1021 = vadd.f32 0.0, %v1020
  %v1022 = vpop.f32.mrb[0].mxu0
  %1023 = vmatprep.mubr.bf16.mxu0 0
  %1024 = vmatmul.mubr.bf16.gmra.mrb[0].mxu0 %v691
  %v1025 = vpop.f32.mrb[0].mxu0
  %v1026 = vadd.f32 0.0, %v1025
  %v1027 = vpop.f32.mrb[0].mxu0
  %v1028 = vpop.f32.mrb[0].mxu0
  %v1029 = vadd.f32 0.0, %v1028
  %v1030 = vpop.f32.mrb[0].mxu0
  %1031 = vmatprep.mubr.bf16.mxu0 0
  %1032 = vmatmul.mubr.bf16.gmra.mrb[0].mxu0 %v694
  %v1033 = vpop.f32.mrb[0].mxu0
  %v1034 = vadd.f32 0.0, %v1033
  %v1035 = vpop.f32.mrb[0].mxu0
  %v1036 = vpop.f32.mrb[0].mxu0
  %v1037 = vadd.f32 0.0, %v1036
  %v1038 = vpop.f32.mrb[0].mxu0
  %1039 = vmatprep.mubr.bf16.mxu0 0
  %1040 = vmatmul.mubr.bf16.gmra.mrb[0].mxu0 %v697
  %v1041 = vpop.f32.mrb[0].mxu0
  %v1042 = vadd.f32 0.0, %v1041
  %v1043 = vpop.f32.mrb[0].mxu0
  %v1044 = vpop.f32.mrb[0].mxu0
  %v1045 = vadd.f32 0.0, %v1044
  %v1046 = vpop.f32.mrb[0].mxu0
  %1047 = vmatprep.mubr.bf16.mxu0 0
  %1048 = vmatmul.mubr.bf16.gmra.mrb[0].mxu0 %v700
  %v1049 = vpop.f32.mrb[0].mxu0
  %v1050 = vadd.f32 0.0, %v1049
  %v1051 = vpop.f32.mrb[0].mxu0
  %v1052 = vpop.f32.mrb[0].mxu0
  %v1053 = vadd.f32 0.0, %v1052
  %v1054 = vpop.f32.mrb[0].mxu0
  %1055 = vmatprep.mubr.bf16.mxu0 0
  %1056 = vmatmul.mubr.bf16.gmra.mrb[0].mxu0 %v703
  %v1057 = vpop.f32.mrb[0].mxu0
  %v1058 = vadd.f32 0.0, %v1057
  %v1059 = vpop.f32.mrb[0].mxu0
  %v1060 = vpop.f32.mrb[0].mxu0
  %v1061 = vadd.f32 0.0, %v1060
  %v1062 = vpop.f32.mrb[0].mxu0
  %1063 = vmatprep.mubr.bf16.mxu0 0
  %1064 = vmatmul.mubr.bf16.gmra.mrb[0].mxu0 %v706
  %v1065 = vpop.f32.mrb[0].mxu0
  %v1066 = vadd.f32 0.0, %v1065
  %v1067 = vpop.f32.mrb[0].mxu0
  %v1068 = vpop.f32.mrb[0].mxu0
  %v1069 = vadd.f32 0.0, %v1068
  %v1070 = vpop.f32.mrb[0].mxu0
  %1071 = vmatprep.mubr.bf16.mxu0 0
  %1072 = vmatmul.mubr.bf16.gmra.mrb[0].mxu0 %v709
  %v1073 = vpop.f32.mrb[0].mxu0
  %v1074 = vadd.f32 0.0, %v1073
  %v1075 = vpop.f32.mrb[0].mxu0
  %v1076 = vpop.f32.mrb[0].mxu0
  %v1077 = vadd.f32 0.0, %v1076
  %v1078 = vpop.f32.mrb[0].mxu0
  %1079 = vmatprep.mubr.bf16.mxu0 0
  %1080 = vmatmul.mubr.bf16.gmra.mrb[0].mxu0 %v712
  %v1081 = vpop.f32.mrb[0].mxu0
  %v1082 = vadd.f32 0.0, %v1081
  %v1083 = vpop.f32.mrb[0].mxu0
  %v1084 = vpop.f32.mrb[0].mxu0
  %v1085 = vadd.f32 0.0, %v1084
  %v1086 = vpop.f32.mrb[0].mxu0
  %1087 = vmatprep.mubr.bf16.mxu0 0
  %1088 = vmatmul.mubr.bf16.gmra.mrb[0].mxu0 %v715
  %v1089 = vpop.f32.mrb[0].mxu0
  %v1090 = vadd.f32 0.0, %v1089
  %v1091 = vpop.f32.mrb[0].mxu0
  %v1092 = vpop.f32.mrb[0].mxu0
  %v1093 = vadd.f32 0.0, %v1092
  %v1094 = vpop.f32.mrb[0].mxu0
  %1095 = vmatprep.mubr.bf16.mxu0 0
  %1096 = vmatmul.mubr.bf16.gmra.mrb[0].mxu0 %v718
  %v1097 = vpop.f32.mrb[0].mxu0
  %v1098 = vadd.f32 0.0, %v1097
  %v1099 = vpop.f32.mrb[0].mxu0
  %v1100 = vpop.f32.mrb[0].mxu0
  %v1101 = vadd.f32 0.0, %v1100
  %v1102 = vpop.f32.mrb[0].mxu0
  %1103 = vmatprep.mubr.bf16.mxu0 0
  %1104 = vmatmul.mubr.bf16.gmra.mrb[0].mxu0 %v721
  %v1105 = vpop.f32.mrb[0].mxu0
  %v1106 = vadd.f32 0.0, %v1105
  %v1107 = vpop.f32.mrb[0].mxu0
  %v1108 = vpop.f32.mrb[0].mxu0
  %v1109 = vadd.f32 0.0, %v1108
  %v1110 = vpop.f32.mrb[0].mxu0
  %1111 = vmatprep.mubr.bf16.mxu0 0
  %1112 = vmatmul.mubr.bf16.gmra.mrb[0].mxu0 %v724
  %v1113 = vpop.f32.mrb[0].mxu0
  %v1114 = vadd.f32 0.0, %v1113
  %v1115 = vpop.f32.mrb[0].mxu0
  %v1116 = vpop.f32.mrb[0].mxu0
  %v1117 = vadd.f32 0.0, %v1116
  %v1118 = vpop.f32.mrb[0].mxu0
  %1119 = vmatprep.mubr.bf16.mxu0 0
  %1120 = vmatmul.mubr.bf16.gmra.mrb[0].mxu0 %v727
  %v1121 = vpop.f32.mrb[0].mxu0
  %v1122 = vadd.f32 0.0, %v1121
  %v1123 = vpop.f32.mrb[0].mxu0
  %v1124 = vpop.f32.mrb[0].mxu0
  %v1125 = vadd.f32 0.0, %v1124
  %v1126 = vpop.f32.mrb[0].mxu0
  %1127 = vmatprep.mubr.bf16.mxu0 0
  %1128 = vmatmul.mubr.bf16.gmra.mrb[0].mxu0 %v730
  %v1129 = vpop.f32.mrb[0].mxu0
  %v1130 = vadd.f32 0.0, %v1129
  %v1131 = vpop.f32.mrb[0].mxu0
  %v1132 = vpop.f32.mrb[0].mxu0
  %v1133 = vadd.f32 0.0, %v1132
  %v1134 = vpop.f32.mrb[0].mxu0
  %1135 = vmatprep.mubr.bf16.mxu0 0
  %1136 = vmatmul.mubr.bf16.gmra.mrb[0].mxu0 %v733
  %v1137 = vpop.f32.mrb[0].mxu0
  %v1138 = vadd.f32 0.0, %v1137
  %v1139 = vpop.f32.mrb[0].mxu0
  %v1140 = vpop.f32.mrb[0].mxu0
  %v1141 = vadd.f32 0.0, %v1140
  %v1142 = vpop.f32.mrb[0].mxu0
  %1143 = vmatprep.mubr.bf16.mxu0 0
  %1144 = vmatmul.mubr.bf16.gmra.mrb[0].mxu0 %v736
  %v1145 = vpop.f32.mrb[0].mxu0
  %v1146 = vadd.f32 0.0, %v1145
  %v1147 = vpop.f32.mrb[0].mxu0
  %v1148 = vpop.f32.mrb[0].mxu0
  %v1149 = vadd.f32 0.0, %v1148
  %v1150 = vpop.f32.mrb[0].mxu0
  %1151 = vmatprep.mubr.bf16.mxu0 0
  %1152 = vmatmul.mubr.bf16.gmra.mrb[0].mxu0 %v739
  %v1153 = vpop.f32.mrb[0].mxu0
  %v1154 = vadd.f32 0.0, %v1153
  %v1155 = vpop.f32.mrb[0].mxu0
  %v1156 = vpop.f32.mrb[0].mxu0
  %v1157 = vadd.f32 0.0, %v1156
  %v1158 = vpop.f32.mrb[0].mxu0
  %1159 = vmatprep.mubr.bf16.mxu0 0
  %1160 = vmatmul.mubr.bf16.gmra.mrb[0].mxu0 %v742
  %v1161 = vpop.f32.mrb[0].mxu0
  %v1162 = vadd.f32 0.0, %v1161
  %v1163 = vpop.f32.mrb[0].mxu0
  %v1164 = vpop.f32.mrb[0].mxu0
  %v1165 = vadd.f32 0.0, %v1164
  %v1166 = vpop.f32.mrb[0].mxu0
  %1167 = vmatprep.mubr.bf16.mxu0 0
  %1168 = vmatmul.mubr.bf16.gmra.mrb[0].mxu0 %v745
  %v1169 = vpop.f32.mrb[0].mxu0
  %v1170 = vadd.f32 0.0, %v1169
  %v1171 = vpop.f32.mrb[0].mxu0
  %v1172 = vpop.f32.mrb[0].mxu0
  %v1173 = vadd.f32 0.0, %v1172
  %v1174 = vpop.f32.mrb[0].mxu0
  %1175 = vmatprep.mubr.bf16.mxu0 0
  %1176 = vmatmul.mubr.bf16.gmra.mrb[0].mxu0 %v748
  %v1177 = vpop.f32.mrb[0].mxu0
  %v1178 = vadd.f32 0.0, %v1177
  %v1179 = vpop.f32.mrb[0].mxu0
  %v1180 = vpop.f32.mrb[0].mxu0
  %v1181 = vadd.f32 0.0, %v1180
  %v1182 = vpop.f32.mrb[0].mxu0
  %1183 = vmatprep.mubr.bf16.mxu0 0
  %1184 = vmatmul.mubr.bf16.gmra.mrb[0].mxu0 %v751
  %v1185 = vpop.f32.mrb[0].mxu0
  %v1186 = vadd.f32 0.0, %v1185
  %v1187 = vpop.f32.mrb[0].mxu0
  %v1188 = vpop.f32.mrb[0].mxu0
  %v1189 = vadd.f32 0.0, %v1188
  %v1190 = vpop.f32.mrb[0].mxu0
  %1191 = vmatprep.mubr.bf16.mxu0 0
  %1192 = vmatmul.mubr.bf16.gmra.mrb[0].mxu0 %v754
  %v1193 = vpop.f32.mrb[0].mxu0
  %v1194 = vadd.f32 0.0, %v1193
  %v1195 = vpop.f32.mrb[0].mxu0
  %v1196 = vpop.f32.mrb[0].mxu0
  %v1197 = vadd.f32 0.0, %v1196
  %v1198 = vpop.f32.mrb[0].mxu0
  %1199 = vmatprep.mubr.bf16.mxu0 0
  %1200 = vmatmul.mubr.bf16.gmra.mrb[0].mxu0 %v757
  %v1201 = vpop.f32.mrb[0].mxu0
  %v1202 = vadd.f32 0.0, %v1201
  %v1203 = vpop.f32.mrb[0].mxu0
  %v1204 = vpop.f32.mrb[0].mxu0
  %v1205 = vadd.f32 0.0, %v1204
  %v1206 = vpop.f32.mrb[0].mxu0
  %1207 = vmatprep.mubr.bf16.mxu0 0
  %1208 = vmatmul.mubr.bf16.gmra.mrb[0].mxu0 %v760
  %v1209 = vpop.f32.mrb[0].mxu0
  %v1210 = vadd.f32 0.0, %v1209
  %v1211 = vpop.f32.mrb[0].mxu0
  %v1212 = vpop.f32.mrb[0].mxu0
  %v1213 = vadd.f32 0.0, %v1212
  %v1214 = vpop.f32.mrb[0].mxu0
  %1215 = vmatprep.mubr.bf16.mxu0 0
  %1216 = vmatmul.mubr.bf16.gmra.mrb[0].mxu0 %v763
  %v1217 = vpop.f32.mrb[0].mxu0
  %v1218 = vadd.f32 0.0, %v1217
  %v1219 = vpop.f32.mrb[0].mxu0
  %v1220 = vpop.f32.mrb[0].mxu0
  %v1221 = vadd.f32 0.0, %v1220
  %v1222 = vpop.f32.mrb[0].mxu0
  %1223 = vmatprep.mubr.bf16.mxu0 0
  %1224 = vmatmul.mubr.bf16.gmra.mrb[0].mxu0 %v766
  %v1225 = vpop.f32.mrb[0].mxu0
  %v1226 = vadd.f32 0.0, %v1225
  %v1227 = vpop.f32.mrb[0].mxu0
  %v1228 = vpop.f32.mrb[0].mxu0
  %v1229 = vadd.f32 0.0, %v1228
  %v1230 = vpop.f32.mrb[0].mxu0
  %1231 = vmatprep.mubr.bf16.mxu0 0
  %1232 = vmatmul.mubr.bf16.gmra.mrb[0].mxu0 %v769
  %v1233 = vpop.f32.mrb[0].mxu0
  %v1234 = vadd.f32 0.0, %v1233
  %v1235 = vpop.f32.mrb[0].mxu0
  %v1236 = vpop.f32.mrb[0].mxu0
  %v1237 = vadd.f32 0.0, %v1236
  %v1238 = vpop.f32.mrb[0].mxu0
  %1239 = vmatprep.mubr.bf16.mxu0 0
  %1240 = vmatmul.mubr.bf16.gmra.mrb[0].mxu0 %v772
  %v1241 = vpop.f32.mrb[0].mxu0
  %v1242 = vadd.f32 0.0, %v1241
  %v1243 = vpop.f32.mrb[0].mxu0
  %v1244 = vpop.f32.mrb[0].mxu0
  %v1245 = vadd.f32 0.0, %v1244
  %v1246 = vpop.f32.mrb[0].mxu0
  %1247 = vmatprep.mubr.bf16.mxu0 0
  %1248 = vmatmul.mubr.bf16.gmra.mrb[0].mxu0 %v775
  %v1249 = vpop.f32.mrb[0].mxu0
  %v1250 = vadd.f32 0.0, %v1249
  %v1251 = vpop.f32.mrb[0].mxu0
  %v1252 = vpop.f32.mrb[0].mxu0
  %v1253 = vadd.f32 0.0, %v1252
  %v1254 = vpop.f32.mrb[0].mxu0
  %1255 = vmatprep.mubr.bf16.mxu0 0
  %1256 = vmatmul.mubr.bf16.gmra.mrb[0].mxu0 %v778
  %v1257 = vpop.f32.mrb[0].mxu0
  %v1258 = vadd.f32 0.0, %v1257
  %v1259 = vpop.f32.mrb[0].mxu0
  %v1260 = vpop.f32.mrb[0].mxu0
  %v1261 = vadd.f32 0.0, %v1260
  %v1262 = vpop.f32.mrb[0].mxu0
  %1263 = vmatprep.mubr.bf16.mxu0 0
  %1264 = vmatmul.mubr.bf16.gmra.mrb[0].mxu0 %v781
  %v1265 = vpop.f32.mrb[0].mxu0
  %v1266 = vadd.f32 0.0, %v1265
  %v1267 = vpop.f32.mrb[0].mxu0
  %v1268 = vpop.f32.mrb[0].mxu0
  %v1269 = vadd.f32 0.0, %v1268
  %v1270 = vpop.f32.mrb[0].mxu0
  %1271 = vmatprep.mubr.bf16.mxu0 0
  %1272 = vmatmul.mubr.bf16.gmra.mrb[0].mxu0 %v784
  %v1273 = vpop.f32.mrb[0].mxu0
  %v1274 = vadd.f32 0.0, %v1273
  %v1275 = vpop.f32.mrb[0].mxu0
  %v1276 = vpop.f32.mrb[0].mxu0
  %v1277 = vadd.f32 0.0, %v1276
  %v1278 = vpop.f32.mrb[0].mxu0
  %1279 = vmatprep.mubr.bf16.mxu0 0
  %1280 = vmatmul.mubr.bf16.gmra.mrb[0].mxu0 %v787
  %v1281 = vpop.f32.mrb[0].mxu0
  %v1282 = vadd.f32 0.0, %v1281
  %v1283 = vpop.f32.mrb[0].mxu0
  %v1284 = vpop.f32.mrb[0].mxu0
  %v1285 = vadd.f32 0.0, %v1284
  %v1286 = vpop.f32.mrb[0].mxu0
  %1287 = vmatprep.mubr.bf16.mxu0 0
  %1288 = vmatmul.mubr.bf16.gmra.mrb[0].mxu0 %v790
  %v1289 = vpop.f32.mrb[0].mxu0
  %v1290 = vadd.f32 0.0, %v1289
  %v1291 = vpop.f32.mrb[0].mxu0
  %v1292 = vpop.f32.mrb[0].mxu0
  %v1293 = vadd.f32 0.0, %v1292
  %v1294 = vpop.f32.mrb[0].mxu0
  %1295 = vmatprep.mubr.bf16.mxu0 0
  %1296 = vmatmul.mubr.bf16.gmra.mrb[0].mxu0 %v793
  %v1297 = vpop.f32.mrb[0].mxu0
  %v1298 = vadd.f32 0.0, %v1297
  %v1299 = vpop.f32.mrb[0].mxu0
  %v1300 = vpop.f32.mrb[0].mxu0
  %v1301 = vadd.f32 0.0, %v1300
  %v1302 = vpop.f32.mrb[0].mxu0
  %1303 = vmatprep.mubr.bf16.mxu0 0
  %1304 = vmatmul.mubr.bf16.gmra.mrb[0].mxu0 %v796
  %v1305 = vpop.f32.mrb[0].mxu0
  %v1306 = vadd.f32 0.0, %v1305
  %v1307 = vpop.f32.mrb[0].mxu0
  %v1308 = vpop.f32.mrb[0].mxu0
  %v1309 = vadd.f32 0.0, %v1308
  %v1310 = vpop.f32.mrb[0].mxu0
  %1311 = vmatprep.mubr.bf16.mxu0 0
  %1312 = vmatmul.mubr.bf16.gmra.mrb[0].mxu0 %v799
  %v1313 = vpop.f32.mrb[0].mxu0
  %v1314 = vadd.f32 0.0, %v1313
  %v1315 = vpop.f32.mrb[0].mxu0
  %v1316 = vpop.f32.mrb[0].mxu0
  %v1317 = vadd.f32 0.0, %v1316
  %v1318 = vpop.f32.mrb[0].mxu0
  %1319 = vmatprep.mubr.bf16.mxu0 0
  %1320 = vmatmul.mubr.bf16.gmra.mrb[0].mxu0 %v802
  %v1321 = vpop.f32.mrb[0].mxu0
  %v1322 = vadd.f32 0.0, %v1321
  %v1323 = vpop.f32.mrb[0].mxu0
  %v1324 = vpop.f32.mrb[0].mxu0
  %v1325 = vadd.f32 0.0, %v1324
  %v1326 = vpop.f32.mrb[0].mxu0
  %1327 = vmatprep.mubr.bf16.mxu0 0
  %1328 = vmatmul.mubr.bf16.gmra.mrb[0].mxu0 %v805
  %v1329 = vpop.f32.mrb[0].mxu0
  %v1330 = vadd.f32 0.0, %v1329
  %v1331 = vpop.f32.mrb[0].mxu0
  %v1332 = vpop.f32.mrb[0].mxu0
  %v1333 = vadd.f32 0.0, %v1332
  %v1334 = vpop.f32.mrb[0].mxu0
  %1335 = vmatprep.mubr.bf16.mxu0 0
  %1336 = vmatmul.mubr.bf16.gmra.mrb[0].mxu0 %v808
  %v1337 = vpop.f32.mrb[0].mxu0
  %v1338 = vadd.f32 0.0, %v1337
  %v1339 = vpop.f32.mrb[0].mxu0
  %v1340 = vpop.f32.mrb[0].mxu0
  %v1341 = vadd.f32 0.0, %v1340
  %v1342 = vpop.f32.mrb[0].mxu0
  %1343 = vmatprep.mubr.bf16.mxu0 0
  %1344 = vmatmul.mubr.bf16.gmra.mrb[0].mxu0 %v811
  %v1345 = vpop.f32.mrb[0].mxu0
  %v1346 = vadd.f32 0.0, %v1345
  %v1347 = vpop.f32.mrb[0].mxu0
  %v1348 = vpop.f32.mrb[0].mxu0
  %v1349 = vadd.f32 0.0, %v1348
  %v1350 = vpop.f32.mrb[0].mxu0
  %1351 = vmatprep.mubr.bf16.mxu0 0
  %1352 = vmatmul.mubr.bf16.gmra.mrb[0].mxu0 %v814
  %v1353 = vpop.f32.mrb[0].mxu0
  %v1354 = vadd.f32 0.0, %v1353
  %v1355 = vpop.f32.mrb[0].mxu0
  %v1356 = vpop.f32.mrb[0].mxu0
  %v1357 = vadd.f32 0.0, %v1356
  %v1358 = vpop.f32.mrb[0].mxu0
  %1359 = vmatprep.mubr.bf16.mxu0 0
  %1360 = vmatmul.mubr.bf16.gmra.mrb[0].mxu0 %v817
  %v1361 = vpop.f32.mrb[0].mxu0
  %v1362 = vadd.f32 0.0, %v1361
  %v1363 = vpop.f32.mrb[0].mxu0
  %v1364 = vpop.f32.mrb[0].mxu0
  %v1365 = vadd.f32 0.0, %v1364
  %v1366 = vpop.f32.mrb[0].mxu0
  %1367 = vdwg.mxu0
  %v1496 = vunpack.c.l.b16 %v33
  %v1497 = vunpack.c.l.b16 %v34
  %v1498 = vunpack.c.l.b16 %v35
  %v1499 = vunpack.c.l.b16 %v36
  %v1500 = vunpack.c.l.b16 %v37
  %v1501 = vunpack.c.l.b16 %v38
  %v1502 = vunpack.c.l.b16 %v39
  %v1503 = vunpack.c.l.b16 %v40
  %v1504 = vunpack.c.l.b16 %v41
  %v1505 = vunpack.c.l.b16 %v42
  %v1506 = vunpack.c.l.b16 %v43
  %v1507 = vunpack.c.l.b16 %v44
  %v1508 = vunpack.c.l.b16 %v45
  %v1509 = vunpack.c.l.b16 %v46
  %v1510 = vunpack.c.l.b16 %v47
  %v1511 = vunpack.c.l.b16 %v48
  %v1512 = vunpack.c.l.b16 %v49
  %v1513 = vunpack.c.l.b16 %v50
  %v1514 = vunpack.c.l.b16 %v51
  %v1515 = vunpack.c.l.b16 %v52
  %v1516 = vunpack.c.l.b16 %v53
  %v1517 = vunpack.c.l.b16 %v54
  %v1518 = vunpack.c.l.b16 %v55
  %v1519 = vunpack.c.l.b16 %v56
  %v1520 = vunpack.c.l.b16 %v57
  %v1521 = vunpack.c.l.b16 %v58
  %v1522 = vunpack.c.l.b16 %v59
  %v1523 = vunpack.c.l.b16 %v60
  %v1524 = vunpack.c.l.b16 %v61
  %v1525 = vunpack.c.l.b16 %v62
  %v1526 = vunpack.c.l.b16 %v63
  %v1527 = vunpack.c.l.b16 %v64
  %v1528 = vunpack.c.l.b16 %v65
  %v1529 = vunpack.c.l.b16 %v66
  %v1530 = vunpack.c.l.b16 %v67
  %v1531 = vunpack.c.l.b16 %v68
  %v1532 = vunpack.c.l.b16 %v69
  %v1533 = vunpack.c.l.b16 %v70
  %v1534 = vunpack.c.l.b16 %v71
  %v1535 = vunpack.c.l.b16 %v72
  %v1536 = vunpack.c.l.b16 %v73
  %v1537 = vunpack.c.l.b16 %v74
  %v1538 = vunpack.c.l.b16 %v75
  %v1539 = vunpack.c.l.b16 %v76
  %v1540 = vunpack.c.l.b16 %v77
  %v1541 = vunpack.c.l.b16 %v78
  %v1542 = vunpack.c.l.b16 %v79
  %v1543 = vunpack.c.l.b16 %v80
  %v1544 = vunpack.c.l.b16 %v81
  %v1545 = vunpack.c.l.b16 %v82
  %v1546 = vunpack.c.l.b16 %v83
  %v1547 = vunpack.c.l.b16 %v84
  %v1548 = vunpack.c.l.b16 %v85
  %v1549 = vunpack.c.l.b16 %v86
  %v1550 = vunpack.c.l.b16 %v87
  %v1551 = vunpack.c.l.b16 %v88
  %v1552 = vunpack.c.l.b16 %v89
  %v1553 = vunpack.c.l.b16 %v90
  %v1554 = vunpack.c.l.b16 %v91
  %v1555 = vunpack.c.l.b16 %v92
  %v1556 = vunpack.c.l.b16 %v93
  %v1557 = vunpack.c.l.b16 %v94
  %v1558 = vunpack.c.l.b16 %v95
  %v1559 = vunpack.c.l.b16 %v96
  %v1560 = vunpack.c.l.b16 %v97
  %v1561 = vunpack.c.l.b16 %v98
  %v1562 = vunpack.c.l.b16 %v99
  %v1563 = vunpack.c.l.b16 %v100
  %v1564 = vunpack.c.l.b16 %v101
  %v1565 = vunpack.c.l.b16 %v102
  %v1566 = vunpack.c.l.b16 %v103
  %v1567 = vunpack.c.l.b16 %v104
  %v1568 = vunpack.c.l.b16 %v105
  %v1569 = vunpack.c.l.b16 %v106
  %v1570 = vunpack.c.l.b16 %v107
  %v1571 = vunpack.c.l.b16 %v108
  %v1572 = vunpack.c.l.b16 %v109
  %v1573 = vunpack.c.l.b16 %v110
  %v1574 = vunpack.c.l.b16 %v111
  %v1575 = vunpack.c.l.b16 %v112
  %v1576 = vunpack.c.l.b16 %v113
  %v1577 = vunpack.c.l.b16 %v114
  %v1578 = vunpack.c.l.b16 %v115
  %v1579 = vunpack.c.l.b16 %v116
  %v1580 = vunpack.c.l.b16 %v117
  %v1581 = vunpack.c.l.b16 %v118
  %v1582 = vunpack.c.l.b16 %v119
  %v1583 = vunpack.c.l.b16 %v120
  %v1584 = vunpack.c.l.b16 %v121
  %v1585 = vunpack.c.l.b16 %v122
  %v1586 = vunpack.c.l.b16 %v123
  %v1587 = vunpack.c.l.b16 %v124
  %v1588 = vunpack.c.l.b16 %v125
  %v1589 = vunpack.c.l.b16 %v126
  %v1590 = vunpack.c.l.b16 %v127
  %v1591 = vunpack.c.l.b16 %v128
  %v1592 = vunpack.c.l.b16 %v129
  %v1593 = vunpack.c.l.b16 %v130
  %v1594 = vunpack.c.l.b16 %v131
  %v1595 = vunpack.c.l.b16 %v132
  %v1596 = vunpack.c.l.b16 %v133
  %v1597 = vunpack.c.l.b16 %v134
  %v1598 = vunpack.c.l.b16 %v135
  %v1599 = vunpack.c.l.b16 %v136
  %v1600 = vunpack.c.l.b16 %v137
  %v1601 = vunpack.c.l.b16 %v138
  %v1602 = vunpack.c.l.b16 %v139
  %v1603 = vunpack.c.l.b16 %v140
  %v1604 = vunpack.c.l.b16 %v141
  %v1605 = vunpack.c.l.b16 %v142
  %v1606 = vunpack.c.l.b16 %v143
  %v1607 = vunpack.c.l.b16 %v144
  %v1608 = vunpack.c.l.b16 %v145
  %v1609 = vunpack.c.l.b16 %v146
  %v1610 = vunpack.c.l.b16 %v147
  %v1611 = vunpack.c.l.b16 %v148
  %v1612 = vunpack.c.l.b16 %v149
  %v1613 = vunpack.c.l.b16 %v150
  %v1614 = vunpack.c.l.b16 %v151
  %v1615 = vunpack.c.l.b16 %v152
  %v1616 = vunpack.c.l.b16 %v153
  %v1617 = vunpack.c.l.b16 %v154
  %v1618 = vunpack.c.l.b16 %v155
  %v1619 = vunpack.c.l.b16 %v156
  %v1620 = vunpack.c.l.b16 %v157
  %v1621 = vunpack.c.l.b16 %v158
  %v1622 = vunpack.c.l.b16 %v159
  %v1623 = vunpack.c.l.b16 %v160
  %v1624 = vpack.c.b16 %v1497, %v1496
  %v1625 = vpack.c.b16 %v1499, %v1498
  %v1626 = vpack.c.b16 %v1501, %v1500
  %v1627 = vpack.c.b16 %v1503, %v1502
  %v1628 = vpack.c.b16 %v1505, %v1504
  %v1629 = vpack.c.b16 %v1507, %v1506
  %v1630 = vpack.c.b16 %v1509, %v1508
  %v1631 = vpack.c.b16 %v1511, %v1510
  %v1632 = vpack.c.b16 %v1513, %v1512
  %v1633 = vpack.c.b16 %v1515, %v1514
  %v1634 = vpack.c.b16 %v1517, %v1516
  %v1635 = vpack.c.b16 %v1519, %v1518
  %v1636 = vpack.c.b16 %v1521, %v1520
  %v1637 = vpack.c.b16 %v1523, %v1522
  %v1638 = vpack.c.b16 %v1525, %v1524
  %v1639 = vpack.c.b16 %v1527, %v1526
  %v1640 = vpack.c.b16 %v1529, %v1528
  %v1641 = vpack.c.b16 %v1531, %v1530
  %v1642 = vpack.c.b16 %v1533, %v1532
  %v1643 = vpack.c.b16 %v1535, %v1534
  %v1644 = vpack.c.b16 %v1537, %v1536
  %v1645 = vpack.c.b16 %v1539, %v1538
  %v1646 = vpack.c.b16 %v1541, %v1540
  %v1647 = vpack.c.b16 %v1543, %v1542
  %v1648 = vpack.c.b16 %v1545, %v1544
  %v1649 = vpack.c.b16 %v1547, %v1546
  %v1650 = vpack.c.b16 %v1549, %v1548
  %v1651 = vpack.c.b16 %v1551, %v1550
  %v1652 = vpack.c.b16 %v1553, %v1552
  %v1653 = vpack.c.b16 %v1555, %v1554
  %v1654 = vpack.c.b16 %v1557, %v1556
  %v1655 = vpack.c.b16 %v1559, %v1558
  %v1656 = vpack.c.b16 %v1561, %v1560
  %v1657 = vpack.c.b16 %v1563, %v1562
  %v1658 = vpack.c.b16 %v1565, %v1564
  %v1659 = vpack.c.b16 %v1567, %v1566
  %v1660 = vpack.c.b16 %v1569, %v1568
  %v1661 = vpack.c.b16 %v1571, %v1570
  %v1662 = vpack.c.b16 %v1573, %v1572
  %v1663 = vpack.c.b16 %v1575, %v1574
  %v1664 = vpack.c.b16 %v1577, %v1576
  %v1665 = vpack.c.b16 %v1579, %v1578
  %v1666 = vpack.c.b16 %v1581, %v1580
  %v1667 = vpack.c.b16 %v1583, %v1582
  %v1668 = vpack.c.b16 %v1585, %v1584
  %v1669 = vpack.c.b16 %v1587, %v1586
  %v1670 = vpack.c.b16 %v1589, %v1588
  %v1671 = vpack.c.b16 %v1591, %v1590
  %v1672 = vpack.c.b16 %v1593, %v1592
  %v1673 = vpack.c.b16 %v1595, %v1594
  %v1674 = vpack.c.b16 %v1597, %v1596
  %v1675 = vpack.c.b16 %v1599, %v1598
  %v1676 = vpack.c.b16 %v1601, %v1600
  %v1677 = vpack.c.b16 %v1603, %v1602
  %v1678 = vpack.c.b16 %v1605, %v1604
  %v1679 = vpack.c.b16 %v1607, %v1606
  %v1680 = vpack.c.b16 %v1609, %v1608
  %v1681 = vpack.c.b16 %v1611, %v1610
  %v1682 = vpack.c.b16 %v1613, %v1612
  %v1683 = vpack.c.b16 %v1615, %v1614
  %v1684 = vpack.c.b16 %v1617, %v1616
  %v1685 = vpack.c.b16 %v1619, %v1618
  %v1686 = vpack.c.b16 %v1621, %v1620
  %v1687 = vpack.c.b16 %v1623, %v1622
  %v1768 = vunpack.c.l.b16 %v161
  %v1769 = vunpack.c.l.b16 %v162
  %v1770 = vunpack.c.l.b16 %v163
  %v1771 = vunpack.c.l.b16 %v164
  %v1772 = vunpack.c.l.b16 %v165
  %v1773 = vunpack.c.l.b16 %v166
  %v1774 = vunpack.c.l.b16 %v167
  %v1775 = vunpack.c.l.b16 %v168
  %v1776 = vunpack.c.l.b16 %v169
  %v1777 = vunpack.c.l.b16 %v170
  %v1778 = vunpack.c.l.b16 %v171
  %v1779 = vunpack.c.l.b16 %v172
  %v1780 = vunpack.c.l.b16 %v173
  %v1781 = vunpack.c.l.b16 %v174
  %v1782 = vunpack.c.l.b16 %v175
  %v1783 = vunpack.c.l.b16 %v176
  %v1784 = vpack.c.b16 %v1769, %v1768
  %v1785 = vpack.c.b16 %v1771, %v1770
  %v1786 = vpack.c.b16 %v1773, %v1772
  %v1787 = vpack.c.b16 %v1775, %v1774
  %v1788 = vpack.c.b16 %v1777, %v1776
  %v1789 = vpack.c.b16 %v1779, %v1778
  %v1790 = vpack.c.b16 %v1781, %v1780
  %v1791 = vpack.c.b16 %v1783, %v1782
  %1800 = vmatprep.subr.bf16.mxu0 0
  %1801 = vmatpush1.bf16.msra.mxu0 %v1784
  %1802 = vmatprep.subr.bf16.mxu0 0
  %1803 = vmatpush1.bf16.msra.mxu0 %v1785
  %1804 = vmatprep.subr.bf16.mxu0 0
  %1805 = vmatpush1.bf16.msra.mxu0 %v1786
  %1806 = vmatprep.subr.bf16.mxu0 0
  %1807 = vmatpush1.bf16.msra.mxu0 %v1787
  %1808 = vmatprep.subr.bf16.mxu0 0
  %1809 = vmatpush1.bf16.msra.mxu0 %v1788
  %1810 = vmatprep.subr.bf16.mxu0 0
  %1811 = vmatpush1.bf16.msra.mxu0 %v1789
  %1812 = vmatprep.subr.bf16.mxu0 0
  %1813 = vmatpush1.bf16.msra.mxu0 %v1790
  %1814 = vmatprep.subr.bf16.mxu0 0
  %1815 = vmatpush1.bf16.msra.mxu0 %v1791
  %1816 = vmatprep.subr.bf16.mxu0 0
  %1817 = vmatpush1.bf16.msra.mxu0 0
  %1818 = vmatprep.subr.bf16.mxu0 0
  %1819 = vmatpush1.bf16.msra.mxu0 0
  %1820 = vmatprep.subr.bf16.mxu0 0
  %1821 = vmatpush1.bf16.msra.mxu0 0
  %1822 = vmatprep.subr.bf16.mxu0 0
  %1823 = vmatpush1.bf16.msra.mxu0 0
  %1824 = vmatprep.subr.bf16.mxu0 0
  %1825 = vmatpush1.bf16.msra.mxu0 0
  %1826 = vmatprep.subr.bf16.mxu0 0
  %1827 = vmatpush1.bf16.msra.mxu0 0
  %1828 = vmatprep.subr.bf16.mxu0 0
  %1829 = vmatpush1.bf16.msra.mxu0 0
  %1830 = vmatprep.subr.bf16.mxu0 0
  %1831 = vmatpush1.bf16.msra.mxu0 0
  %1832 = vmatprep.mubr.bf16.mxu0 0
  %1833 = vmatmul.mubr.bf16.gmra.mrb[0].mxu0 %v1624
  %v1834 = vpop.f32.mrb[0].mxu0
  %v1835 = vadd.f32 %v858, %v1834
  %v1836 = vpop.f32.mrb[0].mxu0
  %v1837 = vpop.f32.mrb[0].mxu0
  %v1838 = vadd.f32 %v861, %v1837
  %v1839 = vpop.f32.mrb[0].mxu0
  %1840 = vmatprep.mubr.bf16.mxu0 0
  %1841 = vmatmul.mubr.bf16.gmra.mrb[0].mxu0 %v1625
  %v1842 = vpop.f32.mrb[0].mxu0
  %v1843 = vadd.f32 %v866, %v1842
  %v1844 = vpop.f32.mrb[0].mxu0
  %v1845 = vpop.f32.mrb[0].mxu0
  %v1846 = vadd.f32 %v869, %v1845
  %v1847 = vpop.f32.mrb[0].mxu0
  %1848 = vmatprep.mubr.bf16.mxu0 0
  %1849 = vmatmul.mubr.bf16.gmra.mrb[0].mxu0 %v1626
  %v1850 = vpop.f32.mrb[0].mxu0
  %v1851 = vadd.f32 %v874, %v1850
  %v1852 = vpop.f32.mrb[0].mxu0
  %v1853 = vpop.f32.mrb[0].mxu0
  %v1854 = vadd.f32 %v877, %v1853
  %v1855 = vpop.f32.mrb[0].mxu0
  %1856 = vmatprep.mubr.bf16.mxu0 0
  %1857 = vmatmul.mubr.bf16.gmra.mrb[0].mxu0 %v1627
  %v1858 = vpop.f32.mrb[0].mxu0
  %v1859 = vadd.f32 %v882, %v1858
  %v1860 = vpop.f32.mrb[0].mxu0
  %v1861 = vpop.f32.mrb[0].mxu0
  %v1862 = vadd.f32 %v885, %v1861
  %v1863 = vpop.f32.mrb[0].mxu0
  %1864 = vmatprep.mubr.bf16.mxu0 0
  %1865 = vmatmul.mubr.bf16.gmra.mrb[0].mxu0 %v1628
  %v1866 = vpop.f32.mrb[0].mxu0
  %v1867 = vadd.f32 %v890, %v1866
  %v1868 = vpop.f32.mrb[0].mxu0
  %v1869 = vpop.f32.mrb[0].mxu0
  %v1870 = vadd.f32 %v893, %v1869
  %v1871 = vpop.f32.mrb[0].mxu0
  %1872 = vmatprep.mubr.bf16.mxu0 0
  %1873 = vmatmul.mubr.bf16.gmra.mrb[0].mxu0 %v1629
  %v1874 = vpop.f32.mrb[0].mxu0
  %v1875 = vadd.f32 %v898, %v1874
  %v1876 = vpop.f32.mrb[0].mxu0
  %v1877 = vpop.f32.mrb[0].mxu0
  %v1878 = vadd.f32 %v901, %v1877
  %v1879 = vpop.f32.mrb[0].mxu0
  %1880 = vmatprep.mubr.bf16.mxu0 0
  %1881 = vmatmul.mubr.bf16.gmra.mrb[0].mxu0 %v1630
  %v1882 = vpop.f32.mrb[0].mxu0
  %v1883 = vadd.f32 %v906, %v1882
  %v1884 = vpop.f32.mrb[0].mxu0
  %v1885 = vpop.f32.mrb[0].mxu0
  %v1886 = vadd.f32 %v909, %v1885
  %v1887 = vpop.f32.mrb[0].mxu0
  %1888 = vmatprep.mubr.bf16.mxu0 0
  %1889 = vmatmul.mubr.bf16.gmra.mrb[0].mxu0 %v1631
  %v1890 = vpop.f32.mrb[0].mxu0
  %v1891 = vadd.f32 %v914, %v1890
  %v1892 = vpop.f32.mrb[0].mxu0
  %v1893 = vpop.f32.mrb[0].mxu0
  %v1894 = vadd.f32 %v917, %v1893
  %v1895 = vpop.f32.mrb[0].mxu0
  %1896 = vmatprep.mubr.bf16.mxu0 0
  %1897 = vmatmul.mubr.bf16.gmra.mrb[0].mxu0 %v1632
  %v1898 = vpop.f32.mrb[0].mxu0
  %v1899 = vadd.f32 %v922, %v1898
  %v1900 = vpop.f32.mrb[0].mxu0
  %v1901 = vpop.f32.mrb[0].mxu0
  %v1902 = vadd.f32 %v925, %v1901
  %v1903 = vpop.f32.mrb[0].mxu0
  %1904 = vmatprep.mubr.bf16.mxu0 0
  %1905 = vmatmul.mubr.bf16.gmra.mrb[0].mxu0 %v1633
  %v1906 = vpop.f32.mrb[0].mxu0
  %v1907 = vadd.f32 %v930, %v1906
  %v1908 = vpop.f32.mrb[0].mxu0
  %v1909 = vpop.f32.mrb[0].mxu0
  %v1910 = vadd.f32 %v933, %v1909
  %v1911 = vpop.f32.mrb[0].mxu0
  %1912 = vmatprep.mubr.bf16.mxu0 0
  %1913 = vmatmul.mubr.bf16.gmra.mrb[0].mxu0 %v1634
  %v1914 = vpop.f32.mrb[0].mxu0
  %v1915 = vadd.f32 %v938, %v1914
  %v1916 = vpop.f32.mrb[0].mxu0
  %v1917 = vpop.f32.mrb[0].mxu0
  %v1918 = vadd.f32 %v941, %v1917
  %v1919 = vpop.f32.mrb[0].mxu0
  %1920 = vmatprep.mubr.bf16.mxu0 0
  %1921 = vmatmul.mubr.bf16.gmra.mrb[0].mxu0 %v1635
  %v1922 = vpop.f32.mrb[0].mxu0
  %v1923 = vadd.f32 %v946, %v1922
  %v1924 = vpop.f32.mrb[0].mxu0
  %v1925 = vpop.f32.mrb[0].mxu0
  %v1926 = vadd.f32 %v949, %v1925
  %v1927 = vpop.f32.mrb[0].mxu0
  %1928 = vmatprep.mubr.bf16.mxu0 0
  %1929 = vmatmul.mubr.bf16.gmra.mrb[0].mxu0 %v1636
  %v1930 = vpop.f32.mrb[0].mxu0
  %v1931 = vadd.f32 %v954, %v1930
  %v1932 = vpop.f32.mrb[0].mxu0
  %v1933 = vpop.f32.mrb[0].mxu0
  %v1934 = vadd.f32 %v957, %v1933
  %v1935 = vpop.f32.mrb[0].mxu0
  %1936 = vmatprep.mubr.bf16.mxu0 0
  %1937 = vmatmul.mubr.bf16.gmra.mrb[0].mxu0 %v1637
  %v1938 = vpop.f32.mrb[0].mxu0
  %v1939 = vadd.f32 %v962, %v1938
  %v1940 = vpop.f32.mrb[0].mxu0
  %v1941 = vpop.f32.mrb[0].mxu0
  %v1942 = vadd.f32 %v965, %v1941
  %v1943 = vpop.f32.mrb[0].mxu0
  %1944 = vmatprep.mubr.bf16.mxu0 0
  %1945 = vmatmul.mubr.bf16.gmra.mrb[0].mxu0 %v1638
  %v1946 = vpop.f32.mrb[0].mxu0
  %v1947 = vadd.f32 %v970, %v1946
  %v1948 = vpop.f32.mrb[0].mxu0
  %v1949 = vpop.f32.mrb[0].mxu0
  %v1950 = vadd.f32 %v973, %v1949
  %v1951 = vpop.f32.mrb[0].mxu0
  %1952 = vmatprep.mubr.bf16.mxu0 0
  %1953 = vmatmul.mubr.bf16.gmra.mrb[0].mxu0 %v1639
  %v1954 = vpop.f32.mrb[0].mxu0
  %v1955 = vadd.f32 %v978, %v1954
  %v1956 = vpop.f32.mrb[0].mxu0
  %v1957 = vpop.f32.mrb[0].mxu0
  %v1958 = vadd.f32 %v981, %v1957
  %v1959 = vpop.f32.mrb[0].mxu0
  %1960 = vmatprep.mubr.bf16.mxu0 0
  %1961 = vmatmul.mubr.bf16.gmra.mrb[0].mxu0 %v1640
  %v1962 = vpop.f32.mrb[0].mxu0
  %v1963 = vadd.f32 %v986, %v1962
  %v1964 = vpop.f32.mrb[0].mxu0
  %v1965 = vpop.f32.mrb[0].mxu0
  %v1966 = vadd.f32 %v989, %v1965
  %v1967 = vpop.f32.mrb[0].mxu0
  %1968 = vmatprep.mubr.bf16.mxu0 0
  %1969 = vmatmul.mubr.bf16.gmra.mrb[0].mxu0 %v1641
  %v1970 = vpop.f32.mrb[0].mxu0
  %v1971 = vadd.f32 %v994, %v1970
  %v1972 = vpop.f32.mrb[0].mxu0
  %v1973 = vpop.f32.mrb[0].mxu0
  %v1974 = vadd.f32 %v997, %v1973
  %v1975 = vpop.f32.mrb[0].mxu0
  %1976 = vmatprep.mubr.bf16.mxu0 0
  %1977 = vmatmul.mubr.bf16.gmra.mrb[0].mxu0 %v1642
  %v1978 = vpop.f32.mrb[0].mxu0
  %v1979 = vadd.f32 %v1002, %v1978
  %v1980 = vpop.f32.mrb[0].mxu0
  %v1981 = vpop.f32.mrb[0].mxu0
  %v1982 = vadd.f32 %v1005, %v1981
  %v1983 = vpop.f32.mrb[0].mxu0
  %1984 = vmatprep.mubr.bf16.mxu0 0
  %1985 = vmatmul.mubr.bf16.gmra.mrb[0].mxu0 %v1643
  %v1986 = vpop.f32.mrb[0].mxu0
  %v1987 = vadd.f32 %v1010, %v1986
  %v1988 = vpop.f32.mrb[0].mxu0
  %v1989 = vpop.f32.mrb[0].mxu0
  %v1990 = vadd.f32 %v1013, %v1989
  %v1991 = vpop.f32.mrb[0].mxu0
  %1992 = vmatprep.mubr.bf16.mxu0 0
  %1993 = vmatmul.mubr.bf16.gmra.mrb[0].mxu0 %v1644
  %v1994 = vpop.f32.mrb[0].mxu0
  %v1995 = vadd.f32 %v1018, %v1994
  %v1996 = vpop.f32.mrb[0].mxu0
  %v1997 = vpop.f32.mrb[0].mxu0
  %v1998 = vadd.f32 %v1021, %v1997
  %v1999 = vpop.f32.mrb[0].mxu0
  %2000 = vmatprep.mubr.bf16.mxu0 0
  %2001 = vmatmul.mubr.bf16.gmra.mrb[0].mxu0 %v1645
  %v2002 = vpop.f32.mrb[0].mxu0
  %v2003 = vadd.f32 %v1026, %v2002
  %v2004 = vpop.f32.mrb[0].mxu0
  %v2005 = vpop.f32.mrb[0].mxu0
  %v2006 = vadd.f32 %v1029, %v2005
  %v2007 = vpop.f32.mrb[0].mxu0
  %2008 = vmatprep.mubr.bf16.mxu0 0
  %2009 = vmatmul.mubr.bf16.gmra.mrb[0].mxu0 %v1646
  %v2010 = vpop.f32.mrb[0].mxu0
  %v2011 = vadd.f32 %v1034, %v2010
  %v2012 = vpop.f32.mrb[0].mxu0
  %v2013 = vpop.f32.mrb[0].mxu0
  %v2014 = vadd.f32 %v1037, %v2013
  %v2015 = vpop.f32.mrb[0].mxu0
  %2016 = vmatprep.mubr.bf16.mxu0 0
  %2017 = vmatmul.mubr.bf16.gmra.mrb[0].mxu0 %v1647
  %v2018 = vpop.f32.mrb[0].mxu0
  %v2019 = vadd.f32 %v1042, %v2018
  %v2020 = vpop.f32.mrb[0].mxu0
  %v2021 = vpop.f32.mrb[0].mxu0
  %v2022 = vadd.f32 %v1045, %v2021
  %v2023 = vpop.f32.mrb[0].mxu0
  %2024 = vmatprep.mubr.bf16.mxu0 0
  %2025 = vmatmul.mubr.bf16.gmra.mrb[0].mxu0 %v1648
  %v2026 = vpop.f32.mrb[0].mxu0
  %v2027 = vadd.f32 %v1050, %v2026
  %v2028 = vpop.f32.mrb[0].mxu0
  %v2029 = vpop.f32.mrb[0].mxu0
  %v2030 = vadd.f32 %v1053, %v2029
  %v2031 = vpop.f32.mrb[0].mxu0
  %2032 = vmatprep.mubr.bf16.mxu0 0
  %2033 = vmatmul.mubr.bf16.gmra.mrb[0].mxu0 %v1649
  %v2034 = vpop.f32.mrb[0].mxu0
  %v2035 = vadd.f32 %v1058, %v2034
  %v2036 = vpop.f32.mrb[0].mxu0
  %v2037 = vpop.f32.mrb[0].mxu0
  %v2038 = vadd.f32 %v1061, %v2037
  %v2039 = vpop.f32.mrb[0].mxu0
  %2040 = vmatprep.mubr.bf16.mxu0 0
  %2041 = vmatmul.mubr.bf16.gmra.mrb[0].mxu0 %v1650
  %v2042 = vpop.f32.mrb[0].mxu0
  %v2043 = vadd.f32 %v1066, %v2042
  %v2044 = vpop.f32.mrb[0].mxu0
  %v2045 = vpop.f32.mrb[0].mxu0
  %v2046 = vadd.f32 %v1069, %v2045
  %v2047 = vpop.f32.mrb[0].mxu0
  %2048 = vmatprep.mubr.bf16.mxu0 0
  %2049 = vmatmul.mubr.bf16.gmra.mrb[0].mxu0 %v1651
  %v2050 = vpop.f32.mrb[0].mxu0
  %v2051 = vadd.f32 %v1074, %v2050
  %v2052 = vpop.f32.mrb[0].mxu0
  %v2053 = vpop.f32.mrb[0].mxu0
  %v2054 = vadd.f32 %v1077, %v2053
  %v2055 = vpop.f32.mrb[0].mxu0
  %2056 = vmatprep.mubr.bf16.mxu0 0
  %2057 = vmatmul.mubr.bf16.gmra.mrb[0].mxu0 %v1652
  %v2058 = vpop.f32.mrb[0].mxu0
  %v2059 = vadd.f32 %v1082, %v2058
  %v2060 = vpop.f32.mrb[0].mxu0
  %v2061 = vpop.f32.mrb[0].mxu0
  %v2062 = vadd.f32 %v1085, %v2061
  %v2063 = vpop.f32.mrb[0].mxu0
  %2064 = vmatprep.mubr.bf16.mxu0 0
  %2065 = vmatmul.mubr.bf16.gmra.mrb[0].mxu0 %v1653
  %v2066 = vpop.f32.mrb[0].mxu0
  %v2067 = vadd.f32 %v1090, %v2066
  %v2068 = vpop.f32.mrb[0].mxu0
  %v2069 = vpop.f32.mrb[0].mxu0
  %v2070 = vadd.f32 %v1093, %v2069
  %v2071 = vpop.f32.mrb[0].mxu0
  %2072 = vmatprep.mubr.bf16.mxu0 0
  %2073 = vmatmul.mubr.bf16.gmra.mrb[0].mxu0 %v1654
  %v2074 = vpop.f32.mrb[0].mxu0
  %v2075 = vadd.f32 %v1098, %v2074
  %v2076 = vpop.f32.mrb[0].mxu0
  %v2077 = vpop.f32.mrb[0].mxu0
  %v2078 = vadd.f32 %v1101, %v2077
  %v2079 = vpop.f32.mrb[0].mxu0
  %2080 = vmatprep.mubr.bf16.mxu0 0
  %2081 = vmatmul.mubr.bf16.gmra.mrb[0].mxu0 %v1655
  %v2082 = vpop.f32.mrb[0].mxu0
  %v2083 = vadd.f32 %v1106, %v2082
  %v2084 = vpop.f32.mrb[0].mxu0
  %v2085 = vpop.f32.mrb[0].mxu0
  %v2086 = vadd.f32 %v1109, %v2085
  %v2087 = vpop.f32.mrb[0].mxu0
  %2088 = vmatprep.mubr.bf16.mxu0 0
  %2089 = vmatmul.mubr.bf16.gmra.mrb[0].mxu0 %v1656
  %v2090 = vpop.f32.mrb[0].mxu0
  %v2091 = vadd.f32 %v1114, %v2090
  %v2092 = vpop.f32.mrb[0].mxu0
  %v2093 = vpop.f32.mrb[0].mxu0
  %v2094 = vadd.f32 %v1117, %v2093
  %v2095 = vpop.f32.mrb[0].mxu0
  %2096 = vmatprep.mubr.bf16.mxu0 0
  %2097 = vmatmul.mubr.bf16.gmra.mrb[0].mxu0 %v1657
  %v2098 = vpop.f32.mrb[0].mxu0
  %v2099 = vadd.f32 %v1122, %v2098
  %v2100 = vpop.f32.mrb[0].mxu0
  %v2101 = vpop.f32.mrb[0].mxu0
  %v2102 = vadd.f32 %v1125, %v2101
  %v2103 = vpop.f32.mrb[0].mxu0
  %2104 = vmatprep.mubr.bf16.mxu0 0
  %2105 = vmatmul.mubr.bf16.gmra.mrb[0].mxu0 %v1658
  %v2106 = vpop.f32.mrb[0].mxu0
  %v2107 = vadd.f32 %v1130, %v2106
  %v2108 = vpop.f32.mrb[0].mxu0
  %v2109 = vpop.f32.mrb[0].mxu0
  %v2110 = vadd.f32 %v1133, %v2109
  %v2111 = vpop.f32.mrb[0].mxu0
  %2112 = vmatprep.mubr.bf16.mxu0 0
  %2113 = vmatmul.mubr.bf16.gmra.mrb[0].mxu0 %v1659
  %v2114 = vpop.f32.mrb[0].mxu0
  %v2115 = vadd.f32 %v1138, %v2114
  %v2116 = vpop.f32.mrb[0].mxu0
  %v2117 = vpop.f32.mrb[0].mxu0
  %v2118 = vadd.f32 %v1141, %v2117
  %v2119 = vpop.f32.mrb[0].mxu0
  %2120 = vmatprep.mubr.bf16.mxu0 0
  %2121 = vmatmul.mubr.bf16.gmra.mrb[0].mxu0 %v1660
  %v2122 = vpop.f32.mrb[0].mxu0
  %v2123 = vadd.f32 %v1146, %v2122
  %v2124 = vpop.f32.mrb[0].mxu0
  %v2125 = vpop.f32.mrb[0].mxu0
  %v2126 = vadd.f32 %v1149, %v2125
  %v2127 = vpop.f32.mrb[0].mxu0
  %2128 = vmatprep.mubr.bf16.mxu0 0
  %2129 = vmatmul.mubr.bf16.gmra.mrb[0].mxu0 %v1661
  %v2130 = vpop.f32.mrb[0].mxu0
  %v2131 = vadd.f32 %v1154, %v2130
  %v2132 = vpop.f32.mrb[0].mxu0
  %v2133 = vpop.f32.mrb[0].mxu0
  %v2134 = vadd.f32 %v1157, %v2133
  %v2135 = vpop.f32.mrb[0].mxu0
  %2136 = vmatprep.mubr.bf16.mxu0 0
  %2137 = vmatmul.mubr.bf16.gmra.mrb[0].mxu0 %v1662
  %v2138 = vpop.f32.mrb[0].mxu0
  %v2139 = vadd.f32 %v1162, %v2138
  %v2140 = vpop.f32.mrb[0].mxu0
  %v2141 = vpop.f32.mrb[0].mxu0
  %v2142 = vadd.f32 %v1165, %v2141
  %v2143 = vpop.f32.mrb[0].mxu0
  %2144 = vmatprep.mubr.bf16.mxu0 0
  %2145 = vmatmul.mubr.bf16.gmra.mrb[0].mxu0 %v1663
  %v2146 = vpop.f32.mrb[0].mxu0
  %v2147 = vadd.f32 %v1170, %v2146
  %v2148 = vpop.f32.mrb[0].mxu0
  %v2149 = vpop.f32.mrb[0].mxu0
  %v2150 = vadd.f32 %v1173, %v2149
  %v2151 = vpop.f32.mrb[0].mxu0
  %2152 = vmatprep.mubr.bf16.mxu0 0
  %2153 = vmatmul.mubr.bf16.gmra.mrb[0].mxu0 %v1664
  %v2154 = vpop.f32.mrb[0].mxu0
  %v2155 = vadd.f32 %v1178, %v2154
  %v2156 = vpop.f32.mrb[0].mxu0
  %v2157 = vpop.f32.mrb[0].mxu0
  %v2158 = vadd.f32 %v1181, %v2157
  %v2159 = vpop.f32.mrb[0].mxu0
  %2160 = vmatprep.mubr.bf16.mxu0 0
  %2161 = vmatmul.mubr.bf16.gmra.mrb[0].mxu0 %v1665
  %v2162 = vpop.f32.mrb[0].mxu0
  %v2163 = vadd.f32 %v1186, %v2162
  %v2164 = vpop.f32.mrb[0].mxu0
  %v2165 = vpop.f32.mrb[0].mxu0
  %v2166 = vadd.f32 %v1189, %v2165
  %v2167 = vpop.f32.mrb[0].mxu0
  %2168 = vmatprep.mubr.bf16.mxu0 0
  %2169 = vmatmul.mubr.bf16.gmra.mrb[0].mxu0 %v1666
  %v2170 = vpop.f32.mrb[0].mxu0
  %v2171 = vadd.f32 %v1194, %v2170
  %v2172 = vpop.f32.mrb[0].mxu0
  %v2173 = vpop.f32.mrb[0].mxu0
  %v2174 = vadd.f32 %v1197, %v2173
  %v2175 = vpop.f32.mrb[0].mxu0
  %2176 = vmatprep.mubr.bf16.mxu0 0
  %2177 = vmatmul.mubr.bf16.gmra.mrb[0].mxu0 %v1667
  %v2178 = vpop.f32.mrb[0].mxu0
  %v2179 = vadd.f32 %v1202, %v2178
  %v2180 = vpop.f32.mrb[0].mxu0
  %v2181 = vpop.f32.mrb[0].mxu0
  %v2182 = vadd.f32 %v1205, %v2181
  %v2183 = vpop.f32.mrb[0].mxu0
  %2184 = vmatprep.mubr.bf16.mxu0 0
  %2185 = vmatmul.mubr.bf16.gmra.mrb[0].mxu0 %v1668
  %v2186 = vpop.f32.mrb[0].mxu0
  %v2187 = vadd.f32 %v1210, %v2186
  %v2188 = vpop.f32.mrb[0].mxu0
  %v2189 = vpop.f32.mrb[0].mxu0
  %v2190 = vadd.f32 %v1213, %v2189
  %v2191 = vpop.f32.mrb[0].mxu0
  %2192 = vmatprep.mubr.bf16.mxu0 0
  %2193 = vmatmul.mubr.bf16.gmra.mrb[0].mxu0 %v1669
  %v2194 = vpop.f32.mrb[0].mxu0
  %v2195 = vadd.f32 %v1218, %v2194
  %v2196 = vpop.f32.mrb[0].mxu0
  %v2197 = vpop.f32.mrb[0].mxu0
  %v2198 = vadd.f32 %v1221, %v2197
  %v2199 = vpop.f32.mrb[0].mxu0
  %2200 = vmatprep.mubr.bf16.mxu0 0
  %2201 = vmatmul.mubr.bf16.gmra.mrb[0].mxu0 %v1670
  %v2202 = vpop.f32.mrb[0].mxu0
  %v2203 = vadd.f32 %v1226, %v2202
  %v2204 = vpop.f32.mrb[0].mxu0
  %v2205 = vpop.f32.mrb[0].mxu0
  %v2206 = vadd.f32 %v1229, %v2205
  %v2207 = vpop.f32.mrb[0].mxu0
  %2208 = vmatprep.mubr.bf16.mxu0 0
  %2209 = vmatmul.mubr.bf16.gmra.mrb[0].mxu0 %v1671
  %v2210 = vpop.f32.mrb[0].mxu0
  %v2211 = vadd.f32 %v1234, %v2210
  %v2212 = vpop.f32.mrb[0].mxu0
  %v2213 = vpop.f32.mrb[0].mxu0
  %v2214 = vadd.f32 %v1237, %v2213
  %v2215 = vpop.f32.mrb[0].mxu0
  %2216 = vmatprep.mubr.bf16.mxu0 0
  %2217 = vmatmul.mubr.bf16.gmra.mrb[0].mxu0 %v1672
  %v2218 = vpop.f32.mrb[0].mxu0
  %v2219 = vadd.f32 %v1242, %v2218
  %v2220 = vpop.f32.mrb[0].mxu0
  %v2221 = vpop.f32.mrb[0].mxu0
  %v2222 = vadd.f32 %v1245, %v2221
  %v2223 = vpop.f32.mrb[0].mxu0
  %2224 = vmatprep.mubr.bf16.mxu0 0
  %2225 = vmatmul.mubr.bf16.gmra.mrb[0].mxu0 %v1673
  %v2226 = vpop.f32.mrb[0].mxu0
  %v2227 = vadd.f32 %v1250, %v2226
  %v2228 = vpop.f32.mrb[0].mxu0
  %v2229 = vpop.f32.mrb[0].mxu0
  %v2230 = vadd.f32 %v1253, %v2229
  %v2231 = vpop.f32.mrb[0].mxu0
  %2232 = vmatprep.mubr.bf16.mxu0 0
  %2233 = vmatmul.mubr.bf16.gmra.mrb[0].mxu0 %v1674
  %v2234 = vpop.f32.mrb[0].mxu0
  %v2235 = vadd.f32 %v1258, %v2234
  %v2236 = vpop.f32.mrb[0].mxu0
  %v2237 = vpop.f32.mrb[0].mxu0
  %v2238 = vadd.f32 %v1261, %v2237
  %v2239 = vpop.f32.mrb[0].mxu0
  %2240 = vmatprep.mubr.bf16.mxu0 0
  %2241 = vmatmul.mubr.bf16.gmra.mrb[0].mxu0 %v1675
  %v2242 = vpop.f32.mrb[0].mxu0
  %v2243 = vadd.f32 %v1266, %v2242
  %v2244 = vpop.f32.mrb[0].mxu0
  %v2245 = vpop.f32.mrb[0].mxu0
  %v2246 = vadd.f32 %v1269, %v2245
  %v2247 = vpop.f32.mrb[0].mxu0
  %2248 = vmatprep.mubr.bf16.mxu0 0
  %2249 = vmatmul.mubr.bf16.gmra.mrb[0].mxu0 %v1676
  %v2250 = vpop.f32.mrb[0].mxu0
  %v2251 = vadd.f32 %v1274, %v2250
  %v2252 = vpop.f32.mrb[0].mxu0
  %v2253 = vpop.f32.mrb[0].mxu0
  %v2254 = vadd.f32 %v1277, %v2253
  %v2255 = vpop.f32.mrb[0].mxu0
  %2256 = vmatprep.mubr.bf16.mxu0 0
  %2257 = vmatmul.mubr.bf16.gmra.mrb[0].mxu0 %v1677
  %v2258 = vpop.f32.mrb[0].mxu0
  %v2259 = vadd.f32 %v1282, %v2258
  %v2260 = vpop.f32.mrb[0].mxu0
  %v2261 = vpop.f32.mrb[0].mxu0
  %v2262 = vadd.f32 %v1285, %v2261
  %v2263 = vpop.f32.mrb[0].mxu0
  %2264 = vmatprep.mubr.bf16.mxu0 0
  %2265 = vmatmul.mubr.bf16.gmra.mrb[0].mxu0 %v1678
  %v2266 = vpop.f32.mrb[0].mxu0
  %v2267 = vadd.f32 %v1290, %v2266
  %v2268 = vpop.f32.mrb[0].mxu0
  %v2269 = vpop.f32.mrb[0].mxu0
  %v2270 = vadd.f32 %v1293, %v2269
  %v2271 = vpop.f32.mrb[0].mxu0
  %2272 = vmatprep.mubr.bf16.mxu0 0
  %2273 = vmatmul.mubr.bf16.gmra.mrb[0].mxu0 %v1679
  %v2274 = vpop.f32.mrb[0].mxu0
  %v2275 = vadd.f32 %v1298, %v2274
  %v2276 = vpop.f32.mrb[0].mxu0
  %v2277 = vpop.f32.mrb[0].mxu0
  %v2278 = vadd.f32 %v1301, %v2277
  %v2279 = vpop.f32.mrb[0].mxu0
  %2280 = vmatprep.mubr.bf16.mxu0 0
  %2281 = vmatmul.mubr.bf16.gmra.mrb[0].mxu0 %v1680
  %v2282 = vpop.f32.mrb[0].mxu0
  %v2283 = vadd.f32 %v1306, %v2282
  %v2284 = vpop.f32.mrb[0].mxu0
  %v2285 = vpop.f32.mrb[0].mxu0
  %v2286 = vadd.f32 %v1309, %v2285
  %v2287 = vpop.f32.mrb[0].mxu0
  %2288 = vmatprep.mubr.bf16.mxu0 0
  %2289 = vmatmul.mubr.bf16.gmra.mrb[0].mxu0 %v1681
  %v2290 = vpop.f32.mrb[0].mxu0
  %v2291 = vadd.f32 %v1314, %v2290
  %v2292 = vpop.f32.mrb[0].mxu0
  %v2293 = vpop.f32.mrb[0].mxu0
  %v2294 = vadd.f32 %v1317, %v2293
  %v2295 = vpop.f32.mrb[0].mxu0
  %2296 = vmatprep.mubr.bf16.mxu0 0
  %2297 = vmatmul.mubr.bf16.gmra.mrb[0].mxu0 %v1682
  %v2298 = vpop.f32.mrb[0].mxu0
  %v2299 = vadd.f32 %v1322, %v2298
  %v2300 = vpop.f32.mrb[0].mxu0
  %v2301 = vpop.f32.mrb[0].mxu0
  %v2302 = vadd.f32 %v1325, %v2301
  %v2303 = vpop.f32.mrb[0].mxu0
  %2304 = vmatprep.mubr.bf16.mxu0 0
  %2305 = vmatmul.mubr.bf16.gmra.mrb[0].mxu0 %v1683
  %v2306 = vpop.f32.mrb[0].mxu0
  %v2307 = vadd.f32 %v1330, %v2306
  %v2308 = vpop.f32.mrb[0].mxu0
  %v2309 = vpop.f32.mrb[0].mxu0
  %v2310 = vadd.f32 %v1333, %v2309
  %v2311 = vpop.f32.mrb[0].mxu0
  %2312 = vmatprep.mubr.bf16.mxu0 0
  %2313 = vmatmul.mubr.bf16.gmra.mrb[0].mxu0 %v1684
  %v2314 = vpop.f32.mrb[0].mxu0
  %v2315 = vadd.f32 %v1338, %v2314
  %v2316 = vpop.f32.mrb[0].mxu0
  %v2317 = vpop.f32.mrb[0].mxu0
  %v2318 = vadd.f32 %v1341, %v2317
  %v2319 = vpop.f32.mrb[0].mxu0
  %2320 = vmatprep.mubr.bf16.mxu0 0
  %2321 = vmatmul.mubr.bf16.gmra.mrb[0].mxu0 %v1685
  %v2322 = vpop.f32.mrb[0].mxu0
  %v2323 = vadd.f32 %v1346, %v2322
  %v2324 = vpop.f32.mrb[0].mxu0
  %v2325 = vpop.f32.mrb[0].mxu0
  %v2326 = vadd.f32 %v1349, %v2325
  %v2327 = vpop.f32.mrb[0].mxu0
  %2328 = vmatprep.mubr.bf16.mxu0 0
  %2329 = vmatmul.mubr.bf16.gmra.mrb[0].mxu0 %v1686
  %v2330 = vpop.f32.mrb[0].mxu0
  %v2331 = vadd.f32 %v1354, %v2330
  %v2332 = vpop.f32.mrb[0].mxu0
  %v2333 = vpop.f32.mrb[0].mxu0
  %v2334 = vadd.f32 %v1357, %v2333
  %v2335 = vpop.f32.mrb[0].mxu0
  %2336 = vmatprep.mubr.bf16.mxu0 0
  %2337 = vmatmul.mubr.bf16.gmra.mrb[0].mxu0 %v1687
  %v2338 = vpop.f32.mrb[0].mxu0
  %v2339 = vadd.f32 %v1362, %v2338
  %v2340 = vpop.f32.mrb[0].mxu0
  %v2341 = vpop.f32.mrb[0].mxu0
  %v2342 = vadd.f32 %v1365, %v2341
  %v2343 = vpop.f32.mrb[0].mxu0
  %2344 = vdwg.mxu0
  %v2345 = vld [vmem:[%s4] sm:$0x1]
  %v2347 = vlaneseq
  %v2348 = vshrl.u32 %v2347, 7
  %v2349 = vsub.s32 0, %v2348
  %v2350 = vrot.slane %v2345, %v2349
  %v2352 = vadd.f32 %v1835, %v2350
  %v2353 = vadd.f32 %v1838, %v2350
  %v2354 = vadd.f32 %v1843, %v2350
  %v2355 = vadd.f32 %v1846, %v2350
  %v2356 = vadd.f32 %v1851, %v2350
  %v2357 = vadd.f32 %v1854, %v2350
  %v2358 = vadd.f32 %v1859, %v2350
  %v2359 = vadd.f32 %v1862, %v2350
  %v2360 = vadd.f32 %v1867, %v2350
  %v2361 = vadd.f32 %v1870, %v2350
  %v2362 = vadd.f32 %v1875, %v2350
  %v2363 = vadd.f32 %v1878, %v2350
  %v2364 = vadd.f32 %v1883, %v2350
  %v2365 = vadd.f32 %v1886, %v2350
  %v2366 = vadd.f32 %v1891, %v2350
  %v2367 = vadd.f32 %v1894, %v2350
  %v2368 = vadd.f32 %v1899, %v2350
  %v2369 = vadd.f32 %v1902, %v2350
  %v2370 = vadd.f32 %v1907, %v2350
  %v2371 = vadd.f32 %v1910, %v2350
  %v2372 = vadd.f32 %v1915, %v2350
  %v2373 = vadd.f32 %v1918, %v2350
  %v2374 = vadd.f32 %v1923, %v2350
  %v2375 = vadd.f32 %v1926, %v2350
  %v2376 = vadd.f32 %v1931, %v2350
  %v2377 = vadd.f32 %v1934, %v2350
  %v2378 = vadd.f32 %v1939, %v2350
  %v2379 = vadd.f32 %v1942, %v2350
  %v2380 = vadd.f32 %v1947, %v2350
  %v2381 = vadd.f32 %v1950, %v2350
  %v2382 = vadd.f32 %v1955, %v2350
  %v2383 = vadd.f32 %v1958, %v2350
  %v2384 = vadd.f32 %v1963, %v2350
  %v2385 = vadd.f32 %v1966, %v2350
  %v2386 = vadd.f32 %v1971, %v2350
  %v2387 = vadd.f32 %v1974, %v2350
  %v2388 = vadd.f32 %v1979, %v2350
  %v2389 = vadd.f32 %v1982, %v2350
  %v2390 = vadd.f32 %v1987, %v2350
  %v2391 = vadd.f32 %v1990, %v2350
  %v2392 = vadd.f32 %v1995, %v2350
  %v2393 = vadd.f32 %v1998, %v2350
  %v2394 = vadd.f32 %v2003, %v2350
  %v2395 = vadd.f32 %v2006, %v2350
  %v2396 = vadd.f32 %v2011, %v2350
  %v2397 = vadd.f32 %v2014, %v2350
  %v2398 = vadd.f32 %v2019, %v2350
  %v2399 = vadd.f32 %v2022, %v2350
  %v2400 = vadd.f32 %v2027, %v2350
  %v2401 = vadd.f32 %v2030, %v2350
  %v2402 = vadd.f32 %v2035, %v2350
  %v2403 = vadd.f32 %v2038, %v2350
  %v2404 = vadd.f32 %v2043, %v2350
  %v2405 = vadd.f32 %v2046, %v2350
  %v2406 = vadd.f32 %v2051, %v2350
  %v2407 = vadd.f32 %v2054, %v2350
  %v2408 = vadd.f32 %v2059, %v2350
  %v2409 = vadd.f32 %v2062, %v2350
  %v2410 = vadd.f32 %v2067, %v2350
  %v2411 = vadd.f32 %v2070, %v2350
  %v2412 = vadd.f32 %v2075, %v2350
  %v2413 = vadd.f32 %v2078, %v2350
  %v2414 = vadd.f32 %v2083, %v2350
  %v2415 = vadd.f32 %v2086, %v2350
  %v2416 = vadd.f32 %v2091, %v2350
  %v2417 = vadd.f32 %v2094, %v2350
  %v2418 = vadd.f32 %v2099, %v2350
  %v2419 = vadd.f32 %v2102, %v2350
  %v2420 = vadd.f32 %v2107, %v2350
  %v2421 = vadd.f32 %v2110, %v2350
  %v2422 = vadd.f32 %v2115, %v2350
  %v2423 = vadd.f32 %v2118, %v2350
  %v2424 = vadd.f32 %v2123, %v2350
  %v2425 = vadd.f32 %v2126, %v2350
  %v2426 = vadd.f32 %v2131, %v2350
  %v2427 = vadd.f32 %v2134, %v2350
  %v2428 = vadd.f32 %v2139, %v2350
  %v2429 = vadd.f32 %v2142, %v2350
  %v2430 = vadd.f32 %v2147, %v2350
  %v2431 = vadd.f32 %v2150, %v2350
  %v2432 = vadd.f32 %v2155, %v2350
  %v2433 = vadd.f32 %v2158, %v2350
  %v2434 = vadd.f32 %v2163, %v2350
  %v2435 = vadd.f32 %v2166, %v2350
  %v2436 = vadd.f32 %v2171, %v2350
  %v2437 = vadd.f32 %v2174, %v2350
  %v2438 = vadd.f32 %v2179, %v2350
  %v2439 = vadd.f32 %v2182, %v2350
  %v2440 = vadd.f32 %v2187, %v2350
  %v2441 = vadd.f32 %v2190, %v2350
  %v2442 = vadd.f32 %v2195, %v2350
  %v2443 = vadd.f32 %v2198, %v2350
  %v2444 = vadd.f32 %v2203, %v2350
  %v2445 = vadd.f32 %v2206, %v2350
  %v2446 = vadd.f32 %v2211, %v2350
  %v2447 = vadd.f32 %v2214, %v2350
  %v2448 = vadd.f32 %v2219, %v2350
  %v2449 = vadd.f32 %v2222, %v2350
  %v2450 = vadd.f32 %v2227, %v2350
  %v2451 = vadd.f32 %v2230, %v2350
  %v2452 = vadd.f32 %v2235, %v2350
  %v2453 = vadd.f32 %v2238, %v2350
  %v2454 = vadd.f32 %v2243, %v2350
  %v2455 = vadd.f32 %v2246, %v2350
  %v2456 = vadd.f32 %v2251, %v2350
  %v2457 = vadd.f32 %v2254, %v2350
  %v2458 = vadd.f32 %v2259, %v2350
  %v2459 = vadd.f32 %v2262, %v2350
  %v2460 = vadd.f32 %v2267, %v2350
  %v2461 = vadd.f32 %v2270, %v2350
  %v2462 = vadd.f32 %v2275, %v2350
  %v2463 = vadd.f32 %v2278, %v2350
  %v2464 = vadd.f32 %v2283, %v2350
  %v2465 = vadd.f32 %v2286, %v2350
  %v2466 = vadd.f32 %v2291, %v2350
  %v2467 = vadd.f32 %v2294, %v2350
  %v2468 = vadd.f32 %v2299, %v2350
  %v2469 = vadd.f32 %v2302, %v2350
  %v2470 = vadd.f32 %v2307, %v2350
  %v2471 = vadd.f32 %v2310, %v2350
  %v2472 = vadd.f32 %v2315, %v2350
  %v2473 = vadd.f32 %v2318, %v2350
  %v2474 = vadd.f32 %v2323, %v2350
  %v2475 = vadd.f32 %v2326, %v2350
  %v2476 = vadd.f32 %v2331, %v2350
  %v2477 = vadd.f32 %v2334, %v2350
  %v2478 = vadd.f32 %v2339, %v2350
  %v2479 = vadd.f32 %v2342, %v2350
  %v2480 = vmax.f32 %v2352, 0.0
  %v2481 = vmax.f32 %v2353, 0.0
  %v2482 = vmax.f32 %v2354, 0.0
  %v2483 = vmax.f32 %v2355, 0.0
  %v2484 = vmax.f32 %v2356, 0.0
  %v2485 = vmax.f32 %v2357, 0.0
  %v2486 = vmax.f32 %v2358, 0.0
  %v2487 = vmax.f32 %v2359, 0.0
  %v2488 = vmax.f32 %v2360, 0.0
  %v2489 = vmax.f32 %v2361, 0.0
  %v2490 = vmax.f32 %v2362, 0.0
  %v2491 = vmax.f32 %v2363, 0.0
  %v2492 = vmax.f32 %v2364, 0.0
  %v2493 = vmax.f32 %v2365, 0.0
  %v2494 = vmax.f32 %v2366, 0.0
  %v2495 = vmax.f32 %v2367, 0.0
  %v2496 = vmax.f32 %v2368, 0.0
  %v2497 = vmax.f32 %v2369, 0.0
  %v2498 = vmax.f32 %v2370, 0.0
  %v2499 = vmax.f32 %v2371, 0.0
  %v2500 = vmax.f32 %v2372, 0.0
  %v2501 = vmax.f32 %v2373, 0.0
  %v2502 = vmax.f32 %v2374, 0.0
  %v2503 = vmax.f32 %v2375, 0.0
  %v2504 = vmax.f32 %v2376, 0.0
  %v2505 = vmax.f32 %v2377, 0.0
  %v2506 = vmax.f32 %v2378, 0.0
  %v2507 = vmax.f32 %v2379, 0.0
  %v2508 = vmax.f32 %v2380, 0.0
  %v2509 = vmax.f32 %v2381, 0.0
  %v2510 = vmax.f32 %v2382, 0.0
  %v2511 = vmax.f32 %v2383, 0.0
  %v2512 = vmax.f32 %v2384, 0.0
  %v2513 = vmax.f32 %v2385, 0.0
  %v2514 = vmax.f32 %v2386, 0.0
  %v2515 = vmax.f32 %v2387, 0.0
  %v2516 = vmax.f32 %v2388, 0.0
  %v2517 = vmax.f32 %v2389, 0.0
  %v2518 = vmax.f32 %v2390, 0.0
  %v2519 = vmax.f32 %v2391, 0.0
  %v2520 = vmax.f32 %v2392, 0.0
  %v2521 = vmax.f32 %v2393, 0.0
  %v2522 = vmax.f32 %v2394, 0.0
  %v2523 = vmax.f32 %v2395, 0.0
  %v2524 = vmax.f32 %v2396, 0.0
  %v2525 = vmax.f32 %v2397, 0.0
  %v2526 = vmax.f32 %v2398, 0.0
  %v2527 = vmax.f32 %v2399, 0.0
  %v2528 = vmax.f32 %v2400, 0.0
  %v2529 = vmax.f32 %v2401, 0.0
  %v2530 = vmax.f32 %v2402, 0.0
  %v2531 = vmax.f32 %v2403, 0.0
  %v2532 = vmax.f32 %v2404, 0.0
  %v2533 = vmax.f32 %v2405, 0.0
  %v2534 = vmax.f32 %v2406, 0.0
  %v2535 = vmax.f32 %v2407, 0.0
  %v2536 = vmax.f32 %v2408, 0.0
  %v2537 = vmax.f32 %v2409, 0.0
  %v2538 = vmax.f32 %v2410, 0.0
  %v2539 = vmax.f32 %v2411, 0.0
  %v2540 = vmax.f32 %v2412, 0.0
  %v2541 = vmax.f32 %v2413, 0.0
  %v2542 = vmax.f32 %v2414, 0.0
  %v2543 = vmax.f32 %v2415, 0.0
  %v2544 = vmax.f32 %v2416, 0.0
  %v2545 = vmax.f32 %v2417, 0.0
  %v2546 = vmax.f32 %v2418, 0.0
  %v2547 = vmax.f32 %v2419, 0.0
  %v2548 = vmax.f32 %v2420, 0.0
  %v2549 = vmax.f32 %v2421, 0.0
  %v2550 = vmax.f32 %v2422, 0.0
  %v2551 = vmax.f32 %v2423, 0.0
  %v2552 = vmax.f32 %v2424, 0.0
  %v2553 = vmax.f32 %v2425, 0.0
  %v2554 = vmax.f32 %v2426, 0.0
  %v2555 = vmax.f32 %v2427, 0.0
  %v2556 = vmax.f32 %v2428, 0.0
  %v2557 = vmax.f32 %v2429, 0.0
  %v2558 = vmax.f32 %v2430, 0.0
  %v2559 = vmax.f32 %v2431, 0.0
  %v2560 = vmax.f32 %v2432, 0.0
  %v2561 = vmax.f32 %v2433, 0.0
  %v2562 = vmax.f32 %v2434, 0.0
  %v2563 = vmax.f32 %v2435, 0.0
  %v2564 = vmax.f32 %v2436, 0.0
  %v2565 = vmax.f32 %v2437, 0.0
  %v2566 = vmax.f32 %v2438, 0.0
  %v2567 = vmax.f32 %v2439, 0.0
  %v2568 = vmax.f32 %v2440, 0.0
  %v2569 = vmax.f32 %v2441, 0.0
  %v2570 = vmax.f32 %v2442, 0.0
  %v2571 = vmax.f32 %v2443, 0.0
  %v2572 = vmax.f32 %v2444, 0.0
  %v2573 = vmax.f32 %v2445, 0.0
  %v2574 = vmax.f32 %v2446, 0.0
  %v2575 = vmax.f32 %v2447, 0.0
  %v2576 = vmax.f32 %v2448, 0.0
  %v2577 = vmax.f32 %v2449, 0.0
  %v2578 = vmax.f32 %v2450, 0.0
  %v2579 = vmax.f32 %v2451, 0.0
  %v2580 = vmax.f32 %v2452, 0.0
  %v2581 = vmax.f32 %v2453, 0.0
  %v2582 = vmax.f32 %v2454, 0.0
  %v2583 = vmax.f32 %v2455, 0.0
  %v2584 = vmax.f32 %v2456, 0.0
  %v2585 = vmax.f32 %v2457, 0.0
  %v2586 = vmax.f32 %v2458, 0.0
  %v2587 = vmax.f32 %v2459, 0.0
  %v2588 = vmax.f32 %v2460, 0.0
  %v2589 = vmax.f32 %v2461, 0.0
  %v2590 = vmax.f32 %v2462, 0.0
  %v2591 = vmax.f32 %v2463, 0.0
  %v2592 = vmax.f32 %v2464, 0.0
  %v2593 = vmax.f32 %v2465, 0.0
  %v2594 = vmax.f32 %v2466, 0.0
  %v2595 = vmax.f32 %v2467, 0.0
  %v2596 = vmax.f32 %v2468, 0.0
  %v2597 = vmax.f32 %v2469, 0.0
  %v2598 = vmax.f32 %v2470, 0.0
  %v2599 = vmax.f32 %v2471, 0.0
  %v2600 = vmax.f32 %v2472, 0.0
  %v2601 = vmax.f32 %v2473, 0.0
  %v2602 = vmax.f32 %v2474, 0.0
  %v2603 = vmax.f32 %v2475, 0.0
  %v2604 = vmax.f32 %v2476, 0.0
  %v2605 = vmax.f32 %v2477, 0.0
  %v2606 = vmax.f32 %v2478, 0.0
  %v2607 = vmax.f32 %v2479, 0.0
  %v2608 = vrot.slane %v2480, 4
  %v2609 = vmax.f32 %v2480, %v2608
  %v2610 = vrot.slane %v2609, 2
  %v2611 = vmax.f32 %v2609, %v2610
  %v2612 = vrot.slane %v2611, 1
  %v2613 = vmax.f32 %v2611, %v2612
  %v2614 = vrot.slane %v2481, 4
  %v2615 = vmax.f32 %v2481, %v2614
  %v2616 = vrot.slane %v2615, 2
  %v2617 = vmax.f32 %v2615, %v2616
  %v2618 = vrot.slane %v2617, 1
  %v2619 = vmax.f32 %v2617, %v2618
  %v2620 = vrot.slane %v2482, 4
  %v2621 = vmax.f32 %v2482, %v2620
  %v2622 = vrot.slane %v2621, 2
  %v2623 = vmax.f32 %v2621, %v2622
  %v2624 = vrot.slane %v2623, 1
  %v2625 = vmax.f32 %v2623, %v2624
  %v2626 = vrot.slane %v2483, 4
  %v2627 = vmax.f32 %v2483, %v2626
  %v2628 = vrot.slane %v2627, 2
  %v2629 = vmax.f32 %v2627, %v2628
  %v2630 = vrot.slane %v2629, 1
  %v2631 = vmax.f32 %v2629, %v2630
  %v2632 = vrot.slane %v2484, 4
  %v2633 = vmax.f32 %v2484, %v2632
  %v2634 = vrot.slane %v2633, 2
  %v2635 = vmax.f32 %v2633, %v2634
  %v2636 = vrot.slane %v2635, 1
  %v2637 = vmax.f32 %v2635, %v2636
  %v2638 = vrot.slane %v2485, 4
  %v2639 = vmax.f32 %v2485, %v2638
  %v2640 = vrot.slane %v2639, 2
  %v2641 = vmax.f32 %v2639, %v2640
  %v2642 = vrot.slane %v2641, 1
  %v2643 = vmax.f32 %v2641, %v2642
  %v2644 = vrot.slane %v2486, 4
  %v2645 = vmax.f32 %v2486, %v2644
  %v2646 = vrot.slane %v2645, 2
  %v2647 = vmax.f32 %v2645, %v2646
  %v2648 = vrot.slane %v2647, 1
  %v2649 = vmax.f32 %v2647, %v2648
  %v2650 = vrot.slane %v2487, 4
  %v2651 = vmax.f32 %v2487, %v2650
  %v2652 = vrot.slane %v2651, 2
  %v2653 = vmax.f32 %v2651, %v2652
  %v2654 = vrot.slane %v2653, 1
  %v2655 = vmax.f32 %v2653, %v2654
  %v2656 = vrot.slane %v2488, 4
  %v2657 = vmax.f32 %v2488, %v2656
  %v2658 = vrot.slane %v2657, 2
  %v2659 = vmax.f32 %v2657, %v2658
  %v2660 = vrot.slane %v2659, 1
  %v2661 = vmax.f32 %v2659, %v2660
  %v2662 = vrot.slane %v2489, 4
  %v2663 = vmax.f32 %v2489, %v2662
  %v2664 = vrot.slane %v2663, 2
  %v2665 = vmax.f32 %v2663, %v2664
  %v2666 = vrot.slane %v2665, 1
  %v2667 = vmax.f32 %v2665, %v2666
  %v2668 = vrot.slane %v2490, 4
  %v2669 = vmax.f32 %v2490, %v2668
  %v2670 = vrot.slane %v2669, 2
  %v2671 = vmax.f32 %v2669, %v2670
  %v2672 = vrot.slane %v2671, 1
  %v2673 = vmax.f32 %v2671, %v2672
  %v2674 = vrot.slane %v2491, 4
  %v2675 = vmax.f32 %v2491, %v2674
  %v2676 = vrot.slane %v2675, 2
  %v2677 = vmax.f32 %v2675, %v2676
  %v2678 = vrot.slane %v2677, 1
  %v2679 = vmax.f32 %v2677, %v2678
  %v2680 = vrot.slane %v2492, 4
  %v2681 = vmax.f32 %v2492, %v2680
  %v2682 = vrot.slane %v2681, 2
  %v2683 = vmax.f32 %v2681, %v2682
  %v2684 = vrot.slane %v2683, 1
  %v2685 = vmax.f32 %v2683, %v2684
  %v2686 = vrot.slane %v2493, 4
  %v2687 = vmax.f32 %v2493, %v2686
  %v2688 = vrot.slane %v2687, 2
  %v2689 = vmax.f32 %v2687, %v2688
  %v2690 = vrot.slane %v2689, 1
  %v2691 = vmax.f32 %v2689, %v2690
  %v2692 = vrot.slane %v2494, 4
  %v2693 = vmax.f32 %v2494, %v2692
  %v2694 = vrot.slane %v2693, 2
  %v2695 = vmax.f32 %v2693, %v2694
  %v2696 = vrot.slane %v2695, 1
  %v2697 = vmax.f32 %v2695, %v2696
  %v2698 = vrot.slane %v2495, 4
  %v2699 = vmax.f32 %v2495, %v2698
  %v2700 = vrot.slane %v2699, 2
  %v2701 = vmax.f32 %v2699, %v2700
  %v2702 = vrot.slane %v2701, 1
  %v2703 = vmax.f32 %v2701, %v2702
  %v2704 = vrot.slane %v2496, 4
  %v2705 = vmax.f32 %v2496, %v2704
  %v2706 = vrot.slane %v2705, 2
  %v2707 = vmax.f32 %v2705, %v2706
  %v2708 = vrot.slane %v2707, 1
  %v2709 = vmax.f32 %v2707, %v2708
  %v2710 = vrot.slane %v2497, 4
  %v2711 = vmax.f32 %v2497, %v2710
  %v2712 = vrot.slane %v2711, 2
  %v2713 = vmax.f32 %v2711, %v2712
  %v2714 = vrot.slane %v2713, 1
  %v2715 = vmax.f32 %v2713, %v2714
  %v2716 = vrot.slane %v2498, 4
  %v2717 = vmax.f32 %v2498, %v2716
  %v2718 = vrot.slane %v2717, 2
  %v2719 = vmax.f32 %v2717, %v2718
  %v2720 = vrot.slane %v2719, 1
  %v2721 = vmax.f32 %v2719, %v2720
  %v2722 = vrot.slane %v2499, 4
  %v2723 = vmax.f32 %v2499, %v2722
  %v2724 = vrot.slane %v2723, 2
  %v2725 = vmax.f32 %v2723, %v2724
  %v2726 = vrot.slane %v2725, 1
  %v2727 = vmax.f32 %v2725, %v2726
  %v2728 = vrot.slane %v2500, 4
  %v2729 = vmax.f32 %v2500, %v2728
  %v2730 = vrot.slane %v2729, 2
  %v2731 = vmax.f32 %v2729, %v2730
  %v2732 = vrot.slane %v2731, 1
  %v2733 = vmax.f32 %v2731, %v2732
  %v2734 = vrot.slane %v2501, 4
  %v2735 = vmax.f32 %v2501, %v2734
  %v2736 = vrot.slane %v2735, 2
  %v2737 = vmax.f32 %v2735, %v2736
  %v2738 = vrot.slane %v2737, 1
  %v2739 = vmax.f32 %v2737, %v2738
  %v2740 = vrot.slane %v2502, 4
  %v2741 = vmax.f32 %v2502, %v2740
  %v2742 = vrot.slane %v2741, 2
  %v2743 = vmax.f32 %v2741, %v2742
  %v2744 = vrot.slane %v2743, 1
  %v2745 = vmax.f32 %v2743, %v2744
  %v2746 = vrot.slane %v2503, 4
  %v2747 = vmax.f32 %v2503, %v2746
  %v2748 = vrot.slane %v2747, 2
  %v2749 = vmax.f32 %v2747, %v2748
  %v2750 = vrot.slane %v2749, 1
  %v2751 = vmax.f32 %v2749, %v2750
  %v2752 = vrot.slane %v2504, 4
  %v2753 = vmax.f32 %v2504, %v2752
  %v2754 = vrot.slane %v2753, 2
  %v2755 = vmax.f32 %v2753, %v2754
  %v2756 = vrot.slane %v2755, 1
  %v2757 = vmax.f32 %v2755, %v2756
  %v2758 = vrot.slane %v2505, 4
  %v2759 = vmax.f32 %v2505, %v2758
  %v2760 = vrot.slane %v2759, 2
  %v2761 = vmax.f32 %v2759, %v2760
  %v2762 = vrot.slane %v2761, 1
  %v2763 = vmax.f32 %v2761, %v2762
  %v2764 = vrot.slane %v2506, 4
  %v2765 = vmax.f32 %v2506, %v2764
  %v2766 = vrot.slane %v2765, 2
  %v2767 = vmax.f32 %v2765, %v2766
  %v2768 = vrot.slane %v2767, 1
  %v2769 = vmax.f32 %v2767, %v2768
  %v2770 = vrot.slane %v2507, 4
  %v2771 = vmax.f32 %v2507, %v2770
  %v2772 = vrot.slane %v2771, 2
  %v2773 = vmax.f32 %v2771, %v2772
  %v2774 = vrot.slane %v2773, 1
  %v2775 = vmax.f32 %v2773, %v2774
  %v2776 = vrot.slane %v2508, 4
  %v2777 = vmax.f32 %v2508, %v2776
  %v2778 = vrot.slane %v2777, 2
  %v2779 = vmax.f32 %v2777, %v2778
  %v2780 = vrot.slane %v2779, 1
  %v2781 = vmax.f32 %v2779, %v2780
  %v2782 = vrot.slane %v2509, 4
  %v2783 = vmax.f32 %v2509, %v2782
  %v2784 = vrot.slane %v2783, 2
  %v2785 = vmax.f32 %v2783, %v2784
  %v2786 = vrot.slane %v2785, 1
  %v2787 = vmax.f32 %v2785, %v2786
  %v2788 = vrot.slane %v2510, 4
  %v2789 = vmax.f32 %v2510, %v2788
  %v2790 = vrot.slane %v2789, 2
  %v2791 = vmax.f32 %v2789, %v2790
  %v2792 = vrot.slane %v2791, 1
  %v2793 = vmax.f32 %v2791, %v2792
  %v2794 = vrot.slane %v2511, 4
  %v2795 = vmax.f32 %v2511, %v2794
  %v2796 = vrot.slane %v2795, 2
  %v2797 = vmax.f32 %v2795, %v2796
  %v2798 = vrot.slane %v2797, 1
  %v2799 = vmax.f32 %v2797, %v2798
  %v2800 = vrot.slane %v2512, 4
  %v2801 = vmax.f32 %v2512, %v2800
  %v2802 = vrot.slane %v2801, 2
  %v2803 = vmax.f32 %v2801, %v2802
  %v2804 = vrot.slane %v2803, 1
  %v2805 = vmax.f32 %v2803, %v2804
  %v2806 = vrot.slane %v2513, 4
  %v2807 = vmax.f32 %v2513, %v2806
  %v2808 = vrot.slane %v2807, 2
  %v2809 = vmax.f32 %v2807, %v2808
  %v2810 = vrot.slane %v2809, 1
  %v2811 = vmax.f32 %v2809, %v2810
  %v2812 = vrot.slane %v2514, 4
  %v2813 = vmax.f32 %v2514, %v2812
  %v2814 = vrot.slane %v2813, 2
  %v2815 = vmax.f32 %v2813, %v2814
  %v2816 = vrot.slane %v2815, 1
  %v2817 = vmax.f32 %v2815, %v2816
  %v2818 = vrot.slane %v2515, 4
  %v2819 = vmax.f32 %v2515, %v2818
  %v2820 = vrot.slane %v2819, 2
  %v2821 = vmax.f32 %v2819, %v2820
  %v2822 = vrot.slane %v2821, 1
  %v2823 = vmax.f32 %v2821, %v2822
  %v2824 = vrot.slane %v2516, 4
  %v2825 = vmax.f32 %v2516, %v2824
  %v2826 = vrot.slane %v2825, 2
  %v2827 = vmax.f32 %v2825, %v2826
  %v2828 = vrot.slane %v2827, 1
  %v2829 = vmax.f32 %v2827, %v2828
  %v2830 = vrot.slane %v2517, 4
  %v2831 = vmax.f32 %v2517, %v2830
  %v2832 = vrot.slane %v2831, 2
  %v2833 = vmax.f32 %v2831, %v2832
  %v2834 = vrot.slane %v2833, 1
  %v2835 = vmax.f32 %v2833, %v2834
  %v2836 = vrot.slane %v2518, 4
  %v2837 = vmax.f32 %v2518, %v2836
  %v2838 = vrot.slane %v2837, 2
  %v2839 = vmax.f32 %v2837, %v2838
  %v2840 = vrot.slane %v2839, 1
  %v2841 = vmax.f32 %v2839, %v2840
  %v2842 = vrot.slane %v2519, 4
  %v2843 = vmax.f32 %v2519, %v2842
  %v2844 = vrot.slane %v2843, 2
  %v2845 = vmax.f32 %v2843, %v2844
  %v2846 = vrot.slane %v2845, 1
  %v2847 = vmax.f32 %v2845, %v2846
  %v2848 = vrot.slane %v2520, 4
  %v2849 = vmax.f32 %v2520, %v2848
  %v2850 = vrot.slane %v2849, 2
  %v2851 = vmax.f32 %v2849, %v2850
  %v2852 = vrot.slane %v2851, 1
  %v2853 = vmax.f32 %v2851, %v2852
  %v2854 = vrot.slane %v2521, 4
  %v2855 = vmax.f32 %v2521, %v2854
  %v2856 = vrot.slane %v2855, 2
  %v2857 = vmax.f32 %v2855, %v2856
  %v2858 = vrot.slane %v2857, 1
  %v2859 = vmax.f32 %v2857, %v2858
  %v2860 = vrot.slane %v2522, 4
  %v2861 = vmax.f32 %v2522, %v2860
  %v2862 = vrot.slane %v2861, 2
  %v2863 = vmax.f32 %v2861, %v2862
  %v2864 = vrot.slane %v2863, 1
  %v2865 = vmax.f32 %v2863, %v2864
  %v2866 = vrot.slane %v2523, 4
  %v2867 = vmax.f32 %v2523, %v2866
  %v2868 = vrot.slane %v2867, 2
  %v2869 = vmax.f32 %v2867, %v2868
  %v2870 = vrot.slane %v2869, 1
  %v2871 = vmax.f32 %v2869, %v2870
  %v2872 = vrot.slane %v2524, 4
  %v2873 = vmax.f32 %v2524, %v2872
  %v2874 = vrot.slane %v2873, 2
  %v2875 = vmax.f32 %v2873, %v2874
  %v2876 = vrot.slane %v2875, 1
  %v2877 = vmax.f32 %v2875, %v2876
  %v2878 = vrot.slane %v2525, 4
  %v2879 = vmax.f32 %v2525, %v2878
  %v2880 = vrot.slane %v2879, 2
  %v2881 = vmax.f32 %v2879, %v2880
  %v2882 = vrot.slane %v2881, 1
  %v2883 = vmax.f32 %v2881, %v2882
  %v2884 = vrot.slane %v2526, 4
  %v2885 = vmax.f32 %v2526, %v2884
  %v2886 = vrot.slane %v2885, 2
  %v2887 = vmax.f32 %v2885, %v2886
  %v2888 = vrot.slane %v2887, 1
  %v2889 = vmax.f32 %v2887, %v2888
  %v2890 = vrot.slane %v2527, 4
  %v2891 = vmax.f32 %v2527, %v2890
  %v2892 = vrot.slane %v2891, 2
  %v2893 = vmax.f32 %v2891, %v2892
  %v2894 = vrot.slane %v2893, 1
  %v2895 = vmax.f32 %v2893, %v2894
  %v2896 = vrot.slane %v2528, 4
  %v2897 = vmax.f32 %v2528, %v2896
  %v2898 = vrot.slane %v2897, 2
  %v2899 = vmax.f32 %v2897, %v2898
  %v2900 = vrot.slane %v2899, 1
  %v2901 = vmax.f32 %v2899, %v2900
  %v2902 = vrot.slane %v2529, 4
  %v2903 = vmax.f32 %v2529, %v2902
  %v2904 = vrot.slane %v2903, 2
  %v2905 = vmax.f32 %v2903, %v2904
  %v2906 = vrot.slane %v2905, 1
  %v2907 = vmax.f32 %v2905, %v2906
  %v2908 = vrot.slane %v2530, 4
  %v2909 = vmax.f32 %v2530, %v2908
  %v2910 = vrot.slane %v2909, 2
  %v2911 = vmax.f32 %v2909, %v2910
  %v2912 = vrot.slane %v2911, 1
  %v2913 = vmax.f32 %v2911, %v2912
  %v2914 = vrot.slane %v2531, 4
  %v2915 = vmax.f32 %v2531, %v2914
  %v2916 = vrot.slane %v2915, 2
  %v2917 = vmax.f32 %v2915, %v2916
  %v2918 = vrot.slane %v2917, 1
  %v2919 = vmax.f32 %v2917, %v2918
  %v2920 = vrot.slane %v2532, 4
  %v2921 = vmax.f32 %v2532, %v2920
  %v2922 = vrot.slane %v2921, 2
  %v2923 = vmax.f32 %v2921, %v2922
  %v2924 = vrot.slane %v2923, 1
  %v2925 = vmax.f32 %v2923, %v2924
  %v2926 = vrot.slane %v2533, 4
  %v2927 = vmax.f32 %v2533, %v2926
  %v2928 = vrot.slane %v2927, 2
  %v2929 = vmax.f32 %v2927, %v2928
  %v2930 = vrot.slane %v2929, 1
  %v2931 = vmax.f32 %v2929, %v2930
  %v2932 = vrot.slane %v2534, 4
  %v2933 = vmax.f32 %v2534, %v2932
  %v2934 = vrot.slane %v2933, 2
  %v2935 = vmax.f32 %v2933, %v2934
  %v2936 = vrot.slane %v2935, 1
  %v2937 = vmax.f32 %v2935, %v2936
  %v2938 = vrot.slane %v2535, 4
  %v2939 = vmax.f32 %v2535, %v2938
  %v2940 = vrot.slane %v2939, 2
  %v2941 = vmax.f32 %v2939, %v2940
  %v2942 = vrot.slane %v2941, 1
  %v2943 = vmax.f32 %v2941, %v2942
  %v2944 = vrot.slane %v2536, 4
  %v2945 = vmax.f32 %v2536, %v2944
  %v2946 = vrot.slane %v2945, 2
  %v2947 = vmax.f32 %v2945, %v2946
  %v2948 = vrot.slane %v2947, 1
  %v2949 = vmax.f32 %v2947, %v2948
  %v2950 = vrot.slane %v2537, 4
  %v2951 = vmax.f32 %v2537, %v2950
  %v2952 = vrot.slane %v2951, 2
  %v2953 = vmax.f32 %v2951, %v2952
  %v2954 = vrot.slane %v2953, 1
  %v2955 = vmax.f32 %v2953, %v2954
  %v2956 = vrot.slane %v2538, 4
  %v2957 = vmax.f32 %v2538, %v2956
  %v2958 = vrot.slane %v2957, 2
  %v2959 = vmax.f32 %v2957, %v2958
  %v2960 = vrot.slane %v2959, 1
  %v2961 = vmax.f32 %v2959, %v2960
  %v2962 = vrot.slane %v2539, 4
  %v2963 = vmax.f32 %v2539, %v2962
  %v2964 = vrot.slane %v2963, 2
  %v2965 = vmax.f32 %v2963, %v2964
  %v2966 = vrot.slane %v2965, 1
  %v2967 = vmax.f32 %v2965, %v2966
  %v2968 = vrot.slane %v2540, 4
  %v2969 = vmax.f32 %v2540, %v2968
  %v2970 = vrot.slane %v2969, 2
  %v2971 = vmax.f32 %v2969, %v2970
  %v2972 = vrot.slane %v2971, 1
  %v2973 = vmax.f32 %v2971, %v2972
  %v2974 = vrot.slane %v2541, 4
  %v2975 = vmax.f32 %v2541, %v2974
  %v2976 = vrot.slane %v2975, 2
  %v2977 = vmax.f32 %v2975, %v2976
  %v2978 = vrot.slane %v2977, 1
  %v2979 = vmax.f32 %v2977, %v2978
  %v2980 = vrot.slane %v2542, 4
  %v2981 = vmax.f32 %v2542, %v2980
  %v2982 = vrot.slane %v2981, 2
  %v2983 = vmax.f32 %v2981, %v2982
  %v2984 = vrot.slane %v2983, 1
  %v2985 = vmax.f32 %v2983, %v2984
  %v2986 = vrot.slane %v2543, 4
  %v2987 = vmax.f32 %v2543, %v2986
  %v2988 = vrot.slane %v2987, 2
  %v2989 = vmax.f32 %v2987, %v2988
  %v2990 = vrot.slane %v2989, 1
  %v2991 = vmax.f32 %v2989, %v2990
  %v2992 = vrot.slane %v2544, 4
  %v2993 = vmax.f32 %v2544, %v2992
  %v2994 = vrot.slane %v2993, 2
  %v2995 = vmax.f32 %v2993, %v2994
  %v2996 = vrot.slane %v2995, 1
  %v2997 = vmax.f32 %v2995, %v2996
  %v2998 = vrot.slane %v2545, 4
  %v2999 = vmax.f32 %v2545, %v2998
  %v3000 = vrot.slane %v2999, 2
  %v3001 = vmax.f32 %v2999, %v3000
  %v3002 = vrot.slane %v3001, 1
  %v3003 = vmax.f32 %v3001, %v3002
  %v3004 = vrot.slane %v2546, 4
  %v3005 = vmax.f32 %v2546, %v3004
  %v3006 = vrot.slane %v3005, 2
  %v3007 = vmax.f32 %v3005, %v3006
  %v3008 = vrot.slane %v3007, 1
  %v3009 = vmax.f32 %v3007, %v3008
  %v3010 = vrot.slane %v2547, 4
  %v3011 = vmax.f32 %v2547, %v3010
  %v3012 = vrot.slane %v3011, 2
  %v3013 = vmax.f32 %v3011, %v3012
  %v3014 = vrot.slane %v3013, 1
  %v3015 = vmax.f32 %v3013, %v3014
  %v3016 = vrot.slane %v2548, 4
  %v3017 = vmax.f32 %v2548, %v3016
  %v3018 = vrot.slane %v3017, 2
  %v3019 = vmax.f32 %v3017, %v3018
  %v3020 = vrot.slane %v3019, 1
  %v3021 = vmax.f32 %v3019, %v3020
  %v3022 = vrot.slane %v2549, 4
  %v3023 = vmax.f32 %v2549, %v3022
  %v3024 = vrot.slane %v3023, 2
  %v3025 = vmax.f32 %v3023, %v3024
  %v3026 = vrot.slane %v3025, 1
  %v3027 = vmax.f32 %v3025, %v3026
  %v3028 = vrot.slane %v2550, 4
  %v3029 = vmax.f32 %v2550, %v3028
  %v3030 = vrot.slane %v3029, 2
  %v3031 = vmax.f32 %v3029, %v3030
  %v3032 = vrot.slane %v3031, 1
  %v3033 = vmax.f32 %v3031, %v3032
  %v3034 = vrot.slane %v2551, 4
  %v3035 = vmax.f32 %v2551, %v3034
  %v3036 = vrot.slane %v3035, 2
  %v3037 = vmax.f32 %v3035, %v3036
  %v3038 = vrot.slane %v3037, 1
  %v3039 = vmax.f32 %v3037, %v3038
  %v3040 = vrot.slane %v2552, 4
  %v3041 = vmax.f32 %v2552, %v3040
  %v3042 = vrot.slane %v3041, 2
  %v3043 = vmax.f32 %v3041, %v3042
  %v3044 = vrot.slane %v3043, 1
  %v3045 = vmax.f32 %v3043, %v3044
  %v3046 = vrot.slane %v2553, 4
  %v3047 = vmax.f32 %v2553, %v3046
  %v3048 = vrot.slane %v3047, 2
  %v3049 = vmax.f32 %v3047, %v3048
  %v3050 = vrot.slane %v3049, 1
  %v3051 = vmax.f32 %v3049, %v3050
  %v3052 = vrot.slane %v2554, 4
  %v3053 = vmax.f32 %v2554, %v3052
  %v3054 = vrot.slane %v3053, 2
  %v3055 = vmax.f32 %v3053, %v3054
  %v3056 = vrot.slane %v3055, 1
  %v3057 = vmax.f32 %v3055, %v3056
  %v3058 = vrot.slane %v2555, 4
  %v3059 = vmax.f32 %v2555, %v3058
  %v3060 = vrot.slane %v3059, 2
  %v3061 = vmax.f32 %v3059, %v3060
  %v3062 = vrot.slane %v3061, 1
  %v3063 = vmax.f32 %v3061, %v3062
  %v3064 = vrot.slane %v2556, 4
  %v3065 = vmax.f32 %v2556, %v3064
  %v3066 = vrot.slane %v3065, 2
  %v3067 = vmax.f32 %v3065, %v3066
  %v3068 = vrot.slane %v3067, 1
  %v3069 = vmax.f32 %v3067, %v3068
  %v3070 = vrot.slane %v2557, 4
  %v3071 = vmax.f32 %v2557, %v3070
  %v3072 = vrot.slane %v3071, 2
  %v3073 = vmax.f32 %v3071, %v3072
  %v3074 = vrot.slane %v3073, 1
  %v3075 = vmax.f32 %v3073, %v3074
  %v3076 = vrot.slane %v2558, 4
  %v3077 = vmax.f32 %v2558, %v3076
  %v3078 = vrot.slane %v3077, 2
  %v3079 = vmax.f32 %v3077, %v3078
  %v3080 = vrot.slane %v3079, 1
  %v3081 = vmax.f32 %v3079, %v3080
  %v3082 = vrot.slane %v2559, 4
  %v3083 = vmax.f32 %v2559, %v3082
  %v3084 = vrot.slane %v3083, 2
  %v3085 = vmax.f32 %v3083, %v3084
  %v3086 = vrot.slane %v3085, 1
  %v3087 = vmax.f32 %v3085, %v3086
  %v3088 = vrot.slane %v2560, 4
  %v3089 = vmax.f32 %v2560, %v3088
  %v3090 = vrot.slane %v3089, 2
  %v3091 = vmax.f32 %v3089, %v3090
  %v3092 = vrot.slane %v3091, 1
  %v3093 = vmax.f32 %v3091, %v3092
  %v3094 = vrot.slane %v2561, 4
  %v3095 = vmax.f32 %v2561, %v3094
  %v3096 = vrot.slane %v3095, 2
  %v3097 = vmax.f32 %v3095, %v3096
  %v3098 = vrot.slane %v3097, 1
  %v3099 = vmax.f32 %v3097, %v3098
  %v3100 = vrot.slane %v2562, 4
  %v3101 = vmax.f32 %v2562, %v3100
  %v3102 = vrot.slane %v3101, 2
  %v3103 = vmax.f32 %v3101, %v3102
  %v3104 = vrot.slane %v3103, 1
  %v3105 = vmax.f32 %v3103, %v3104
  %v3106 = vrot.slane %v2563, 4
  %v3107 = vmax.f32 %v2563, %v3106
  %v3108 = vrot.slane %v3107, 2
  %v3109 = vmax.f32 %v3107, %v3108
  %v3110 = vrot.slane %v3109, 1
  %v3111 = vmax.f32 %v3109, %v3110
  %v3112 = vrot.slane %v2564, 4
  %v3113 = vmax.f32 %v2564, %v3112
  %v3114 = vrot.slane %v3113, 2
  %v3115 = vmax.f32 %v3113, %v3114
  %v3116 = vrot.slane %v3115, 1
  %v3117 = vmax.f32 %v3115, %v3116
  %v3118 = vrot.slane %v2565, 4
  %v3119 = vmax.f32 %v2565, %v3118
  %v3120 = vrot.slane %v3119, 2
  %v3121 = vmax.f32 %v3119, %v3120
  %v3122 = vrot.slane %v3121, 1
  %v3123 = vmax.f32 %v3121, %v3122
  %v3124 = vrot.slane %v2566, 4
  %v3125 = vmax.f32 %v2566, %v3124
  %v3126 = vrot.slane %v3125, 2
  %v3127 = vmax.f32 %v3125, %v3126
  %v3128 = vrot.slane %v3127, 1
  %v3129 = vmax.f32 %v3127, %v3128
  %v3130 = vrot.slane %v2567, 4
  %v3131 = vmax.f32 %v2567, %v3130
  %v3132 = vrot.slane %v3131, 2
  %v3133 = vmax.f32 %v3131, %v3132
  %v3134 = vrot.slane %v3133, 1
  %v3135 = vmax.f32 %v3133, %v3134
  %v3136 = vrot.slane %v2568, 4
  %v3137 = vmax.f32 %v2568, %v3136
  %v3138 = vrot.slane %v3137, 2
  %v3139 = vmax.f32 %v3137, %v3138
  %v3140 = vrot.slane %v3139, 1
  %v3141 = vmax.f32 %v3139, %v3140
  %v3142 = vrot.slane %v2569, 4
  %v3143 = vmax.f32 %v2569, %v3142
  %v3144 = vrot.slane %v3143, 2
  %v3145 = vmax.f32 %v3143, %v3144
  %v3146 = vrot.slane %v3145, 1
  %v3147 = vmax.f32 %v3145, %v3146
  %v3148 = vrot.slane %v2570, 4
  %v3149 = vmax.f32 %v2570, %v3148
  %v3150 = vrot.slane %v3149, 2
  %v3151 = vmax.f32 %v3149, %v3150
  %v3152 = vrot.slane %v3151, 1
  %v3153 = vmax.f32 %v3151, %v3152
  %v3154 = vrot.slane %v2571, 4
  %v3155 = vmax.f32 %v2571, %v3154
  %v3156 = vrot.slane %v3155, 2
  %v3157 = vmax.f32 %v3155, %v3156
  %v3158 = vrot.slane %v3157, 1
  %v3159 = vmax.f32 %v3157, %v3158
  %v3160 = vrot.slane %v2572, 4
  %v3161 = vmax.f32 %v2572, %v3160
  %v3162 = vrot.slane %v3161, 2
  %v3163 = vmax.f32 %v3161, %v3162
  %v3164 = vrot.slane %v3163, 1
  %v3165 = vmax.f32 %v3163, %v3164
  %v3166 = vrot.slane %v2573, 4
  %v3167 = vmax.f32 %v2573, %v3166
  %v3168 = vrot.slane %v3167, 2
  %v3169 = vmax.f32 %v3167, %v3168
  %v3170 = vrot.slane %v3169, 1
  %v3171 = vmax.f32 %v3169, %v3170
  %v3172 = vrot.slane %v2574, 4
  %v3173 = vmax.f32 %v2574, %v3172
  %v3174 = vrot.slane %v3173, 2
  %v3175 = vmax.f32 %v3173, %v3174
  %v3176 = vrot.slane %v3175, 1
  %v3177 = vmax.f32 %v3175, %v3176
  %v3178 = vrot.slane %v2575, 4
  %v3179 = vmax.f32 %v2575, %v3178
  %v3180 = vrot.slane %v3179, 2
  %v3181 = vmax.f32 %v3179, %v3180
  %v3182 = vrot.slane %v3181, 1
  %v3183 = vmax.f32 %v3181, %v3182
  %v3184 = vrot.slane %v2576, 4
  %v3185 = vmax.f32 %v2576, %v3184
  %v3186 = vrot.slane %v3185, 2
  %v3187 = vmax.f32 %v3185, %v3186
  %v3188 = vrot.slane %v3187, 1
  %v3189 = vmax.f32 %v3187, %v3188
  %v3190 = vrot.slane %v2577, 4
  %v3191 = vmax.f32 %v2577, %v3190
  %v3192 = vrot.slane %v3191, 2
  %v3193 = vmax.f32 %v3191, %v3192
  %v3194 = vrot.slane %v3193, 1
  %v3195 = vmax.f32 %v3193, %v3194
  %v3196 = vrot.slane %v2578, 4
  %v3197 = vmax.f32 %v2578, %v3196
  %v3198 = vrot.slane %v3197, 2
  %v3199 = vmax.f32 %v3197, %v3198
  %v3200 = vrot.slane %v3199, 1
  %v3201 = vmax.f32 %v3199, %v3200
  %v3202 = vrot.slane %v2579, 4
  %v3203 = vmax.f32 %v2579, %v3202
  %v3204 = vrot.slane %v3203, 2
  %v3205 = vmax.f32 %v3203, %v3204
  %v3206 = vrot.slane %v3205, 1
  %v3207 = vmax.f32 %v3205, %v3206
  %v3208 = vrot.slane %v2580, 4
  %v3209 = vmax.f32 %v2580, %v3208
  %v3210 = vrot.slane %v3209, 2
  %v3211 = vmax.f32 %v3209, %v3210
  %v3212 = vrot.slane %v3211, 1
  %v3213 = vmax.f32 %v3211, %v3212
  %v3214 = vrot.slane %v2581, 4
  %v3215 = vmax.f32 %v2581, %v3214
  %v3216 = vrot.slane %v3215, 2
  %v3217 = vmax.f32 %v3215, %v3216
  %v3218 = vrot.slane %v3217, 1
  %v3219 = vmax.f32 %v3217, %v3218
  %v3220 = vrot.slane %v2582, 4
  %v3221 = vmax.f32 %v2582, %v3220
  %v3222 = vrot.slane %v3221, 2
  %v3223 = vmax.f32 %v3221, %v3222
  %v3224 = vrot.slane %v3223, 1
  %v3225 = vmax.f32 %v3223, %v3224
  %v3226 = vrot.slane %v2583, 4
  %v3227 = vmax.f32 %v2583, %v3226
  %v3228 = vrot.slane %v3227, 2
  %v3229 = vmax.f32 %v3227, %v3228
  %v3230 = vrot.slane %v3229, 1
  %v3231 = vmax.f32 %v3229, %v3230
  %v3232 = vrot.slane %v2584, 4
  %v3233 = vmax.f32 %v2584, %v3232
  %v3234 = vrot.slane %v3233, 2
  %v3235 = vmax.f32 %v3233, %v3234
  %v3236 = vrot.slane %v3235, 1
  %v3237 = vmax.f32 %v3235, %v3236
  %v3238 = vrot.slane %v2585, 4
  %v3239 = vmax.f32 %v2585, %v3238
  %v3240 = vrot.slane %v3239, 2
  %v3241 = vmax.f32 %v3239, %v3240
  %v3242 = vrot.slane %v3241, 1
  %v3243 = vmax.f32 %v3241, %v3242
  %v3244 = vrot.slane %v2586, 4
  %v3245 = vmax.f32 %v2586, %v3244
  %v3246 = vrot.slane %v3245, 2
  %v3247 = vmax.f32 %v3245, %v3246
  %v3248 = vrot.slane %v3247, 1
  %v3249 = vmax.f32 %v3247, %v3248
  %v3250 = vrot.slane %v2587, 4
  %v3251 = vmax.f32 %v2587, %v3250
  %v3252 = vrot.slane %v3251, 2
  %v3253 = vmax.f32 %v3251, %v3252
  %v3254 = vrot.slane %v3253, 1
  %v3255 = vmax.f32 %v3253, %v3254
  %v3256 = vrot.slane %v2588, 4
  %v3257 = vmax.f32 %v2588, %v3256
  %v3258 = vrot.slane %v3257, 2
  %v3259 = vmax.f32 %v3257, %v3258
  %v3260 = vrot.slane %v3259, 1
  %v3261 = vmax.f32 %v3259, %v3260
  %v3262 = vrot.slane %v2589, 4
  %v3263 = vmax.f32 %v2589, %v3262
  %v3264 = vrot.slane %v3263, 2
  %v3265 = vmax.f32 %v3263, %v3264
  %v3266 = vrot.slane %v3265, 1
  %v3267 = vmax.f32 %v3265, %v3266
  %v3268 = vrot.slane %v2590, 4
  %v3269 = vmax.f32 %v2590, %v3268
  %v3270 = vrot.slane %v3269, 2
  %v3271 = vmax.f32 %v3269, %v3270
  %v3272 = vrot.slane %v3271, 1
  %v3273 = vmax.f32 %v3271, %v3272
  %v3274 = vrot.slane %v2591, 4
  %v3275 = vmax.f32 %v2591, %v3274
  %v3276 = vrot.slane %v3275, 2
  %v3277 = vmax.f32 %v3275, %v3276
  %v3278 = vrot.slane %v3277, 1
  %v3279 = vmax.f32 %v3277, %v3278
  %v3280 = vrot.slane %v2592, 4
  %v3281 = vmax.f32 %v2592, %v3280
  %v3282 = vrot.slane %v3281, 2
  %v3283 = vmax.f32 %v3281, %v3282
  %v3284 = vrot.slane %v3283, 1
  %v3285 = vmax.f32 %v3283, %v3284
  %v3286 = vrot.slane %v2593, 4
  %v3287 = vmax.f32 %v2593, %v3286
  %v3288 = vrot.slane %v3287, 2
  %v3289 = vmax.f32 %v3287, %v3288
  %v3290 = vrot.slane %v3289, 1
  %v3291 = vmax.f32 %v3289, %v3290
  %v3292 = vrot.slane %v2594, 4
  %v3293 = vmax.f32 %v2594, %v3292
  %v3294 = vrot.slane %v3293, 2
  %v3295 = vmax.f32 %v3293, %v3294
  %v3296 = vrot.slane %v3295, 1
  %v3297 = vmax.f32 %v3295, %v3296
  %v3298 = vrot.slane %v2595, 4
  %v3299 = vmax.f32 %v2595, %v3298
  %v3300 = vrot.slane %v3299, 2
  %v3301 = vmax.f32 %v3299, %v3300
  %v3302 = vrot.slane %v3301, 1
  %v3303 = vmax.f32 %v3301, %v3302
  %v3304 = vrot.slane %v2596, 4
  %v3305 = vmax.f32 %v2596, %v3304
  %v3306 = vrot.slane %v3305, 2
  %v3307 = vmax.f32 %v3305, %v3306
  %v3308 = vrot.slane %v3307, 1
  %v3309 = vmax.f32 %v3307, %v3308
  %v3310 = vrot.slane %v2597, 4
  %v3311 = vmax.f32 %v2597, %v3310
  %v3312 = vrot.slane %v3311, 2
  %v3313 = vmax.f32 %v3311, %v3312
  %v3314 = vrot.slane %v3313, 1
  %v3315 = vmax.f32 %v3313, %v3314
  %v3316 = vrot.slane %v2598, 4
  %v3317 = vmax.f32 %v2598, %v3316
  %v3318 = vrot.slane %v3317, 2
  %v3319 = vmax.f32 %v3317, %v3318
  %v3320 = vrot.slane %v3319, 1
  %v3321 = vmax.f32 %v3319, %v3320
  %v3322 = vrot.slane %v2599, 4
  %v3323 = vmax.f32 %v2599, %v3322
  %v3324 = vrot.slane %v3323, 2
  %v3325 = vmax.f32 %v3323, %v3324
  %v3326 = vrot.slane %v3325, 1
  %v3327 = vmax.f32 %v3325, %v3326
  %v3328 = vrot.slane %v2600, 4
  %v3329 = vmax.f32 %v2600, %v3328
  %v3330 = vrot.slane %v3329, 2
  %v3331 = vmax.f32 %v3329, %v3330
  %v3332 = vrot.slane %v3331, 1
  %v3333 = vmax.f32 %v3331, %v3332
  %v3334 = vrot.slane %v2601, 4
  %v3335 = vmax.f32 %v2601, %v3334
  %v3336 = vrot.slane %v3335, 2
  %v3337 = vmax.f32 %v3335, %v3336
  %v3338 = vrot.slane %v3337, 1
  %v3339 = vmax.f32 %v3337, %v3338
  %v3340 = vrot.slane %v2602, 4
  %v3341 = vmax.f32 %v2602, %v3340
  %v3342 = vrot.slane %v3341, 2
  %v3343 = vmax.f32 %v3341, %v3342
  %v3344 = vrot.slane %v3343, 1
  %v3345 = vmax.f32 %v3343, %v3344
  %v3346 = vrot.slane %v2603, 4
  %v3347 = vmax.f32 %v2603, %v3346
  %v3348 = vrot.slane %v3347, 2
  %v3349 = vmax.f32 %v3347, %v3348
  %v3350 = vrot.slane %v3349, 1
  %v3351 = vmax.f32 %v3349, %v3350
  %v3352 = vrot.slane %v2604, 4
  %v3353 = vmax.f32 %v2604, %v3352
  %v3354 = vrot.slane %v3353, 2
  %v3355 = vmax.f32 %v3353, %v3354
  %v3356 = vrot.slane %v3355, 1
  %v3357 = vmax.f32 %v3355, %v3356
  %v3358 = vrot.slane %v2605, 4
  %v3359 = vmax.f32 %v2605, %v3358
  %v3360 = vrot.slane %v3359, 2
  %v3361 = vmax.f32 %v3359, %v3360
  %v3362 = vrot.slane %v3361, 1
  %v3363 = vmax.f32 %v3361, %v3362
  %v3364 = vrot.slane %v2606, 4
  %v3365 = vmax.f32 %v2606, %v3364
  %v3366 = vrot.slane %v3365, 2
  %v3367 = vmax.f32 %v3365, %v3366
  %v3368 = vrot.slane %v3367, 1
  %v3369 = vmax.f32 %v3367, %v3368
  %v3370 = vrot.slane %v2607, 4
  %v3371 = vmax.f32 %v2607, %v3370
  %v3372 = vrot.slane %v3371, 2
  %v3373 = vmax.f32 %v3371, %v3372
  %v3374 = vrot.slane %v3373, 1
  %v3375 = vmax.f32 %v3373, %v3374
  %v3376 = vpack.c.bf16 %v2613, %v2613
  %v3377 = vpack.c.bf16 %v2619, %v2619
  %v3378 = vpack.c.bf16 %v2625, %v2625
  %v3379 = vpack.c.bf16 %v2631, %v2631
  %v3380 = vpack.c.bf16 %v2637, %v2637
  %v3381 = vpack.c.bf16 %v2643, %v2643
  %v3382 = vpack.c.bf16 %v2649, %v2649
  %v3383 = vpack.c.bf16 %v2655, %v2655
  %v3384 = vpack.c.bf16 %v2661, %v2661
  %v3385 = vpack.c.bf16 %v2667, %v2667
  %v3386 = vpack.c.bf16 %v2673, %v2673
  %v3387 = vpack.c.bf16 %v2679, %v2679
  %v3388 = vpack.c.bf16 %v2685, %v2685
  %v3389 = vpack.c.bf16 %v2691, %v2691
  %v3390 = vpack.c.bf16 %v2697, %v2697
  %v3391 = vpack.c.bf16 %v2703, %v2703
  %v3392 = vpack.c.bf16 %v2709, %v2709
  %v3393 = vpack.c.bf16 %v2715, %v2715
  %v3394 = vpack.c.bf16 %v2721, %v2721
  %v3395 = vpack.c.bf16 %v2727, %v2727
  %v3396 = vpack.c.bf16 %v2733, %v2733
  %v3397 = vpack.c.bf16 %v2739, %v2739
  %v3398 = vpack.c.bf16 %v2745, %v2745
  %v3399 = vpack.c.bf16 %v2751, %v2751
  %v3400 = vpack.c.bf16 %v2757, %v2757
  %v3401 = vpack.c.bf16 %v2763, %v2763
  %v3402 = vpack.c.bf16 %v2769, %v2769
  %v3403 = vpack.c.bf16 %v2775, %v2775
  %v3404 = vpack.c.bf16 %v2781, %v2781
  %v3405 = vpack.c.bf16 %v2787, %v2787
  %v3406 = vpack.c.bf16 %v2793, %v2793
  %v3407 = vpack.c.bf16 %v2799, %v2799
  %v3408 = vpack.c.bf16 %v2805, %v2805
  %v3409 = vpack.c.bf16 %v2811, %v2811
  %v3410 = vpack.c.bf16 %v2817, %v2817
  %v3411 = vpack.c.bf16 %v2823, %v2823
  %v3412 = vpack.c.bf16 %v2829, %v2829
  %v3413 = vpack.c.bf16 %v2835, %v2835
  %v3414 = vpack.c.bf16 %v2841, %v2841
  %v3415 = vpack.c.bf16 %v2847, %v2847
  %v3416 = vpack.c.bf16 %v2853, %v2853
  %v3417 = vpack.c.bf16 %v2859, %v2859
  %v3418 = vpack.c.bf16 %v2865, %v2865
  %v3419 = vpack.c.bf16 %v2871, %v2871
  %v3420 = vpack.c.bf16 %v2877, %v2877
  %v3421 = vpack.c.bf16 %v2883, %v2883
  %v3422 = vpack.c.bf16 %v2889, %v2889
  %v3423 = vpack.c.bf16 %v2895, %v2895
  %v3424 = vpack.c.bf16 %v2901, %v2901
  %v3425 = vpack.c.bf16 %v2907, %v2907
  %v3426 = vpack.c.bf16 %v2913, %v2913
  %v3427 = vpack.c.bf16 %v2919, %v2919
  %v3428 = vpack.c.bf16 %v2925, %v2925
  %v3429 = vpack.c.bf16 %v2931, %v2931
  %v3430 = vpack.c.bf16 %v2937, %v2937
  %v3431 = vpack.c.bf16 %v2943, %v2943
  %v3432 = vpack.c.bf16 %v2949, %v2949
  %v3433 = vpack.c.bf16 %v2955, %v2955
  %v3434 = vpack.c.bf16 %v2961, %v2961
  %v3435 = vpack.c.bf16 %v2967, %v2967
  %v3436 = vpack.c.bf16 %v2973, %v2973
  %v3437 = vpack.c.bf16 %v2979, %v2979
  %v3438 = vpack.c.bf16 %v2985, %v2985
  %v3439 = vpack.c.bf16 %v2991, %v2991
  %v3440 = vpack.c.bf16 %v2997, %v2997
  %v3441 = vpack.c.bf16 %v3003, %v3003
  %v3442 = vpack.c.bf16 %v3009, %v3009
  %v3443 = vpack.c.bf16 %v3015, %v3015
  %v3444 = vpack.c.bf16 %v3021, %v3021
  %v3445 = vpack.c.bf16 %v3027, %v3027
  %v3446 = vpack.c.bf16 %v3033, %v3033
  %v3447 = vpack.c.bf16 %v3039, %v3039
  %v3448 = vpack.c.bf16 %v3045, %v3045
  %v3449 = vpack.c.bf16 %v3051, %v3051
  %v3450 = vpack.c.bf16 %v3057, %v3057
  %v3451 = vpack.c.bf16 %v3063, %v3063
  %v3452 = vpack.c.bf16 %v3069, %v3069
  %v3453 = vpack.c.bf16 %v3075, %v3075
  %v3454 = vpack.c.bf16 %v3081, %v3081
  %v3455 = vpack.c.bf16 %v3087, %v3087
  %v3456 = vpack.c.bf16 %v3093, %v3093
  %v3457 = vpack.c.bf16 %v3099, %v3099
  %v3458 = vpack.c.bf16 %v3105, %v3105
  %v3459 = vpack.c.bf16 %v3111, %v3111
  %v3460 = vpack.c.bf16 %v3117, %v3117
  %v3461 = vpack.c.bf16 %v3123, %v3123
  %v3462 = vpack.c.bf16 %v3129, %v3129
  %v3463 = vpack.c.bf16 %v3135, %v3135
  %v3464 = vpack.c.bf16 %v3141, %v3141
  %v3465 = vpack.c.bf16 %v3147, %v3147
  %v3466 = vpack.c.bf16 %v3153, %v3153
  %v3467 = vpack.c.bf16 %v3159, %v3159
  %v3468 = vpack.c.bf16 %v3165, %v3165
  %v3469 = vpack.c.bf16 %v3171, %v3171
  %v3470 = vpack.c.bf16 %v3177, %v3177
  %v3471 = vpack.c.bf16 %v3183, %v3183
  %v3472 = vpack.c.bf16 %v3189, %v3189
  %v3473 = vpack.c.bf16 %v3195, %v3195
  %v3474 = vpack.c.bf16 %v3201, %v3201
  %v3475 = vpack.c.bf16 %v3207, %v3207
  %v3476 = vpack.c.bf16 %v3213, %v3213
  %v3477 = vpack.c.bf16 %v3219, %v3219
  %v3478 = vpack.c.bf16 %v3225, %v3225
  %v3479 = vpack.c.bf16 %v3231, %v3231
  %v3480 = vpack.c.bf16 %v3237, %v3237
  %v3481 = vpack.c.bf16 %v3243, %v3243
  %v3482 = vpack.c.bf16 %v3249, %v3249
  %v3483 = vpack.c.bf16 %v3255, %v3255
  %v3484 = vpack.c.bf16 %v3261, %v3261
  %v3485 = vpack.c.bf16 %v3267, %v3267
  %v3486 = vpack.c.bf16 %v3273, %v3273
  %v3487 = vpack.c.bf16 %v3279, %v3279
  %v3488 = vpack.c.bf16 %v3285, %v3285
  %v3489 = vpack.c.bf16 %v3291, %v3291
  %v3490 = vpack.c.bf16 %v3297, %v3297
  %v3491 = vpack.c.bf16 %v3303, %v3303
  %v3492 = vpack.c.bf16 %v3309, %v3309
  %v3493 = vpack.c.bf16 %v3315, %v3315
  %v3494 = vpack.c.bf16 %v3321, %v3321
  %v3495 = vpack.c.bf16 %v3327, %v3327
  %v3496 = vpack.c.bf16 %v3333, %v3333
  %v3497 = vpack.c.bf16 %v3339, %v3339
  %v3498 = vpack.c.bf16 %v3345, %v3345
  %v3499 = vpack.c.bf16 %v3351, %v3351
  %v3500 = vpack.c.bf16 %v3357, %v3357
  %v3501 = vpack.c.bf16 %v3363, %v3363
  %v3502 = vpack.c.bf16 %v3369, %v3369
  %v3503 = vpack.c.bf16 %v3375, %v3375
  %v3504 = vld [vmem:[%s5] sm:$0xff]
  %v3505 = vld [vmem:[%s5 + $0x8] sm:$0xff]
  %v3506 = vld [vmem:[%s5 + $0x10] sm:$0xff]
  %v3507 = vld [vmem:[%s5 + $0x18] sm:$0xff]
  %v3508 = vld [vmem:[%s5 + $0x20] sm:$0xff]
  %v3509 = vld [vmem:[%s5 + $0x28] sm:$0xff]
  %v3510 = vld [vmem:[%s5 + $0x30] sm:$0xff]
  %v3511 = vld [vmem:[%s5 + $0x38] sm:$0xff]
  %v3512 = vld [vmem:[%s5 + $0x40] sm:$0xff]
  %v3513 = vld [vmem:[%s5 + $0x48] sm:$0xff]
  %v3514 = vld [vmem:[%s5 + $0x50] sm:$0xff]
  %v3515 = vld [vmem:[%s5 + $0x58] sm:$0xff]
  %v3516 = vld [vmem:[%s5 + $0x60] sm:$0xff]
  %v3517 = vld [vmem:[%s5 + $0x68] sm:$0xff]
  %v3518 = vld [vmem:[%s5 + $0x70] sm:$0xff]
  %v3519 = vld [vmem:[%s5 + $0x78] sm:$0xff]
  %v3520 = vld [vmem:[%s6] sm:$0x3]
  %v3522 = vlaneseq
  %v3523 = vshrl.u32 %v3522, 7
  %v3524 = vsub.s32 0, %v3523
  %v3525 = vrot.slane %v3520, %v3524
  %v3526 = vlaneseq
  %v3527 = vshrl.u32 %v3526, 7
  %v3528 = vsub.s32 1, %v3527
  %v3529 = vrot.slane %v3520, %v3528
  %v3660 = vunpack.c.l.b16 %v3376
  %v3661 = vunpack.c.l.b16 %v3377
  %v3662 = vunpack.c.l.b16 %v3378
  %v3663 = vunpack.c.l.b16 %v3379
  %v3664 = vunpack.c.l.b16 %v3380
  %v3665 = vunpack.c.l.b16 %v3381
  %v3666 = vunpack.c.l.b16 %v3382
  %v3667 = vunpack.c.l.b16 %v3383
  %v3668 = vunpack.c.l.b16 %v3384
  %v3669 = vunpack.c.l.b16 %v3385
  %v3670 = vunpack.c.l.b16 %v3386
  %v3671 = vunpack.c.l.b16 %v3387
  %v3672 = vunpack.c.l.b16 %v3388
  %v3673 = vunpack.c.l.b16 %v3389
  %v3674 = vunpack.c.l.b16 %v3390
  %v3675 = vunpack.c.l.b16 %v3391
  %v3676 = vunpack.c.l.b16 %v3392
  %v3677 = vunpack.c.l.b16 %v3393
  %v3678 = vunpack.c.l.b16 %v3394
  %v3679 = vunpack.c.l.b16 %v3395
  %v3680 = vunpack.c.l.b16 %v3396
  %v3681 = vunpack.c.l.b16 %v3397
  %v3682 = vunpack.c.l.b16 %v3398
  %v3683 = vunpack.c.l.b16 %v3399
  %v3684 = vunpack.c.l.b16 %v3400
  %v3685 = vunpack.c.l.b16 %v3401
  %v3686 = vunpack.c.l.b16 %v3402
  %v3687 = vunpack.c.l.b16 %v3403
  %v3688 = vunpack.c.l.b16 %v3404
  %v3689 = vunpack.c.l.b16 %v3405
  %v3690 = vunpack.c.l.b16 %v3406
  %v3691 = vunpack.c.l.b16 %v3407
  %v3692 = vunpack.c.l.b16 %v3408
  %v3693 = vunpack.c.l.b16 %v3409
  %v3694 = vunpack.c.l.b16 %v3410
  %v3695 = vunpack.c.l.b16 %v3411
  %v3696 = vunpack.c.l.b16 %v3412
  %v3697 = vunpack.c.l.b16 %v3413
  %v3698 = vunpack.c.l.b16 %v3414
  %v3699 = vunpack.c.l.b16 %v3415
  %v3700 = vunpack.c.l.b16 %v3416
  %v3701 = vunpack.c.l.b16 %v3417
  %v3702 = vunpack.c.l.b16 %v3418
  %v3703 = vunpack.c.l.b16 %v3419
  %v3704 = vunpack.c.l.b16 %v3420
  %v3705 = vunpack.c.l.b16 %v3421
  %v3706 = vunpack.c.l.b16 %v3422
  %v3707 = vunpack.c.l.b16 %v3423
  %v3708 = vunpack.c.l.b16 %v3424
  %v3709 = vunpack.c.l.b16 %v3425
  %v3710 = vunpack.c.l.b16 %v3426
  %v3711 = vunpack.c.l.b16 %v3427
  %v3712 = vunpack.c.l.b16 %v3428
  %v3713 = vunpack.c.l.b16 %v3429
  %v3714 = vunpack.c.l.b16 %v3430
  %v3715 = vunpack.c.l.b16 %v3431
  %v3716 = vunpack.c.l.b16 %v3432
  %v3717 = vunpack.c.l.b16 %v3433
  %v3718 = vunpack.c.l.b16 %v3434
  %v3719 = vunpack.c.l.b16 %v3435
  %v3720 = vunpack.c.l.b16 %v3436
  %v3721 = vunpack.c.l.b16 %v3437
  %v3722 = vunpack.c.l.b16 %v3438
  %v3723 = vunpack.c.l.b16 %v3439
  %v3724 = vunpack.c.l.b16 %v3440
  %v3725 = vunpack.c.l.b16 %v3441
  %v3726 = vunpack.c.l.b16 %v3442
  %v3727 = vunpack.c.l.b16 %v3443
  %v3728 = vunpack.c.l.b16 %v3444
  %v3729 = vunpack.c.l.b16 %v3445
  %v3730 = vunpack.c.l.b16 %v3446
  %v3731 = vunpack.c.l.b16 %v3447
  %v3732 = vunpack.c.l.b16 %v3448
  %v3733 = vunpack.c.l.b16 %v3449
  %v3734 = vunpack.c.l.b16 %v3450
  %v3735 = vunpack.c.l.b16 %v3451
  %v3736 = vunpack.c.l.b16 %v3452
  %v3737 = vunpack.c.l.b16 %v3453
  %v3738 = vunpack.c.l.b16 %v3454
  %v3739 = vunpack.c.l.b16 %v3455
  %v3740 = vunpack.c.l.b16 %v3456
  %v3741 = vunpack.c.l.b16 %v3457
  %v3742 = vunpack.c.l.b16 %v3458
  %v3743 = vunpack.c.l.b16 %v3459
  %v3744 = vunpack.c.l.b16 %v3460
  %v3745 = vunpack.c.l.b16 %v3461
  %v3746 = vunpack.c.l.b16 %v3462
  %v3747 = vunpack.c.l.b16 %v3463
  %v3748 = vunpack.c.l.b16 %v3464
  %v3749 = vunpack.c.l.b16 %v3465
  %v3750 = vunpack.c.l.b16 %v3466
  %v3751 = vunpack.c.l.b16 %v3467
  %v3752 = vunpack.c.l.b16 %v3468
  %v3753 = vunpack.c.l.b16 %v3469
  %v3754 = vunpack.c.l.b16 %v3470
  %v3755 = vunpack.c.l.b16 %v3471
  %v3756 = vunpack.c.l.b16 %v3472
  %v3757 = vunpack.c.l.b16 %v3473
  %v3758 = vunpack.c.l.b16 %v3474
  %v3759 = vunpack.c.l.b16 %v3475
  %v3760 = vunpack.c.l.b16 %v3476
  %v3761 = vunpack.c.l.b16 %v3477
  %v3762 = vunpack.c.l.b16 %v3478
  %v3763 = vunpack.c.l.b16 %v3479
  %v3764 = vunpack.c.l.b16 %v3480
  %v3765 = vunpack.c.l.b16 %v3481
  %v3766 = vunpack.c.l.b16 %v3482
  %v3767 = vunpack.c.l.b16 %v3483
  %v3768 = vunpack.c.l.b16 %v3484
  %v3769 = vunpack.c.l.b16 %v3485
  %v3770 = vunpack.c.l.b16 %v3486
  %v3771 = vunpack.c.l.b16 %v3487
  %v3772 = vunpack.c.l.b16 %v3488
  %v3773 = vunpack.c.l.b16 %v3489
  %v3774 = vunpack.c.l.b16 %v3490
  %v3775 = vunpack.c.l.b16 %v3491
  %v3776 = vunpack.c.l.b16 %v3492
  %v3777 = vunpack.c.l.b16 %v3493
  %v3778 = vunpack.c.l.b16 %v3494
  %v3779 = vunpack.c.l.b16 %v3495
  %v3780 = vunpack.c.l.b16 %v3496
  %v3781 = vunpack.c.l.b16 %v3497
  %v3782 = vunpack.c.l.b16 %v3498
  %v3783 = vunpack.c.l.b16 %v3499
  %v3784 = vunpack.c.l.b16 %v3500
  %v3785 = vunpack.c.l.b16 %v3501
  %v3786 = vunpack.c.l.b16 %v3502
  %v3787 = vunpack.c.l.b16 %v3503
  %vm3788 = vcmask 1041409
  %v3789 = vsel %vm3788, %v3661, %v3660
  %vm3790 = vcmask 1042434
  %v3791 = vsel %vm3790, %v3662, %v3789
  %vm3792 = vcmask 1043459
  %v3793 = vsel %vm3792, %v3663, %v3791
  %vm3794 = vcmask 1044484
  %v3795 = vsel %vm3794, %v3664, %v3793
  %vm3796 = vcmask 1045509
  %v3797 = vsel %vm3796, %v3665, %v3795
  %vm3798 = vcmask 1046534
  %v3799 = vsel %vm3798, %v3666, %v3797
  %vm3800 = vcmask 1047559
  %v3801 = vsel %vm3800, %v3667, %v3799
  %v3802 = vsel %vm3788, %v3669, %v3668
  %v3803 = vsel %vm3790, %v3670, %v3802
  %v3804 = vsel %vm3792, %v3671, %v3803
  %v3805 = vsel %vm3794, %v3672, %v3804
  %v3806 = vsel %vm3796, %v3673, %v3805
  %v3807 = vsel %vm3798, %v3674, %v3806
  %v3808 = vsel %vm3800, %v3675, %v3807
  %v3809 = vsel %vm3788, %v3677, %v3676
  %v3810 = vsel %vm3790, %v3678, %v3809
  %v3811 = vsel %vm3792, %v3679, %v3810
  %v3812 = vsel %vm3794, %v3680, %v3811
  %v3813 = vsel %vm3796, %v3681, %v3812
  %v3814 = vsel %vm3798, %v3682, %v3813
  %v3815 = vsel %vm3800, %v3683, %v3814
  %v3816 = vsel %vm3788, %v3685, %v3684
  %v3817 = vsel %vm3790, %v3686, %v3816
  %v3818 = vsel %vm3792, %v3687, %v3817
  %v3819 = vsel %vm3794, %v3688, %v3818
  %v3820 = vsel %vm3796, %v3689, %v3819
  %v3821 = vsel %vm3798, %v3690, %v3820
  %v3822 = vsel %vm3800, %v3691, %v3821
  %v3823 = vsel %vm3788, %v3693, %v3692
  %v3824 = vsel %vm3790, %v3694, %v3823
  %v3825 = vsel %vm3792, %v3695, %v3824
  %v3826 = vsel %vm3794, %v3696, %v3825
  %v3827 = vsel %vm3796, %v3697, %v3826
  %v3828 = vsel %vm3798, %v3698, %v3827
  %v3829 = vsel %vm3800, %v3699, %v3828
  %v3830 = vsel %vm3788, %v3701, %v3700
  %v3831 = vsel %vm3790, %v3702, %v3830
  %v3832 = vsel %vm3792, %v3703, %v3831
  %v3833 = vsel %vm3794, %v3704, %v3832
  %v3834 = vsel %vm3796, %v3705, %v3833
  %v3835 = vsel %vm3798, %v3706, %v3834
  %v3836 = vsel %vm3800, %v3707, %v3835
  %v3837 = vsel %vm3788, %v3709, %v3708
  %v3838 = vsel %vm3790, %v3710, %v3837
  %v3839 = vsel %vm3792, %v3711, %v3838
  %v3840 = vsel %vm3794, %v3712, %v3839
  %v3841 = vsel %vm3796, %v3713, %v3840
  %v3842 = vsel %vm3798, %v3714, %v3841
  %v3843 = vsel %vm3800, %v3715, %v3842
  %v3844 = vsel %vm3788, %v3717, %v3716
  %v3845 = vsel %vm3790, %v3718, %v3844
  %v3846 = vsel %vm3792, %v3719, %v3845
  %v3847 = vsel %vm3794, %v3720, %v3846
  %v3848 = vsel %vm3796, %v3721, %v3847
  %v3849 = vsel %vm3798, %v3722, %v3848
  %v3850 = vsel %vm3800, %v3723, %v3849
  %v3851 = vsel %vm3788, %v3725, %v3724
  %v3852 = vsel %vm3790, %v3726, %v3851
  %v3853 = vsel %vm3792, %v3727, %v3852
  %v3854 = vsel %vm3794, %v3728, %v3853
  %v3855 = vsel %vm3796, %v3729, %v3854
  %v3856 = vsel %vm3798, %v3730, %v3855
  %v3857 = vsel %vm3800, %v3731, %v3856
  %v3858 = vsel %vm3788, %v3733, %v3732
  %v3859 = vsel %vm3790, %v3734, %v3858
  %v3860 = vsel %vm3792, %v3735, %v3859
  %v3861 = vsel %vm3794, %v3736, %v3860
  %v3862 = vsel %vm3796, %v3737, %v3861
  %v3863 = vsel %vm3798, %v3738, %v3862
  %v3864 = vsel %vm3800, %v3739, %v3863
  %v3865 = vsel %vm3788, %v3741, %v3740
  %v3866 = vsel %vm3790, %v3742, %v3865
  %v3867 = vsel %vm3792, %v3743, %v3866
  %v3868 = vsel %vm3794, %v3744, %v3867
  %v3869 = vsel %vm3796, %v3745, %v3868
  %v3870 = vsel %vm3798, %v3746, %v3869
  %v3871 = vsel %vm3800, %v3747, %v3870
  %v3872 = vsel %vm3788, %v3749, %v3748
  %v3873 = vsel %vm3790, %v3750, %v3872
  %v3874 = vsel %vm3792, %v3751, %v3873
  %v3875 = vsel %vm3794, %v3752, %v3874
  %v3876 = vsel %vm3796, %v3753, %v3875
  %v3877 = vsel %vm3798, %v3754, %v3876
  %v3878 = vsel %vm3800, %v3755, %v3877
  %v3879 = vsel %vm3788, %v3757, %v3756
  %v3880 = vsel %vm3790, %v3758, %v3879
  %v3881 = vsel %vm3792, %v3759, %v3880
  %v3882 = vsel %vm3794, %v3760, %v3881
  %v3883 = vsel %vm3796, %v3761, %v3882
  %v3884 = vsel %vm3798, %v3762, %v3883
  %v3885 = vsel %vm3800, %v3763, %v3884
  %v3886 = vsel %vm3788, %v3765, %v3764
  %v3887 = vsel %vm3790, %v3766, %v3886
  %v3888 = vsel %vm3792, %v3767, %v3887
  %v3889 = vsel %vm3794, %v3768, %v3888
  %v3890 = vsel %vm3796, %v3769, %v3889
  %v3891 = vsel %vm3798, %v3770, %v3890
  %v3892 = vsel %vm3800, %v3771, %v3891
  %v3893 = vsel %vm3788, %v3773, %v3772
  %v3894 = vsel %vm3790, %v3774, %v3893
  %v3895 = vsel %vm3792, %v3775, %v3894
  %v3896 = vsel %vm3794, %v3776, %v3895
  %v3897 = vsel %vm3796, %v3777, %v3896
  %v3898 = vsel %vm3798, %v3778, %v3897
  %v3899 = vsel %vm3800, %v3779, %v3898
  %v3900 = vsel %vm3788, %v3781, %v3780
  %v3901 = vsel %vm3790, %v3782, %v3900
  %v3902 = vsel %vm3792, %v3783, %v3901
  %v3903 = vsel %vm3794, %v3784, %v3902
  %v3904 = vsel %vm3796, %v3785, %v3903
  %v3905 = vsel %vm3798, %v3786, %v3904
  %v3906 = vsel %vm3800, %v3787, %v3905
  %v3907 = vpack.c.b16 %v3808, %v3801
  %v3908 = vpack.c.b16 %v3822, %v3815
  %v3909 = vpack.c.b16 %v3836, %v3829
  %v3910 = vpack.c.b16 %v3850, %v3843
  %v3911 = vpack.c.b16 %v3864, %v3857
  %v3912 = vpack.c.b16 %v3878, %v3871
  %v3913 = vpack.c.b16 %v3892, %v3885
  %v3914 = vpack.c.b16 %v3906, %v3899
  %v3939 = vunpack.c.l.b16 %v3504
  %v3940 = vunpack.c.h.b16 %v3504
  %v3941 = vunpack.c.l.b16 %v3505
  %v3942 = vunpack.c.h.b16 %v3505
  %v3943 = vunpack.c.l.b16 %v3506
  %v3944 = vunpack.c.h.b16 %v3506
  %v3945 = vunpack.c.l.b16 %v3507
  %v3946 = vunpack.c.h.b16 %v3507
  %v3947 = vunpack.c.l.b16 %v3508
  %v3948 = vunpack.c.h.b16 %v3508
  %v3949 = vunpack.c.l.b16 %v3509
  %v3950 = vunpack.c.h.b16 %v3509
  %v3951 = vunpack.c.l.b16 %v3510
  %v3952 = vunpack.c.h.b16 %v3510
  %v3953 = vunpack.c.l.b16 %v3511
  %v3954 = vunpack.c.h.b16 %v3511
  %v3955 = vunpack.c.l.b16 %v3512
  %v3956 = vunpack.c.h.b16 %v3512
  %v3957 = vunpack.c.l.b16 %v3513
  %v3958 = vunpack.c.h.b16 %v3513
  %v3959 = vunpack.c.l.b16 %v3514
  %v3960 = vunpack.c.h.b16 %v3514
  %v3961 = vunpack.c.l.b16 %v3515
  %v3962 = vunpack.c.h.b16 %v3515
  %v3963 = vunpack.c.l.b16 %v3516
  %v3964 = vunpack.c.h.b16 %v3516
  %v3965 = vunpack.c.l.b16 %v3517
  %v3966 = vunpack.c.h.b16 %v3517
  %v3967 = vunpack.c.l.b16 %v3518
  %v3968 = vunpack.c.h.b16 %v3518
  %v3969 = vunpack.c.l.b16 %v3519
  %v3970 = vunpack.c.h.b16 %v3519
  %v3971 = vpack.c.b16 %v3941, %v3939
  %v3972 = vpack.c.b16 %v3942, %v3940
  %v3973 = vpack.c.b16 %v3945, %v3943
  %v3974 = vpack.c.b16 %v3946, %v3944
  %v3975 = vpack.c.b16 %v3949, %v3947
  %v3976 = vpack.c.b16 %v3950, %v3948
  %v3977 = vpack.c.b16 %v3953, %v3951
  %v3978 = vpack.c.b16 %v3954, %v3952
  %v3979 = vpack.c.b16 %v3957, %v3955
  %v3980 = vpack.c.b16 %v3958, %v3956
  %v3981 = vpack.c.b16 %v3961, %v3959
  %v3982 = vpack.c.b16 %v3962, %v3960
  %v3983 = vpack.c.b16 %v3965, %v3963
  %v3984 = vpack.c.b16 %v3966, %v3964
  %v3985 = vpack.c.b16 %v3969, %v3967
  %v3986 = vpack.c.b16 %v3970, %v3968
  %4003 = vmatprep.subr.bf16.mxu0 %v3972
  %4004 = vmatpush1.bf16.msra.mxu0 %v3971
  %4005 = vmatprep.subr.bf16.mxu0 %v3974
  %4006 = vmatpush1.bf16.msra.mxu0 %v3973
  %4007 = vmatprep.subr.bf16.mxu0 %v3976
  %4008 = vmatpush1.bf16.msra.mxu0 %v3975
  %4009 = vmatprep.subr.bf16.mxu0 %v3978
  %4010 = vmatpush1.bf16.msra.mxu0 %v3977
  %4011 = vmatprep.subr.bf16.mxu0 %v3980
  %4012 = vmatpush1.bf16.msra.mxu0 %v3979
  %4013 = vmatprep.subr.bf16.mxu0 %v3982
  %4014 = vmatpush1.bf16.msra.mxu0 %v3981
  %4015 = vmatprep.subr.bf16.mxu0 %v3984
  %4016 = vmatpush1.bf16.msra.mxu0 %v3983
  %4017 = vmatprep.subr.bf16.mxu0 %v3986
  %4018 = vmatpush1.bf16.msra.mxu0 %v3985
  %4019 = vmatprep.subr.bf16.mxu0 0
  %4020 = vmatpush1.bf16.msra.mxu0 0
  %4021 = vmatprep.subr.bf16.mxu0 0
  %4022 = vmatpush1.bf16.msra.mxu0 0
  %4023 = vmatprep.subr.bf16.mxu0 0
  %4024 = vmatpush1.bf16.msra.mxu0 0
  %4025 = vmatprep.subr.bf16.mxu0 0
  %4026 = vmatpush1.bf16.msra.mxu0 0
  %4027 = vmatprep.subr.bf16.mxu0 0
  %4028 = vmatpush1.bf16.msra.mxu0 0
  %4029 = vmatprep.subr.bf16.mxu0 0
  %4030 = vmatpush1.bf16.msra.mxu0 0
  %4031 = vmatprep.subr.bf16.mxu0 0
  %4032 = vmatpush1.bf16.msra.mxu0 0
  %4033 = vmatprep.subr.bf16.mxu0 0
  %4034 = vmatpush1.bf16.msra.mxu0 0
  %4035 = vmatprep.mubr.bf16.mxu0 0
  %4036 = vmatmul.mubr.bf16.gmra.mrb[0].mxu0 %v3907
  %v4037 = vpop.f32.mrb[0].mxu0
  %v4038 = vadd.f32 %v3525, %v4037
  %v4039 = vpop.f32.mrb[0].mxu0
  %v4040 = vadd.f32 %v3529, %v4039
  %v4041 = vpop.f32.mrb[0].mxu0
  %v4042 = vadd.f32 %v3525, %v4041
  %v4043 = vpop.f32.mrb[0].mxu0
  %v4044 = vadd.f32 %v3529, %v4043
  %4045 = vmatprep.mubr.bf16.mxu0 0
  %4046 = vmatmul.mubr.bf16.gmra.mrb[0].mxu0 %v3908
  %v4047 = vpop.f32.mrb[0].mxu0
  %v4048 = vadd.f32 %v3525, %v4047
  %v4049 = vpop.f32.mrb[0].mxu0
  %v4050 = vadd.f32 %v3529, %v4049
  %v4051 = vpop.f32.mrb[0].mxu0
  %v4052 = vadd.f32 %v3525, %v4051
  %v4053 = vpop.f32.mrb[0].mxu0
  %v4054 = vadd.f32 %v3529, %v4053
  %4055 = vmatprep.mubr.bf16.mxu0 0
  %4056 = vmatmul.mubr.bf16.gmra.mrb[0].mxu0 %v3909
  %v4057 = vpop.f32.mrb[0].mxu0
  %v4058 = vadd.f32 %v3525, %v4057
  %v4059 = vpop.f32.mrb[0].mxu0
  %v4060 = vadd.f32 %v3529, %v4059
  %v4061 = vpop.f32.mrb[0].mxu0
  %v4062 = vadd.f32 %v3525, %v4061
  %v4063 = vpop.f32.mrb[0].mxu0
  %v4064 = vadd.f32 %v3529, %v4063
  %4065 = vmatprep.mubr.bf16.mxu0 0
  %4066 = vmatmul.mubr.bf16.gmra.mrb[0].mxu0 %v3910
  %v4067 = vpop.f32.mrb[0].mxu0
  %v4068 = vadd.f32 %v3525, %v4067
  %v4069 = vpop.f32.mrb[0].mxu0
  %v4070 = vadd.f32 %v3529, %v4069
  %v4071 = vpop.f32.mrb[0].mxu0
  %v4072 = vadd.f32 %v3525, %v4071
  %v4073 = vpop.f32.mrb[0].mxu0
  %v4074 = vadd.f32 %v3529, %v4073
  %4075 = vmatprep.mubr.bf16.mxu0 0
  %4076 = vmatmul.mubr.bf16.gmra.mrb[0].mxu0 %v3911
  %v4077 = vpop.f32.mrb[0].mxu0
  %v4078 = vadd.f32 %v3525, %v4077
  %v4079 = vpop.f32.mrb[0].mxu0
  %v4080 = vadd.f32 %v3529, %v4079
  %v4081 = vpop.f32.mrb[0].mxu0
  %v4082 = vadd.f32 %v3525, %v4081
  %v4083 = vpop.f32.mrb[0].mxu0
  %v4084 = vadd.f32 %v3529, %v4083
  %4085 = vmatprep.mubr.bf16.mxu0 0
  %4086 = vmatmul.mubr.bf16.gmra.mrb[0].mxu0 %v3912
  %v4087 = vpop.f32.mrb[0].mxu0
  %v4088 = vadd.f32 %v3525, %v4087
  %v4089 = vpop.f32.mrb[0].mxu0
  %v4090 = vadd.f32 %v3529, %v4089
  %v4091 = vpop.f32.mrb[0].mxu0
  %v4092 = vadd.f32 %v3525, %v4091
  %v4093 = vpop.f32.mrb[0].mxu0
  %v4094 = vadd.f32 %v3529, %v4093
  %4095 = vmatprep.mubr.bf16.mxu0 0
  %4096 = vmatmul.mubr.bf16.gmra.mrb[0].mxu0 %v3913
  %v4097 = vpop.f32.mrb[0].mxu0
  %v4098 = vadd.f32 %v3525, %v4097
  %v4099 = vpop.f32.mrb[0].mxu0
  %v4100 = vadd.f32 %v3529, %v4099
  %v4101 = vpop.f32.mrb[0].mxu0
  %v4102 = vadd.f32 %v3525, %v4101
  %v4103 = vpop.f32.mrb[0].mxu0
  %v4104 = vadd.f32 %v3529, %v4103
  %4105 = vmatprep.mubr.bf16.mxu0 0
  %4106 = vmatmul.mubr.bf16.gmra.mrb[0].mxu0 %v3914
  %v4107 = vpop.f32.mrb[0].mxu0
  %v4108 = vadd.f32 %v3525, %v4107
  %v4109 = vpop.f32.mrb[0].mxu0
  %v4110 = vadd.f32 %v3529, %v4109
  %v4111 = vpop.f32.mrb[0].mxu0
  %v4112 = vadd.f32 %v3525, %v4111
  %v4113 = vpop.f32.mrb[0].mxu0
  %v4114 = vadd.f32 %v3529, %v4113
  %4115 = vdwg.mxu0
  %v4116 = vmax.f32 %v4038, 0.0
  %v4117 = vmax.f32 %v4040, 0.0
  %v4118 = vmax.f32 %v4042, 0.0
  %v4119 = vmax.f32 %v4044, 0.0
  %v4120 = vmax.f32 %v4048, 0.0
  %v4121 = vmax.f32 %v4050, 0.0
  %v4122 = vmax.f32 %v4052, 0.0
  %v4123 = vmax.f32 %v4054, 0.0
  %v4124 = vmax.f32 %v4058, 0.0
  %v4125 = vmax.f32 %v4060, 0.0
  %v4126 = vmax.f32 %v4062, 0.0
  %v4127 = vmax.f32 %v4064, 0.0
  %v4128 = vmax.f32 %v4068, 0.0
  %v4129 = vmax.f32 %v4070, 0.0
  %v4130 = vmax.f32 %v4072, 0.0
  %v4131 = vmax.f32 %v4074, 0.0
  %v4132 = vmax.f32 %v4078, 0.0
  %v4133 = vmax.f32 %v4080, 0.0
  %v4134 = vmax.f32 %v4082, 0.0
  %v4135 = vmax.f32 %v4084, 0.0
  %v4136 = vmax.f32 %v4088, 0.0
  %v4137 = vmax.f32 %v4090, 0.0
  %v4138 = vmax.f32 %v4092, 0.0
  %v4139 = vmax.f32 %v4094, 0.0
  %v4140 = vmax.f32 %v4098, 0.0
  %v4141 = vmax.f32 %v4100, 0.0
  %v4142 = vmax.f32 %v4102, 0.0
  %v4143 = vmax.f32 %v4104, 0.0
  %v4144 = vmax.f32 %v4108, 0.0
  %v4145 = vmax.f32 %v4110, 0.0
  %v4146 = vmax.f32 %v4112, 0.0
  %v4147 = vmax.f32 %v4114, 0.0
  %v4148 = vpack.c.bf16 %v4118, %v4116
  %v4149 = vpack.c.bf16 %v4119, %v4117
  %v4150 = vpack.c.bf16 %v4122, %v4120
  %v4151 = vpack.c.bf16 %v4123, %v4121
  %v4152 = vpack.c.bf16 %v4126, %v4124
  %v4153 = vpack.c.bf16 %v4127, %v4125
  %v4154 = vpack.c.bf16 %v4130, %v4128
  %v4155 = vpack.c.bf16 %v4131, %v4129
  %v4156 = vpack.c.bf16 %v4134, %v4132
  %v4157 = vpack.c.bf16 %v4135, %v4133
  %v4158 = vpack.c.bf16 %v4138, %v4136
  %v4159 = vpack.c.bf16 %v4139, %v4137
  %v4160 = vpack.c.bf16 %v4142, %v4140
  %v4161 = vpack.c.bf16 %v4143, %v4141
  %v4162 = vpack.c.bf16 %v4146, %v4144
  %v4163 = vpack.c.bf16 %v4147, %v4145
  %v4164 = vld [vmem:[%s7] sm:$0xf]
  %v4165 = vld [vmem:[%s7 + $0x4] sm:$0xf]
  %v4166 = vld [vmem:[%s7 + $0x8] sm:$0xf]
  %v4167 = vld [vmem:[%s7 + $0xc] sm:$0xf]
  %v4168 = vld [vmem:[%s7 + $0x10] sm:$0xf]
  %v4169 = vld [vmem:[%s7 + $0x14] sm:$0xf]
  %v4170 = vld [vmem:[%s7 + $0x18] sm:$0xf]
  %v4171 = vld [vmem:[%s7 + $0x1c] sm:$0xf]
  %v4172 = vld [vmem:[%s7 + $0x20] sm:$0xf]
  %v4173 = vld [vmem:[%s7 + $0x24] sm:$0xf]
  %v4174 = vld [vmem:[%s7 + $0x28] sm:$0xf]
  %v4175 = vld [vmem:[%s7 + $0x2c] sm:$0xf]
  %v4176 = vld [vmem:[%s7 + $0x30] sm:$0xf]
  %v4177 = vld [vmem:[%s7 + $0x34] sm:$0xf]
  %v4178 = vld [vmem:[%s7 + $0x38] sm:$0xf]
  %v4179 = vld [vmem:[%s7 + $0x3c] sm:$0xf]
  %v4180 = vld [vmem:[%s7 + $0x40] sm:$0xf]
  %v4181 = vld [vmem:[%s7 + $0x44] sm:$0xf]
  %v4182 = vld [vmem:[%s7 + $0x48] sm:$0xf]
  %v4183 = vld [vmem:[%s7 + $0x4c] sm:$0xf]
  %v4184 = vld [vmem:[%s7 + $0x50] sm:$0xf]
  %v4185 = vld [vmem:[%s7 + $0x54] sm:$0xf]
  %v4186 = vld [vmem:[%s7 + $0x58] sm:$0xf]
  %v4187 = vld [vmem:[%s7 + $0x5c] sm:$0xf]
  %v4188 = vld [vmem:[%s7 + $0x60] sm:$0xf]
  %v4189 = vld [vmem:[%s7 + $0x64] sm:$0xf]
  %v4190 = vld [vmem:[%s7 + $0x68] sm:$0xf]
  %v4191 = vld [vmem:[%s7 + $0x6c] sm:$0xf]
  %v4192 = vld [vmem:[%s7 + $0x70] sm:$0xf]
  %v4193 = vld [vmem:[%s7 + $0x74] sm:$0xf]
  %v4194 = vld [vmem:[%s7 + $0x78] sm:$0xf]
  %v4195 = vld [vmem:[%s7 + $0x7c] sm:$0xf]
  %v4196 = vld [vmem:[%s8] sm:$0x1]
  %v4198 = vlaneseq
  %v4199 = vshrl.u32 %v4198, 7
  %v4200 = vsub.s32 0, %v4199
  %v4201 = vrot.slane %v4196, %v4200
  %v4235 = vunpack.c.l.b16 %v4164
  %v4236 = vunpack.c.l.b16 %v4165
  %v4237 = vunpack.c.l.b16 %v4166
  %v4238 = vunpack.c.l.b16 %v4167
  %v4239 = vunpack.c.l.b16 %v4168
  %v4240 = vunpack.c.l.b16 %v4169
  %v4241 = vunpack.c.l.b16 %v4170
  %v4242 = vunpack.c.l.b16 %v4171
  %v4243 = vunpack.c.l.b16 %v4172
  %v4244 = vunpack.c.l.b16 %v4173
  %v4245 = vunpack.c.l.b16 %v4174
  %v4246 = vunpack.c.l.b16 %v4175
  %v4247 = vunpack.c.l.b16 %v4176
  %v4248 = vunpack.c.l.b16 %v4177
  %v4249 = vunpack.c.l.b16 %v4178
  %v4250 = vunpack.c.l.b16 %v4179
  %v4251 = vunpack.c.l.b16 %v4180
  %v4252 = vunpack.c.l.b16 %v4181
  %v4253 = vunpack.c.l.b16 %v4182
  %v4254 = vunpack.c.l.b16 %v4183
  %v4255 = vunpack.c.l.b16 %v4184
  %v4256 = vunpack.c.l.b16 %v4185
  %v4257 = vunpack.c.l.b16 %v4186
  %v4258 = vunpack.c.l.b16 %v4187
  %v4259 = vunpack.c.l.b16 %v4188
  %v4260 = vunpack.c.l.b16 %v4189
  %v4261 = vunpack.c.l.b16 %v4190
  %v4262 = vunpack.c.l.b16 %v4191
  %v4263 = vunpack.c.l.b16 %v4192
  %v4264 = vunpack.c.l.b16 %v4193
  %v4265 = vunpack.c.l.b16 %v4194
  %v4266 = vunpack.c.l.b16 %v4195
  %v4267 = vpack.c.b16 %v4236, %v4235
  %v4268 = vpack.c.b16 %v4238, %v4237
  %v4269 = vpack.c.b16 %v4240, %v4239
  %v4270 = vpack.c.b16 %v4242, %v4241
  %v4271 = vpack.c.b16 %v4244, %v4243
  %v4272 = vpack.c.b16 %v4246, %v4245
  %v4273 = vpack.c.b16 %v4248, %v4247
  %v4274 = vpack.c.b16 %v4250, %v4249
  %v4275 = vpack.c.b16 %v4252, %v4251
  %v4276 = vpack.c.b16 %v4254, %v4253
  %v4277 = vpack.c.b16 %v4256, %v4255
  %v4278 = vpack.c.b16 %v4258, %v4257
  %v4279 = vpack.c.b16 %v4260, %v4259
  %v4280 = vpack.c.b16 %v4262, %v4261
  %v4281 = vpack.c.b16 %v4264, %v4263
  %v4282 = vpack.c.b16 %v4266, %v4265
  %4299 = vmatprep.subr.bf16.mxu0 0
  %4300 = vmatpush1.bf16.msra.mxu0 %v4267
  %4301 = vmatprep.subr.bf16.mxu0 0
  %4302 = vmatpush1.bf16.msra.mxu0 %v4268
  %4303 = vmatprep.subr.bf16.mxu0 0
  %4304 = vmatpush1.bf16.msra.mxu0 %v4269
  %4305 = vmatprep.subr.bf16.mxu0 0
  %4306 = vmatpush1.bf16.msra.mxu0 %v4270
  %4307 = vmatprep.subr.bf16.mxu0 0
  %4308 = vmatpush1.bf16.msra.mxu0 %v4271
  %4309 = vmatprep.subr.bf16.mxu0 0
  %4310 = vmatpush1.bf16.msra.mxu0 %v4272
  %4311 = vmatprep.subr.bf16.mxu0 0
  %4312 = vmatpush1.bf16.msra.mxu0 %v4273
  %4313 = vmatprep.subr.bf16.mxu0 0
  %4314 = vmatpush1.bf16.msra.mxu0 %v4274
  %4315 = vmatprep.subr.bf16.mxu0 0
  %4316 = vmatpush1.bf16.msra.mxu0 %v4275
  %4317 = vmatprep.subr.bf16.mxu0 0
  %4318 = vmatpush1.bf16.msra.mxu0 %v4276
  %4319 = vmatprep.subr.bf16.mxu0 0
  %4320 = vmatpush1.bf16.msra.mxu0 %v4277
  %4321 = vmatprep.subr.bf16.mxu0 0
  %4322 = vmatpush1.bf16.msra.mxu0 %v4278
  %4323 = vmatprep.subr.bf16.mxu0 0
  %4324 = vmatpush1.bf16.msra.mxu0 %v4279
  %4325 = vmatprep.subr.bf16.mxu0 0
  %4326 = vmatpush1.bf16.msra.mxu0 %v4280
  %4327 = vmatprep.subr.bf16.mxu0 0
  %4328 = vmatpush1.bf16.msra.mxu0 %v4281
  %4329 = vmatprep.subr.bf16.mxu0 0
  %4330 = vmatpush1.bf16.msra.mxu0 %v4282
  %4331 = vmatprep.mubr.bf16.mxu0 %v4149
  %4332 = vmatmul.mubr.bf16.gmra.mrb[0].mxu0 %v4148
  %v4333 = vpop.f32.mrb[0].mxu0
  %v4334 = vadd.f32 %v4201, %v4333
  %v4335 = vpop.f32.mrb[0].mxu0
  %v4336 = vpop.f32.mrb[0].mxu0
  %v4337 = vadd.f32 %v4201, %v4336
  %v4338 = vpop.f32.mrb[0].mxu0
  %4339 = vmatprep.mubr.bf16.mxu0 %v4151
  %4340 = vmatmul.mubr.bf16.gmra.mrb[0].mxu0 %v4150
  %v4341 = vpop.f32.mrb[0].mxu0
  %v4342 = vadd.f32 %v4201, %v4341
  %v4343 = vpop.f32.mrb[0].mxu0
  %v4344 = vpop.f32.mrb[0].mxu0
  %v4345 = vadd.f32 %v4201, %v4344
  %v4346 = vpop.f32.mrb[0].mxu0
  %4347 = vmatprep.mubr.bf16.mxu0 %v4153
  %4348 = vmatmul.mubr.bf16.gmra.mrb[0].mxu0 %v4152
  %v4349 = vpop.f32.mrb[0].mxu0
  %v4350 = vadd.f32 %v4201, %v4349
  %v4351 = vpop.f32.mrb[0].mxu0
  %v4352 = vpop.f32.mrb[0].mxu0
  %v4353 = vadd.f32 %v4201, %v4352
  %v4354 = vpop.f32.mrb[0].mxu0
  %4355 = vmatprep.mubr.bf16.mxu0 %v4155
  %4356 = vmatmul.mubr.bf16.gmra.mrb[0].mxu0 %v4154
  %v4357 = vpop.f32.mrb[0].mxu0
  %v4358 = vadd.f32 %v4201, %v4357
  %v4359 = vpop.f32.mrb[0].mxu0
  %v4360 = vpop.f32.mrb[0].mxu0
  %v4361 = vadd.f32 %v4201, %v4360
  %v4362 = vpop.f32.mrb[0].mxu0
  %4363 = vmatprep.mubr.bf16.mxu0 %v4157
  %4364 = vmatmul.mubr.bf16.gmra.mrb[0].mxu0 %v4156
  %v4365 = vpop.f32.mrb[0].mxu0
  %v4366 = vadd.f32 %v4201, %v4365
  %v4367 = vpop.f32.mrb[0].mxu0
  %v4368 = vpop.f32.mrb[0].mxu0
  %v4369 = vadd.f32 %v4201, %v4368
  %v4370 = vpop.f32.mrb[0].mxu0
  %4371 = vmatprep.mubr.bf16.mxu0 %v4159
  %4372 = vmatmul.mubr.bf16.gmra.mrb[0].mxu0 %v4158
  %v4373 = vpop.f32.mrb[0].mxu0
  %v4374 = vadd.f32 %v4201, %v4373
  %v4375 = vpop.f32.mrb[0].mxu0
  %v4376 = vpop.f32.mrb[0].mxu0
  %v4377 = vadd.f32 %v4201, %v4376
  %v4378 = vpop.f32.mrb[0].mxu0
  %4379 = vmatprep.mubr.bf16.mxu0 %v4161
  %4380 = vmatmul.mubr.bf16.gmra.mrb[0].mxu0 %v4160
  %v4381 = vpop.f32.mrb[0].mxu0
  %v4382 = vadd.f32 %v4201, %v4381
  %v4383 = vpop.f32.mrb[0].mxu0
  %v4384 = vpop.f32.mrb[0].mxu0
  %v4385 = vadd.f32 %v4201, %v4384
  %v4386 = vpop.f32.mrb[0].mxu0
  %4387 = vmatprep.mubr.bf16.mxu0 %v4163
  %4388 = vmatmul.mubr.bf16.gmra.mrb[0].mxu0 %v4162
  %v4389 = vpop.f32.mrb[0].mxu0
  %v4390 = vadd.f32 %v4201, %v4389
  %v4391 = vpop.f32.mrb[0].mxu0
  %v4392 = vpop.f32.mrb[0].mxu0
  %v4393 = vadd.f32 %v4201, %v4392
  %v4394 = vpop.f32.mrb[0].mxu0
  %4395 = vdwg.mxu0
  %v4524 = vsel %vm3788, %v2619, %v2613
  %v4525 = vsel %vm3790, %v2625, %v4524
  %v4526 = vsel %vm3792, %v2631, %v4525
  %v4527 = vsel %vm3794, %v2637, %v4526
  %v4528 = vsel %vm3796, %v2643, %v4527
  %v4529 = vsel %vm3798, %v2649, %v4528
  %v4530 = vsel %vm3800, %v2655, %v4529
  %v4531 = vsel %vm3788, %v2667, %v2661
  %v4532 = vsel %vm3790, %v2673, %v4531
  %v4533 = vsel %vm3792, %v2679, %v4532
  %v4534 = vsel %vm3794, %v2685, %v4533
  %v4535 = vsel %vm3796, %v2691, %v4534
  %v4536 = vsel %vm3798, %v2697, %v4535
  %v4537 = vsel %vm3800, %v2703, %v4536
  %v4538 = vsel %vm3788, %v2715, %v2709
  %v4539 = vsel %vm3790, %v2721, %v4538
  %v4540 = vsel %vm3792, %v2727, %v4539
  %v4541 = vsel %vm3794, %v2733, %v4540
  %v4542 = vsel %vm3796, %v2739, %v4541
  %v4543 = vsel %vm3798, %v2745, %v4542
  %v4544 = vsel %vm3800, %v2751, %v4543
  %v4545 = vsel %vm3788, %v2763, %v2757
  %v4546 = vsel %vm3790, %v2769, %v4545
  %v4547 = vsel %vm3792, %v2775, %v4546
  %v4548 = vsel %vm3794, %v2781, %v4547
  %v4549 = vsel %vm3796, %v2787, %v4548
  %v4550 = vsel %vm3798, %v2793, %v4549
  %v4551 = vsel %vm3800, %v2799, %v4550
  %v4552 = vsel %vm3788, %v2811, %v2805
  %v4553 = vsel %vm3790, %v2817, %v4552
  %v4554 = vsel %vm3792, %v2823, %v4553
  %v4555 = vsel %vm3794, %v2829, %v4554
  %v4556 = vsel %vm3796, %v2835, %v4555
  %v4557 = vsel %vm3798, %v2841, %v4556
  %v4558 = vsel %vm3800, %v2847, %v4557
  %v4559 = vsel %vm3788, %v2859, %v2853
  %v4560 = vsel %vm3790, %v2865, %v4559
  %v4561 = vsel %vm3792, %v2871, %v4560
  %v4562 = vsel %vm3794, %v2877, %v4561
  %v4563 = vsel %vm3796, %v2883, %v4562
  %v4564 = vsel %vm3798, %v2889, %v4563
  %v4565 = vsel %vm3800, %v2895, %v4564
  %v4566 = vsel %vm3788, %v2907, %v2901
  %v4567 = vsel %vm3790, %v2913, %v4566
  %v4568 = vsel %vm3792, %v2919, %v4567
  %v4569 = vsel %vm3794, %v2925, %v4568
  %v4570 = vsel %vm3796, %v2931, %v4569
  %v4571 = vsel %vm3798, %v2937, %v4570
  %v4572 = vsel %vm3800, %v2943, %v4571
  %v4573 = vsel %vm3788, %v2955, %v2949
  %v4574 = vsel %vm3790, %v2961, %v4573
  %v4575 = vsel %vm3792, %v2967, %v4574
  %v4576 = vsel %vm3794, %v2973, %v4575
  %v4577 = vsel %vm3796, %v2979, %v4576
  %v4578 = vsel %vm3798, %v2985, %v4577
  %v4579 = vsel %vm3800, %v2991, %v4578
  %v4580 = vsel %vm3788, %v3003, %v2997
  %v4581 = vsel %vm3790, %v3009, %v4580
  %v4582 = vsel %vm3792, %v3015, %v4581
  %v4583 = vsel %vm3794, %v3021, %v4582
  %v4584 = vsel %vm3796, %v3027, %v4583
  %v4585 = vsel %vm3798, %v3033, %v4584
  %v4586 = vsel %vm3800, %v3039, %v4585
  %v4587 = vsel %vm3788, %v3051, %v3045
  %v4588 = vsel %vm3790, %v3057, %v4587
  %v4589 = vsel %vm3792, %v3063, %v4588
  %v4590 = vsel %vm3794, %v3069, %v4589
  %v4591 = vsel %vm3796, %v3075, %v4590
  %v4592 = vsel %vm3798, %v3081, %v4591
  %v4593 = vsel %vm3800, %v3087, %v4592
  %v4594 = vsel %vm3788, %v3099, %v3093
  %v4595 = vsel %vm3790, %v3105, %v4594
  %v4596 = vsel %vm3792, %v3111, %v4595
  %v4597 = vsel %vm3794, %v3117, %v4596
  %v4598 = vsel %vm3796, %v3123, %v4597
  %v4599 = vsel %vm3798, %v3129, %v4598
  %v4600 = vsel %vm3800, %v3135, %v4599
  %v4601 = vsel %vm3788, %v3147, %v3141
  %v4602 = vsel %vm3790, %v3153, %v4601
  %v4603 = vsel %vm3792, %v3159, %v4602
  %v4604 = vsel %vm3794, %v3165, %v4603
  %v4605 = vsel %vm3796, %v3171, %v4604
  %v4606 = vsel %vm3798, %v3177, %v4605
  %v4607 = vsel %vm3800, %v3183, %v4606
  %v4608 = vsel %vm3788, %v3195, %v3189
  %v4609 = vsel %vm3790, %v3201, %v4608
  %v4610 = vsel %vm3792, %v3207, %v4609
  %v4611 = vsel %vm3794, %v3213, %v4610
  %v4612 = vsel %vm3796, %v3219, %v4611
  %v4613 = vsel %vm3798, %v3225, %v4612
  %v4614 = vsel %vm3800, %v3231, %v4613
  %v4615 = vsel %vm3788, %v3243, %v3237
  %v4616 = vsel %vm3790, %v3249, %v4615
  %v4617 = vsel %vm3792, %v3255, %v4616
  %v4618 = vsel %vm3794, %v3261, %v4617
  %v4619 = vsel %vm3796, %v3267, %v4618
  %v4620 = vsel %vm3798, %v3273, %v4619
  %v4621 = vsel %vm3800, %v3279, %v4620
  %v4622 = vsel %vm3788, %v3291, %v3285
  %v4623 = vsel %vm3790, %v3297, %v4622
  %v4624 = vsel %vm3792, %v3303, %v4623
  %v4625 = vsel %vm3794, %v3309, %v4624
  %v4626 = vsel %vm3796, %v3315, %v4625
  %v4627 = vsel %vm3798, %v3321, %v4626
  %v4628 = vsel %vm3800, %v3327, %v4627
  %v4629 = vsel %vm3788, %v3339, %v3333
  %v4630 = vsel %vm3790, %v3345, %v4629
  %v4631 = vsel %vm3792, %v3351, %v4630
  %v4632 = vsel %vm3794, %v3357, %v4631
  %v4633 = vsel %vm3796, %v3363, %v4632
  %v4634 = vsel %vm3798, %v3369, %v4633
  %v4635 = vsel %vm3800, %v3375, %v4634
  %v4652 = vadd.f32 %v4334, %v4530
  %v4653 = vadd.f32 %v4337, %v4537
  %v4654 = vadd.f32 %v4342, %v4544
  %v4655 = vadd.f32 %v4345, %v4551
  %v4656 = vadd.f32 %v4350, %v4558
  %v4657 = vadd.f32 %v4353, %v4565
  %v4658 = vadd.f32 %v4358, %v4572
  %v4659 = vadd.f32 %v4361, %v4579
  %v4660 = vadd.f32 %v4366, %v4586
  %v4661 = vadd.f32 %v4369, %v4593
  %v4662 = vadd.f32 %v4374, %v4600
  %v4663 = vadd.f32 %v4377, %v4607
  %v4664 = vadd.f32 %v4382, %v4614
  %v4665 = vadd.f32 %v4385, %v4621
  %v4666 = vadd.f32 %v4390, %v4628
  %v4667 = vadd.f32 %v4393, %v4635
  %v4668 = vmax.f32 %v4652, 0.0
  %v4669 = vmax.f32 %v4653, 0.0
  %v4670 = vmax.f32 %v4654, 0.0
  %v4671 = vmax.f32 %v4655, 0.0
  %v4672 = vmax.f32 %v4656, 0.0
  %v4673 = vmax.f32 %v4657, 0.0
  %v4674 = vmax.f32 %v4658, 0.0
  %v4675 = vmax.f32 %v4659, 0.0
  %v4676 = vmax.f32 %v4660, 0.0
  %v4677 = vmax.f32 %v4661, 0.0
  %v4678 = vmax.f32 %v4662, 0.0
  %v4679 = vmax.f32 %v4663, 0.0
  %v4680 = vmax.f32 %v4664, 0.0
  %v4681 = vmax.f32 %v4665, 0.0
  %v4682 = vmax.f32 %v4666, 0.0
  %v4683 = vmax.f32 %v4667, 0.0
  %v4684 = vpack.c.bf16 %v4669, %v4668
  %v4685 = vpack.c.bf16 %v4671, %v4670
  %v4686 = vpack.c.bf16 %v4673, %v4672
  %v4687 = vpack.c.bf16 %v4675, %v4674
  %v4688 = vpack.c.bf16 %v4677, %v4676
  %v4689 = vpack.c.bf16 %v4679, %v4678
  %v4690 = vpack.c.bf16 %v4681, %v4680
  %v4691 = vpack.c.bf16 %v4683, %v4682
  %v4700 = vunpack.c.l.b16 %v4684
  %v4701 = vunpack.c.h.b16 %v4684
  %v4702 = vunpack.c.l.b16 %v4685
  %v4703 = vunpack.c.h.b16 %v4685
  %v4704 = vunpack.c.l.b16 %v4686
  %v4705 = vunpack.c.h.b16 %v4686
  %v4706 = vunpack.c.l.b16 %v4687
  %v4707 = vunpack.c.h.b16 %v4687
  %v4708 = vunpack.c.l.b16 %v4688
  %v4709 = vunpack.c.h.b16 %v4688
  %v4710 = vunpack.c.l.b16 %v4689
  %v4711 = vunpack.c.h.b16 %v4689
  %v4712 = vunpack.c.l.b16 %v4690
  %v4713 = vunpack.c.h.b16 %v4690
  %v4714 = vunpack.c.l.b16 %v4691
  %v4715 = vunpack.c.h.b16 %v4691
  %v4716 = vpack.c.b16 %v4700, %v4700
  %v4717 = vpack.c.b16 %v4701, %v4701
  %v4718 = vpack.c.b16 %v4702, %v4702
  %v4719 = vpack.c.b16 %v4703, %v4703
  %v4720 = vpack.c.b16 %v4704, %v4704
  %v4721 = vpack.c.b16 %v4705, %v4705
  %v4722 = vpack.c.b16 %v4706, %v4706
  %v4723 = vpack.c.b16 %v4707, %v4707
  %v4724 = vpack.c.b16 %v4708, %v4708
  %v4725 = vpack.c.b16 %v4709, %v4709
  %v4726 = vpack.c.b16 %v4710, %v4710
  %v4727 = vpack.c.b16 %v4711, %v4711
  %v4728 = vpack.c.b16 %v4712, %v4712
  %v4729 = vpack.c.b16 %v4713, %v4713
  %v4730 = vpack.c.b16 %v4714, %v4714
  %v4731 = vpack.c.b16 %v4715, %v4715
  %4748 = vst [vmem:[%s9] sm:$0xf] %v4716
  %4749 = vst [vmem:[%s9 + $0x4] sm:$0xf] %v4717
  %4750 = vst [vmem:[%s9 + $0x8] sm:$0xf] %v4718
  %4751 = vst [vmem:[%s9 + $0xc] sm:$0xf] %v4719
  %4752 = vst [vmem:[%s9 + $0x10] sm:$0xf] %v4720
  %4753 = vst [vmem:[%s9 + $0x14] sm:$0xf] %v4721
  %4754 = vst [vmem:[%s9 + $0x18] sm:$0xf] %v4722
  %4755 = vst [vmem:[%s9 + $0x1c] sm:$0xf] %v4723
  %4756 = vst [vmem:[%s9 + $0x20] sm:$0xf] %v4724
  %4757 = vst [vmem:[%s9 + $0x24] sm:$0xf] %v4725
  %4758 = vst [vmem:[%s9 + $0x28] sm:$0xf] %v4726
  %4759 = vst [vmem:[%s9 + $0x2c] sm:$0xf] %v4727
  %4760 = vst [vmem:[%s9 + $0x30] sm:$0xf] %v4728
  %4761 = vst [vmem:[%s9 + $0x34] sm:$0xf] %v4729
  %4762 = vst [vmem:[%s9 + $0x38] sm:$0xf] %v4730
  %4763 = vst [vmem:[%s9 + $0x3c] sm:$0xf] %v4731
  // Predicated region
  $region38: #{_lambda_.7} parent=0 // pred_check
    _
  $region39: #{_lambda_.7} parent=0 // pred_check_branch
    %4765 = sbr.rel (0) target = $region41
  $region40: #{_lambda_.7} parent=0 // pred_region
    _
  $region41: #{_lambda_.7} parent=0 // pred_fallthru
    _
  // Predicated region
  $region42: #{_lambda_.7} parent=0 // pred_check
    _
  $region43: #{_lambda_.7} parent=0 // pred_check_branch
    %4767 = sbr.rel (0) target = $region45
  $region44: #{_lambda_.7} parent=0 // pred_region
    _
  $region45: #{_lambda_.7} parent=0 // pred_fallthru
    _

// kernel: neg.12
$region0: #{neg.12}
  #allocation0 [shape = 's32[1]{0}', space=sflag, size = 0x4, scoped, tag = 'scoped memory for neg.12']
  %s0 = inlined_call_operand.vmem [shape: f32[2,64,16], index: 0, kind: input, shape index: {}]
  %s1 = inlined_call_operand.vmem [shape: f32[2,64,16], index: 1, kind: output, shape index: {}]
  %v2 = vld [vmem:[%s0] sm:$0xff]
  %3 = xla_tuple %v2
  %4 = xla_tuple %3
  %v5 = vxor.u32 %v2, 2147483648
  %6 = xla_tuple %v5
  %7 = vst [vmem:[%s1] sm:$0xff] %v5
  %s8 = scalar_lea.vmem %s0, 16
  %v9 = vld [vmem:[%s8] sm:$0xff]
  %10 = xla_tuple %v9
  %11 = xla_tuple %10
  %v12 = vxor.u32 %v9, 2147483648
  %13 = xla_tuple %v12
  %s14 = scalar_lea.vmem %s1, 16
  %15 = vst [vmem:[%s14] sm:$0xff] %v12
  %s16 = scalar_lea.vmem %s0, 8
  %v17 = vld [vmem:[%s16] sm:$0xff]
  %18 = xla_tuple %v17
  %19 = xla_tuple %18
  %v20 = vxor.u32 %v17, 2147483648
  %21 = xla_tuple %v20
  %s22 = scalar_lea.vmem %s1, 8
  %23 = vst [vmem:[%s22] sm:$0xff] %v20
  %s24 = scalar_lea.vmem %s0, 24
  %v25 = vld [vmem:[%s24] sm:$0xff]
  %26 = xla_tuple %v25
  %27 = xla_tuple %26
  %v28 = vxor.u32 %v25, 2147483648
  %29 = xla_tuple %v28
  %s30 = scalar_lea.vmem %s1, 24
  %31 = vst [vmem:[%s30] sm:$0xff] %v28

// kernel: _lambda_.8
$region0: #{_lambda_.8}
  #allocation0 [shape = 'u32[]', space=smem, size = 0x4, offset = 0x4, fixed_abs, tag = 'smem constant byte address 0x4 - core index']
  #allocation1 [shape = 'u32[144,128]{1,0:T(1,128)}', space=vmem, size = 0x12000, scoped, tag = 'internal scratch']
  %s0 = inlined_call_operand.vmem [shape: bf16[256,128], index: 0, kind: input, shape index: {}]
  %s1 = inlined_call_operand.vmem [shape: bf16[256,8], index: 1, kind: input, shape index: {}]
  %s2 = inlined_call_operand.vmem [shape: bf16[128,128], index: 2, kind: input, shape index: {}]
  %s3 = inlined_call_operand.vmem [shape: bf16[8,128], index: 3, kind: input, shape index: {}]
  %s4 = inlined_call_operand.vmem [shape: f32[1,128], index: 4, kind: input, shape index: {}]
  %s5 = inlined_call_operand.vmem [shape: bf16[128,512], index: 5, kind: input, shape index: {}]
  %s6 = inlined_call_operand.vmem [shape: f32[1,512], index: 6, kind: input, shape index: {}]
  %s7 = inlined_call_operand.vmem [shape: bf16[512,128], index: 7, kind: input, shape index: {}]
  %s8 = inlined_call_operand.vmem [shape: f32[1,128], index: 8, kind: input, shape index: {}]
  %s9 = inlined_call_operand.vmem [shape: bf16[32,128], index: 9, kind: output, shape index: {}]
  %s10 = sld [smem:[#allocation0]]
  $region46: #{_lambda_.8} parent=0
    _
  %s12 = ssub.s32 1, %s10
  %s13 = scalar_select 0, %s12, %s10
  // Predicated region
  $region2: #{_lambda_.8} parent=0 // pred_check
    _
  $region3: #{_lambda_.8} parent=0 // pred_check_branch
    %15 = sbr.rel (0) target = $region5
  $region4: #{_lambda_.8} parent=0 // pred_region
    _
  $region5: #{_lambda_.8} parent=0 // pred_fallthru
    _
  // Predicated region
  $region6: #{_lambda_.8} parent=0 // pred_check
    _
  $region7: #{_lambda_.8} parent=0 // pred_check_branch
    %17 = sbr.rel (0) target = $region9
  $region8: #{_lambda_.8} parent=0 // pred_region
    _
  $region9: #{_lambda_.8} parent=0 // pred_fallthru
    _
  // Predicated region
  $region10: #{_lambda_.8} parent=0 // pred_check
    _
  $region11: #{_lambda_.8} parent=0 // pred_check_branch
    %19 = sbr.rel (0) target = $region13
  $region12: #{_lambda_.8} parent=0 // pred_region
    _
  $region13: #{_lambda_.8} parent=0 // pred_fallthru
    _
  // Predicated region
  $region14: #{_lambda_.8} parent=0 // pred_check
    _
  $region15: #{_lambda_.8} parent=0 // pred_check_branch
    %21 = sbr.rel (0) target = $region17
  $region16: #{_lambda_.8} parent=0 // pred_region
    _
  $region17: #{_lambda_.8} parent=0 // pred_fallthru
    _
  // Predicated region
  $region18: #{_lambda_.8} parent=0 // pred_check
    _
  $region19: #{_lambda_.8} parent=0 // pred_check_branch
    %23 = sbr.rel (0) target = $region21
  $region20: #{_lambda_.8} parent=0 // pred_region
    _
  $region21: #{_lambda_.8} parent=0 // pred_fallthru
    _
  // Predicated region
  $region22: #{_lambda_.8} parent=0 // pred_check
    _
  $region23: #{_lambda_.8} parent=0 // pred_check_branch
    %25 = sbr.rel (0) target = $region25
  $region24: #{_lambda_.8} parent=0 // pred_region
    _
  $region25: #{_lambda_.8} parent=0 // pred_fallthru
    _
  // Predicated region
  $region26: #{_lambda_.8} parent=0 // pred_check
    _
  $region27: #{_lambda_.8} parent=0 // pred_check_branch
    %27 = sbr.rel (0) target = $region29
  $region28: #{_lambda_.8} parent=0 // pred_region
    _
  $region29: #{_lambda_.8} parent=0 // pred_fallthru
    _
  // Predicated region
  $region30: #{_lambda_.8} parent=0 // pred_check
    _
  $region31: #{_lambda_.8} parent=0 // pred_check_branch
    %29 = sbr.rel (0) target = $region33
  $region32: #{_lambda_.8} parent=0 // pred_region
    _
  $region33: #{_lambda_.8} parent=0 // pred_fallthru
    _
  // Predicated region
  $region34: #{_lambda_.8} parent=0 // pred_check
    _
  $region35: #{_lambda_.8} parent=0 // pred_check_branch
    %31 = sbr.rel (0) target = $region37
  $region36: #{_lambda_.8} parent=0 // pred_region
    _
  $region37: #{_lambda_.8} parent=0 // pred_fallthru
    _
  %v33 = vld [vmem:[%s0] sm:$0xf]
  %v34 = vld [vmem:[%s0 + $0x4] sm:$0xf]
  %v35 = vld [vmem:[%s0 + $0x8] sm:$0xf]
  %v36 = vld [vmem:[%s0 + $0xc] sm:$0xf]
  %v37 = vld [vmem:[%s0 + $0x10] sm:$0xf]
  %v38 = vld [vmem:[%s0 + $0x14] sm:$0xf]
  %v39 = vld [vmem:[%s0 + $0x18] sm:$0xf]
  %v40 = vld [vmem:[%s0 + $0x1c] sm:$0xf]
  %v41 = vld [vmem:[%s0 + $0x20] sm:$0xf]
  %v42 = vld [vmem:[%s0 + $0x24] sm:$0xf]
  %v43 = vld [vmem:[%s0 + $0x28] sm:$0xf]
  %v44 = vld [vmem:[%s0 + $0x2c] sm:$0xf]
  %v45 = vld [vmem:[%s0 + $0x30] sm:$0xf]
  %v46 = vld [vmem:[%s0 + $0x34] sm:$0xf]
  %v47 = vld [vmem:[%s0 + $0x38] sm:$0xf]
  %v48 = vld [vmem:[%s0 + $0x3c] sm:$0xf]
  %v49 = vld [vmem:[%s0 + $0x40] sm:$0xf]
  %v50 = vld [vmem:[%s0 + $0x44] sm:$0xf]
  %v51 = vld [vmem:[%s0 + $0x48] sm:$0xf]
  %v52 = vld [vmem:[%s0 + $0x4c] sm:$0xf]
  %v53 = vld [vmem:[%s0 + $0x50] sm:$0xf]
  %v54 = vld [vmem:[%s0 + $0x54] sm:$0xf]
  %v55 = vld [vmem:[%s0 + $0x58] sm:$0xf]
  %v56 = vld [vmem:[%s0 + $0x5c] sm:$0xf]
  %v57 = vld [vmem:[%s0 + $0x60] sm:$0xf]
  %v58 = vld [vmem:[%s0 + $0x64] sm:$0xf]
  %v59 = vld [vmem:[%s0 + $0x68] sm:$0xf]
  %v60 = vld [vmem:[%s0 + $0x6c] sm:$0xf]
  %v61 = vld [vmem:[%s0 + $0x70] sm:$0xf]
  %v62 = vld [vmem:[%s0 + $0x74] sm:$0xf]
  %v63 = vld [vmem:[%s0 + $0x78] sm:$0xf]
  %v64 = vld [vmem:[%s0 + $0x7c] sm:$0xf]
  %v65 = vld [vmem:[%s2] sm:$0xf]
  %v66 = vld [vmem:[%s2 + $0x4] sm:$0xf]
  %v67 = vld [vmem:[%s2 + $0x8] sm:$0xf]
  %v68 = vld [vmem:[%s2 + $0xc] sm:$0xf]
  %v69 = vld [vmem:[%s2 + $0x10] sm:$0xf]
  %v70 = vld [vmem:[%s2 + $0x14] sm:$0xf]
  %v71 = vld [vmem:[%s2 + $0x18] sm:$0xf]
  %v72 = vld [vmem:[%s2 + $0x1c] sm:$0xf]
  %v73 = vld [vmem:[%s2 + $0x20] sm:$0xf]
  %v74 = vld [vmem:[%s2 + $0x24] sm:$0xf]
  %v75 = vld [vmem:[%s2 + $0x28] sm:$0xf]
  %v76 = vld [vmem:[%s2 + $0x2c] sm:$0xf]
  %v77 = vld [vmem:[%s2 + $0x30] sm:$0xf]
  %v78 = vld [vmem:[%s2 + $0x34] sm:$0xf]
  %v79 = vld [vmem:[%s2 + $0x38] sm:$0xf]
  %v80 = vld [vmem:[%s2 + $0x3c] sm:$0xf]
  %v81 = vld [vmem:[%s1] sm:$0xf]
  %v82 = vld [vmem:[%s1 + $0x4] sm:$0xf]
  %v83 = vld [vmem:[%s1 + $0x8] sm:$0xf]
  %v84 = vld [vmem:[%s1 + $0xc] sm:$0xf]
  %v85 = vld [vmem:[%s1 + $0x10] sm:$0xf]
  %v86 = vld [vmem:[%s1 + $0x14] sm:$0xf]
  %v87 = vld [vmem:[%s1 + $0x18] sm:$0xf]
  %v88 = vld [vmem:[%s1 + $0x1c] sm:$0xf]
  %v89 = vld [vmem:[%s1 + $0x20] sm:$0xf]
  %v90 = vld [vmem:[%s1 + $0x24] sm:$0xf]
  %v91 = vld [vmem:[%s1 + $0x28] sm:$0xf]
  %v92 = vld [vmem:[%s1 + $0x2c] sm:$0xf]
  %v93 = vld [vmem:[%s1 + $0x30] sm:$0xf]
  %v94 = vld [vmem:[%s1 + $0x34] sm:$0xf]
  %v95 = vld [vmem:[%s1 + $0x38] sm:$0xf]
  %v96 = vld [vmem:[%s1 + $0x3c] sm:$0xf]
  %v97 = vld [vmem:[%s1 + $0x40] sm:$0xf]
  %v98 = vld [vmem:[%s1 + $0x44] sm:$0xf]
  %v99 = vld [vmem:[%s1 + $0x48] sm:$0xf]
  %v100 = vld [vmem:[%s1 + $0x4c] sm:$0xf]
  %v101 = vld [vmem:[%s1 + $0x50] sm:$0xf]
  %v102 = vld [vmem:[%s1 + $0x54] sm:$0xf]
  %v103 = vld [vmem:[%s1 + $0x58] sm:$0xf]
  %v104 = vld [vmem:[%s1 + $0x5c] sm:$0xf]
  %v105 = vld [vmem:[%s1 + $0x60] sm:$0xf]
  %v106 = vld [vmem:[%s1 + $0x64] sm:$0xf]
  %v107 = vld [vmem:[%s1 + $0x68] sm:$0xf]
  %v108 = vld [vmem:[%s1 + $0x6c] sm:$0xf]
  %v109 = vld [vmem:[%s1 + $0x70] sm:$0xf]
  %v110 = vld [vmem:[%s1 + $0x74] sm:$0xf]
  %v111 = vld [vmem:[%s1 + $0x78] sm:$0xf]
  %v112 = vld [vmem:[%s1 + $0x7c] sm:$0xf]
  %v113 = vld [vmem:[%s3] sm:$0xf]
  %v146 = vunpack.c.l.b16 %v81
  %v147 = vunpack.c.l.b16 %v82
  %v148 = vunpack.c.l.b16 %v83
  %v149 = vunpack.c.l.b16 %v84
  %v150 = vunpack.c.l.b16 %v85
  %v151 = vunpack.c.l.b16 %v86
  %v152 = vunpack.c.l.b16 %v87
  %v153 = vunpack.c.l.b16 %v88
  %v154 = vunpack.c.l.b16 %v89
  %v155 = vunpack.c.l.b16 %v90
  %v156 = vunpack.c.l.b16 %v91
  %v157 = vunpack.c.l.b16 %v92
  %v158 = vunpack.c.l.b16 %v93
  %v159 = vunpack.c.l.b16 %v94
  %v160 = vunpack.c.l.b16 %v95
  %v161 = vunpack.c.l.b16 %v96
  %v162 = vunpack.c.l.b16 %v97
  %v163 = vunpack.c.l.b16 %v98
  %v164 = vunpack.c.l.b16 %v99
  %v165 = vunpack.c.l.b16 %v100
  %v166 = vunpack.c.l.b16 %v101
  %v167 = vunpack.c.l.b16 %v102
  %v168 = vunpack.c.l.b16 %v103
  %v169 = vunpack.c.l.b16 %v104
  %v170 = vunpack.c.l.b16 %v105
  %v171 = vunpack.c.l.b16 %v106
  %v172 = vunpack.c.l.b16 %v107
  %v173 = vunpack.c.l.b16 %v108
  %v174 = vunpack.c.l.b16 %v109
  %v175 = vunpack.c.l.b16 %v110
  %v176 = vunpack.c.l.b16 %v111
  %v177 = vunpack.c.l.b16 %v112
  %v178 = vpack.c.b16 %v147, %v146
  %v179 = vpack.c.b16 %v149, %v148
  %v180 = vpack.c.b16 %v151, %v150
  %v181 = vpack.c.b16 %v153, %v152
  %v182 = vpack.c.b16 %v155, %v154
  %v183 = vpack.c.b16 %v157, %v156
  %v184 = vpack.c.b16 %v159, %v158
  %v185 = vpack.c.b16 %v161, %v160
  %v186 = vpack.c.b16 %v163, %v162
  %v187 = vpack.c.b16 %v165, %v164
  %v188 = vpack.c.b16 %v167, %v166
  %v189 = vpack.c.b16 %v169, %v168
  %v190 = vpack.c.b16 %v171, %v170
  %v191 = vpack.c.b16 %v173, %v172
  %v192 = vpack.c.b16 %v175, %v174
  %v193 = vpack.c.b16 %v177, %v176
  %vm194 = vcmask 64512
  %v196 = vsel %vm194, %v178, 0
  %v199 = vsel %vm194, %v179, 0
  %v202 = vsel %vm194, %v180, 0
  %v205 = vsel %vm194, %v181, 0
  %v208 = vsel %vm194, %v182, 0
  %v211 = vsel %vm194, %v183, 0
  %v214 = vsel %vm194, %v184, 0
  %v217 = vsel %vm194, %v185, 0
  %v220 = vsel %vm194, %v186, 0
  %v223 = vsel %vm194, %v187, 0
  %v226 = vsel %vm194, %v188, 0
  %v229 = vsel %vm194, %v189, 0
  %v232 = vsel %vm194, %v190, 0
  %v235 = vsel %vm194, %v191, 0
  %v238 = vsel %vm194, %v192, 0
  %v241 = vsel %vm194, %v193, 0
  %vm243 = vcmask 1043456
  %v245 = vsel %vm243, %v113, 0
  %247 = vmatprep.subr.bf16.mxu0 0
  %248 = vmatpush1.bf16.msra.mxu0 %v245
  %249 = vmatprep.subr.bf16.mxu0 0
  %250 = vmatpush1.bf16.msra.mxu0 0
  %251 = vmatprep.subr.bf16.mxu0 0
  %252 = vmatpush1.bf16.msra.mxu0 0
  %253 = vmatprep.subr.bf16.mxu0 0
  %254 = vmatpush1.bf16.msra.mxu0 0
  %255 = vmatprep.subr.bf16.mxu0 0
  %256 = vmatpush1.bf16.msra.mxu0 0
  %257 = vmatprep.subr.bf16.mxu0 0
  %258 = vmatpush1.bf16.msra.mxu0 0
  %259 = vmatprep.subr.bf16.mxu0 0
  %260 = vmatpush1.bf16.msra.mxu0 0
  %261 = vmatprep.subr.bf16.mxu0 0
  %262 = vmatpush1.bf16.msra.mxu0 0
  %263 = vmatprep.subr.bf16.mxu0 0
  %264 = vmatpush1.bf16.msra.mxu0 0
  %265 = vmatprep.subr.bf16.mxu0 0
  %266 = vmatpush1.bf16.msra.mxu0 0
  %267 = vmatprep.subr.bf16.mxu0 0
  %268 = vmatpush1.bf16.msra.mxu0 0
  %269 = vmatprep.subr.bf16.mxu0 0
  %270 = vmatpush1.bf16.msra.mxu0 0
  %271 = vmatprep.subr.bf16.mxu0 0
  %272 = vmatpush1.bf16.msra.mxu0 0
  %273 = vmatprep.subr.bf16.mxu0 0
  %274 = vmatpush1.bf16.msra.mxu0 0
  %275 = vmatprep.subr.bf16.mxu0 0
  %276 = vmatpush1.bf16.msra.mxu0 0
  %277 = vmatprep.subr.bf16.mxu0 0
  %278 = vmatpush1.bf16.msra.mxu0 0
  %279 = vmatprep.mubr.bf16.mxu0 0
  %280 = vmatmul.mubr.bf16.gmra.mrb[0].mxu0 %v196
  %v281 = vpop.f32.mrb[0].mxu0
  %v282 = vadd.f32 0.0, %v281
  %v283 = vpop.f32.mrb[0].mxu0
  %v284 = vpop.f32.mrb[0].mxu0
  %v285 = vadd.f32 0.0, %v284
  %v286 = vpop.f32.mrb[0].mxu0
  %287 = vmatprep.mubr.bf16.mxu0 0
  %288 = vmatmul.mubr.bf16.gmra.mrb[0].mxu0 %v199
  %v289 = vpop.f32.mrb[0].mxu0
  %v290 = vadd.f32 0.0, %v289
  %v291 = vpop.f32.mrb[0].mxu0
  %v292 = vpop.f32.mrb[0].mxu0
  %v293 = vadd.f32 0.0, %v292
  %v294 = vpop.f32.mrb[0].mxu0
  %295 = vmatprep.mubr.bf16.mxu0 0
  %296 = vmatmul.mubr.bf16.gmra.mrb[0].mxu0 %v202
  %v297 = vpop.f32.mrb[0].mxu0
  %v298 = vadd.f32 0.0, %v297
  %v299 = vpop.f32.mrb[0].mxu0
  %v300 = vpop.f32.mrb[0].mxu0
  %v301 = vadd.f32 0.0, %v300
  %v302 = vpop.f32.mrb[0].mxu0
  %303 = vmatprep.mubr.bf16.mxu0 0
  %304 = vmatmul.mubr.bf16.gmra.mrb[0].mxu0 %v205
  %v305 = vpop.f32.mrb[0].mxu0
  %v306 = vadd.f32 0.0, %v305
  %v307 = vpop.f32.mrb[0].mxu0
  %v308 = vpop.f32.mrb[0].mxu0
  %v309 = vadd.f32 0.0, %v308
  %v310 = vpop.f32.mrb[0].mxu0
  %311 = vmatprep.mubr.bf16.mxu0 0
  %312 = vmatmul.mubr.bf16.gmra.mrb[0].mxu0 %v208
  %v313 = vpop.f32.mrb[0].mxu0
  %v314 = vadd.f32 0.0, %v313
  %v315 = vpop.f32.mrb[0].mxu0
  %v316 = vpop.f32.mrb[0].mxu0
  %v317 = vadd.f32 0.0, %v316
  %v318 = vpop.f32.mrb[0].mxu0
  %319 = vmatprep.mubr.bf16.mxu0 0
  %320 = vmatmul.mubr.bf16.gmra.mrb[0].mxu0 %v211
  %v321 = vpop.f32.mrb[0].mxu0
  %v322 = vadd.f32 0.0, %v321
  %v323 = vpop.f32.mrb[0].mxu0
  %v324 = vpop.f32.mrb[0].mxu0
  %v325 = vadd.f32 0.0, %v324
  %v326 = vpop.f32.mrb[0].mxu0
  %327 = vmatprep.mubr.bf16.mxu0 0
  %328 = vmatmul.mubr.bf16.gmra.mrb[0].mxu0 %v214
  %v329 = vpop.f32.mrb[0].mxu0
  %v330 = vadd.f32 0.0, %v329
  %v331 = vpop.f32.mrb[0].mxu0
  %v332 = vpop.f32.mrb[0].mxu0
  %v333 = vadd.f32 0.0, %v332
  %v334 = vpop.f32.mrb[0].mxu0
  %335 = vmatprep.mubr.bf16.mxu0 0
  %336 = vmatmul.mubr.bf16.gmra.mrb[0].mxu0 %v217
  %v337 = vpop.f32.mrb[0].mxu0
  %v338 = vadd.f32 0.0, %v337
  %v339 = vpop.f32.mrb[0].mxu0
  %v340 = vpop.f32.mrb[0].mxu0
  %v341 = vadd.f32 0.0, %v340
  %v342 = vpop.f32.mrb[0].mxu0
  %343 = vmatprep.mubr.bf16.mxu0 0
  %344 = vmatmul.mubr.bf16.gmra.mrb[0].mxu0 %v220
  %v345 = vpop.f32.mrb[0].mxu0
  %v346 = vadd.f32 0.0, %v345
  %v347 = vpop.f32.mrb[0].mxu0
  %v348 = vpop.f32.mrb[0].mxu0
  %v349 = vadd.f32 0.0, %v348
  %v350 = vpop.f32.mrb[0].mxu0
  %351 = vmatprep.mubr.bf16.mxu0 0
  %352 = vmatmul.mubr.bf16.gmra.mrb[0].mxu0 %v223
  %v353 = vpop.f32.mrb[0].mxu0
  %v354 = vadd.f32 0.0, %v353
  %v355 = vpop.f32.mrb[0].mxu0
  %v356 = vpop.f32.mrb[0].mxu0
  %v357 = vadd.f32 0.0, %v356
  %v358 = vpop.f32.mrb[0].mxu0
  %359 = vmatprep.mubr.bf16.mxu0 0
  %360 = vmatmul.mubr.bf16.gmra.mrb[0].mxu0 %v226
  %v361 = vpop.f32.mrb[0].mxu0
  %v362 = vadd.f32 0.0, %v361
  %v363 = vpop.f32.mrb[0].mxu0
  %v364 = vpop.f32.mrb[0].mxu0
  %v365 = vadd.f32 0.0, %v364
  %v366 = vpop.f32.mrb[0].mxu0
  %367 = vmatprep.mubr.bf16.mxu0 0
  %368 = vmatmul.mubr.bf16.gmra.mrb[0].mxu0 %v229
  %v369 = vpop.f32.mrb[0].mxu0
  %v370 = vadd.f32 0.0, %v369
  %v371 = vpop.f32.mrb[0].mxu0
  %v372 = vpop.f32.mrb[0].mxu0
  %v373 = vadd.f32 0.0, %v372
  %v374 = vpop.f32.mrb[0].mxu0
  %375 = vmatprep.mubr.bf16.mxu0 0
  %376 = vmatmul.mubr.bf16.gmra.mrb[0].mxu0 %v232
  %v377 = vpop.f32.mrb[0].mxu0
  %v378 = vadd.f32 0.0, %v377
  %v379 = vpop.f32.mrb[0].mxu0
  %v380 = vpop.f32.mrb[0].mxu0
  %v381 = vadd.f32 0.0, %v380
  %v382 = vpop.f32.mrb[0].mxu0
  %383 = vmatprep.mubr.bf16.mxu0 0
  %384 = vmatmul.mubr.bf16.gmra.mrb[0].mxu0 %v235
  %v385 = vpop.f32.mrb[0].mxu0
  %v386 = vadd.f32 0.0, %v385
  %v387 = vpop.f32.mrb[0].mxu0
  %v388 = vpop.f32.mrb[0].mxu0
  %v389 = vadd.f32 0.0, %v388
  %v390 = vpop.f32.mrb[0].mxu0
  %391 = vmatprep.mubr.bf16.mxu0 0
  %392 = vmatmul.mubr.bf16.gmra.mrb[0].mxu0 %v238
  %v393 = vpop.f32.mrb[0].mxu0
  %v394 = vadd.f32 0.0, %v393
  %v395 = vpop.f32.mrb[0].mxu0
  %v396 = vpop.f32.mrb[0].mxu0
  %v397 = vadd.f32 0.0, %v396
  %v398 = vpop.f32.mrb[0].mxu0
  %399 = vmatprep.mubr.bf16.mxu0 0
  %400 = vmatmul.mubr.bf16.gmra.mrb[0].mxu0 %v241
  %v401 = vpop.f32.mrb[0].mxu0
  %v402 = vadd.f32 0.0, %v401
  %v403 = vpop.f32.mrb[0].mxu0
  %v404 = vpop.f32.mrb[0].mxu0
  %v405 = vadd.f32 0.0, %v404
  %v406 = vpop.f32.mrb[0].mxu0
  %407 = vdwg.mxu0
  %v440 = vunpack.c.l.b16 %v33
  %v441 = vunpack.c.l.b16 %v34
  %v442 = vunpack.c.l.b16 %v35
  %v443 = vunpack.c.l.b16 %v36
  %v444 = vunpack.c.l.b16 %v37
  %v445 = vunpack.c.l.b16 %v38
  %v446 = vunpack.c.l.b16 %v39
  %v447 = vunpack.c.l.b16 %v40
  %v448 = vunpack.c.l.b16 %v41
  %v449 = vunpack.c.l.b16 %v42
  %v450 = vunpack.c.l.b16 %v43
  %v451 = vunpack.c.l.b16 %v44
  %v452 = vunpack.c.l.b16 %v45
  %v453 = vunpack.c.l.b16 %v46
  %v454 = vunpack.c.l.b16 %v47
  %v455 = vunpack.c.l.b16 %v48
  %v456 = vunpack.c.l.b16 %v49
  %v457 = vunpack.c.l.b16 %v50
  %v458 = vunpack.c.l.b16 %v51
  %v459 = vunpack.c.l.b16 %v52
  %v460 = vunpack.c.l.b16 %v53
  %v461 = vunpack.c.l.b16 %v54
  %v462 = vunpack.c.l.b16 %v55
  %v463 = vunpack.c.l.b16 %v56
  %v464 = vunpack.c.l.b16 %v57
  %v465 = vunpack.c.l.b16 %v58
  %v466 = vunpack.c.l.b16 %v59
  %v467 = vunpack.c.l.b16 %v60
  %v468 = vunpack.c.l.b16 %v61
  %v469 = vunpack.c.l.b16 %v62
  %v470 = vunpack.c.l.b16 %v63
  %v471 = vunpack.c.l.b16 %v64
  %v472 = vpack.c.b16 %v441, %v440
  %v473 = vpack.c.b16 %v443, %v442
  %v474 = vpack.c.b16 %v445, %v444
  %v475 = vpack.c.b16 %v447, %v446
  %v476 = vpack.c.b16 %v449, %v448
  %v477 = vpack.c.b16 %v451, %v450
  %v478 = vpack.c.b16 %v453, %v452
  %v479 = vpack.c.b16 %v455, %v454
  %v480 = vpack.c.b16 %v457, %v456
  %v481 = vpack.c.b16 %v459, %v458
  %v482 = vpack.c.b16 %v461, %v460
  %v483 = vpack.c.b16 %v463, %v462
  %v484 = vpack.c.b16 %v465, %v464
  %v485 = vpack.c.b16 %v467, %v466
  %v486 = vpack.c.b16 %v469, %v468
  %v487 = vpack.c.b16 %v471, %v470
  %v520 = vunpack.c.l.b16 %v65
  %v521 = vunpack.c.l.b16 %v66
  %v522 = vunpack.c.l.b16 %v67
  %v523 = vunpack.c.l.b16 %v68
  %v524 = vunpack.c.l.b16 %v69
  %v525 = vunpack.c.l.b16 %v70
  %v526 = vunpack.c.l.b16 %v71
  %v527 = vunpack.c.l.b16 %v72
  %v528 = vunpack.c.l.b16 %v73
  %v529 = vunpack.c.l.b16 %v74
  %v530 = vunpack.c.l.b16 %v75
  %v531 = vunpack.c.l.b16 %v76
  %v532 = vunpack.c.l.b16 %v77
  %v533 = vunpack.c.l.b16 %v78
  %v534 = vunpack.c.l.b16 %v79
  %v535 = vunpack.c.l.b16 %v80
  %v536 = vpack.c.b16 %v521, %v520
  %v537 = vpack.c.b16 %v523, %v522
  %v538 = vpack.c.b16 %v525, %v524
  %v539 = vpack.c.b16 %v527, %v526
  %v540 = vpack.c.b16 %v529, %v528
  %v541 = vpack.c.b16 %v531, %v530
  %v542 = vpack.c.b16 %v533, %v532
  %v543 = vpack.c.b16 %v535, %v534
  %552 = vmatprep.subr.bf16.mxu0 0
  %553 = vmatpush1.bf16.msra.mxu0 %v536
  %554 = vmatprep.subr.bf16.mxu0 0
  %555 = vmatpush1.bf16.msra.mxu0 %v537
  %556 = vmatprep.subr.bf16.mxu0 0
  %557 = vmatpush1.bf16.msra.mxu0 %v538
  %558 = vmatprep.subr.bf16.mxu0 0
  %559 = vmatpush1.bf16.msra.mxu0 %v539
  %560 = vmatprep.subr.bf16.mxu0 0
  %561 = vmatpush1.bf16.msra.mxu0 %v540
  %562 = vmatprep.subr.bf16.mxu0 0
  %563 = vmatpush1.bf16.msra.mxu0 %v541
  %564 = vmatprep.subr.bf16.mxu0 0
  %565 = vmatpush1.bf16.msra.mxu0 %v542
  %566 = vmatprep.subr.bf16.mxu0 0
  %567 = vmatpush1.bf16.msra.mxu0 %v543
  %568 = vmatprep.subr.bf16.mxu0 0
  %569 = vmatpush1.bf16.msra.mxu0 0
  %570 = vmatprep.subr.bf16.mxu0 0
  %571 = vmatpush1.bf16.msra.mxu0 0
  %572 = vmatprep.subr.bf16.mxu0 0
  %573 = vmatpush1.bf16.msra.mxu0 0
  %574 = vmatprep.subr.bf16.mxu0 0
  %575 = vmatpush1.bf16.msra.mxu0 0
  %576 = vmatprep.subr.bf16.mxu0 0
  %577 = vmatpush1.bf16.msra.mxu0 0
  %578 = vmatprep.subr.bf16.mxu0 0
  %579 = vmatpush1.bf16.msra.mxu0 0
  %580 = vmatprep.subr.bf16.mxu0 0
  %581 = vmatpush1.bf16.msra.mxu0 0
  %582 = vmatprep.subr.bf16.mxu0 0
  %583 = vmatpush1.bf16.msra.mxu0 0
  %584 = vmatprep.mubr.bf16.mxu0 0
  %585 = vmatmul.mubr.bf16.gmra.mrb[0].mxu0 %v472
  %v586 = vpop.f32.mrb[0].mxu0
  %v587 = vadd.f32 %v282, %v586
  %v588 = vpop.f32.mrb[0].mxu0
  %v589 = vpop.f32.mrb[0].mxu0
  %v590 = vadd.f32 %v285, %v589
  %v591 = vpop.f32.mrb[0].mxu0
  %592 = vmatprep.mubr.bf16.mxu0 0
  %593 = vmatmul.mubr.bf16.gmra.mrb[0].mxu0 %v473
  %v594 = vpop.f32.mrb[0].mxu0
  %v595 = vadd.f32 %v290, %v594
  %v596 = vpop.f32.mrb[0].mxu0
  %v597 = vpop.f32.mrb[0].mxu0
  %v598 = vadd.f32 %v293, %v597
  %v599 = vpop.f32.mrb[0].mxu0
  %600 = vmatprep.mubr.bf16.mxu0 0
  %601 = vmatmul.mubr.bf16.gmra.mrb[0].mxu0 %v474
  %v602 = vpop.f32.mrb[0].mxu0
  %v603 = vadd.f32 %v298, %v602
  %v604 = vpop.f32.mrb[0].mxu0
  %v605 = vpop.f32.mrb[0].mxu0
  %v606 = vadd.f32 %v301, %v605
  %v607 = vpop.f32.mrb[0].mxu0
  %608 = vmatprep.mubr.bf16.mxu0 0
  %609 = vmatmul.mubr.bf16.gmra.mrb[0].mxu0 %v475
  %v610 = vpop.f32.mrb[0].mxu0
  %v611 = vadd.f32 %v306, %v610
  %v612 = vpop.f32.mrb[0].mxu0
  %v613 = vpop.f32.mrb[0].mxu0
  %v614 = vadd.f32 %v309, %v613
  %v615 = vpop.f32.mrb[0].mxu0
  %616 = vmatprep.mubr.bf16.mxu0 0
  %617 = vmatmul.mubr.bf16.gmra.mrb[0].mxu0 %v476
  %v618 = vpop.f32.mrb[0].mxu0
  %v619 = vadd.f32 %v314, %v618
  %v620 = vpop.f32.mrb[0].mxu0
  %v621 = vpop.f32.mrb[0].mxu0
  %v622 = vadd.f32 %v317, %v621
  %v623 = vpop.f32.mrb[0].mxu0
  %624 = vmatprep.mubr.bf16.mxu0 0
  %625 = vmatmul.mubr.bf16.gmra.mrb[0].mxu0 %v477
  %v626 = vpop.f32.mrb[0].mxu0
  %v627 = vadd.f32 %v322, %v626
  %v628 = vpop.f32.mrb[0].mxu0
  %v629 = vpop.f32.mrb[0].mxu0
  %v630 = vadd.f32 %v325, %v629
  %v631 = vpop.f32.mrb[0].mxu0
  %632 = vmatprep.mubr.bf16.mxu0 0
  %633 = vmatmul.mubr.bf16.gmra.mrb[0].mxu0 %v478
  %v634 = vpop.f32.mrb[0].mxu0
  %v635 = vadd.f32 %v330, %v634
  %v636 = vpop.f32.mrb[0].mxu0
  %v637 = vpop.f32.mrb[0].mxu0
  %v638 = vadd.f32 %v333, %v637
  %v639 = vpop.f32.mrb[0].mxu0
  %640 = vmatprep.mubr.bf16.mxu0 0
  %641 = vmatmul.mubr.bf16.gmra.mrb[0].mxu0 %v479
  %v642 = vpop.f32.mrb[0].mxu0
  %v643 = vadd.f32 %v338, %v642
  %v644 = vpop.f32.mrb[0].mxu0
  %v645 = vpop.f32.mrb[0].mxu0
  %v646 = vadd.f32 %v341, %v645
  %v647 = vpop.f32.mrb[0].mxu0
  %648 = vmatprep.mubr.bf16.mxu0 0
  %649 = vmatmul.mubr.bf16.gmra.mrb[0].mxu0 %v480
  %v650 = vpop.f32.mrb[0].mxu0
  %v651 = vadd.f32 %v346, %v650
  %v652 = vpop.f32.mrb[0].mxu0
  %v653 = vpop.f32.mrb[0].mxu0
  %v654 = vadd.f32 %v349, %v653
  %v655 = vpop.f32.mrb[0].mxu0
  %656 = vmatprep.mubr.bf16.mxu0 0
  %657 = vmatmul.mubr.bf16.gmra.mrb[0].mxu0 %v481
  %v658 = vpop.f32.mrb[0].mxu0
  %v659 = vadd.f32 %v354, %v658
  %v660 = vpop.f32.mrb[0].mxu0
  %v661 = vpop.f32.mrb[0].mxu0
  %v662 = vadd.f32 %v357, %v661
  %v663 = vpop.f32.mrb[0].mxu0
  %664 = vmatprep.mubr.bf16.mxu0 0
  %665 = vmatmul.mubr.bf16.gmra.mrb[0].mxu0 %v482
  %v666 = vpop.f32.mrb[0].mxu0
  %v667 = vadd.f32 %v362, %v666
  %v668 = vpop.f32.mrb[0].mxu0
  %v669 = vpop.f32.mrb[0].mxu0
  %v670 = vadd.f32 %v365, %v669
  %v671 = vpop.f32.mrb[0].mxu0
  %672 = vmatprep.mubr.bf16.mxu0 0
  %673 = vmatmul.mubr.bf16.gmra.mrb[0].mxu0 %v483
  %v674 = vpop.f32.mrb[0].mxu0
  %v675 = vadd.f32 %v370, %v674
  %v676 = vpop.f32.mrb[0].mxu0
  %v677 = vpop.f32.mrb[0].mxu0
  %v678 = vadd.f32 %v373, %v677
  %v679 = vpop.f32.mrb[0].mxu0
  %680 = vmatprep.mubr.bf16.mxu0 0
  %681 = vmatmul.mubr.bf16.gmra.mrb[0].mxu0 %v484
  %v682 = vpop.f32.mrb[0].mxu0
  %v683 = vadd.f32 %v378, %v682
  %v684 = vpop.f32.mrb[0].mxu0
  %v685 = vpop.f32.mrb[0].mxu0
  %v686 = vadd.f32 %v381, %v685
  %v687 = vpop.f32.mrb[0].mxu0
  %688 = vmatprep.mubr.bf16.mxu0 0
  %689 = vmatmul.mubr.bf16.gmra.mrb[0].mxu0 %v485
  %v690 = vpop.f32.mrb[0].mxu0
  %v691 = vadd.f32 %v386, %v690
  %v692 = vpop.f32.mrb[0].mxu0
  %v693 = vpop.f32.mrb[0].mxu0
  %v694 = vadd.f32 %v389, %v693
  %v695 = vpop.f32.mrb[0].mxu0
  %696 = vmatprep.mubr.bf16.mxu0 0
  %697 = vmatmul.mubr.bf16.gmra.mrb[0].mxu0 %v486
  %v698 = vpop.f32.mrb[0].mxu0
  %v699 = vadd.f32 %v394, %v698
  %v700 = vpop.f32.mrb[0].mxu0
  %v701 = vpop.f32.mrb[0].mxu0
  %v702 = vadd.f32 %v397, %v701
  %v703 = vpop.f32.mrb[0].mxu0
  %704 = vmatprep.mubr.bf16.mxu0 0
  %705 = vmatmul.mubr.bf16.gmra.mrb[0].mxu0 %v487
  %v706 = vpop.f32.mrb[0].mxu0
  %v707 = vadd.f32 %v402, %v706
  %v708 = vpop.f32.mrb[0].mxu0
  %v709 = vpop.f32.mrb[0].mxu0
  %v710 = vadd.f32 %v405, %v709
  %v711 = vpop.f32.mrb[0].mxu0
  %712 = vdwg.mxu0
  %v713 = vld [vmem:[%s4] sm:$0x1]
  %v715 = vlaneseq
  %v716 = vshrl.u32 %v715, 7
  %v717 = vsub.s32 0, %v716
  %v718 = vrot.slane %v713, %v717
  %v720 = vadd.f32 %v587, %v718
  %v721 = vadd.f32 %v590, %v718
  %v722 = vadd.f32 %v595, %v718
  %v723 = vadd.f32 %v598, %v718
  %v724 = vadd.f32 %v603, %v718
  %v725 = vadd.f32 %v606, %v718
  %v726 = vadd.f32 %v611, %v718
  %v727 = vadd.f32 %v614, %v718
  %v728 = vadd.f32 %v619, %v718
  %v729 = vadd.f32 %v622, %v718
  %v730 = vadd.f32 %v627, %v718
  %v731 = vadd.f32 %v630, %v718
  %v732 = vadd.f32 %v635, %v718
  %v733 = vadd.f32 %v638, %v718
  %v734 = vadd.f32 %v643, %v718
  %v735 = vadd.f32 %v646, %v718
  %v736 = vadd.f32 %v651, %v718
  %v737 = vadd.f32 %v654, %v718
  %v738 = vadd.f32 %v659, %v718
  %v739 = vadd.f32 %v662, %v718
  %v740 = vadd.f32 %v667, %v718
  %v741 = vadd.f32 %v670, %v718
  %v742 = vadd.f32 %v675, %v718
  %v743 = vadd.f32 %v678, %v718
  %v744 = vadd.f32 %v683, %v718
  %v745 = vadd.f32 %v686, %v718
  %v746 = vadd.f32 %v691, %v718
  %v747 = vadd.f32 %v694, %v718
  %v748 = vadd.f32 %v699, %v718
  %v749 = vadd.f32 %v702, %v718
  %v750 = vadd.f32 %v707, %v718
  %v751 = vadd.f32 %v710, %v718
  %v752 = vmax.f32 %v720, 0.0
  %v753 = vmax.f32 %v721, 0.0
  %v754 = vmax.f32 %v722, 0.0
  %v755 = vmax.f32 %v723, 0.0
  %v756 = vmax.f32 %v724, 0.0
  %v757 = vmax.f32 %v725, 0.0
  %v758 = vmax.f32 %v726, 0.0
  %v759 = vmax.f32 %v727, 0.0
  %v760 = vmax.f32 %v728, 0.0
  %v761 = vmax.f32 %v729, 0.0
  %v762 = vmax.f32 %v730, 0.0
  %v763 = vmax.f32 %v731, 0.0
  %v764 = vmax.f32 %v732, 0.0
  %v765 = vmax.f32 %v733, 0.0
  %v766 = vmax.f32 %v734, 0.0
  %v767 = vmax.f32 %v735, 0.0
  %v768 = vmax.f32 %v736, 0.0
  %v769 = vmax.f32 %v737, 0.0
  %v770 = vmax.f32 %v738, 0.0
  %v771 = vmax.f32 %v739, 0.0
  %v772 = vmax.f32 %v740, 0.0
  %v773 = vmax.f32 %v741, 0.0
  %v774 = vmax.f32 %v742, 0.0
  %v775 = vmax.f32 %v743, 0.0
  %v776 = vmax.f32 %v744, 0.0
  %v777 = vmax.f32 %v745, 0.0
  %v778 = vmax.f32 %v746, 0.0
  %v779 = vmax.f32 %v747, 0.0
  %v780 = vmax.f32 %v748, 0.0
  %v781 = vmax.f32 %v749, 0.0
  %v782 = vmax.f32 %v750, 0.0
  %v783 = vmax.f32 %v751, 0.0
  %v784 = vrot.slane %v752, 4
  %v785 = vmax.f32 %v752, %v784
  %v786 = vrot.slane %v785, 2
  %v787 = vmax.f32 %v785, %v786
  %v788 = vrot.slane %v787, 1
  %v789 = vmax.f32 %v787, %v788
  %v790 = vrot.slane %v753, 4
  %v791 = vmax.f32 %v753, %v790
  %v792 = vrot.slane %v791, 2
  %v793 = vmax.f32 %v791, %v792
  %v794 = vrot.slane %v793, 1
  %v795 = vmax.f32 %v793, %v794
  %v796 = vrot.slane %v754, 4
  %v797 = vmax.f32 %v754, %v796
  %v798 = vrot.slane %v797, 2
  %v799 = vmax.f32 %v797, %v798
  %v800 = vrot.slane %v799, 1
  %v801 = vmax.f32 %v799, %v800
  %v802 = vrot.slane %v755, 4
  %v803 = vmax.f32 %v755, %v802
  %v804 = vrot.slane %v803, 2
  %v805 = vmax.f32 %v803, %v804
  %v806 = vrot.slane %v805, 1
  %v807 = vmax.f32 %v805, %v806
  %v808 = vrot.slane %v756, 4
  %v809 = vmax.f32 %v756, %v808
  %v810 = vrot.slane %v809, 2
  %v811 = vmax.f32 %v809, %v810
  %v812 = vrot.slane %v811, 1
  %v813 = vmax.f32 %v811, %v812
  %v814 = vrot.slane %v757, 4
  %v815 = vmax.f32 %v757, %v814
  %v816 = vrot.slane %v815, 2
  %v817 = vmax.f32 %v815, %v816
  %v818 = vrot.slane %v817, 1
  %v819 = vmax.f32 %v817, %v818
  %v820 = vrot.slane %v758, 4
  %v821 = vmax.f32 %v758, %v820
  %v822 = vrot.slane %v821, 2
  %v823 = vmax.f32 %v821, %v822
  %v824 = vrot.slane %v823, 1
  %v825 = vmax.f32 %v823, %v824
  %v826 = vrot.slane %v759, 4
  %v827 = vmax.f32 %v759, %v826
  %v828 = vrot.slane %v827, 2
  %v829 = vmax.f32 %v827, %v828
  %v830 = vrot.slane %v829, 1
  %v831 = vmax.f32 %v829, %v830
  %v832 = vrot.slane %v760, 4
  %v833 = vmax.f32 %v760, %v832
  %v834 = vrot.slane %v833, 2
  %v835 = vmax.f32 %v833, %v834
  %v836 = vrot.slane %v835, 1
  %v837 = vmax.f32 %v835, %v836
  %v838 = vrot.slane %v761, 4
  %v839 = vmax.f32 %v761, %v838
  %v840 = vrot.slane %v839, 2
  %v841 = vmax.f32 %v839, %v840
  %v842 = vrot.slane %v841, 1
  %v843 = vmax.f32 %v841, %v842
  %v844 = vrot.slane %v762, 4
  %v845 = vmax.f32 %v762, %v844
  %v846 = vrot.slane %v845, 2
  %v847 = vmax.f32 %v845, %v846
  %v848 = vrot.slane %v847, 1
  %v849 = vmax.f32 %v847, %v848
  %v850 = vrot.slane %v763, 4
  %v851 = vmax.f32 %v763, %v850
  %v852 = vrot.slane %v851, 2
  %v853 = vmax.f32 %v851, %v852
  %v854 = vrot.slane %v853, 1
  %v855 = vmax.f32 %v853, %v854
  %v856 = vrot.slane %v764, 4
  %v857 = vmax.f32 %v764, %v856
  %v858 = vrot.slane %v857, 2
  %v859 = vmax.f32 %v857, %v858
  %v860 = vrot.slane %v859, 1
  %v861 = vmax.f32 %v859, %v860
  %v862 = vrot.slane %v765, 4
  %v863 = vmax.f32 %v765, %v862
  %v864 = vrot.slane %v863, 2
  %v865 = vmax.f32 %v863, %v864
  %v866 = vrot.slane %v865, 1
  %v867 = vmax.f32 %v865, %v866
  %v868 = vrot.slane %v766, 4
  %v869 = vmax.f32 %v766, %v868
  %v870 = vrot.slane %v869, 2
  %v871 = vmax.f32 %v869, %v870
  %v872 = vrot.slane %v871, 1
  %v873 = vmax.f32 %v871, %v872
  %v874 = vrot.slane %v767, 4
  %v875 = vmax.f32 %v767, %v874
  %v876 = vrot.slane %v875, 2
  %v877 = vmax.f32 %v875, %v876
  %v878 = vrot.slane %v877, 1
  %v879 = vmax.f32 %v877, %v878
  %v880 = vrot.slane %v768, 4
  %v881 = vmax.f32 %v768, %v880
  %v882 = vrot.slane %v881, 2
  %v883 = vmax.f32 %v881, %v882
  %v884 = vrot.slane %v883, 1
  %v885 = vmax.f32 %v883, %v884
  %v886 = vrot.slane %v769, 4
  %v887 = vmax.f32 %v769, %v886
  %v888 = vrot.slane %v887, 2
  %v889 = vmax.f32 %v887, %v888
  %v890 = vrot.slane %v889, 1
  %v891 = vmax.f32 %v889, %v890
  %v892 = vrot.slane %v770, 4
  %v893 = vmax.f32 %v770, %v892
  %v894 = vrot.slane %v893, 2
  %v895 = vmax.f32 %v893, %v894
  %v896 = vrot.slane %v895, 1
  %v897 = vmax.f32 %v895, %v896
  %v898 = vrot.slane %v771, 4
  %v899 = vmax.f32 %v771, %v898
  %v900 = vrot.slane %v899, 2
  %v901 = vmax.f32 %v899, %v900
  %v902 = vrot.slane %v901, 1
  %v903 = vmax.f32 %v901, %v902
  %v904 = vrot.slane %v772, 4
  %v905 = vmax.f32 %v772, %v904
  %v906 = vrot.slane %v905, 2
  %v907 = vmax.f32 %v905, %v906
  %v908 = vrot.slane %v907, 1
  %v909 = vmax.f32 %v907, %v908
  %v910 = vrot.slane %v773, 4
  %v911 = vmax.f32 %v773, %v910
  %v912 = vrot.slane %v911, 2
  %v913 = vmax.f32 %v911, %v912
  %v914 = vrot.slane %v913, 1
  %v915 = vmax.f32 %v913, %v914
  %v916 = vrot.slane %v774, 4
  %v917 = vmax.f32 %v774, %v916
  %v918 = vrot.slane %v917, 2
  %v919 = vmax.f32 %v917, %v918
  %v920 = vrot.slane %v919, 1
  %v921 = vmax.f32 %v919, %v920
  %v922 = vrot.slane %v775, 4
  %v923 = vmax.f32 %v775, %v922
  %v924 = vrot.slane %v923, 2
  %v925 = vmax.f32 %v923, %v924
  %v926 = vrot.slane %v925, 1
  %v927 = vmax.f32 %v925, %v926
  %v928 = vrot.slane %v776, 4
  %v929 = vmax.f32 %v776, %v928
  %v930 = vrot.slane %v929, 2
  %v931 = vmax.f32 %v929, %v930
  %v932 = vrot.slane %v931, 1
  %v933 = vmax.f32 %v931, %v932
  %v934 = vrot.slane %v777, 4
  %v935 = vmax.f32 %v777, %v934
  %v936 = vrot.slane %v935, 2
  %v937 = vmax.f32 %v935, %v936
  %v938 = vrot.slane %v937, 1
  %v939 = vmax.f32 %v937, %v938
  %v940 = vrot.slane %v778, 4
  %v941 = vmax.f32 %v778, %v940
  %v942 = vrot.slane %v941, 2
  %v943 = vmax.f32 %v941, %v942
  %v944 = vrot.slane %v943, 1
  %v945 = vmax.f32 %v943, %v944
  %v946 = vrot.slane %v779, 4
  %v947 = vmax.f32 %v779, %v946
  %v948 = vrot.slane %v947, 2
  %v949 = vmax.f32 %v947, %v948
  %v950 = vrot.slane %v949, 1
  %v951 = vmax.f32 %v949, %v950
  %v952 = vrot.slane %v780, 4
  %v953 = vmax.f32 %v780, %v952
  %v954 = vrot.slane %v953, 2
  %v955 = vmax.f32 %v953, %v954
  %v956 = vrot.slane %v955, 1
  %v957 = vmax.f32 %v955, %v956
  %v958 = vrot.slane %v781, 4
  %v959 = vmax.f32 %v781, %v958
  %v960 = vrot.slane %v959, 2
  %v961 = vmax.f32 %v959, %v960
  %v962 = vrot.slane %v961, 1
  %v963 = vmax.f32 %v961, %v962
  %v964 = vrot.slane %v782, 4
  %v965 = vmax.f32 %v782, %v964
  %v966 = vrot.slane %v965, 2
  %v967 = vmax.f32 %v965, %v966
  %v968 = vrot.slane %v967, 1
  %v969 = vmax.f32 %v967, %v968
  %v970 = vrot.slane %v783, 4
  %v971 = vmax.f32 %v783, %v970
  %v972 = vrot.slane %v971, 2
  %v973 = vmax.f32 %v971, %v972
  %v974 = vrot.slane %v973, 1
  %v975 = vmax.f32 %v973, %v974
  %v976 = vpack.c.bf16 %v789, %v789
  %v977 = vpack.c.bf16 %v795, %v795
  %v978 = vpack.c.bf16 %v801, %v801
  %v979 = vpack.c.bf16 %v807, %v807
  %v980 = vpack.c.bf16 %v813, %v813
  %v981 = vpack.c.bf16 %v819, %v819
  %v982 = vpack.c.bf16 %v825, %v825
  %v983 = vpack.c.bf16 %v831, %v831
  %v984 = vpack.c.bf16 %v837, %v837
  %v985 = vpack.c.bf16 %v843, %v843
  %v986 = vpack.c.bf16 %v849, %v849
  %v987 = vpack.c.bf16 %v855, %v855
  %v988 = vpack.c.bf16 %v861, %v861
  %v989 = vpack.c.bf16 %v867, %v867
  %v990 = vpack.c.bf16 %v873, %v873
  %v991 = vpack.c.bf16 %v879, %v879
  %v992 = vpack.c.bf16 %v885, %v885
  %v993 = vpack.c.bf16 %v891, %v891
  %v994 = vpack.c.bf16 %v897, %v897
  %v995 = vpack.c.bf16 %v903, %v903
  %v996 = vpack.c.bf16 %v909, %v909
  %v997 = vpack.c.bf16 %v915, %v915
  %v998 = vpack.c.bf16 %v921, %v921
  %v999 = vpack.c.bf16 %v927, %v927
  %v1000 = vpack.c.bf16 %v933, %v933
  %v1001 = vpack.c.bf16 %v939, %v939
  %v1002 = vpack.c.bf16 %v945, %v945
  %v1003 = vpack.c.bf16 %v951, %v951
  %v1004 = vpack.c.bf16 %v957, %v957
  %v1005 = vpack.c.bf16 %v963, %v963
  %v1006 = vpack.c.bf16 %v969, %v969
  %v1007 = vpack.c.bf16 %v975, %v975
  %v1008 = vld [vmem:[%s5] sm:$0xff]
  %v1009 = vld [vmem:[%s5 + $0x8] sm:$0xff]
  %v1010 = vld [vmem:[%s5 + $0x10] sm:$0xff]
  %v1011 = vld [vmem:[%s5 + $0x18] sm:$0xff]
  %v1012 = vld [vmem:[%s5 + $0x20] sm:$0xff]
  %v1013 = vld [vmem:[%s5 + $0x28] sm:$0xff]
  %v1014 = vld [vmem:[%s5 + $0x30] sm:$0xff]
  %v1015 = vld [vmem:[%s5 + $0x38] sm:$0xff]
  %v1016 = vld [vmem:[%s5 + $0x40] sm:$0xff]
  %v1017 = vld [vmem:[%s5 + $0x48] sm:$0xff]
  %v1018 = vld [vmem:[%s5 + $0x50] sm:$0xff]
  %v1019 = vld [vmem:[%s5 + $0x58] sm:$0xff]
  %v1020 = vld [vmem:[%s5 + $0x60] sm:$0xff]
  %v1021 = vld [vmem:[%s5 + $0x68] sm:$0xff]
  %v1022 = vld [vmem:[%s5 + $0x70] sm:$0xff]
  %v1023 = vld [vmem:[%s5 + $0x78] sm:$0xff]
  %v1024 = vld [vmem:[%s5 + $0x80] sm:$0xff]
  %v1025 = vld [vmem:[%s5 + $0x88] sm:$0xff]
  %v1026 = vld [vmem:[%s5 + $0x90] sm:$0xff]
  %v1027 = vld [vmem:[%s5 + $0x98] sm:$0xff]
  %v1028 = vld [vmem:[%s5 + $0xa0] sm:$0xff]
  %v1029 = vld [vmem:[%s5 + $0xa8] sm:$0xff]
  %v1030 = vld [vmem:[%s5 + $0xb0] sm:$0xff]
  %v1031 = vld [vmem:[%s5 + $0xb8] sm:$0xff]
  %v1032 = vld [vmem:[%s5 + $0xc0] sm:$0xff]
  %v1033 = vld [vmem:[%s5 + $0xc8] sm:$0xff]
  %v1034 = vld [vmem:[%s5 + $0xd0] sm:$0xff]
  %v1035 = vld [vmem:[%s5 + $0xd8] sm:$0xff]
  %v1036 = vld [vmem:[%s5 + $0xe0] sm:$0xff]
  %v1037 = vld [vmem:[%s5 + $0xe8] sm:$0xff]
  %v1038 = vld [vmem:[%s5 + $0xf0] sm:$0xff]
  %v1039 = vld [vmem:[%s5 + $0xf8] sm:$0xff]
  %v1040 = vld [vmem:[%s6] sm:$0xf]
  %v1042 = vlaneseq
  %v1043 = vshrl.u32 %v1042, 7
  %v1044 = vsub.s32 0, %v1043
  %v1045 = vrot.slane %v1040, %v1044
  %v1046 = vlaneseq
  %v1047 = vshrl.u32 %v1046, 7
  %v1048 = vsub.s32 1, %v1047
  %v1049 = vrot.slane %v1040, %v1048
  %v1050 = vlaneseq
  %v1051 = vshrl.u32 %v1050, 7
  %v1052 = vsub.s32 2, %v1051
  %v1053 = vrot.slane %v1040, %v1052
  %v1054 = vlaneseq
  %v1055 = vshrl.u32 %v1054, 7
  %v1056 = vsub.s32 3, %v1055
  %v1057 = vrot.slane %v1040, %v1056
  %v1094 = vunpack.c.l.b16 %v976
  %v1095 = vunpack.c.l.b16 %v977
  %v1096 = vunpack.c.l.b16 %v978
  %v1097 = vunpack.c.l.b16 %v979
  %v1098 = vunpack.c.l.b16 %v980
  %v1099 = vunpack.c.l.b16 %v981
  %v1100 = vunpack.c.l.b16 %v982
  %v1101 = vunpack.c.l.b16 %v983
  %v1102 = vunpack.c.l.b16 %v984
  %v1103 = vunpack.c.l.b16 %v985
  %v1104 = vunpack.c.l.b16 %v986
  %v1105 = vunpack.c.l.b16 %v987
  %v1106 = vunpack.c.l.b16 %v988
  %v1107 = vunpack.c.l.b16 %v989
  %v1108 = vunpack.c.l.b16 %v990
  %v1109 = vunpack.c.l.b16 %v991
  %v1110 = vunpack.c.l.b16 %v992
  %v1111 = vunpack.c.l.b16 %v993
  %v1112 = vunpack.c.l.b16 %v994
  %v1113 = vunpack.c.l.b16 %v995
  %v1114 = vunpack.c.l.b16 %v996
  %v1115 = vunpack.c.l.b16 %v997
  %v1116 = vunpack.c.l.b16 %v998
  %v1117 = vunpack.c.l.b16 %v999
  %v1118 = vunpack.c.l.b16 %v1000
  %v1119 = vunpack.c.l.b16 %v1001
  %v1120 = vunpack.c.l.b16 %v1002
  %v1121 = vunpack.c.l.b16 %v1003
  %v1122 = vunpack.c.l.b16 %v1004
  %v1123 = vunpack.c.l.b16 %v1005
  %v1124 = vunpack.c.l.b16 %v1006
  %v1125 = vunpack.c.l.b16 %v1007
  %vm1126 = vcmask 1041409
  %v1127 = vsel %vm1126, %v1095, %v1094
  %vm1128 = vcmask 1042434
  %v1129 = vsel %vm1128, %v1096, %v1127
  %vm1130 = vcmask 1043459
  %v1131 = vsel %vm1130, %v1097, %v1129
  %vm1132 = vcmask 1044484
  %v1133 = vsel %vm1132, %v1098, %v1131
  %vm1134 = vcmask 1045509
  %v1135 = vsel %vm1134, %v1099, %v1133
  %vm1136 = vcmask 1046534
  %v1137 = vsel %vm1136, %v1100, %v1135
  %vm1138 = vcmask 1047559
  %v1139 = vsel %vm1138, %v1101, %v1137
  %v1140 = vsel %vm1126, %v1103, %v1102
  %v1141 = vsel %vm1128, %v1104, %v1140
  %v1142 = vsel %vm1130, %v1105, %v1141
  %v1143 = vsel %vm1132, %v1106, %v1142
  %v1144 = vsel %vm1134, %v1107, %v1143
  %v1145 = vsel %vm1136, %v1108, %v1144
  %v1146 = vsel %vm1138, %v1109, %v1145
  %v1147 = vsel %vm1126, %v1111, %v1110
  %v1148 = vsel %vm1128, %v1112, %v1147
  %v1149 = vsel %vm1130, %v1113, %v1148
  %v1150 = vsel %vm1132, %v1114, %v1149
  %v1151 = vsel %vm1134, %v1115, %v1150
  %v1152 = vsel %vm1136, %v1116, %v1151
  %v1153 = vsel %vm1138, %v1117, %v1152
  %v1154 = vsel %vm1126, %v1119, %v1118
  %v1155 = vsel %vm1128, %v1120, %v1154
  %v1156 = vsel %vm1130, %v1121, %v1155
  %v1157 = vsel %vm1132, %v1122, %v1156
  %v1158 = vsel %vm1134, %v1123, %v1157
  %v1159 = vsel %vm1136, %v1124, %v1158
  %v1160 = vsel %vm1138, %v1125, %v1159
  %v1161 = vpack.c.b16 %v1146, %v1139
  %v1162 = vpack.c.b16 %v1160, %v1153
  %v1197 = vunpack.c.l.b16 %v1008
  %v1198 = vunpack.c.h.b16 %v1008
  %v1199 = vunpack.c.l.b16 %v1009
  %v1200 = vunpack.c.h.b16 %v1009
  %v1201 = vunpack.c.l.b16 %v1010
  %v1202 = vunpack.c.h.b16 %v1010
  %v1203 = vunpack.c.l.b16 %v1011
  %v1204 = vunpack.c.h.b16 %v1011
  %v1205 = vunpack.c.l.b16 %v1012
  %v1206 = vunpack.c.h.b16 %v1012
  %v1207 = vunpack.c.l.b16 %v1013
  %v1208 = vunpack.c.h.b16 %v1013
  %v1209 = vunpack.c.l.b16 %v1014
  %v1210 = vunpack.c.h.b16 %v1014
  %v1211 = vunpack.c.l.b16 %v1015
  %v1212 = vunpack.c.h.b16 %v1015
  %v1213 = vunpack.c.l.b16 %v1016
  %v1214 = vunpack.c.h.b16 %v1016
  %v1215 = vunpack.c.l.b16 %v1017
  %v1216 = vunpack.c.h.b16 %v1017
  %v1217 = vunpack.c.l.b16 %v1018
  %v1218 = vunpack.c.h.b16 %v1018
  %v1219 = vunpack.c.l.b16 %v1019
  %v1220 = vunpack.c.h.b16 %v1019
  %v1221 = vunpack.c.l.b16 %v1020
  %v1222 = vunpack.c.h.b16 %v1020
  %v1223 = vunpack.c.l.b16 %v1021
  %v1224 = vunpack.c.h.b16 %v1021
  %v1225 = vunpack.c.l.b16 %v1022
  %v1226 = vunpack.c.h.b16 %v1022
  %v1227 = vunpack.c.l.b16 %v1023
  %v1228 = vunpack.c.h.b16 %v1023
  %v1229 = vunpack.c.l.b16 %v1024
  %v1230 = vunpack.c.h.b16 %v1024
  %v1231 = vunpack.c.l.b16 %v1025
  %v1232 = vunpack.c.h.b16 %v1025
  %v1233 = vunpack.c.l.b16 %v1026
  %v1234 = vunpack.c.h.b16 %v1026
  %v1235 = vunpack.c.l.b16 %v1027
  %v1236 = vunpack.c.h.b16 %v1027
  %v1237 = vunpack.c.l.b16 %v1028
  %v1238 = vunpack.c.h.b16 %v1028
  %v1239 = vunpack.c.l.b16 %v1029
  %v1240 = vunpack.c.h.b16 %v1029
  %v1241 = vunpack.c.l.b16 %v1030
  %v1242 = vunpack.c.h.b16 %v1030
  %v1243 = vunpack.c.l.b16 %v1031
  %v1244 = vunpack.c.h.b16 %v1031
  %v1245 = vunpack.c.l.b16 %v1032
  %v1246 = vunpack.c.h.b16 %v1032
  %v1247 = vunpack.c.l.b16 %v1033
  %v1248 = vunpack.c.h.b16 %v1033
  %v1249 = vunpack.c.l.b16 %v1034
  %v1250 = vunpack.c.h.b16 %v1034
  %v1251 = vunpack.c.l.b16 %v1035
  %v1252 = vunpack.c.h.b16 %v1035
  %v1253 = vunpack.c.l.b16 %v1036
  %v1254 = vunpack.c.h.b16 %v1036
  %v1255 = vunpack.c.l.b16 %v1037
  %v1256 = vunpack.c.h.b16 %v1037
  %v1257 = vunpack.c.l.b16 %v1038
  %v1258 = vunpack.c.h.b16 %v1038
  %v1259 = vunpack.c.l.b16 %v1039
  %v1260 = vunpack.c.h.b16 %v1039
  %v1261 = vpack.c.b16 %v1201, %v1197
  %v1262 = vpack.c.b16 %v1202, %v1198
  %v1263 = vpack.c.b16 %v1203, %v1199
  %v1264 = vpack.c.b16 %v1204, %v1200
  %v1265 = vpack.c.b16 %v1209, %v1205
  %v1266 = vpack.c.b16 %v1210, %v1206
  %v1267 = vpack.c.b16 %v1211, %v1207
  %v1268 = vpack.c.b16 %v1212, %v1208
  %v1269 = vpack.c.b16 %v1217, %v1213
  %v1270 = vpack.c.b16 %v1218, %v1214
  %v1271 = vpack.c.b16 %v1219, %v1215
  %v1272 = vpack.c.b16 %v1220, %v1216
  %v1273 = vpack.c.b16 %v1225, %v1221
  %v1274 = vpack.c.b16 %v1226, %v1222
  %v1275 = vpack.c.b16 %v1227, %v1223
  %v1276 = vpack.c.b16 %v1228, %v1224
  %v1277 = vpack.c.b16 %v1233, %v1229
  %v1278 = vpack.c.b16 %v1234, %v1230
  %v1279 = vpack.c.b16 %v1235, %v1231
  %v1280 = vpack.c.b16 %v1236, %v1232
  %v1281 = vpack.c.b16 %v1241, %v1237
  %v1282 = vpack.c.b16 %v1242, %v1238
  %v1283 = vpack.c.b16 %v1243, %v1239
  %v1284 = vpack.c.b16 %v1244, %v1240
  %v1285 = vpack.c.b16 %v1249, %v1245
  %v1286 = vpack.c.b16 %v1250, %v1246
  %v1287 = vpack.c.b16 %v1251, %v1247
  %v1288 = vpack.c.b16 %v1252, %v1248
  %v1289 = vpack.c.b16 %v1257, %v1253
  %v1290 = vpack.c.b16 %v1258, %v1254
  %v1291 = vpack.c.b16 %v1259, %v1255
  %v1292 = vpack.c.b16 %v1260, %v1256
  %1325 = vmatprep.subr.bf16.mxu0 %v1262
  %1326 = vmatpush1.bf16.msra.mxu0 %v1261
  %1327 = vmatprep.subr.bf16.mxu0 %v1266
  %1328 = vmatpush1.bf16.msra.mxu0 %v1265
  %1329 = vmatprep.subr.bf16.mxu0 %v1270
  %1330 = vmatpush1.bf16.msra.mxu0 %v1269
  %1331 = vmatprep.subr.bf16.mxu0 %v1274
  %1332 = vmatpush1.bf16.msra.mxu0 %v1273
  %1333 = vmatprep.subr.bf16.mxu0 %v1278
  %1334 = vmatpush1.bf16.msra.mxu0 %v1277
  %1335 = vmatprep.subr.bf16.mxu0 %v1282
  %1336 = vmatpush1.bf16.msra.mxu0 %v1281
  %1337 = vmatprep.subr.bf16.mxu0 %v1286
  %1338 = vmatpush1.bf16.msra.mxu0 %v1285
  %1339 = vmatprep.subr.bf16.mxu0 %v1290
  %1340 = vmatpush1.bf16.msra.mxu0 %v1289
  %1341 = vmatprep.subr.bf16.mxu0 0
  %1342 = vmatpush1.bf16.msra.mxu0 0
  %1343 = vmatprep.subr.bf16.mxu0 0
  %1344 = vmatpush1.bf16.msra.mxu0 0
  %1345 = vmatprep.subr.bf16.mxu0 0
  %1346 = vmatpush1.bf16.msra.mxu0 0
  %1347 = vmatprep.subr.bf16.mxu0 0
  %1348 = vmatpush1.bf16.msra.mxu0 0
  %1349 = vmatprep.subr.bf16.mxu0 0
  %1350 = vmatpush1.bf16.msra.mxu0 0
  %1351 = vmatprep.subr.bf16.mxu0 0
  %1352 = vmatpush1.bf16.msra.mxu0 0
  %1353 = vmatprep.subr.bf16.mxu0 0
  %1354 = vmatpush1.bf16.msra.mxu0 0
  %1355 = vmatprep.subr.bf16.mxu0 0
  %1356 = vmatpush1.bf16.msra.mxu0 0
  %1357 = vmatprep.mubr.bf16.mxu0 0
  %1358 = vmatmul.mubr.bf16.gmra.mrb[0].mxu0 %v1161
  %v1359 = vpop.f32.mrb[0].mxu0
  %v1360 = vadd.f32 %v1045, %v1359
  %v1361 = vpop.f32.mrb[0].mxu0
  %v1362 = vadd.f32 %v1049, %v1361
  %v1363 = vpop.f32.mrb[0].mxu0
  %v1364 = vadd.f32 %v1045, %v1363
  %v1365 = vpop.f32.mrb[0].mxu0
  %v1366 = vadd.f32 %v1049, %v1365
  %1367 = vmatprep.mubr.bf16.mxu0 0
  %1368 = vmatmul.mubr.bf16.gmra.mrb[0].mxu0 %v1162
  %v1369 = vpop.f32.mrb[0].mxu0
  %v1370 = vadd.f32 %v1045, %v1369
  %v1371 = vpop.f32.mrb[0].mxu0
  %v1372 = vadd.f32 %v1049, %v1371
  %v1373 = vpop.f32.mrb[0].mxu0
  %v1374 = vadd.f32 %v1045, %v1373
  %v1375 = vpop.f32.mrb[0].mxu0
  %v1376 = vadd.f32 %v1049, %v1375
  %1377 = vdwg.mxu0
  %1378 = vmatprep.subr.bf16.mxu0 %v1264
  %1379 = vmatpush1.bf16.msra.mxu0 %v1263
  %1380 = vmatprep.subr.bf16.mxu0 %v1268
  %1381 = vmatpush1.bf16.msra.mxu0 %v1267
  %1382 = vmatprep.subr.bf16.mxu0 %v1272
  %1383 = vmatpush1.bf16.msra.mxu0 %v1271
  %1384 = vmatprep.subr.bf16.mxu0 %v1276
  %1385 = vmatpush1.bf16.msra.mxu0 %v1275
  %1386 = vmatprep.subr.bf16.mxu0 %v1280
  %1387 = vmatpush1.bf16.msra.mxu0 %v1279
  %1388 = vmatprep.subr.bf16.mxu0 %v1284
  %1389 = vmatpush1.bf16.msra.mxu0 %v1283
  %1390 = vmatprep.subr.bf16.mxu0 %v1288
  %1391 = vmatpush1.bf16.msra.mxu0 %v1287
  %1392 = vmatprep.subr.bf16.mxu0 %v1292
  %1393 = vmatpush1.bf16.msra.mxu0 %v1291
  %1394 = vmatprep.subr.bf16.mxu0 0
  %1395 = vmatpush1.bf16.msra.mxu0 0
  %1396 = vmatprep.subr.bf16.mxu0 0
  %1397 = vmatpush1.bf16.msra.mxu0 0
  %1398 = vmatprep.subr.bf16.mxu0 0
  %1399 = vmatpush1.bf16.msra.mxu0 0
  %1400 = vmatprep.subr.bf16.mxu0 0
  %1401 = vmatpush1.bf16.msra.mxu0 0
  %1402 = vmatprep.subr.bf16.mxu0 0
  %1403 = vmatpush1.bf16.msra.mxu0 0
  %1404 = vmatprep.subr.bf16.mxu0 0
  %1405 = vmatpush1.bf16.msra.mxu0 0
  %1406 = vmatprep.subr.bf16.mxu0 0
  %1407 = vmatpush1.bf16.msra.mxu0 0
  %1408 = vmatprep.subr.bf16.mxu0 0
  %1409 = vmatpush1.bf16.msra.mxu0 0
  %1410 = vmatprep.mubr.bf16.mxu0 0
  %1411 = vmatmul.mubr.bf16.gmra.mrb[0].mxu0 %v1161
  %v1412 = vpop.f32.mrb[0].mxu0
  %v1413 = vadd.f32 %v1053, %v1412
  %v1414 = vpop.f32.mrb[0].mxu0
  %v1415 = vadd.f32 %v1057, %v1414
  %v1416 = vpop.f32.mrb[0].mxu0
  %v1417 = vadd.f32 %v1053, %v1416
  %v1418 = vpop.f32.mrb[0].mxu0
  %v1419 = vadd.f32 %v1057, %v1418
  %1420 = vmatprep.mubr.bf16.mxu0 0
  %1421 = vmatmul.mubr.bf16.gmra.mrb[0].mxu0 %v1162
  %v1422 = vpop.f32.mrb[0].mxu0
  %v1423 = vadd.f32 %v1053, %v1422
  %v1424 = vpop.f32.mrb[0].mxu0
  %v1425 = vadd.f32 %v1057, %v1424
  %v1426 = vpop.f32.mrb[0].mxu0
  %v1427 = vadd.f32 %v1053, %v1426
  %v1428 = vpop.f32.mrb[0].mxu0
  %v1429 = vadd.f32 %v1057, %v1428
  %1430 = vdwg.mxu0
  %v1431 = vmax.f32 %v1360, 0.0
  %v1432 = vmax.f32 %v1362, 0.0
  %v1433 = vmax.f32 %v1413, 0.0
  %v1434 = vmax.f32 %v1415, 0.0
  %v1435 = vmax.f32 %v1364, 0.0
  %v1436 = vmax.f32 %v1366, 0.0
  %v1437 = vmax.f32 %v1417, 0.0
  %v1438 = vmax.f32 %v1419, 0.0
  %v1439 = vmax.f32 %v1370, 0.0
  %v1440 = vmax.f32 %v1372, 0.0
  %v1441 = vmax.f32 %v1423, 0.0
  %v1442 = vmax.f32 %v1425, 0.0
  %v1443 = vmax.f32 %v1374, 0.0
  %v1444 = vmax.f32 %v1376, 0.0
  %v1445 = vmax.f32 %v1427, 0.0
  %v1446 = vmax.f32 %v1429, 0.0
  %v1447 = vpack.c.bf16 %v1435, %v1431
  %v1448 = vpack.c.bf16 %v1436, %v1432
  %v1449 = vpack.c.bf16 %v1437, %v1433
  %v1450 = vpack.c.bf16 %v1438, %v1434
  %v1451 = vpack.c.bf16 %v1443, %v1439
  %v1452 = vpack.c.bf16 %v1444, %v1440
  %v1453 = vpack.c.bf16 %v1445, %v1441
  %v1454 = vpack.c.bf16 %v1446, %v1442
  %v1455 = vld [vmem:[%s7] sm:$0xf]
  %v1456 = vld [vmem:[%s7 + $0x4] sm:$0xf]
  %v1457 = vld [vmem:[%s7 + $0x8] sm:$0xf]
  %v1458 = vld [vmem:[%s7 + $0xc] sm:$0xf]
  %v1459 = vld [vmem:[%s7 + $0x10] sm:$0xf]
  %v1460 = vld [vmem:[%s7 + $0x14] sm:$0xf]
  %v1461 = vld [vmem:[%s7 + $0x18] sm:$0xf]
  %v1462 = vld [vmem:[%s7 + $0x1c] sm:$0xf]
  %v1463 = vld [vmem:[%s7 + $0x20] sm:$0xf]
  %v1464 = vld [vmem:[%s7 + $0x24] sm:$0xf]
  %v1465 = vld [vmem:[%s7 + $0x28] sm:$0xf]
  %v1466 = vld [vmem:[%s7 + $0x2c] sm:$0xf]
  %v1467 = vld [vmem:[%s7 + $0x30] sm:$0xf]
  %v1468 = vld [vmem:[%s7 + $0x34] sm:$0xf]
  %v1469 = vld [vmem:[%s7 + $0x38] sm:$0xf]
  %v1470 = vld [vmem:[%s7 + $0x3c] sm:$0xf]
  %v1471 = vld [vmem:[%s7 + $0x40] sm:$0xf]
  %v1472 = vld [vmem:[%s7 + $0x44] sm:$0xf]
  %v1473 = vld [vmem:[%s7 + $0x48] sm:$0xf]
  %v1474 = vld [vmem:[%s7 + $0x4c] sm:$0xf]
  %v1475 = vld [vmem:[%s7 + $0x50] sm:$0xf]
  %v1476 = vld [vmem:[%s7 + $0x54] sm:$0xf]
  %v1477 = vld [vmem:[%s7 + $0x58] sm:$0xf]
  %v1478 = vld [vmem:[%s7 + $0x5c] sm:$0xf]
  %v1479 = vld [vmem:[%s7 + $0x60] sm:$0xf]
  %v1480 = vld [vmem:[%s7 + $0x64] sm:$0xf]
  %v1481 = vld [vmem:[%s7 + $0x68] sm:$0xf]
  %v1482 = vld [vmem:[%s7 + $0x6c] sm:$0xf]
  %v1483 = vld [vmem:[%s7 + $0x70] sm:$0xf]
  %v1484 = vld [vmem:[%s7 + $0x74] sm:$0xf]
  %v1485 = vld [vmem:[%s7 + $0x78] sm:$0xf]
  %v1486 = vld [vmem:[%s7 + $0x7c] sm:$0xf]
  %v1487 = vld [vmem:[%s7 + $0x80] sm:$0xf]
  %v1488 = vld [vmem:[%s7 + $0x84] sm:$0xf]
  %v1489 = vld [vmem:[%s7 + $0x88] sm:$0xf]
  %v1490 = vld [vmem:[%s7 + $0x8c] sm:$0xf]
  %v1491 = vld [vmem:[%s7 + $0x90] sm:$0xf]
  %v1492 = vld [vmem:[%s7 + $0x94] sm:$0xf]
  %v1493 = vld [vmem:[%s7 + $0x98] sm:$0xf]
  %v1494 = vld [vmem:[%s7 + $0x9c] sm:$0xf]
  %v1495 = vld [vmem:[%s7 + $0xa0] sm:$0xf]
  %v1496 = vld [vmem:[%s7 + $0xa4] sm:$0xf]
  %v1497 = vld [vmem:[%s7 + $0xa8] sm:$0xf]
  %v1498 = vld [vmem:[%s7 + $0xac] sm:$0xf]
  %v1499 = vld [vmem:[%s7 + $0xb0] sm:$0xf]
  %v1500 = vld [vmem:[%s7 + $0xb4] sm:$0xf]
  %v1501 = vld [vmem:[%s7 + $0xb8] sm:$0xf]
  %v1502 = vld [vmem:[%s7 + $0xbc] sm:$0xf]
  %v1503 = vld [vmem:[%s7 + $0xc0] sm:$0xf]
  %v1504 = vld [vmem:[%s7 + $0xc4] sm:$0xf]
  %v1505 = vld [vmem:[%s7 + $0xc8] sm:$0xf]
  %v1506 = vld [vmem:[%s7 + $0xcc] sm:$0xf]
  %v1507 = vld [vmem:[%s7 + $0xd0] sm:$0xf]
  %v1508 = vld [vmem:[%s7 + $0xd4] sm:$0xf]
  %v1509 = vld [vmem:[%s7 + $0xd8] sm:$0xf]
  %v1510 = vld [vmem:[%s7 + $0xdc] sm:$0xf]
  %v1511 = vld [vmem:[%s7 + $0xe0] sm:$0xf]
  %v1512 = vld [vmem:[%s7 + $0xe4] sm:$0xf]
  %v1513 = vld [vmem:[%s7 + $0xe8] sm:$0xf]
  %v1514 = vld [vmem:[%s7 + $0xec] sm:$0xf]
  %v1515 = vld [vmem:[%s7 + $0xf0] sm:$0xf]
  %v1516 = vld [vmem:[%s7 + $0xf4] sm:$0xf]
  %v1517 = vld [vmem:[%s7 + $0xf8] sm:$0xf]
  %v1518 = vld [vmem:[%s7 + $0xfc] sm:$0xf]
  %v1519 = vld [vmem:[%s8] sm:$0x1]
  %v1521 = vlaneseq
  %v1522 = vshrl.u32 %v1521, 7
  %v1523 = vsub.s32 0, %v1522
  %v1524 = vrot.slane %v1519, %v1523
  %v1590 = vunpack.c.l.b16 %v1455
  %v1591 = vunpack.c.l.b16 %v1456
  %v1592 = vunpack.c.l.b16 %v1457
  %v1593 = vunpack.c.l.b16 %v1458
  %v1594 = vunpack.c.l.b16 %v1459
  %v1595 = vunpack.c.l.b16 %v1460
  %v1596 = vunpack.c.l.b16 %v1461
  %v1597 = vunpack.c.l.b16 %v1462
  %v1598 = vunpack.c.l.b16 %v1463
  %v1599 = vunpack.c.l.b16 %v1464
  %v1600 = vunpack.c.l.b16 %v1465
  %v1601 = vunpack.c.l.b16 %v1466
  %v1602 = vunpack.c.l.b16 %v1467
  %v1603 = vunpack.c.l.b16 %v1468
  %v1604 = vunpack.c.l.b16 %v1469
  %v1605 = vunpack.c.l.b16 %v1470
  %v1606 = vunpack.c.l.b16 %v1471
  %v1607 = vunpack.c.l.b16 %v1472
  %v1608 = vunpack.c.l.b16 %v1473
  %v1609 = vunpack.c.l.b16 %v1474
  %v1610 = vunpack.c.l.b16 %v1475
  %v1611 = vunpack.c.l.b16 %v1476
  %v1612 = vunpack.c.l.b16 %v1477
  %v1613 = vunpack.c.l.b16 %v1478
  %v1614 = vunpack.c.l.b16 %v1479
  %v1615 = vunpack.c.l.b16 %v1480
  %v1616 = vunpack.c.l.b16 %v1481
  %v1617 = vunpack.c.l.b16 %v1482
  %v1618 = vunpack.c.l.b16 %v1483
  %v1619 = vunpack.c.l.b16 %v1484
  %v1620 = vunpack.c.l.b16 %v1485
  %v1621 = vunpack.c.l.b16 %v1486
  %v1622 = vunpack.c.l.b16 %v1487
  %v1623 = vunpack.c.l.b16 %v1488
  %v1624 = vunpack.c.l.b16 %v1489
  %v1625 = vunpack.c.l.b16 %v1490
  %v1626 = vunpack.c.l.b16 %v1491
  %v1627 = vunpack.c.l.b16 %v1492
  %v1628 = vunpack.c.l.b16 %v1493
  %v1629 = vunpack.c.l.b16 %v1494
  %v1630 = vunpack.c.l.b16 %v1495
  %v1631 = vunpack.c.l.b16 %v1496
  %v1632 = vunpack.c.l.b16 %v1497
  %v1633 = vunpack.c.l.b16 %v1498
  %v1634 = vunpack.c.l.b16 %v1499
  %v1635 = vunpack.c.l.b16 %v1500
  %v1636 = vunpack.c.l.b16 %v1501
  %v1637 = vunpack.c.l.b16 %v1502
  %v1638 = vunpack.c.l.b16 %v1503
  %v1639 = vunpack.c.l.b16 %v1504
  %v1640 = vunpack.c.l.b16 %v1505
  %v1641 = vunpack.c.l.b16 %v1506
  %v1642 = vunpack.c.l.b16 %v1507
  %v1643 = vunpack.c.l.b16 %v1508
  %v1644 = vunpack.c.l.b16 %v1509
  %v1645 = vunpack.c.l.b16 %v1510
  %v1646 = vunpack.c.l.b16 %v1511
  %v1647 = vunpack.c.l.b16 %v1512
  %v1648 = vunpack.c.l.b16 %v1513
  %v1649 = vunpack.c.l.b16 %v1514
  %v1650 = vunpack.c.l.b16 %v1515
  %v1651 = vunpack.c.l.b16 %v1516
  %v1652 = vunpack.c.l.b16 %v1517
  %v1653 = vunpack.c.l.b16 %v1518
  %v1654 = vpack.c.b16 %v1591, %v1590
  %v1655 = vpack.c.b16 %v1593, %v1592
  %v1656 = vpack.c.b16 %v1595, %v1594
  %v1657 = vpack.c.b16 %v1597, %v1596
  %v1658 = vpack.c.b16 %v1599, %v1598
  %v1659 = vpack.c.b16 %v1601, %v1600
  %v1660 = vpack.c.b16 %v1603, %v1602
  %v1661 = vpack.c.b16 %v1605, %v1604
  %v1662 = vpack.c.b16 %v1607, %v1606
  %v1663 = vpack.c.b16 %v1609, %v1608
  %v1664 = vpack.c.b16 %v1611, %v1610
  %v1665 = vpack.c.b16 %v1613, %v1612
  %v1666 = vpack.c.b16 %v1615, %v1614
  %v1667 = vpack.c.b16 %v1617, %v1616
  %v1668 = vpack.c.b16 %v1619, %v1618
  %v1669 = vpack.c.b16 %v1621, %v1620
  %v1670 = vpack.c.b16 %v1623, %v1622
  %v1671 = vpack.c.b16 %v1625, %v1624
  %v1672 = vpack.c.b16 %v1627, %v1626
  %v1673 = vpack.c.b16 %v1629, %v1628
  %v1674 = vpack.c.b16 %v1631, %v1630
  %v1675 = vpack.c.b16 %v1633, %v1632
  %v1676 = vpack.c.b16 %v1635, %v1634
  %v1677 = vpack.c.b16 %v1637, %v1636
  %v1678 = vpack.c.b16 %v1639, %v1638
  %v1679 = vpack.c.b16 %v1641, %v1640
  %v1680 = vpack.c.b16 %v1643, %v1642
  %v1681 = vpack.c.b16 %v1645, %v1644
  %v1682 = vpack.c.b16 %v1647, %v1646
  %v1683 = vpack.c.b16 %v1649, %v1648
  %v1684 = vpack.c.b16 %v1651, %v1650
  %v1685 = vpack.c.b16 %v1653, %v1652
  %1718 = vmatprep.subr.bf16.mxu0 0
  %1719 = vmatpush1.bf16.msra.mxu0 %v1654
  %1720 = vmatprep.subr.bf16.mxu0 0
  %1721 = vmatpush1.bf16.msra.mxu0 %v1655
  %1722 = vmatprep.subr.bf16.mxu0 0
  %1723 = vmatpush1.bf16.msra.mxu0 %v1656
  %1724 = vmatprep.subr.bf16.mxu0 0
  %1725 = vmatpush1.bf16.msra.mxu0 %v1657
  %1726 = vmatprep.subr.bf16.mxu0 0
  %1727 = vmatpush1.bf16.msra.mxu0 %v1658
  %1728 = vmatprep.subr.bf16.mxu0 0
  %1729 = vmatpush1.bf16.msra.mxu0 %v1659
  %1730 = vmatprep.subr.bf16.mxu0 0
  %1731 = vmatpush1.bf16.msra.mxu0 %v1660
  %1732 = vmatprep.subr.bf16.mxu0 0
  %1733 = vmatpush1.bf16.msra.mxu0 %v1661
  %1734 = vmatprep.subr.bf16.mxu0 0
  %1735 = vmatpush1.bf16.msra.mxu0 %v1662
  %1736 = vmatprep.subr.bf16.mxu0 0
  %1737 = vmatpush1.bf16.msra.mxu0 %v1663
  %1738 = vmatprep.subr.bf16.mxu0 0
  %1739 = vmatpush1.bf16.msra.mxu0 %v1664
  %1740 = vmatprep.subr.bf16.mxu0 0
  %1741 = vmatpush1.bf16.msra.mxu0 %v1665
  %1742 = vmatprep.subr.bf16.mxu0 0
  %1743 = vmatpush1.bf16.msra.mxu0 %v1666
  %1744 = vmatprep.subr.bf16.mxu0 0
  %1745 = vmatpush1.bf16.msra.mxu0 %v1667
  %1746 = vmatprep.subr.bf16.mxu0 0
  %1747 = vmatpush1.bf16.msra.mxu0 %v1668
  %1748 = vmatprep.subr.bf16.mxu0 0
  %1749 = vmatpush1.bf16.msra.mxu0 %v1669
  %1750 = vmatprep.mubr.bf16.mxu0 %v1448
  %1751 = vmatmul.mubr.bf16.gmra.mrb[0].mxu0 %v1447
  %v1752 = vpop.f32.mrb[0].mxu0
  %v1753 = vadd.f32 %v1524, %v1752
  %v1754 = vpop.f32.mrb[0].mxu0
  %v1755 = vpop.f32.mrb[0].mxu0
  %v1756 = vadd.f32 %v1524, %v1755
  %v1757 = vpop.f32.mrb[0].mxu0
  %1758 = vmatprep.mubr.bf16.mxu0 %v1452
  %1759 = vmatmul.mubr.bf16.gmra.mrb[0].mxu0 %v1451
  %v1760 = vpop.f32.mrb[0].mxu0
  %v1761 = vadd.f32 %v1524, %v1760
  %v1762 = vpop.f32.mrb[0].mxu0
  %v1763 = vpop.f32.mrb[0].mxu0
  %v1764 = vadd.f32 %v1524, %v1763
  %v1765 = vpop.f32.mrb[0].mxu0
  %1766 = vdwg.mxu0
  %1767 = vmatprep.subr.bf16.mxu0 0
  %1768 = vmatpush1.bf16.msra.mxu0 %v1670
  %1769 = vmatprep.subr.bf16.mxu0 0
  %1770 = vmatpush1.bf16.msra.mxu0 %v1671
  %1771 = vmatprep.subr.bf16.mxu0 0
  %1772 = vmatpush1.bf16.msra.mxu0 %v1672
  %1773 = vmatprep.subr.bf16.mxu0 0
  %1774 = vmatpush1.bf16.msra.mxu0 %v1673
  %1775 = vmatprep.subr.bf16.mxu0 0
  %1776 = vmatpush1.bf16.msra.mxu0 %v1674
  %1777 = vmatprep.subr.bf16.mxu0 0
  %1778 = vmatpush1.bf16.msra.mxu0 %v1675
  %1779 = vmatprep.subr.bf16.mxu0 0
  %1780 = vmatpush1.bf16.msra.mxu0 %v1676
  %1781 = vmatprep.subr.bf16.mxu0 0
  %1782 = vmatpush1.bf16.msra.mxu0 %v1677
  %1783 = vmatprep.subr.bf16.mxu0 0
  %1784 = vmatpush1.bf16.msra.mxu0 %v1678
  %1785 = vmatprep.subr.bf16.mxu0 0
  %1786 = vmatpush1.bf16.msra.mxu0 %v1679
  %1787 = vmatprep.subr.bf16.mxu0 0
  %1788 = vmatpush1.bf16.msra.mxu0 %v1680
  %1789 = vmatprep.subr.bf16.mxu0 0
  %1790 = vmatpush1.bf16.msra.mxu0 %v1681
  %1791 = vmatprep.subr.bf16.mxu0 0
  %1792 = vmatpush1.bf16.msra.mxu0 %v1682
  %1793 = vmatprep.subr.bf16.mxu0 0
  %1794 = vmatpush1.bf16.msra.mxu0 %v1683
  %1795 = vmatprep.subr.bf16.mxu0 0
  %1796 = vmatpush1.bf16.msra.mxu0 %v1684
  %1797 = vmatprep.subr.bf16.mxu0 0
  %1798 = vmatpush1.bf16.msra.mxu0 %v1685
  %1799 = vmatprep.mubr.bf16.mxu0 %v1450
  %1800 = vmatmul.mubr.bf16.gmra.mrb[0].mxu0 %v1449
  %v1801 = vpop.f32.mrb[0].mxu0
  %v1802 = vadd.f32 %v1753, %v1801
  %v1803 = vpop.f32.mrb[0].mxu0
  %v1804 = vpop.f32.mrb[0].mxu0
  %v1805 = vadd.f32 %v1756, %v1804
  %v1806 = vpop.f32.mrb[0].mxu0
  %1807 = vmatprep.mubr.bf16.mxu0 %v1454
  %1808 = vmatmul.mubr.bf16.gmra.mrb[0].mxu0 %v1453
  %v1809 = vpop.f32.mrb[0].mxu0
  %v1810 = vadd.f32 %v1761, %v1809
  %v1811 = vpop.f32.mrb[0].mxu0
  %v1812 = vpop.f32.mrb[0].mxu0
  %v1813 = vadd.f32 %v1764, %v1812
  %v1814 = vpop.f32.mrb[0].mxu0
  %1815 = vdwg.mxu0
  %v1848 = vsel %vm1126, %v795, %v789
  %v1849 = vsel %vm1128, %v801, %v1848
  %v1850 = vsel %vm1130, %v807, %v1849
  %v1851 = vsel %vm1132, %v813, %v1850
  %v1852 = vsel %vm1134, %v819, %v1851
  %v1853 = vsel %vm1136, %v825, %v1852
  %v1854 = vsel %vm1138, %v831, %v1853
  %v1855 = vsel %vm1126, %v843, %v837
  %v1856 = vsel %vm1128, %v849, %v1855
  %v1857 = vsel %vm1130, %v855, %v1856
  %v1858 = vsel %vm1132, %v861, %v1857
  %v1859 = vsel %vm1134, %v867, %v1858
  %v1860 = vsel %vm1136, %v873, %v1859
  %v1861 = vsel %vm1138, %v879, %v1860
  %v1862 = vsel %vm1126, %v891, %v885
  %v1863 = vsel %vm1128, %v897, %v1862
  %v1864 = vsel %vm1130, %v903, %v1863
  %v1865 = vsel %vm1132, %v909, %v1864
  %v1866 = vsel %vm1134, %v915, %v1865
  %v1867 = vsel %vm1136, %v921, %v1866
  %v1868 = vsel %vm1138, %v927, %v1867
  %v1869 = vsel %vm1126, %v939, %v933
  %v1870 = vsel %vm1128, %v945, %v1869
  %v1871 = vsel %vm1130, %v951, %v1870
  %v1872 = vsel %vm1132, %v957, %v1871
  %v1873 = vsel %vm1134, %v963, %v1872
  %v1874 = vsel %vm1136, %v969, %v1873
  %v1875 = vsel %vm1138, %v975, %v1874
  %v1880 = vadd.f32 %v1802, %v1854
  %v1881 = vadd.f32 %v1805, %v1861
  %v1882 = vadd.f32 %v1810, %v1868
  %v1883 = vadd.f32 %v1813, %v1875
  %v1884 = vmax.f32 %v1880, 0.0
  %v1885 = vmax.f32 %v1881, 0.0
  %v1886 = vmax.f32 %v1882, 0.0
  %v1887 = vmax.f32 %v1883, 0.0
  %v1888 = vpack.c.bf16 %v1885, %v1884
  %v1889 = vpack.c.bf16 %v1887, %v1886
  %v1892 = vunpack.c.l.b16 %v1888
  %v1893 = vunpack.c.h.b16 %v1888
  %v1894 = vunpack.c.l.b16 %v1889
  %v1895 = vunpack.c.h.b16 %v1889
  %v1896 = vpack.c.b16 %v1892, %v1892
  %v1897 = vpack.c.b16 %v1893, %v1893
  %v1898 = vpack.c.b16 %v1894, %v1894
  %v1899 = vpack.c.b16 %v1895, %v1895
  %1904 = vst [vmem:[%s9] sm:$0xf] %v1896
  %1905 = vst [vmem:[%s9 + $0x4] sm:$0xf] %v1897
  %1906 = vst [vmem:[%s9 + $0x8] sm:$0xf] %v1898
  %1907 = vst [vmem:[%s9 + $0xc] sm:$0xf] %v1899
  // Predicated region
  $region38: #{_lambda_.8} parent=0 // pred_check
    _
  $region39: #{_lambda_.8} parent=0 // pred_check_branch
    %1909 = sbr.rel (0) target = $region41
  $region40: #{_lambda_.8} parent=0 // pred_region
    _
  $region41: #{_lambda_.8} parent=0 // pred_fallthru
    _
  // Predicated region
  $region42: #{_lambda_.8} parent=0 // pred_check
    _
  $region43: #{_lambda_.8} parent=0 // pred_check_branch
    %1911 = sbr.rel (0) target = $region45
  $region44: #{_lambda_.8} parent=0 // pred_region
    _
  $region45: #{_lambda_.8} parent=0 // pred_fallthru
    _

// kernel: _lambda_.9
$region0: #{_lambda_.9}
  #allocation0 [shape = 'u32[]', space=smem, size = 0x4, offset = 0x4, fixed_abs, tag = 'smem constant byte address 0x4 - core index']
  #allocation1 [shape = 'u32[144,128]{1,0:T(1,128)}', space=vmem, size = 0x12000, scoped, tag = 'internal scratch']
  %s0 = inlined_call_operand.vmem [shape: bf16[128,128], index: 0, kind: input, shape index: {}]
  %s1 = inlined_call_operand.vmem [shape: bf16[128,128], index: 1, kind: input, shape index: {}]
  %s2 = inlined_call_operand.vmem [shape: bf16[128,128], index: 2, kind: input, shape index: {}]
  %s3 = inlined_call_operand.vmem [shape: bf16[128,128], index: 3, kind: input, shape index: {}]
  %s4 = inlined_call_operand.vmem [shape: f32[1,128], index: 4, kind: input, shape index: {}]
  %s5 = inlined_call_operand.vmem [shape: bf16[128,128], index: 5, kind: input, shape index: {}]
  %s6 = inlined_call_operand.vmem [shape: f32[1,128], index: 6, kind: input, shape index: {}]
  %s7 = inlined_call_operand.vmem [shape: bf16[128,128], index: 7, kind: output, shape index: {}]
  %s8 = sld [smem:[#allocation0]]
  $region38: #{_lambda_.9} parent=0
    _
  %s10 = ssub.s32 1, %s8
  %s11 = scalar_select 0, %s10, %s8
  // Predicated region
  $region2: #{_lambda_.9} parent=0 // pred_check
    _
  $region3: #{_lambda_.9} parent=0 // pred_check_branch
    %13 = sbr.rel (0) target = $region5
  $region4: #{_lambda_.9} parent=0 // pred_region
    _
  $region5: #{_lambda_.9} parent=0 // pred_fallthru
    _
  // Predicated region
  $region6: #{_lambda_.9} parent=0 // pred_check
    _
  $region7: #{_lambda_.9} parent=0 // pred_check_branch
    %15 = sbr.rel (0) target = $region9
  $region8: #{_lambda_.9} parent=0 // pred_region
    _
  $region9: #{_lambda_.9} parent=0 // pred_fallthru
    _
  // Predicated region
  $region10: #{_lambda_.9} parent=0 // pred_check
    _
  $region11: #{_lambda_.9} parent=0 // pred_check_branch
    %17 = sbr.rel (0) target = $region13
  $region12: #{_lambda_.9} parent=0 // pred_region
    _
  $region13: #{_lambda_.9} parent=0 // pred_fallthru
    _
  // Predicated region
  $region14: #{_lambda_.9} parent=0 // pred_check
    _
  $region15: #{_lambda_.9} parent=0 // pred_check_branch
    %19 = sbr.rel (0) target = $region17
  $region16: #{_lambda_.9} parent=0 // pred_region
    _
  $region17: #{_lambda_.9} parent=0 // pred_fallthru
    _
  // Predicated region
  $region18: #{_lambda_.9} parent=0 // pred_check
    _
  $region19: #{_lambda_.9} parent=0 // pred_check_branch
    %21 = sbr.rel (0) target = $region21
  $region20: #{_lambda_.9} parent=0 // pred_region
    _
  $region21: #{_lambda_.9} parent=0 // pred_fallthru
    _
  // Predicated region
  $region22: #{_lambda_.9} parent=0 // pred_check
    _
  $region23: #{_lambda_.9} parent=0 // pred_check_branch
    %23 = sbr.rel (0) target = $region25
  $region24: #{_lambda_.9} parent=0 // pred_region
    _
  $region25: #{_lambda_.9} parent=0 // pred_fallthru
    _
  // Predicated region
  $region26: #{_lambda_.9} parent=0 // pred_check
    _
  $region27: #{_lambda_.9} parent=0 // pred_check_branch
    %25 = sbr.rel (0) target = $region29
  $region28: #{_lambda_.9} parent=0 // pred_region
    _
  $region29: #{_lambda_.9} parent=0 // pred_fallthru
    _
  %v27 = vld [vmem:[%s0] sm:$0xf]
  %v28 = vld [vmem:[%s0 + $0x4] sm:$0xf]
  %v29 = vld [vmem:[%s0 + $0x8] sm:$0xf]
  %v30 = vld [vmem:[%s0 + $0xc] sm:$0xf]
  %v31 = vld [vmem:[%s0 + $0x10] sm:$0xf]
  %v32 = vld [vmem:[%s0 + $0x14] sm:$0xf]
  %v33 = vld [vmem:[%s0 + $0x18] sm:$0xf]
  %v34 = vld [vmem:[%s0 + $0x1c] sm:$0xf]
  %v35 = vld [vmem:[%s0 + $0x20] sm:$0xf]
  %v36 = vld [vmem:[%s0 + $0x24] sm:$0xf]
  %v37 = vld [vmem:[%s0 + $0x28] sm:$0xf]
  %v38 = vld [vmem:[%s0 + $0x2c] sm:$0xf]
  %v39 = vld [vmem:[%s0 + $0x30] sm:$0xf]
  %v40 = vld [vmem:[%s0 + $0x34] sm:$0xf]
  %v41 = vld [vmem:[%s0 + $0x38] sm:$0xf]
  %v42 = vld [vmem:[%s0 + $0x3c] sm:$0xf]
  %v43 = vld [vmem:[%s2] sm:$0xf]
  %v44 = vld [vmem:[%s2 + $0x4] sm:$0xf]
  %v45 = vld [vmem:[%s2 + $0x8] sm:$0xf]
  %v46 = vld [vmem:[%s2 + $0xc] sm:$0xf]
  %v47 = vld [vmem:[%s2 + $0x10] sm:$0xf]
  %v48 = vld [vmem:[%s2 + $0x14] sm:$0xf]
  %v49 = vld [vmem:[%s2 + $0x18] sm:$0xf]
  %v50 = vld [vmem:[%s2 + $0x1c] sm:$0xf]
  %v51 = vld [vmem:[%s2 + $0x20] sm:$0xf]
  %v52 = vld [vmem:[%s2 + $0x24] sm:$0xf]
  %v53 = vld [vmem:[%s2 + $0x28] sm:$0xf]
  %v54 = vld [vmem:[%s2 + $0x2c] sm:$0xf]
  %v55 = vld [vmem:[%s2 + $0x30] sm:$0xf]
  %v56 = vld [vmem:[%s2 + $0x34] sm:$0xf]
  %v57 = vld [vmem:[%s2 + $0x38] sm:$0xf]
  %v58 = vld [vmem:[%s2 + $0x3c] sm:$0xf]
  %v59 = vld [vmem:[%s1] sm:$0xf]
  %v60 = vld [vmem:[%s1 + $0x4] sm:$0xf]
  %v61 = vld [vmem:[%s1 + $0x8] sm:$0xf]
  %v62 = vld [vmem:[%s1 + $0xc] sm:$0xf]
  %v63 = vld [vmem:[%s1 + $0x10] sm:$0xf]
  %v64 = vld [vmem:[%s1 + $0x14] sm:$0xf]
  %v65 = vld [vmem:[%s1 + $0x18] sm:$0xf]
  %v66 = vld [vmem:[%s1 + $0x1c] sm:$0xf]
  %v67 = vld [vmem:[%s1 + $0x20] sm:$0xf]
  %v68 = vld [vmem:[%s1 + $0x24] sm:$0xf]
  %v69 = vld [vmem:[%s1 + $0x28] sm:$0xf]
  %v70 = vld [vmem:[%s1 + $0x2c] sm:$0xf]
  %v71 = vld [vmem:[%s1 + $0x30] sm:$0xf]
  %v72 = vld [vmem:[%s1 + $0x34] sm:$0xf]
  %v73 = vld [vmem:[%s1 + $0x38] sm:$0xf]
  %v74 = vld [vmem:[%s1 + $0x3c] sm:$0xf]
  %v75 = vld [vmem:[%s3] sm:$0xf]
  %v76 = vld [vmem:[%s3 + $0x4] sm:$0xf]
  %v77 = vld [vmem:[%s3 + $0x8] sm:$0xf]
  %v78 = vld [vmem:[%s3 + $0xc] sm:$0xf]
  %v79 = vld [vmem:[%s3 + $0x10] sm:$0xf]
  %v80 = vld [vmem:[%s3 + $0x14] sm:$0xf]
  %v81 = vld [vmem:[%s3 + $0x18] sm:$0xf]
  %v82 = vld [vmem:[%s3 + $0x1c] sm:$0xf]
  %v83 = vld [vmem:[%s3 + $0x20] sm:$0xf]
  %v84 = vld [vmem:[%s3 + $0x24] sm:$0xf]
  %v85 = vld [vmem:[%s3 + $0x28] sm:$0xf]
  %v86 = vld [vmem:[%s3 + $0x2c] sm:$0xf]
  %v87 = vld [vmem:[%s3 + $0x30] sm:$0xf]
  %v88 = vld [vmem:[%s3 + $0x34] sm:$0xf]
  %v89 = vld [vmem:[%s3 + $0x38] sm:$0xf]
  %v90 = vld [vmem:[%s3 + $0x3c] sm:$0xf]
  %v107 = vunpack.c.l.b16 %v59
  %v108 = vunpack.c.l.b16 %v60
  %v109 = vunpack.c.l.b16 %v61
  %v110 = vunpack.c.l.b16 %v62
  %v111 = vunpack.c.l.b16 %v63
  %v112 = vunpack.c.l.b16 %v64
  %v113 = vunpack.c.l.b16 %v65
  %v114 = vunpack.c.l.b16 %v66
  %v115 = vunpack.c.l.b16 %v67
  %v116 = vunpack.c.l.b16 %v68
  %v117 = vunpack.c.l.b16 %v69
  %v118 = vunpack.c.l.b16 %v70
  %v119 = vunpack.c.l.b16 %v71
  %v120 = vunpack.c.l.b16 %v72
  %v121 = vunpack.c.l.b16 %v73
  %v122 = vunpack.c.l.b16 %v74
  %v123 = vpack.c.b16 %v108, %v107
  %v124 = vpack.c.b16 %v110, %v109
  %v125 = vpack.c.b16 %v112, %v111
  %v126 = vpack.c.b16 %v114, %v113
  %v127 = vpack.c.b16 %v116, %v115
  %v128 = vpack.c.b16 %v118, %v117
  %v129 = vpack.c.b16 %v120, %v119
  %v130 = vpack.c.b16 %v122, %v121
  %v155 = vunpack.c.l.b16 %v75
  %v156 = vunpack.c.l.b16 %v76
  %v157 = vunpack.c.l.b16 %v77
  %v158 = vunpack.c.l.b16 %v78
  %v159 = vunpack.c.l.b16 %v79
  %v160 = vunpack.c.l.b16 %v80
  %v161 = vunpack.c.l.b16 %v81
  %v162 = vunpack.c.l.b16 %v82
  %v163 = vunpack.c.l.b16 %v83
  %v164 = vunpack.c.l.b16 %v84
  %v165 = vunpack.c.l.b16 %v85
  %v166 = vunpack.c.l.b16 %v86
  %v167 = vunpack.c.l.b16 %v87
  %v168 = vunpack.c.l.b16 %v88
  %v169 = vunpack.c.l.b16 %v89
  %v170 = vunpack.c.l.b16 %v90
  %v171 = vpack.c.b16 %v156, %v155
  %v172 = vpack.c.b16 %v158, %v157
  %v173 = vpack.c.b16 %v160, %v159
  %v174 = vpack.c.b16 %v162, %v161
  %v175 = vpack.c.b16 %v164, %v163
  %v176 = vpack.c.b16 %v166, %v165
  %v177 = vpack.c.b16 %v168, %v167
  %v178 = vpack.c.b16 %v170, %v169
  %187 = vmatprep.subr.bf16.mxu0 0
  %188 = vmatpush1.bf16.msra.mxu0 %v171
  %189 = vmatprep.subr.bf16.mxu0 0
  %190 = vmatpush1.bf16.msra.mxu0 %v172
  %191 = vmatprep.subr.bf16.mxu0 0
  %192 = vmatpush1.bf16.msra.mxu0 %v173
  %193 = vmatprep.subr.bf16.mxu0 0
  %194 = vmatpush1.bf16.msra.mxu0 %v174
  %195 = vmatprep.subr.bf16.mxu0 0
  %196 = vmatpush1.bf16.msra.mxu0 %v175
  %197 = vmatprep.subr.bf16.mxu0 0
  %198 = vmatpush1.bf16.msra.mxu0 %v176
  %199 = vmatprep.subr.bf16.mxu0 0
  %200 = vmatpush1.bf16.msra.mxu0 %v177
  %201 = vmatprep.subr.bf16.mxu0 0
  %202 = vmatpush1.bf16.msra.mxu0 %v178
  %203 = vmatprep.subr.bf16.mxu0 0
  %204 = vmatpush1.bf16.msra.mxu0 0
  %205 = vmatprep.subr.bf16.mxu0 0
  %206 = vmatpush1.bf16.msra.mxu0 0
  %207 = vmatprep.subr.bf16.mxu0 0
  %208 = vmatpush1.bf16.msra.mxu0 0
  %209 = vmatprep.subr.bf16.mxu0 0
  %210 = vmatpush1.bf16.msra.mxu0 0
  %211 = vmatprep.subr.bf16.mxu0 0
  %212 = vmatpush1.bf16.msra.mxu0 0
  %213 = vmatprep.subr.bf16.mxu0 0
  %214 = vmatpush1.bf16.msra.mxu0 0
  %215 = vmatprep.subr.bf16.mxu0 0
  %216 = vmatpush1.bf16.msra.mxu0 0
  %217 = vmatprep.subr.bf16.mxu0 0
  %218 = vmatpush1.bf16.msra.mxu0 0
  %219 = vmatprep.mubr.bf16.mxu0 0
  %220 = vmatmul.mubr.bf16.gmra.mrb[0].mxu0 %v123
  %v221 = vpop.f32.mrb[0].mxu0
  %v222 = vadd.f32 0.0, %v221
  %v223 = vpop.f32.mrb[0].mxu0
  %v224 = vpop.f32.mrb[0].mxu0
  %v225 = vadd.f32 0.0, %v224
  %v226 = vpop.f32.mrb[0].mxu0
  %227 = vmatprep.mubr.bf16.mxu0 0
  %228 = vmatmul.mubr.bf16.gmra.mrb[0].mxu0 %v124
  %v229 = vpop.f32.mrb[0].mxu0
  %v230 = vadd.f32 0.0, %v229
  %v231 = vpop.f32.mrb[0].mxu0
  %v232 = vpop.f32.mrb[0].mxu0
  %v233 = vadd.f32 0.0, %v232
  %v234 = vpop.f32.mrb[0].mxu0
  %235 = vmatprep.mubr.bf16.mxu0 0
  %236 = vmatmul.mubr.bf16.gmra.mrb[0].mxu0 %v125
  %v237 = vpop.f32.mrb[0].mxu0
  %v238 = vadd.f32 0.0, %v237
  %v239 = vpop.f32.mrb[0].mxu0
  %v240 = vpop.f32.mrb[0].mxu0
  %v241 = vadd.f32 0.0, %v240
  %v242 = vpop.f32.mrb[0].mxu0
  %243 = vmatprep.mubr.bf16.mxu0 0
  %244 = vmatmul.mubr.bf16.gmra.mrb[0].mxu0 %v126
  %v245 = vpop.f32.mrb[0].mxu0
  %v246 = vadd.f32 0.0, %v245
  %v247 = vpop.f32.mrb[0].mxu0
  %v248 = vpop.f32.mrb[0].mxu0
  %v249 = vadd.f32 0.0, %v248
  %v250 = vpop.f32.mrb[0].mxu0
  %251 = vmatprep.mubr.bf16.mxu0 0
  %252 = vmatmul.mubr.bf16.gmra.mrb[0].mxu0 %v127
  %v253 = vpop.f32.mrb[0].mxu0
  %v254 = vadd.f32 0.0, %v253
  %v255 = vpop.f32.mrb[0].mxu0
  %v256 = vpop.f32.mrb[0].mxu0
  %v257 = vadd.f32 0.0, %v256
  %v258 = vpop.f32.mrb[0].mxu0
  %259 = vmatprep.mubr.bf16.mxu0 0
  %260 = vmatmul.mubr.bf16.gmra.mrb[0].mxu0 %v128
  %v261 = vpop.f32.mrb[0].mxu0
  %v262 = vadd.f32 0.0, %v261
  %v263 = vpop.f32.mrb[0].mxu0
  %v264 = vpop.f32.mrb[0].mxu0
  %v265 = vadd.f32 0.0, %v264
  %v266 = vpop.f32.mrb[0].mxu0
  %267 = vmatprep.mubr.bf16.mxu0 0
  %268 = vmatmul.mubr.bf16.gmra.mrb[0].mxu0 %v129
  %v269 = vpop.f32.mrb[0].mxu0
  %v270 = vadd.f32 0.0, %v269
  %v271 = vpop.f32.mrb[0].mxu0
  %v272 = vpop.f32.mrb[0].mxu0
  %v273 = vadd.f32 0.0, %v272
  %v274 = vpop.f32.mrb[0].mxu0
  %275 = vmatprep.mubr.bf16.mxu0 0
  %276 = vmatmul.mubr.bf16.gmra.mrb[0].mxu0 %v130
  %v277 = vpop.f32.mrb[0].mxu0
  %v278 = vadd.f32 0.0, %v277
  %v279 = vpop.f32.mrb[0].mxu0
  %v280 = vpop.f32.mrb[0].mxu0
  %v281 = vadd.f32 0.0, %v280
  %v282 = vpop.f32.mrb[0].mxu0
  %283 = vdwg.mxu0
  %v300 = vunpack.c.l.b16 %v27
  %v301 = vunpack.c.l.b16 %v28
  %v302 = vunpack.c.l.b16 %v29
  %v303 = vunpack.c.l.b16 %v30
  %v304 = vunpack.c.l.b16 %v31
  %v305 = vunpack.c.l.b16 %v32
  %v306 = vunpack.c.l.b16 %v33
  %v307 = vunpack.c.l.b16 %v34
  %v308 = vunpack.c.l.b16 %v35
  %v309 = vunpack.c.l.b16 %v36
  %v310 = vunpack.c.l.b16 %v37
  %v311 = vunpack.c.l.b16 %v38
  %v312 = vunpack.c.l.b16 %v39
  %v313 = vunpack.c.l.b16 %v40
  %v314 = vunpack.c.l.b16 %v41
  %v315 = vunpack.c.l.b16 %v42
  %v316 = vpack.c.b16 %v301, %v300
  %v317 = vpack.c.b16 %v303, %v302
  %v318 = vpack.c.b16 %v305, %v304
  %v319 = vpack.c.b16 %v307, %v306
  %v320 = vpack.c.b16 %v309, %v308
  %v321 = vpack.c.b16 %v311, %v310
  %v322 = vpack.c.b16 %v313, %v312
  %v323 = vpack.c.b16 %v315, %v314
  %v348 = vunpack.c.l.b16 %v43
  %v349 = vunpack.c.l.b16 %v44
  %v350 = vunpack.c.l.b16 %v45
  %v351 = vunpack.c.l.b16 %v46
  %v352 = vunpack.c.l.b16 %v47
  %v353 = vunpack.c.l.b16 %v48
  %v354 = vunpack.c.l.b16 %v49
  %v355 = vunpack.c.l.b16 %v50
  %v356 = vunpack.c.l.b16 %v51
  %v357 = vunpack.c.l.b16 %v52
  %v358 = vunpack.c.l.b16 %v53
  %v359 = vunpack.c.l.b16 %v54
  %v360 = vunpack.c.l.b16 %v55
  %v361 = vunpack.c.l.b16 %v56
  %v362 = vunpack.c.l.b16 %v57
  %v363 = vunpack.c.l.b16 %v58
  %v364 = vpack.c.b16 %v349, %v348
  %v365 = vpack.c.b16 %v351, %v350
  %v366 = vpack.c.b16 %v353, %v352
  %v367 = vpack.c.b16 %v355, %v354
  %v368 = vpack.c.b16 %v357, %v356
  %v369 = vpack.c.b16 %v359, %v358
  %v370 = vpack.c.b16 %v361, %v360
  %v371 = vpack.c.b16 %v363, %v362
  %380 = vmatprep.subr.bf16.mxu0 0
  %381 = vmatpush1.bf16.msra.mxu0 %v364
  %382 = vmatprep.subr.bf16.mxu0 0
  %383 = vmatpush1.bf16.msra.mxu0 %v365
  %384 = vmatprep.subr.bf16.mxu0 0
  %385 = vmatpush1.bf16.msra.mxu0 %v366
  %386 = vmatprep.subr.bf16.mxu0 0
  %387 = vmatpush1.bf16.msra.mxu0 %v367
  %388 = vmatprep.subr.bf16.mxu0 0
  %389 = vmatpush1.bf16.msra.mxu0 %v368
  %390 = vmatprep.subr.bf16.mxu0 0
  %391 = vmatpush1.bf16.msra.mxu0 %v369
  %392 = vmatprep.subr.bf16.mxu0 0
  %393 = vmatpush1.bf16.msra.mxu0 %v370
  %394 = vmatprep.subr.bf16.mxu0 0
  %395 = vmatpush1.bf16.msra.mxu0 %v371
  %396 = vmatprep.subr.bf16.mxu0 0
  %397 = vmatpush1.bf16.msra.mxu0 0
  %398 = vmatprep.subr.bf16.mxu0 0
  %399 = vmatpush1.bf16.msra.mxu0 0
  %400 = vmatprep.subr.bf16.mxu0 0
  %401 = vmatpush1.bf16.msra.mxu0 0
  %402 = vmatprep.subr.bf16.mxu0 0
  %403 = vmatpush1.bf16.msra.mxu0 0
  %404 = vmatprep.subr.bf16.mxu0 0
  %405 = vmatpush1.bf16.msra.mxu0 0
  %406 = vmatprep.subr.bf16.mxu0 0
  %407 = vmatpush1.bf16.msra.mxu0 0
  %408 = vmatprep.subr.bf16.mxu0 0
  %409 = vmatpush1.bf16.msra.mxu0 0
  %410 = vmatprep.subr.bf16.mxu0 0
  %411 = vmatpush1.bf16.msra.mxu0 0
  %412 = vmatprep.mubr.bf16.mxu0 0
  %413 = vmatmul.mubr.bf16.gmra.mrb[0].mxu0 %v316
  %v414 = vpop.f32.mrb[0].mxu0
  %v415 = vadd.f32 %v222, %v414
  %v416 = vpop.f32.mrb[0].mxu0
  %v417 = vpop.f32.mrb[0].mxu0
  %v418 = vadd.f32 %v225, %v417
  %v419 = vpop.f32.mrb[0].mxu0
  %420 = vmatprep.mubr.bf16.mxu0 0
  %421 = vmatmul.mubr.bf16.gmra.mrb[0].mxu0 %v317
  %v422 = vpop.f32.mrb[0].mxu0
  %v423 = vadd.f32 %v230, %v422
  %v424 = vpop.f32.mrb[0].mxu0
  %v425 = vpop.f32.mrb[0].mxu0
  %v426 = vadd.f32 %v233, %v425
  %v427 = vpop.f32.mrb[0].mxu0
  %428 = vmatprep.mubr.bf16.mxu0 0
  %429 = vmatmul.mubr.bf16.gmra.mrb[0].mxu0 %v318
  %v430 = vpop.f32.mrb[0].mxu0
  %v431 = vadd.f32 %v238, %v430
  %v432 = vpop.f32.mrb[0].mxu0
  %v433 = vpop.f32.mrb[0].mxu0
  %v434 = vadd.f32 %v241, %v433
  %v435 = vpop.f32.mrb[0].mxu0
  %436 = vmatprep.mubr.bf16.mxu0 0
  %437 = vmatmul.mubr.bf16.gmra.mrb[0].mxu0 %v319
  %v438 = vpop.f32.mrb[0].mxu0
  %v439 = vadd.f32 %v246, %v438
  %v440 = vpop.f32.mrb[0].mxu0
  %v441 = vpop.f32.mrb[0].mxu0
  %v442 = vadd.f32 %v249, %v441
  %v443 = vpop.f32.mrb[0].mxu0
  %444 = vmatprep.mubr.bf16.mxu0 0
  %445 = vmatmul.mubr.bf16.gmra.mrb[0].mxu0 %v320
  %v446 = vpop.f32.mrb[0].mxu0
  %v447 = vadd.f32 %v254, %v446
  %v448 = vpop.f32.mrb[0].mxu0
  %v449 = vpop.f32.mrb[0].mxu0
  %v450 = vadd.f32 %v257, %v449
  %v451 = vpop.f32.mrb[0].mxu0
  %452 = vmatprep.mubr.bf16.mxu0 0
  %453 = vmatmul.mubr.bf16.gmra.mrb[0].mxu0 %v321
  %v454 = vpop.f32.mrb[0].mxu0
  %v455 = vadd.f32 %v262, %v454
  %v456 = vpop.f32.mrb[0].mxu0
  %v457 = vpop.f32.mrb[0].mxu0
  %v458 = vadd.f32 %v265, %v457
  %v459 = vpop.f32.mrb[0].mxu0
  %460 = vmatprep.mubr.bf16.mxu0 0
  %461 = vmatmul.mubr.bf16.gmra.mrb[0].mxu0 %v322
  %v462 = vpop.f32.mrb[0].mxu0
  %v463 = vadd.f32 %v270, %v462
  %v464 = vpop.f32.mrb[0].mxu0
  %v465 = vpop.f32.mrb[0].mxu0
  %v466 = vadd.f32 %v273, %v465
  %v467 = vpop.f32.mrb[0].mxu0
  %468 = vmatprep.mubr.bf16.mxu0 0
  %469 = vmatmul.mubr.bf16.gmra.mrb[0].mxu0 %v323
  %v470 = vpop.f32.mrb[0].mxu0
  %v471 = vadd.f32 %v278, %v470
  %v472 = vpop.f32.mrb[0].mxu0
  %v473 = vpop.f32.mrb[0].mxu0
  %v474 = vadd.f32 %v281, %v473
  %v475 = vpop.f32.mrb[0].mxu0
  %476 = vdwg.mxu0
  %v477 = vld [vmem:[%s4] sm:$0x1]
  %v479 = vlaneseq
  %v480 = vshrl.u32 %v479, 7
  %v481 = vsub.s32 0, %v480
  %v482 = vrot.slane %v477, %v481
  %v484 = vadd.f32 %v415, %v482
  %v485 = vadd.f32 %v418, %v482
  %v486 = vadd.f32 %v423, %v482
  %v487 = vadd.f32 %v426, %v482
  %v488 = vadd.f32 %v431, %v482
  %v489 = vadd.f32 %v434, %v482
  %v490 = vadd.f32 %v439, %v482
  %v491 = vadd.f32 %v442, %v482
  %v492 = vadd.f32 %v447, %v482
  %v493 = vadd.f32 %v450, %v482
  %v494 = vadd.f32 %v455, %v482
  %v495 = vadd.f32 %v458, %v482
  %v496 = vadd.f32 %v463, %v482
  %v497 = vadd.f32 %v466, %v482
  %v498 = vadd.f32 %v471, %v482
  %v499 = vadd.f32 %v474, %v482
  %v500 = vmax.f32 %v484, 0.0
  %v501 = vmax.f32 %v485, 0.0
  %v502 = vmax.f32 %v486, 0.0
  %v503 = vmax.f32 %v487, 0.0
  %v504 = vmax.f32 %v488, 0.0
  %v505 = vmax.f32 %v489, 0.0
  %v506 = vmax.f32 %v490, 0.0
  %v507 = vmax.f32 %v491, 0.0
  %v508 = vmax.f32 %v492, 0.0
  %v509 = vmax.f32 %v493, 0.0
  %v510 = vmax.f32 %v494, 0.0
  %v511 = vmax.f32 %v495, 0.0
  %v512 = vmax.f32 %v496, 0.0
  %v513 = vmax.f32 %v497, 0.0
  %v514 = vmax.f32 %v498, 0.0
  %v515 = vmax.f32 %v499, 0.0
  %v516 = vpack.c.bf16 %v501, %v500
  %v517 = vpack.c.bf16 %v503, %v502
  %v518 = vpack.c.bf16 %v505, %v504
  %v519 = vpack.c.bf16 %v507, %v506
  %v520 = vpack.c.bf16 %v509, %v508
  %v521 = vpack.c.bf16 %v511, %v510
  %v522 = vpack.c.bf16 %v513, %v512
  %v523 = vpack.c.bf16 %v515, %v514
  %v524 = vld [vmem:[%s5] sm:$0xf]
  %v525 = vld [vmem:[%s5 + $0x4] sm:$0xf]
  %v526 = vld [vmem:[%s5 + $0x8] sm:$0xf]
  %v527 = vld [vmem:[%s5 + $0xc] sm:$0xf]
  %v528 = vld [vmem:[%s5 + $0x10] sm:$0xf]
  %v529 = vld [vmem:[%s5 + $0x14] sm:$0xf]
  %v530 = vld [vmem:[%s5 + $0x18] sm:$0xf]
  %v531 = vld [vmem:[%s5 + $0x1c] sm:$0xf]
  %v532 = vld [vmem:[%s5 + $0x20] sm:$0xf]
  %v533 = vld [vmem:[%s5 + $0x24] sm:$0xf]
  %v534 = vld [vmem:[%s5 + $0x28] sm:$0xf]
  %v535 = vld [vmem:[%s5 + $0x2c] sm:$0xf]
  %v536 = vld [vmem:[%s5 + $0x30] sm:$0xf]
  %v537 = vld [vmem:[%s5 + $0x34] sm:$0xf]
  %v538 = vld [vmem:[%s5 + $0x38] sm:$0xf]
  %v539 = vld [vmem:[%s5 + $0x3c] sm:$0xf]
  %v540 = vld [vmem:[%s6] sm:$0x1]
  %v542 = vlaneseq
  %v543 = vshrl.u32 %v542, 7
  %v544 = vsub.s32 0, %v543
  %v545 = vrot.slane %v540, %v544
  %v563 = vunpack.c.l.b16 %v524
  %v564 = vunpack.c.l.b16 %v525
  %v565 = vunpack.c.l.b16 %v526
  %v566 = vunpack.c.l.b16 %v527
  %v567 = vunpack.c.l.b16 %v528
  %v568 = vunpack.c.l.b16 %v529
  %v569 = vunpack.c.l.b16 %v530
  %v570 = vunpack.c.l.b16 %v531
  %v571 = vunpack.c.l.b16 %v532
  %v572 = vunpack.c.l.b16 %v533
  %v573 = vunpack.c.l.b16 %v534
  %v574 = vunpack.c.l.b16 %v535
  %v575 = vunpack.c.l.b16 %v536
  %v576 = vunpack.c.l.b16 %v537
  %v577 = vunpack.c.l.b16 %v538
  %v578 = vunpack.c.l.b16 %v539
  %v579 = vpack.c.b16 %v564, %v563
  %v580 = vpack.c.b16 %v566, %v565
  %v581 = vpack.c.b16 %v568, %v567
  %v582 = vpack.c.b16 %v570, %v569
  %v583 = vpack.c.b16 %v572, %v571
  %v584 = vpack.c.b16 %v574, %v573
  %v585 = vpack.c.b16 %v576, %v575
  %v586 = vpack.c.b16 %v578, %v577
  %595 = vmatprep.subr.bf16.mxu0 0
  %596 = vmatpush1.bf16.msra.mxu0 %v579
  %597 = vmatprep.subr.bf16.mxu0 0
  %598 = vmatpush1.bf16.msra.mxu0 %v580
  %599 = vmatprep.subr.bf16.mxu0 0
  %600 = vmatpush1.bf16.msra.mxu0 %v581
  %601 = vmatprep.subr.bf16.mxu0 0
  %602 = vmatpush1.bf16.msra.mxu0 %v582
  %603 = vmatprep.subr.bf16.mxu0 0
  %604 = vmatpush1.bf16.msra.mxu0 %v583
  %605 = vmatprep.subr.bf16.mxu0 0
  %606 = vmatpush1.bf16.msra.mxu0 %v584
  %607 = vmatprep.subr.bf16.mxu0 0
  %608 = vmatpush1.bf16.msra.mxu0 %v585
  %609 = vmatprep.subr.bf16.mxu0 0
  %610 = vmatpush1.bf16.msra.mxu0 %v586
  %611 = vmatprep.subr.bf16.mxu0 0
  %612 = vmatpush1.bf16.msra.mxu0 0
  %613 = vmatprep.subr.bf16.mxu0 0
  %614 = vmatpush1.bf16.msra.mxu0 0
  %615 = vmatprep.subr.bf16.mxu0 0
  %616 = vmatpush1.bf16.msra.mxu0 0
  %617 = vmatprep.subr.bf16.mxu0 0
  %618 = vmatpush1.bf16.msra.mxu0 0
  %619 = vmatprep.subr.bf16.mxu0 0
  %620 = vmatpush1.bf16.msra.mxu0 0
  %621 = vmatprep.subr.bf16.mxu0 0
  %622 = vmatpush1.bf16.msra.mxu0 0
  %623 = vmatprep.subr.bf16.mxu0 0
  %624 = vmatpush1.bf16.msra.mxu0 0
  %625 = vmatprep.subr.bf16.mxu0 0
  %626 = vmatpush1.bf16.msra.mxu0 0
  %627 = vmatprep.mubr.bf16.mxu0 0
  %628 = vmatmul.mubr.bf16.gmra.mrb[0].mxu0 %v516
  %v629 = vpop.f32.mrb[0].mxu0
  %v630 = vadd.f32 %v545, %v629
  %v631 = vpop.f32.mrb[0].mxu0
  %v632 = vpop.f32.mrb[0].mxu0
  %v633 = vadd.f32 %v545, %v632
  %v634 = vpop.f32.mrb[0].mxu0
  %635 = vmatprep.mubr.bf16.mxu0 0
  %636 = vmatmul.mubr.bf16.gmra.mrb[0].mxu0 %v517
  %v637 = vpop.f32.mrb[0].mxu0
  %v638 = vadd.f32 %v545, %v637
  %v639 = vpop.f32.mrb[0].mxu0
  %v640 = vpop.f32.mrb[0].mxu0
  %v641 = vadd.f32 %v545, %v640
  %v642 = vpop.f32.mrb[0].mxu0
  %643 = vmatprep.mubr.bf16.mxu0 0
  %644 = vmatmul.mubr.bf16.gmra.mrb[0].mxu0 %v518
  %v645 = vpop.f32.mrb[0].mxu0
  %v646 = vadd.f32 %v545, %v645
  %v647 = vpop.f32.mrb[0].mxu0
  %v648 = vpop.f32.mrb[0].mxu0
  %v649 = vadd.f32 %v545, %v648
  %v650 = vpop.f32.mrb[0].mxu0
  %651 = vmatprep.mubr.bf16.mxu0 0
  %652 = vmatmul.mubr.bf16.gmra.mrb[0].mxu0 %v519
  %v653 = vpop.f32.mrb[0].mxu0
  %v654 = vadd.f32 %v545, %v653
  %v655 = vpop.f32.mrb[0].mxu0
  %v656 = vpop.f32.mrb[0].mxu0
  %v657 = vadd.f32 %v545, %v656
  %v658 = vpop.f32.mrb[0].mxu0
  %659 = vmatprep.mubr.bf16.mxu0 0
  %660 = vmatmul.mubr.bf16.gmra.mrb[0].mxu0 %v520
  %v661 = vpop.f32.mrb[0].mxu0
  %v662 = vadd.f32 %v545, %v661
  %v663 = vpop.f32.mrb[0].mxu0
  %v664 = vpop.f32.mrb[0].mxu0
  %v665 = vadd.f32 %v545, %v664
  %v666 = vpop.f32.mrb[0].mxu0
  %667 = vmatprep.mubr.bf16.mxu0 0
  %668 = vmatmul.mubr.bf16.gmra.mrb[0].mxu0 %v521
  %v669 = vpop.f32.mrb[0].mxu0
  %v670 = vadd.f32 %v545, %v669
  %v671 = vpop.f32.mrb[0].mxu0
  %v672 = vpop.f32.mrb[0].mxu0
  %v673 = vadd.f32 %v545, %v672
  %v674 = vpop.f32.mrb[0].mxu0
  %675 = vmatprep.mubr.bf16.mxu0 0
  %676 = vmatmul.mubr.bf16.gmra.mrb[0].mxu0 %v522
  %v677 = vpop.f32.mrb[0].mxu0
  %v678 = vadd.f32 %v545, %v677
  %v679 = vpop.f32.mrb[0].mxu0
  %v680 = vpop.f32.mrb[0].mxu0
  %v681 = vadd.f32 %v545, %v680
  %v682 = vpop.f32.mrb[0].mxu0
  %683 = vmatprep.mubr.bf16.mxu0 0
  %684 = vmatmul.mubr.bf16.gmra.mrb[0].mxu0 %v523
  %v685 = vpop.f32.mrb[0].mxu0
  %v686 = vadd.f32 %v545, %v685
  %v687 = vpop.f32.mrb[0].mxu0
  %v688 = vpop.f32.mrb[0].mxu0
  %v689 = vadd.f32 %v545, %v688
  %v690 = vpop.f32.mrb[0].mxu0
  %691 = vdwg.mxu0
  %v692 = vmax.f32 %v630, 0.0
  %v693 = vmax.f32 %v633, 0.0
  %v694 = vmax.f32 %v638, 0.0
  %v695 = vmax.f32 %v641, 0.0
  %v696 = vmax.f32 %v646, 0.0
  %v697 = vmax.f32 %v649, 0.0
  %v698 = vmax.f32 %v654, 0.0
  %v699 = vmax.f32 %v657, 0.0
  %v700 = vmax.f32 %v662, 0.0
  %v701 = vmax.f32 %v665, 0.0
  %v702 = vmax.f32 %v670, 0.0
  %v703 = vmax.f32 %v673, 0.0
  %v704 = vmax.f32 %v678, 0.0
  %v705 = vmax.f32 %v681, 0.0
  %v706 = vmax.f32 %v686, 0.0
  %v707 = vmax.f32 %v689, 0.0
  %v708 = vpack.c.bf16 %v693, %v692
  %v709 = vpack.c.bf16 %v695, %v694
  %v710 = vpack.c.bf16 %v697, %v696
  %v711 = vpack.c.bf16 %v699, %v698
  %v712 = vpack.c.bf16 %v701, %v700
  %v713 = vpack.c.bf16 %v703, %v702
  %v714 = vpack.c.bf16 %v705, %v704
  %v715 = vpack.c.bf16 %v707, %v706
  %v724 = vunpack.c.l.b16 %v708
  %v725 = vunpack.c.h.b16 %v708
  %v726 = vunpack.c.l.b16 %v709
  %v727 = vunpack.c.h.b16 %v709
  %v728 = vunpack.c.l.b16 %v710
  %v729 = vunpack.c.h.b16 %v710
  %v730 = vunpack.c.l.b16 %v711
  %v731 = vunpack.c.h.b16 %v711
  %v732 = vunpack.c.l.b16 %v712
  %v733 = vunpack.c.h.b16 %v712
  %v734 = vunpack.c.l.b16 %v713
  %v735 = vunpack.c.h.b16 %v713
  %v736 = vunpack.c.l.b16 %v714
  %v737 = vunpack.c.h.b16 %v714
  %v738 = vunpack.c.l.b16 %v715
  %v739 = vunpack.c.h.b16 %v715
  %v740 = vpack.c.b16 %v724, %v724
  %v741 = vpack.c.b16 %v725, %v725
  %v742 = vpack.c.b16 %v726, %v726
  %v743 = vpack.c.b16 %v727, %v727
  %v744 = vpack.c.b16 %v728, %v728
  %v745 = vpack.c.b16 %v729, %v729
  %v746 = vpack.c.b16 %v730, %v730
  %v747 = vpack.c.b16 %v731, %v731
  %v748 = vpack.c.b16 %v732, %v732
  %v749 = vpack.c.b16 %v733, %v733
  %v750 = vpack.c.b16 %v734, %v734
  %v751 = vpack.c.b16 %v735, %v735
  %v752 = vpack.c.b16 %v736, %v736
  %v753 = vpack.c.b16 %v737, %v737
  %v754 = vpack.c.b16 %v738, %v738
  %v755 = vpack.c.b16 %v739, %v739
  %772 = vst [vmem:[%s7] sm:$0xf] %v740
  %773 = vst [vmem:[%s7 + $0x4] sm:$0xf] %v741
  %774 = vst [vmem:[%s7 + $0x8] sm:$0xf] %v742
  %775 = vst [vmem:[%s7 + $0xc] sm:$0xf] %v743
  %776 = vst [vmem:[%s7 + $0x10] sm:$0xf] %v744
  %777 = vst [vmem:[%s7 + $0x14] sm:$0xf] %v745
  %778 = vst [vmem:[%s7 + $0x18] sm:$0xf] %v746
  %779 = vst [vmem:[%s7 + $0x1c] sm:$0xf] %v747
  %780 = vst [vmem:[%s7 + $0x20] sm:$0xf] %v748
  %781 = vst [vmem:[%s7 + $0x24] sm:$0xf] %v749
  %782 = vst [vmem:[%s7 + $0x28] sm:$0xf] %v750
  %783 = vst [vmem:[%s7 + $0x2c] sm:$0xf] %v751
  %784 = vst [vmem:[%s7 + $0x30] sm:$0xf] %v752
  %785 = vst [vmem:[%s7 + $0x34] sm:$0xf] %v753
  %786 = vst [vmem:[%s7 + $0x38] sm:$0xf] %v754
  %787 = vst [vmem:[%s7 + $0x3c] sm:$0xf] %v755
  // Predicated region
  $region30: #{_lambda_.9} parent=0 // pred_check
    _
  $region31: #{_lambda_.9} parent=0 // pred_check_branch
    %789 = sbr.rel (0) target = $region33
  $region32: #{_lambda_.9} parent=0 // pred_region
    _
  $region33: #{_lambda_.9} parent=0 // pred_fallthru
    _
  // Predicated region
  $region34: #{_lambda_.9} parent=0 // pred_check
    _
  $region35: #{_lambda_.9} parent=0 // pred_check_branch
    %791 = sbr.rel (0) target = $region37
  $region36: #{_lambda_.9} parent=0 // pred_region
    _
  $region37: #{_lambda_.9} parent=0 // pred_fallthru
    _

// kernel: neg.14
$region0: #{neg.14}
  #allocation0 [shape = 's32[1]{0}', space=sflag, size = 0x4, scoped, tag = 'scoped memory for neg.14']
  %s0 = inlined_call_operand.vmem [shape: f32[2,128,64], index: 0, kind: input, shape index: {}]
  %s1 = inlined_call_operand.vmem [shape: f32[2,128,64], index: 1, kind: output, shape index: {}]
  %v2 = vld [vmem:[%s0] sm:$0xff]
  %3 = xla_tuple %v2
  %4 = xla_tuple %3
  %v5 = vxor.u32 %v2, 2147483648
  %6 = xla_tuple %v5
  %7 = vst [vmem:[%s1] sm:$0xff] %v5
  %s8 = scalar_lea.vmem %s0, 64
  %v9 = vld [vmem:[%s8] sm:$0xff]
  %10 = xla_tuple %v9
  %11 = xla_tuple %10
  %v12 = vxor.u32 %v9, 2147483648
  %13 = xla_tuple %v12
  %s14 = scalar_lea.vmem %s1, 64
  %15 = vst [vmem:[%s14] sm:$0xff] %v12
  %s16 = scalar_lea.vmem %s0, 8
  %v17 = vld [vmem:[%s16] sm:$0xff]
  %18 = xla_tuple %v17
  %19 = xla_tuple %18
  %v20 = vxor.u32 %v17, 2147483648
  %21 = xla_tuple %v20
  %s22 = scalar_lea.vmem %s1, 8
  %23 = vst [vmem:[%s22] sm:$0xff] %v20
  %s24 = scalar_lea.vmem %s0, 72
  %v25 = vld [vmem:[%s24] sm:$0xff]
  %26 = xla_tuple %v25
  %27 = xla_tuple %26
  %v28 = vxor.u32 %v25, 2147483648
  %29 = xla_tuple %v28
  %s30 = scalar_lea.vmem %s1, 72
  %31 = vst [vmem:[%s30] sm:$0xff] %v28
  %s32 = scalar_lea.vmem %s0, 16
  %v33 = vld [vmem:[%s32] sm:$0xff]
  %34 = xla_tuple %v33
  %35 = xla_tuple %34
  %v36 = vxor.u32 %v33, 2147483648
  %37 = xla_tuple %v36
  %s38 = scalar_lea.vmem %s1, 16
  %39 = vst [vmem:[%s38] sm:$0xff] %v36
  %s40 = scalar_lea.vmem %s0, 80
  %v41 = vld [vmem:[%s40] sm:$0xff]
  %42 = xla_tuple %v41
  %43 = xla_tuple %42
  %v44 = vxor.u32 %v41, 2147483648
  %45 = xla_tuple %v44
  %s46 = scalar_lea.vmem %s1, 80
  %47 = vst [vmem:[%s46] sm:$0xff] %v44
  %s48 = scalar_lea.vmem %s0, 24
  %v49 = vld [vmem:[%s48] sm:$0xff]
  %50 = xla_tuple %v49
  %51 = xla_tuple %50
  %v52 = vxor.u32 %v49, 2147483648
  %53 = xla_tuple %v52
  %s54 = scalar_lea.vmem %s1, 24
  %55 = vst [vmem:[%s54] sm:$0xff] %v52
  %s56 = scalar_lea.vmem %s0, 88
  %v57 = vld [vmem:[%s56] sm:$0xff]
  %58 = xla_tuple %v57
  %59 = xla_tuple %58
  %v60 = vxor.u32 %v57, 2147483648
  %61 = xla_tuple %v60
  %s62 = scalar_lea.vmem %s1, 88
  %63 = vst [vmem:[%s62] sm:$0xff] %v60
  %s64 = scalar_lea.vmem %s0, 32
  %v65 = vld [vmem:[%s64] sm:$0xff]
  %66 = xla_tuple %v65
  %67 = xla_tuple %66
  %v68 = vxor.u32 %v65, 2147483648
  %69 = xla_tuple %v68
  %s70 = scalar_lea.vmem %s1, 32
  %71 = vst [vmem:[%s70] sm:$0xff] %v68
  %s72 = scalar_lea.vmem %s0, 96
  %v73 = vld [vmem:[%s72] sm:$0xff]
  %74 = xla_tuple %v73
  %75 = xla_tuple %74
  %v76 = vxor.u32 %v73, 2147483648
  %77 = xla_tuple %v76
  %s78 = scalar_lea.vmem %s1, 96
  %79 = vst [vmem:[%s78] sm:$0xff] %v76
  %s80 = scalar_lea.vmem %s0, 40
  %v81 = vld [vmem:[%s80] sm:$0xff]
  %82 = xla_tuple %v81
  %83 = xla_tuple %82
  %v84 = vxor.u32 %v81, 2147483648
  %85 = xla_tuple %v84
  %s86 = scalar_lea.vmem %s1, 40
  %87 = vst [vmem:[%s86] sm:$0xff] %v84
  %s88 = scalar_lea.vmem %s0, 104
  %v89 = vld [vmem:[%s88] sm:$0xff]
  %90 = xla_tuple %v89
  %91 = xla_tuple %90
  %v92 = vxor.u32 %v89, 2147483648
  %93 = xla_tuple %v92
  %s94 = scalar_lea.vmem %s1, 104
  %95 = vst [vmem:[%s94] sm:$0xff] %v92
  %s96 = scalar_lea.vmem %s0, 48
  %v97 = vld [vmem:[%s96] sm:$0xff]
  %98 = xla_tuple %v97
  %99 = xla_tuple %98
  %v100 = vxor.u32 %v97, 2147483648
  %101 = xla_tuple %v100
  %s102 = scalar_lea.vmem %s1, 48
  %103 = vst [vmem:[%s102] sm:$0xff] %v100
  %s104 = scalar_lea.vmem %s0, 112
  %v105 = vld [vmem:[%s104] sm:$0xff]
  %106 = xla_tuple %v105
  %107 = xla_tuple %106
  %v108 = vxor.u32 %v105, 2147483648
  %109 = xla_tuple %v108
  %s110 = scalar_lea.vmem %s1, 112
  %111 = vst [vmem:[%s110] sm:$0xff] %v108
  %s112 = scalar_lea.vmem %s0, 56
  %v113 = vld [vmem:[%s112] sm:$0xff]
  %114 = xla_tuple %v113
  %115 = xla_tuple %114
  %v116 = vxor.u32 %v113, 2147483648
  %117 = xla_tuple %v116
  %s118 = scalar_lea.vmem %s1, 56
  %119 = vst [vmem:[%s118] sm:$0xff] %v116
  %s120 = scalar_lea.vmem %s0, 120
  %v121 = vld [vmem:[%s120] sm:$0xff]
  %122 = xla_tuple %v121
  %123 = xla_tuple %122
  %v124 = vxor.u32 %v121, 2147483648
  %125 = xla_tuple %v124
  %s126 = scalar_lea.vmem %s1, 120
  %127 = vst [vmem:[%s126] sm:$0xff] %v124

// kernel: _lambda_.10
$region0: #{_lambda_.10}
  #allocation0 [shape = 'u32[]', space=smem, size = 0x4, offset = 0x4, fixed_abs, tag = 'smem constant byte address 0x4 - core index']
  #allocation1 [shape = 'u32[144,128]{1,0:T(1,128)}', space=vmem, size = 0x12000, scoped, tag = 'internal scratch']
  %s0 = inlined_call_operand.vmem [shape: bf16[256,128], index: 0, kind: input, shape index: {}]
  %s1 = inlined_call_operand.vmem [shape: bf16[256,128], index: 1, kind: input, shape index: {}]
  %s2 = inlined_call_operand.vmem [shape: bf16[128,128], index: 2, kind: input, shape index: {}]
  %s3 = inlined_call_operand.vmem [shape: bf16[128,128], index: 3, kind: input, shape index: {}]
  %s4 = inlined_call_operand.vmem [shape: f32[1,128], index: 4, kind: input, shape index: {}]
  %s5 = inlined_call_operand.vmem [shape: bf16[128,128], index: 5, kind: input, shape index: {}]
  %s6 = inlined_call_operand.vmem [shape: f32[1,128], index: 6, kind: input, shape index: {}]
  %s7 = inlined_call_operand.vmem [shape: bf16[256,128], index: 7, kind: output, shape index: {}]
  %s8 = sld [smem:[#allocation0]]
  $region38: #{_lambda_.10} parent=0
    _
  %s10 = ssub.s32 1, %s8
  %s11 = scalar_select 0, %s10, %s8
  // Predicated region
  $region2: #{_lambda_.10} parent=0 // pred_check
    _
  $region3: #{_lambda_.10} parent=0 // pred_check_branch
    %13 = sbr.rel (0) target = $region5
  $region4: #{_lambda_.10} parent=0 // pred_region
    _
  $region5: #{_lambda_.10} parent=0 // pred_fallthru
    _
  // Predicated region
  $region6: #{_lambda_.10} parent=0 // pred_check
    _
  $region7: #{_lambda_.10} parent=0 // pred_check_branch
    %15 = sbr.rel (0) target = $region9
  $region8: #{_lambda_.10} parent=0 // pred_region
    _
  $region9: #{_lambda_.10} parent=0 // pred_fallthru
    _
  // Predicated region
  $region10: #{_lambda_.10} parent=0 // pred_check
    _
  $region11: #{_lambda_.10} parent=0 // pred_check_branch
    %17 = sbr.rel (0) target = $region13
  $region12: #{_lambda_.10} parent=0 // pred_region
    _
  $region13: #{_lambda_.10} parent=0 // pred_fallthru
    _
  // Predicated region
  $region14: #{_lambda_.10} parent=0 // pred_check
    _
  $region15: #{_lambda_.10} parent=0 // pred_check_branch
    %19 = sbr.rel (0) target = $region17
  $region16: #{_lambda_.10} parent=0 // pred_region
    _
  $region17: #{_lambda_.10} parent=0 // pred_fallthru
    _
  // Predicated region
  $region18: #{_lambda_.10} parent=0 // pred_check
    _
  $region19: #{_lambda_.10} parent=0 // pred_check_branch
    %21 = sbr.rel (0) target = $region21
  $region20: #{_lambda_.10} parent=0 // pred_region
    _
  $region21: #{_lambda_.10} parent=0 // pred_fallthru
    _
  // Predicated region
  $region22: #{_lambda_.10} parent=0 // pred_check
    _
  $region23: #{_lambda_.10} parent=0 // pred_check_branch
    %23 = sbr.rel (0) target = $region25
  $region24: #{_lambda_.10} parent=0 // pred_region
    _
  $region25: #{_lambda_.10} parent=0 // pred_fallthru
    _
  // Predicated region
  $region26: #{_lambda_.10} parent=0 // pred_check
    _
  $region27: #{_lambda_.10} parent=0 // pred_check_branch
    %25 = sbr.rel (0) target = $region29
  $region28: #{_lambda_.10} parent=0 // pred_region
    _
  $region29: #{_lambda_.10} parent=0 // pred_fallthru
    _
  %v27 = vld [vmem:[%s0] sm:$0xf]
  %v28 = vld [vmem:[%s0 + $0x4] sm:$0xf]
  %v29 = vld [vmem:[%s0 + $0x8] sm:$0xf]
  %v30 = vld [vmem:[%s0 + $0xc] sm:$0xf]
  %v31 = vld [vmem:[%s0 + $0x10] sm:$0xf]
  %v32 = vld [vmem:[%s0 + $0x14] sm:$0xf]
  %v33 = vld [vmem:[%s0 + $0x18] sm:$0xf]
  %v34 = vld [vmem:[%s0 + $0x1c] sm:$0xf]
  %v35 = vld [vmem:[%s0 + $0x20] sm:$0xf]
  %v36 = vld [vmem:[%s0 + $0x24] sm:$0xf]
  %v37 = vld [vmem:[%s0 + $0x28] sm:$0xf]
  %v38 = vld [vmem:[%s0 + $0x2c] sm:$0xf]
  %v39 = vld [vmem:[%s0 + $0x30] sm:$0xf]
  %v40 = vld [vmem:[%s0 + $0x34] sm:$0xf]
  %v41 = vld [vmem:[%s0 + $0x38] sm:$0xf]
  %v42 = vld [vmem:[%s0 + $0x3c] sm:$0xf]
  %v43 = vld [vmem:[%s0 + $0x40] sm:$0xf]
  %v44 = vld [vmem:[%s0 + $0x44] sm:$0xf]
  %v45 = vld [vmem:[%s0 + $0x48] sm:$0xf]
  %v46 = vld [vmem:[%s0 + $0x4c] sm:$0xf]
  %v47 = vld [vmem:[%s0 + $0x50] sm:$0xf]
  %v48 = vld [vmem:[%s0 + $0x54] sm:$0xf]
  %v49 = vld [vmem:[%s0 + $0x58] sm:$0xf]
  %v50 = vld [vmem:[%s0 + $0x5c] sm:$0xf]
  %v51 = vld [vmem:[%s0 + $0x60] sm:$0xf]
  %v52 = vld [vmem:[%s0 + $0x64] sm:$0xf]
  %v53 = vld [vmem:[%s0 + $0x68] sm:$0xf]
  %v54 = vld [vmem:[%s0 + $0x6c] sm:$0xf]
  %v55 = vld [vmem:[%s0 + $0x70] sm:$0xf]
  %v56 = vld [vmem:[%s0 + $0x74] sm:$0xf]
  %v57 = vld [vmem:[%s0 + $0x78] sm:$0xf]
  %v58 = vld [vmem:[%s0 + $0x7c] sm:$0xf]
  %v59 = vld [vmem:[%s2] sm:$0xf]
  %v60 = vld [vmem:[%s2 + $0x4] sm:$0xf]
  %v61 = vld [vmem:[%s2 + $0x8] sm:$0xf]
  %v62 = vld [vmem:[%s2 + $0xc] sm:$0xf]
  %v63 = vld [vmem:[%s2 + $0x10] sm:$0xf]
  %v64 = vld [vmem:[%s2 + $0x14] sm:$0xf]
  %v65 = vld [vmem:[%s2 + $0x18] sm:$0xf]
  %v66 = vld [vmem:[%s2 + $0x1c] sm:$0xf]
  %v67 = vld [vmem:[%s2 + $0x20] sm:$0xf]
  %v68 = vld [vmem:[%s2 + $0x24] sm:$0xf]
  %v69 = vld [vmem:[%s2 + $0x28] sm:$0xf]
  %v70 = vld [vmem:[%s2 + $0x2c] sm:$0xf]
  %v71 = vld [vmem:[%s2 + $0x30] sm:$0xf]
  %v72 = vld [vmem:[%s2 + $0x34] sm:$0xf]
  %v73 = vld [vmem:[%s2 + $0x38] sm:$0xf]
  %v74 = vld [vmem:[%s2 + $0x3c] sm:$0xf]
  %v75 = vld [vmem:[%s1] sm:$0xf]
  %v76 = vld [vmem:[%s1 + $0x4] sm:$0xf]
  %v77 = vld [vmem:[%s1 + $0x8] sm:$0xf]
  %v78 = vld [vmem:[%s1 + $0xc] sm:$0xf]
  %v79 = vld [vmem:[%s1 + $0x10] sm:$0xf]
  %v80 = vld [vmem:[%s1 + $0x14] sm:$0xf]
  %v81 = vld [vmem:[%s1 + $0x18] sm:$0xf]
  %v82 = vld [vmem:[%s1 + $0x1c] sm:$0xf]
  %v83 = vld [vmem:[%s1 + $0x20] sm:$0xf]
  %v84 = vld [vmem:[%s1 + $0x24] sm:$0xf]
  %v85 = vld [vmem:[%s1 + $0x28] sm:$0xf]
  %v86 = vld [vmem:[%s1 + $0x2c] sm:$0xf]
  %v87 = vld [vmem:[%s1 + $0x30] sm:$0xf]
  %v88 = vld [vmem:[%s1 + $0x34] sm:$0xf]
  %v89 = vld [vmem:[%s1 + $0x38] sm:$0xf]
  %v90 = vld [vmem:[%s1 + $0x3c] sm:$0xf]
  %v91 = vld [vmem:[%s1 + $0x40] sm:$0xf]
  %v92 = vld [vmem:[%s1 + $0x44] sm:$0xf]
  %v93 = vld [vmem:[%s1 + $0x48] sm:$0xf]
  %v94 = vld [vmem:[%s1 + $0x4c] sm:$0xf]
  %v95 = vld [vmem:[%s1 + $0x50] sm:$0xf]
  %v96 = vld [vmem:[%s1 + $0x54] sm:$0xf]
  %v97 = vld [vmem:[%s1 + $0x58] sm:$0xf]
  %v98 = vld [vmem:[%s1 + $0x5c] sm:$0xf]
  %v99 = vld [vmem:[%s1 + $0x60] sm:$0xf]
  %v100 = vld [vmem:[%s1 + $0x64] sm:$0xf]
  %v101 = vld [vmem:[%s1 + $0x68] sm:$0xf]
  %v102 = vld [vmem:[%s1 + $0x6c] sm:$0xf]
  %v103 = vld [vmem:[%s1 + $0x70] sm:$0xf]
  %v104 = vld [vmem:[%s1 + $0x74] sm:$0xf]
  %v105 = vld [vmem:[%s1 + $0x78] sm:$0xf]
  %v106 = vld [vmem:[%s1 + $0x7c] sm:$0xf]
  %v107 = vld [vmem:[%s3] sm:$0xf]
  %v108 = vld [vmem:[%s3 + $0x4] sm:$0xf]
  %v109 = vld [vmem:[%s3 + $0x8] sm:$0xf]
  %v110 = vld [vmem:[%s3 + $0xc] sm:$0xf]
  %v111 = vld [vmem:[%s3 + $0x10] sm:$0xf]
  %v112 = vld [vmem:[%s3 + $0x14] sm:$0xf]
  %v113 = vld [vmem:[%s3 + $0x18] sm:$0xf]
  %v114 = vld [vmem:[%s3 + $0x1c] sm:$0xf]
  %v115 = vld [vmem:[%s3 + $0x20] sm:$0xf]
  %v116 = vld [vmem:[%s3 + $0x24] sm:$0xf]
  %v117 = vld [vmem:[%s3 + $0x28] sm:$0xf]
  %v118 = vld [vmem:[%s3 + $0x2c] sm:$0xf]
  %v119 = vld [vmem:[%s3 + $0x30] sm:$0xf]
  %v120 = vld [vmem:[%s3 + $0x34] sm:$0xf]
  %v121 = vld [vmem:[%s3 + $0x38] sm:$0xf]
  %v122 = vld [vmem:[%s3 + $0x3c] sm:$0xf]
  %v155 = vunpack.c.l.b16 %v75
  %v156 = vunpack.c.l.b16 %v76
  %v157 = vunpack.c.l.b16 %v77
  %v158 = vunpack.c.l.b16 %v78
  %v159 = vunpack.c.l.b16 %v79
  %v160 = vunpack.c.l.b16 %v80
  %v161 = vunpack.c.l.b16 %v81
  %v162 = vunpack.c.l.b16 %v82
  %v163 = vunpack.c.l.b16 %v83
  %v164 = vunpack.c.l.b16 %v84
  %v165 = vunpack.c.l.b16 %v85
  %v166 = vunpack.c.l.b16 %v86
  %v167 = vunpack.c.l.b16 %v87
  %v168 = vunpack.c.l.b16 %v88
  %v169 = vunpack.c.l.b16 %v89
  %v170 = vunpack.c.l.b16 %v90
  %v171 = vunpack.c.l.b16 %v91
  %v172 = vunpack.c.l.b16 %v92
  %v173 = vunpack.c.l.b16 %v93
  %v174 = vunpack.c.l.b16 %v94
  %v175 = vunpack.c.l.b16 %v95
  %v176 = vunpack.c.l.b16 %v96
  %v177 = vunpack.c.l.b16 %v97
  %v178 = vunpack.c.l.b16 %v98
  %v179 = vunpack.c.l.b16 %v99
  %v180 = vunpack.c.l.b16 %v100
  %v181 = vunpack.c.l.b16 %v101
  %v182 = vunpack.c.l.b16 %v102
  %v183 = vunpack.c.l.b16 %v103
  %v184 = vunpack.c.l.b16 %v104
  %v185 = vunpack.c.l.b16 %v105
  %v186 = vunpack.c.l.b16 %v106
  %v187 = vpack.c.b16 %v156, %v155
  %v188 = vpack.c.b16 %v158, %v157
  %v189 = vpack.c.b16 %v160, %v159
  %v190 = vpack.c.b16 %v162, %v161
  %v191 = vpack.c.b16 %v164, %v163
  %v192 = vpack.c.b16 %v166, %v165
  %v193 = vpack.c.b16 %v168, %v167
  %v194 = vpack.c.b16 %v170, %v169
  %v195 = vpack.c.b16 %v172, %v171
  %v196 = vpack.c.b16 %v174, %v173
  %v197 = vpack.c.b16 %v176, %v175
  %v198 = vpack.c.b16 %v178, %v177
  %v199 = vpack.c.b16 %v180, %v179
  %v200 = vpack.c.b16 %v182, %v181
  %v201 = vpack.c.b16 %v184, %v183
  %v202 = vpack.c.b16 %v186, %v185
  %v235 = vunpack.c.l.b16 %v107
  %v236 = vunpack.c.l.b16 %v108
  %v237 = vunpack.c.l.b16 %v109
  %v238 = vunpack.c.l.b16 %v110
  %v239 = vunpack.c.l.b16 %v111
  %v240 = vunpack.c.l.b16 %v112
  %v241 = vunpack.c.l.b16 %v113
  %v242 = vunpack.c.l.b16 %v114
  %v243 = vunpack.c.l.b16 %v115
  %v244 = vunpack.c.l.b16 %v116
  %v245 = vunpack.c.l.b16 %v117
  %v246 = vunpack.c.l.b16 %v118
  %v247 = vunpack.c.l.b16 %v119
  %v248 = vunpack.c.l.b16 %v120
  %v249 = vunpack.c.l.b16 %v121
  %v250 = vunpack.c.l.b16 %v122
  %v251 = vpack.c.b16 %v236, %v235
  %v252 = vpack.c.b16 %v238, %v237
  %v253 = vpack.c.b16 %v240, %v239
  %v254 = vpack.c.b16 %v242, %v241
  %v255 = vpack.c.b16 %v244, %v243
  %v256 = vpack.c.b16 %v246, %v245
  %v257 = vpack.c.b16 %v248, %v247
  %v258 = vpack.c.b16 %v250, %v249
  %267 = vmatprep.subr.bf16.mxu0 0
  %268 = vmatpush1.bf16.msra.mxu0 %v251
  %269 = vmatprep.subr.bf16.mxu0 0
  %270 = vmatpush1.bf16.msra.mxu0 %v252
  %271 = vmatprep.subr.bf16.mxu0 0
  %272 = vmatpush1.bf16.msra.mxu0 %v253
  %273 = vmatprep.subr.bf16.mxu0 0
  %274 = vmatpush1.bf16.msra.mxu0 %v254
  %275 = vmatprep.subr.bf16.mxu0 0
  %276 = vmatpush1.bf16.msra.mxu0 %v255
  %277 = vmatprep.subr.bf16.mxu0 0
  %278 = vmatpush1.bf16.msra.mxu0 %v256
  %279 = vmatprep.subr.bf16.mxu0 0
  %280 = vmatpush1.bf16.msra.mxu0 %v257
  %281 = vmatprep.subr.bf16.mxu0 0
  %282 = vmatpush1.bf16.msra.mxu0 %v258
  %283 = vmatprep.subr.bf16.mxu0 0
  %284 = vmatpush1.bf16.msra.mxu0 0
  %285 = vmatprep.subr.bf16.mxu0 0
  %286 = vmatpush1.bf16.msra.mxu0 0
  %287 = vmatprep.subr.bf16.mxu0 0
  %288 = vmatpush1.bf16.msra.mxu0 0
  %289 = vmatprep.subr.bf16.mxu0 0
  %290 = vmatpush1.bf16.msra.mxu0 0
  %291 = vmatprep.subr.bf16.mxu0 0
  %292 = vmatpush1.bf16.msra.mxu0 0
  %293 = vmatprep.subr.bf16.mxu0 0
  %294 = vmatpush1.bf16.msra.mxu0 0
  %295 = vmatprep.subr.bf16.mxu0 0
  %296 = vmatpush1.bf16.msra.mxu0 0
  %297 = vmatprep.subr.bf16.mxu0 0
  %298 = vmatpush1.bf16.msra.mxu0 0
  %299 = vmatprep.mubr.bf16.mxu0 0
  %300 = vmatmul.mubr.bf16.gmra.mrb[0].mxu0 %v187
  %v301 = vpop.f32.mrb[0].mxu0
  %v302 = vadd.f32 0.0, %v301
  %v303 = vpop.f32.mrb[0].mxu0
  %v304 = vpop.f32.mrb[0].mxu0
  %v305 = vadd.f32 0.0, %v304
  %v306 = vpop.f32.mrb[0].mxu0
  %307 = vmatprep.mubr.bf16.mxu0 0
  %308 = vmatmul.mubr.bf16.gmra.mrb[0].mxu0 %v188
  %v309 = vpop.f32.mrb[0].mxu0
  %v310 = vadd.f32 0.0, %v309
  %v311 = vpop.f32.mrb[0].mxu0
  %v312 = vpop.f32.mrb[0].mxu0
  %v313 = vadd.f32 0.0, %v312
  %v314 = vpop.f32.mrb[0].mxu0
  %315 = vmatprep.mubr.bf16.mxu0 0
  %316 = vmatmul.mubr.bf16.gmra.mrb[0].mxu0 %v189
  %v317 = vpop.f32.mrb[0].mxu0
  %v318 = vadd.f32 0.0, %v317
  %v319 = vpop.f32.mrb[0].mxu0
  %v320 = vpop.f32.mrb[0].mxu0
  %v321 = vadd.f32 0.0, %v320
  %v322 = vpop.f32.mrb[0].mxu0
  %323 = vmatprep.mubr.bf16.mxu0 0
  %324 = vmatmul.mubr.bf16.gmra.mrb[0].mxu0 %v190
  %v325 = vpop.f32.mrb[0].mxu0
  %v326 = vadd.f32 0.0, %v325
  %v327 = vpop.f32.mrb[0].mxu0
  %v328 = vpop.f32.mrb[0].mxu0
  %v329 = vadd.f32 0.0, %v328
  %v330 = vpop.f32.mrb[0].mxu0
  %331 = vmatprep.mubr.bf16.mxu0 0
  %332 = vmatmul.mubr.bf16.gmra.mrb[0].mxu0 %v191
  %v333 = vpop.f32.mrb[0].mxu0
  %v334 = vadd.f32 0.0, %v333
  %v335 = vpop.f32.mrb[0].mxu0
  %v336 = vpop.f32.mrb[0].mxu0
  %v337 = vadd.f32 0.0, %v336
  %v338 = vpop.f32.mrb[0].mxu0
  %339 = vmatprep.mubr.bf16.mxu0 0
  %340 = vmatmul.mubr.bf16.gmra.mrb[0].mxu0 %v192
  %v341 = vpop.f32.mrb[0].mxu0
  %v342 = vadd.f32 0.0, %v341
  %v343 = vpop.f32.mrb[0].mxu0
  %v344 = vpop.f32.mrb[0].mxu0
  %v345 = vadd.f32 0.0, %v344
  %v346 = vpop.f32.mrb[0].mxu0
  %347 = vmatprep.mubr.bf16.mxu0 0
  %348 = vmatmul.mubr.bf16.gmra.mrb[0].mxu0 %v193
  %v349 = vpop.f32.mrb[0].mxu0
  %v350 = vadd.f32 0.0, %v349
  %v351 = vpop.f32.mrb[0].mxu0
  %v352 = vpop.f32.mrb[0].mxu0
  %v353 = vadd.f32 0.0, %v352
  %v354 = vpop.f32.mrb[0].mxu0
  %355 = vmatprep.mubr.bf16.mxu0 0
  %356 = vmatmul.mubr.bf16.gmra.mrb[0].mxu0 %v194
  %v357 = vpop.f32.mrb[0].mxu0
  %v358 = vadd.f32 0.0, %v357
  %v359 = vpop.f32.mrb[0].mxu0
  %v360 = vpop.f32.mrb[0].mxu0
  %v361 = vadd.f32 0.0, %v360
  %v362 = vpop.f32.mrb[0].mxu0
  %363 = vmatprep.mubr.bf16.mxu0 0
  %364 = vmatmul.mubr.bf16.gmra.mrb[0].mxu0 %v195
  %v365 = vpop.f32.mrb[0].mxu0
  %v366 = vadd.f32 0.0, %v365
  %v367 = vpop.f32.mrb[0].mxu0
  %v368 = vpop.f32.mrb[0].mxu0
  %v369 = vadd.f32 0.0, %v368
  %v370 = vpop.f32.mrb[0].mxu0
  %371 = vmatprep.mubr.bf16.mxu0 0
  %372 = vmatmul.mubr.bf16.gmra.mrb[0].mxu0 %v196
  %v373 = vpop.f32.mrb[0].mxu0
  %v374 = vadd.f32 0.0, %v373
  %v375 = vpop.f32.mrb[0].mxu0
  %v376 = vpop.f32.mrb[0].mxu0
  %v377 = vadd.f32 0.0, %v376
  %v378 = vpop.f32.mrb[0].mxu0
  %379 = vmatprep.mubr.bf16.mxu0 0
  %380 = vmatmul.mubr.bf16.gmra.mrb[0].mxu0 %v197
  %v381 = vpop.f32.mrb[0].mxu0
  %v382 = vadd.f32 0.0, %v381
  %v383 = vpop.f32.mrb[0].mxu0
  %v384 = vpop.f32.mrb[0].mxu0
  %v385 = vadd.f32 0.0, %v384
  %v386 = vpop.f32.mrb[0].mxu0
  %387 = vmatprep.mubr.bf16.mxu0 0
  %388 = vmatmul.mubr.bf16.gmra.mrb[0].mxu0 %v198
  %v389 = vpop.f32.mrb[0].mxu0
  %v390 = vadd.f32 0.0, %v389
  %v391 = vpop.f32.mrb[0].mxu0
  %v392 = vpop.f32.mrb[0].mxu0
  %v393 = vadd.f32 0.0, %v392
  %v394 = vpop.f32.mrb[0].mxu0
  %395 = vmatprep.mubr.bf16.mxu0 0
  %396 = vmatmul.mubr.bf16.gmra.mrb[0].mxu0 %v199
  %v397 = vpop.f32.mrb[0].mxu0
  %v398 = vadd.f32 0.0, %v397
  %v399 = vpop.f32.mrb[0].mxu0
  %v400 = vpop.f32.mrb[0].mxu0
  %v401 = vadd.f32 0.0, %v400
  %v402 = vpop.f32.mrb[0].mxu0
  %403 = vmatprep.mubr.bf16.mxu0 0
  %404 = vmatmul.mubr.bf16.gmra.mrb[0].mxu0 %v200
  %v405 = vpop.f32.mrb[0].mxu0
  %v406 = vadd.f32 0.0, %v405
  %v407 = vpop.f32.mrb[0].mxu0
  %v408 = vpop.f32.mrb[0].mxu0
  %v409 = vadd.f32 0.0, %v408
  %v410 = vpop.f32.mrb[0].mxu0
  %411 = vmatprep.mubr.bf16.mxu0 0
  %412 = vmatmul.mubr.bf16.gmra.mrb[0].mxu0 %v201
  %v413 = vpop.f32.mrb[0].mxu0
  %v414 = vadd.f32 0.0, %v413
  %v415 = vpop.f32.mrb[0].mxu0
  %v416 = vpop.f32.mrb[0].mxu0
  %v417 = vadd.f32 0.0, %v416
  %v418 = vpop.f32.mrb[0].mxu0
  %419 = vmatprep.mubr.bf16.mxu0 0
  %420 = vmatmul.mubr.bf16.gmra.mrb[0].mxu0 %v202
  %v421 = vpop.f32.mrb[0].mxu0
  %v422 = vadd.f32 0.0, %v421
  %v423 = vpop.f32.mrb[0].mxu0
  %v424 = vpop.f32.mrb[0].mxu0
  %v425 = vadd.f32 0.0, %v424
  %v426 = vpop.f32.mrb[0].mxu0
  %427 = vdwg.mxu0
  %v460 = vunpack.c.l.b16 %v27
  %v461 = vunpack.c.l.b16 %v28
  %v462 = vunpack.c.l.b16 %v29
  %v463 = vunpack.c.l.b16 %v30
  %v464 = vunpack.c.l.b16 %v31
  %v465 = vunpack.c.l.b16 %v32
  %v466 = vunpack.c.l.b16 %v33
  %v467 = vunpack.c.l.b16 %v34
  %v468 = vunpack.c.l.b16 %v35
  %v469 = vunpack.c.l.b16 %v36
  %v470 = vunpack.c.l.b16 %v37
  %v471 = vunpack.c.l.b16 %v38
  %v472 = vunpack.c.l.b16 %v39
  %v473 = vunpack.c.l.b16 %v40
  %v474 = vunpack.c.l.b16 %v41
  %v475 = vunpack.c.l.b16 %v42
  %v476 = vunpack.c.l.b16 %v43
  %v477 = vunpack.c.l.b16 %v44
  %v478 = vunpack.c.l.b16 %v45
  %v479 = vunpack.c.l.b16 %v46
  %v480 = vunpack.c.l.b16 %v47
  %v481 = vunpack.c.l.b16 %v48
  %v482 = vunpack.c.l.b16 %v49
  %v483 = vunpack.c.l.b16 %v50
  %v484 = vunpack.c.l.b16 %v51
  %v485 = vunpack.c.l.b16 %v52
  %v486 = vunpack.c.l.b16 %v53
  %v487 = vunpack.c.l.b16 %v54
  %v488 = vunpack.c.l.b16 %v55
  %v489 = vunpack.c.l.b16 %v56
  %v490 = vunpack.c.l.b16 %v57
  %v491 = vunpack.c.l.b16 %v58
  %v492 = vpack.c.b16 %v461, %v460
  %v493 = vpack.c.b16 %v463, %v462
  %v494 = vpack.c.b16 %v465, %v464
  %v495 = vpack.c.b16 %v467, %v466
  %v496 = vpack.c.b16 %v469, %v468
  %v497 = vpack.c.b16 %v471, %v470
  %v498 = vpack.c.b16 %v473, %v472
  %v499 = vpack.c.b16 %v475, %v474
  %v500 = vpack.c.b16 %v477, %v476
  %v501 = vpack.c.b16 %v479, %v478
  %v502 = vpack.c.b16 %v481, %v480
  %v503 = vpack.c.b16 %v483, %v482
  %v504 = vpack.c.b16 %v485, %v484
  %v505 = vpack.c.b16 %v487, %v486
  %v506 = vpack.c.b16 %v489, %v488
  %v507 = vpack.c.b16 %v491, %v490
  %v540 = vunpack.c.l.b16 %v59
  %v541 = vunpack.c.l.b16 %v60
  %v542 = vunpack.c.l.b16 %v61
  %v543 = vunpack.c.l.b16 %v62
  %v544 = vunpack.c.l.b16 %v63
  %v545 = vunpack.c.l.b16 %v64
  %v546 = vunpack.c.l.b16 %v65
  %v547 = vunpack.c.l.b16 %v66
  %v548 = vunpack.c.l.b16 %v67
  %v549 = vunpack.c.l.b16 %v68
  %v550 = vunpack.c.l.b16 %v69
  %v551 = vunpack.c.l.b16 %v70
  %v552 = vunpack.c.l.b16 %v71
  %v553 = vunpack.c.l.b16 %v72
  %v554 = vunpack.c.l.b16 %v73
  %v555 = vunpack.c.l.b16 %v74
  %v556 = vpack.c.b16 %v541, %v540
  %v557 = vpack.c.b16 %v543, %v542
  %v558 = vpack.c.b16 %v545, %v544
  %v559 = vpack.c.b16 %v547, %v546
  %v560 = vpack.c.b16 %v549, %v548
  %v561 = vpack.c.b16 %v551, %v550
  %v562 = vpack.c.b16 %v553, %v552
  %v563 = vpack.c.b16 %v555, %v554
  %572 = vmatprep.subr.bf16.mxu0 0
  %573 = vmatpush1.bf16.msra.mxu0 %v556
  %574 = vmatprep.subr.bf16.mxu0 0
  %575 = vmatpush1.bf16.msra.mxu0 %v557
  %576 = vmatprep.subr.bf16.mxu0 0
  %577 = vmatpush1.bf16.msra.mxu0 %v558
  %578 = vmatprep.subr.bf16.mxu0 0
  %579 = vmatpush1.bf16.msra.mxu0 %v559
  %580 = vmatprep.subr.bf16.mxu0 0
  %581 = vmatpush1.bf16.msra.mxu0 %v560
  %582 = vmatprep.subr.bf16.mxu0 0
  %583 = vmatpush1.bf16.msra.mxu0 %v561
  %584 = vmatprep.subr.bf16.mxu0 0
  %585 = vmatpush1.bf16.msra.mxu0 %v562
  %586 = vmatprep.subr.bf16.mxu0 0
  %587 = vmatpush1.bf16.msra.mxu0 %v563
  %588 = vmatprep.subr.bf16.mxu0 0
  %589 = vmatpush1.bf16.msra.mxu0 0
  %590 = vmatprep.subr.bf16.mxu0 0
  %591 = vmatpush1.bf16.msra.mxu0 0
  %592 = vmatprep.subr.bf16.mxu0 0
  %593 = vmatpush1.bf16.msra.mxu0 0
  %594 = vmatprep.subr.bf16.mxu0 0
  %595 = vmatpush1.bf16.msra.mxu0 0
  %596 = vmatprep.subr.bf16.mxu0 0
  %597 = vmatpush1.bf16.msra.mxu0 0
  %598 = vmatprep.subr.bf16.mxu0 0
  %599 = vmatpush1.bf16.msra.mxu0 0
  %600 = vmatprep.subr.bf16.mxu0 0
  %601 = vmatpush1.bf16.msra.mxu0 0
  %602 = vmatprep.subr.bf16.mxu0 0
  %603 = vmatpush1.bf16.msra.mxu0 0
  %604 = vmatprep.mubr.bf16.mxu0 0
  %605 = vmatmul.mubr.bf16.gmra.mrb[0].mxu0 %v492
  %v606 = vpop.f32.mrb[0].mxu0
  %v607 = vadd.f32 %v302, %v606
  %v608 = vpop.f32.mrb[0].mxu0
  %v609 = vpop.f32.mrb[0].mxu0
  %v610 = vadd.f32 %v305, %v609
  %v611 = vpop.f32.mrb[0].mxu0
  %612 = vmatprep.mubr.bf16.mxu0 0
  %613 = vmatmul.mubr.bf16.gmra.mrb[0].mxu0 %v493
  %v614 = vpop.f32.mrb[0].mxu0
  %v615 = vadd.f32 %v310, %v614
  %v616 = vpop.f32.mrb[0].mxu0
  %v617 = vpop.f32.mrb[0].mxu0
  %v618 = vadd.f32 %v313, %v617
  %v619 = vpop.f32.mrb[0].mxu0
  %620 = vmatprep.mubr.bf16.mxu0 0
  %621 = vmatmul.mubr.bf16.gmra.mrb[0].mxu0 %v494
  %v622 = vpop.f32.mrb[0].mxu0
  %v623 = vadd.f32 %v318, %v622
  %v624 = vpop.f32.mrb[0].mxu0
  %v625 = vpop.f32.mrb[0].mxu0
  %v626 = vadd.f32 %v321, %v625
  %v627 = vpop.f32.mrb[0].mxu0
  %628 = vmatprep.mubr.bf16.mxu0 0
  %629 = vmatmul.mubr.bf16.gmra.mrb[0].mxu0 %v495
  %v630 = vpop.f32.mrb[0].mxu0
  %v631 = vadd.f32 %v326, %v630
  %v632 = vpop.f32.mrb[0].mxu0
  %v633 = vpop.f32.mrb[0].mxu0
  %v634 = vadd.f32 %v329, %v633
  %v635 = vpop.f32.mrb[0].mxu0
  %636 = vmatprep.mubr.bf16.mxu0 0
  %637 = vmatmul.mubr.bf16.gmra.mrb[0].mxu0 %v496
  %v638 = vpop.f32.mrb[0].mxu0
  %v639 = vadd.f32 %v334, %v638
  %v640 = vpop.f32.mrb[0].mxu0
  %v641 = vpop.f32.mrb[0].mxu0
  %v642 = vadd.f32 %v337, %v641
  %v643 = vpop.f32.mrb[0].mxu0
  %644 = vmatprep.mubr.bf16.mxu0 0
  %645 = vmatmul.mubr.bf16.gmra.mrb[0].mxu0 %v497
  %v646 = vpop.f32.mrb[0].mxu0
  %v647 = vadd.f32 %v342, %v646
  %v648 = vpop.f32.mrb[0].mxu0
  %v649 = vpop.f32.mrb[0].mxu0
  %v650 = vadd.f32 %v345, %v649
  %v651 = vpop.f32.mrb[0].mxu0
  %652 = vmatprep.mubr.bf16.mxu0 0
  %653 = vmatmul.mubr.bf16.gmra.mrb[0].mxu0 %v498
  %v654 = vpop.f32.mrb[0].mxu0
  %v655 = vadd.f32 %v350, %v654
  %v656 = vpop.f32.mrb[0].mxu0
  %v657 = vpop.f32.mrb[0].mxu0
  %v658 = vadd.f32 %v353, %v657
  %v659 = vpop.f32.mrb[0].mxu0
  %660 = vmatprep.mubr.bf16.mxu0 0
  %661 = vmatmul.mubr.bf16.gmra.mrb[0].mxu0 %v499
  %v662 = vpop.f32.mrb[0].mxu0
  %v663 = vadd.f32 %v358, %v662
  %v664 = vpop.f32.mrb[0].mxu0
  %v665 = vpop.f32.mrb[0].mxu0
  %v666 = vadd.f32 %v361, %v665
  %v667 = vpop.f32.mrb[0].mxu0
  %668 = vmatprep.mubr.bf16.mxu0 0
  %669 = vmatmul.mubr.bf16.gmra.mrb[0].mxu0 %v500
  %v670 = vpop.f32.mrb[0].mxu0
  %v671 = vadd.f32 %v366, %v670
  %v672 = vpop.f32.mrb[0].mxu0
  %v673 = vpop.f32.mrb[0].mxu0
  %v674 = vadd.f32 %v369, %v673
  %v675 = vpop.f32.mrb[0].mxu0
  %676 = vmatprep.mubr.bf16.mxu0 0
  %677 = vmatmul.mubr.bf16.gmra.mrb[0].mxu0 %v501
  %v678 = vpop.f32.mrb[0].mxu0
  %v679 = vadd.f32 %v374, %v678
  %v680 = vpop.f32.mrb[0].mxu0
  %v681 = vpop.f32.mrb[0].mxu0
  %v682 = vadd.f32 %v377, %v681
  %v683 = vpop.f32.mrb[0].mxu0
  %684 = vmatprep.mubr.bf16.mxu0 0
  %685 = vmatmul.mubr.bf16.gmra.mrb[0].mxu0 %v502
  %v686 = vpop.f32.mrb[0].mxu0
  %v687 = vadd.f32 %v382, %v686
  %v688 = vpop.f32.mrb[0].mxu0
  %v689 = vpop.f32.mrb[0].mxu0
  %v690 = vadd.f32 %v385, %v689
  %v691 = vpop.f32.mrb[0].mxu0
  %692 = vmatprep.mubr.bf16.mxu0 0
  %693 = vmatmul.mubr.bf16.gmra.mrb[0].mxu0 %v503
  %v694 = vpop.f32.mrb[0].mxu0
  %v695 = vadd.f32 %v390, %v694
  %v696 = vpop.f32.mrb[0].mxu0
  %v697 = vpop.f32.mrb[0].mxu0
  %v698 = vadd.f32 %v393, %v697
  %v699 = vpop.f32.mrb[0].mxu0
  %700 = vmatprep.mubr.bf16.mxu0 0
  %701 = vmatmul.mubr.bf16.gmra.mrb[0].mxu0 %v504
  %v702 = vpop.f32.mrb[0].mxu0
  %v703 = vadd.f32 %v398, %v702
  %v704 = vpop.f32.mrb[0].mxu0
  %v705 = vpop.f32.mrb[0].mxu0
  %v706 = vadd.f32 %v401, %v705
  %v707 = vpop.f32.mrb[0].mxu0
  %708 = vmatprep.mubr.bf16.mxu0 0
  %709 = vmatmul.mubr.bf16.gmra.mrb[0].mxu0 %v505
  %v710 = vpop.f32.mrb[0].mxu0
  %v711 = vadd.f32 %v406, %v710
  %v712 = vpop.f32.mrb[0].mxu0
  %v713 = vpop.f32.mrb[0].mxu0
  %v714 = vadd.f32 %v409, %v713
  %v715 = vpop.f32.mrb[0].mxu0
  %716 = vmatprep.mubr.bf16.mxu0 0
  %717 = vmatmul.mubr.bf16.gmra.mrb[0].mxu0 %v506
  %v718 = vpop.f32.mrb[0].mxu0
  %v719 = vadd.f32 %v414, %v718
  %v720 = vpop.f32.mrb[0].mxu0
  %v721 = vpop.f32.mrb[0].mxu0
  %v722 = vadd.f32 %v417, %v721
  %v723 = vpop.f32.mrb[0].mxu0
  %724 = vmatprep.mubr.bf16.mxu0 0
  %725 = vmatmul.mubr.bf16.gmra.mrb[0].mxu0 %v507
  %v726 = vpop.f32.mrb[0].mxu0
  %v727 = vadd.f32 %v422, %v726
  %v728 = vpop.f32.mrb[0].mxu0
  %v729 = vpop.f32.mrb[0].mxu0
  %v730 = vadd.f32 %v425, %v729
  %v731 = vpop.f32.mrb[0].mxu0
  %732 = vdwg.mxu0
  %v733 = vld [vmem:[%s4] sm:$0x1]
  %v735 = vlaneseq
  %v736 = vshrl.u32 %v735, 7
  %v737 = vsub.s32 0, %v736
  %v738 = vrot.slane %v733, %v737
  %v740 = vadd.f32 %v607, %v738
  %v741 = vadd.f32 %v610, %v738
  %v742 = vadd.f32 %v615, %v738
  %v743 = vadd.f32 %v618, %v738
  %v744 = vadd.f32 %v623, %v738
  %v745 = vadd.f32 %v626, %v738
  %v746 = vadd.f32 %v631, %v738
  %v747 = vadd.f32 %v634, %v738
  %v748 = vadd.f32 %v639, %v738
  %v749 = vadd.f32 %v642, %v738
  %v750 = vadd.f32 %v647, %v738
  %v751 = vadd.f32 %v650, %v738
  %v752 = vadd.f32 %v655, %v738
  %v753 = vadd.f32 %v658, %v738
  %v754 = vadd.f32 %v663, %v738
  %v755 = vadd.f32 %v666, %v738
  %v756 = vadd.f32 %v671, %v738
  %v757 = vadd.f32 %v674, %v738
  %v758 = vadd.f32 %v679, %v738
  %v759 = vadd.f32 %v682, %v738
  %v760 = vadd.f32 %v687, %v738
  %v761 = vadd.f32 %v690, %v738
  %v762 = vadd.f32 %v695, %v738
  %v763 = vadd.f32 %v698, %v738
  %v764 = vadd.f32 %v703, %v738
  %v765 = vadd.f32 %v706, %v738
  %v766 = vadd.f32 %v711, %v738
  %v767 = vadd.f32 %v714, %v738
  %v768 = vadd.f32 %v719, %v738
  %v769 = vadd.f32 %v722, %v738
  %v770 = vadd.f32 %v727, %v738
  %v771 = vadd.f32 %v730, %v738
  %v772 = vmax.f32 %v740, 0.0
  %v773 = vmax.f32 %v741, 0.0
  %v774 = vmax.f32 %v742, 0.0
  %v775 = vmax.f32 %v743, 0.0
  %v776 = vmax.f32 %v744, 0.0
  %v777 = vmax.f32 %v745, 0.0
  %v778 = vmax.f32 %v746, 0.0
  %v779 = vmax.f32 %v747, 0.0
  %v780 = vmax.f32 %v748, 0.0
  %v781 = vmax.f32 %v749, 0.0
  %v782 = vmax.f32 %v750, 0.0
  %v783 = vmax.f32 %v751, 0.0
  %v784 = vmax.f32 %v752, 0.0
  %v785 = vmax.f32 %v753, 0.0
  %v786 = vmax.f32 %v754, 0.0
  %v787 = vmax.f32 %v755, 0.0
  %v788 = vmax.f32 %v756, 0.0
  %v789 = vmax.f32 %v757, 0.0
  %v790 = vmax.f32 %v758, 0.0
  %v791 = vmax.f32 %v759, 0.0
  %v792 = vmax.f32 %v760, 0.0
  %v793 = vmax.f32 %v761, 0.0
  %v794 = vmax.f32 %v762, 0.0
  %v795 = vmax.f32 %v763, 0.0
  %v796 = vmax.f32 %v764, 0.0
  %v797 = vmax.f32 %v765, 0.0
  %v798 = vmax.f32 %v766, 0.0
  %v799 = vmax.f32 %v767, 0.0
  %v800 = vmax.f32 %v768, 0.0
  %v801 = vmax.f32 %v769, 0.0
  %v802 = vmax.f32 %v770, 0.0
  %v803 = vmax.f32 %v771, 0.0
  %v804 = vpack.c.bf16 %v773, %v772
  %v805 = vpack.c.bf16 %v775, %v774
  %v806 = vpack.c.bf16 %v777, %v776
  %v807 = vpack.c.bf16 %v779, %v778
  %v808 = vpack.c.bf16 %v781, %v780
  %v809 = vpack.c.bf16 %v783, %v782
  %v810 = vpack.c.bf16 %v785, %v784
  %v811 = vpack.c.bf16 %v787, %v786
  %v812 = vpack.c.bf16 %v789, %v788
  %v813 = vpack.c.bf16 %v791, %v790
  %v814 = vpack.c.bf16 %v793, %v792
  %v815 = vpack.c.bf16 %v795, %v794
  %v816 = vpack.c.bf16 %v797, %v796
  %v817 = vpack.c.bf16 %v799, %v798
  %v818 = vpack.c.bf16 %v801, %v800
  %v819 = vpack.c.bf16 %v803, %v802
  %v820 = vld [vmem:[%s5] sm:$0xf]
  %v821 = vld [vmem:[%s5 + $0x4] sm:$0xf]
  %v822 = vld [vmem:[%s5 + $0x8] sm:$0xf]
  %v823 = vld [vmem:[%s5 + $0xc] sm:$0xf]
  %v824 = vld [vmem:[%s5 + $0x10] sm:$0xf]
  %v825 = vld [vmem:[%s5 + $0x14] sm:$0xf]
  %v826 = vld [vmem:[%s5 + $0x18] sm:$0xf]
  %v827 = vld [vmem:[%s5 + $0x1c] sm:$0xf]
  %v828 = vld [vmem:[%s5 + $0x20] sm:$0xf]
  %v829 = vld [vmem:[%s5 + $0x24] sm:$0xf]
  %v830 = vld [vmem:[%s5 + $0x28] sm:$0xf]
  %v831 = vld [vmem:[%s5 + $0x2c] sm:$0xf]
  %v832 = vld [vmem:[%s5 + $0x30] sm:$0xf]
  %v833 = vld [vmem:[%s5 + $0x34] sm:$0xf]
  %v834 = vld [vmem:[%s5 + $0x38] sm:$0xf]
  %v835 = vld [vmem:[%s5 + $0x3c] sm:$0xf]
  %v836 = vld [vmem:[%s6] sm:$0x1]
  %v838 = vlaneseq
  %v839 = vshrl.u32 %v838, 7
  %v840 = vsub.s32 0, %v839
  %v841 = vrot.slane %v836, %v840
  %v859 = vunpack.c.l.b16 %v820
  %v860 = vunpack.c.l.b16 %v821
  %v861 = vunpack.c.l.b16 %v822
  %v862 = vunpack.c.l.b16 %v823
  %v863 = vunpack.c.l.b16 %v824
  %v864 = vunpack.c.l.b16 %v825
  %v865 = vunpack.c.l.b16 %v826
  %v866 = vunpack.c.l.b16 %v827
  %v867 = vunpack.c.l.b16 %v828
  %v868 = vunpack.c.l.b16 %v829
  %v869 = vunpack.c.l.b16 %v830
  %v870 = vunpack.c.l.b16 %v831
  %v871 = vunpack.c.l.b16 %v832
  %v872 = vunpack.c.l.b16 %v833
  %v873 = vunpack.c.l.b16 %v834
  %v874 = vunpack.c.l.b16 %v835
  %v875 = vpack.c.b16 %v860, %v859
  %v876 = vpack.c.b16 %v862, %v861
  %v877 = vpack.c.b16 %v864, %v863
  %v878 = vpack.c.b16 %v866, %v865
  %v879 = vpack.c.b16 %v868, %v867
  %v880 = vpack.c.b16 %v870, %v869
  %v881 = vpack.c.b16 %v872, %v871
  %v882 = vpack.c.b16 %v874, %v873
  %891 = vmatprep.subr.bf16.mxu0 0
  %892 = vmatpush1.bf16.msra.mxu0 %v875
  %893 = vmatprep.subr.bf16.mxu0 0
  %894 = vmatpush1.bf16.msra.mxu0 %v876
  %895 = vmatprep.subr.bf16.mxu0 0
  %896 = vmatpush1.bf16.msra.mxu0 %v877
  %897 = vmatprep.subr.bf16.mxu0 0
  %898 = vmatpush1.bf16.msra.mxu0 %v878
  %899 = vmatprep.subr.bf16.mxu0 0
  %900 = vmatpush1.bf16.msra.mxu0 %v879
  %901 = vmatprep.subr.bf16.mxu0 0
  %902 = vmatpush1.bf16.msra.mxu0 %v880
  %903 = vmatprep.subr.bf16.mxu0 0
  %904 = vmatpush1.bf16.msra.mxu0 %v881
  %905 = vmatprep.subr.bf16.mxu0 0
  %906 = vmatpush1.bf16.msra.mxu0 %v882
  %907 = vmatprep.subr.bf16.mxu0 0
  %908 = vmatpush1.bf16.msra.mxu0 0
  %909 = vmatprep.subr.bf16.mxu0 0
  %910 = vmatpush1.bf16.msra.mxu0 0
  %911 = vmatprep.subr.bf16.mxu0 0
  %912 = vmatpush1.bf16.msra.mxu0 0
  %913 = vmatprep.subr.bf16.mxu0 0
  %914 = vmatpush1.bf16.msra.mxu0 0
  %915 = vmatprep.subr.bf16.mxu0 0
  %916 = vmatpush1.bf16.msra.mxu0 0
  %917 = vmatprep.subr.bf16.mxu0 0
  %918 = vmatpush1.bf16.msra.mxu0 0
  %919 = vmatprep.subr.bf16.mxu0 0
  %920 = vmatpush1.bf16.msra.mxu0 0
  %921 = vmatprep.subr.bf16.mxu0 0
  %922 = vmatpush1.bf16.msra.mxu0 0
  %923 = vmatprep.mubr.bf16.mxu0 0
  %924 = vmatmul.mubr.bf16.gmra.mrb[0].mxu0 %v804
  %v925 = vpop.f32.mrb[0].mxu0
  %v926 = vadd.f32 %v841, %v925
  %v927 = vpop.f32.mrb[0].mxu0
  %v928 = vpop.f32.mrb[0].mxu0
  %v929 = vadd.f32 %v841, %v928
  %v930 = vpop.f32.mrb[0].mxu0
  %931 = vmatprep.mubr.bf16.mxu0 0
  %932 = vmatmul.mubr.bf16.gmra.mrb[0].mxu0 %v805
  %v933 = vpop.f32.mrb[0].mxu0
  %v934 = vadd.f32 %v841, %v933
  %v935 = vpop.f32.mrb[0].mxu0
  %v936 = vpop.f32.mrb[0].mxu0
  %v937 = vadd.f32 %v841, %v936
  %v938 = vpop.f32.mrb[0].mxu0
  %939 = vmatprep.mubr.bf16.mxu0 0
  %940 = vmatmul.mubr.bf16.gmra.mrb[0].mxu0 %v806
  %v941 = vpop.f32.mrb[0].mxu0
  %v942 = vadd.f32 %v841, %v941
  %v943 = vpop.f32.mrb[0].mxu0
  %v944 = vpop.f32.mrb[0].mxu0
  %v945 = vadd.f32 %v841, %v944
  %v946 = vpop.f32.mrb[0].mxu0
  %947 = vmatprep.mubr.bf16.mxu0 0
  %948 = vmatmul.mubr.bf16.gmra.mrb[0].mxu0 %v807
  %v949 = vpop.f32.mrb[0].mxu0
  %v950 = vadd.f32 %v841, %v949
  %v951 = vpop.f32.mrb[0].mxu0
  %v952 = vpop.f32.mrb[0].mxu0
  %v953 = vadd.f32 %v841, %v952
  %v954 = vpop.f32.mrb[0].mxu0
  %955 = vmatprep.mubr.bf16.mxu0 0
  %956 = vmatmul.mubr.bf16.gmra.mrb[0].mxu0 %v808
  %v957 = vpop.f32.mrb[0].mxu0
  %v958 = vadd.f32 %v841, %v957
  %v959 = vpop.f32.mrb[0].mxu0
  %v960 = vpop.f32.mrb[0].mxu0
  %v961 = vadd.f32 %v841, %v960
  %v962 = vpop.f32.mrb[0].mxu0
  %963 = vmatprep.mubr.bf16.mxu0 0
  %964 = vmatmul.mubr.bf16.gmra.mrb[0].mxu0 %v809
  %v965 = vpop.f32.mrb[0].mxu0
  %v966 = vadd.f32 %v841, %v965
  %v967 = vpop.f32.mrb[0].mxu0
  %v968 = vpop.f32.mrb[0].mxu0
  %v969 = vadd.f32 %v841, %v968
  %v970 = vpop.f32.mrb[0].mxu0
  %971 = vmatprep.mubr.bf16.mxu0 0
  %972 = vmatmul.mubr.bf16.gmra.mrb[0].mxu0 %v810
  %v973 = vpop.f32.mrb[0].mxu0
  %v974 = vadd.f32 %v841, %v973
  %v975 = vpop.f32.mrb[0].mxu0
  %v976 = vpop.f32.mrb[0].mxu0
  %v977 = vadd.f32 %v841, %v976
  %v978 = vpop.f32.mrb[0].mxu0
  %979 = vmatprep.mubr.bf16.mxu0 0
  %980 = vmatmul.mubr.bf16.gmra.mrb[0].mxu0 %v811
  %v981 = vpop.f32.mrb[0].mxu0
  %v982 = vadd.f32 %v841, %v981
  %v983 = vpop.f32.mrb[0].mxu0
  %v984 = vpop.f32.mrb[0].mxu0
  %v985 = vadd.f32 %v841, %v984
  %v986 = vpop.f32.mrb[0].mxu0
  %987 = vmatprep.mubr.bf16.mxu0 0
  %988 = vmatmul.mubr.bf16.gmra.mrb[0].mxu0 %v812
  %v989 = vpop.f32.mrb[0].mxu0
  %v990 = vadd.f32 %v841, %v989
  %v991 = vpop.f32.mrb[0].mxu0
  %v992 = vpop.f32.mrb[0].mxu0
  %v993 = vadd.f32 %v841, %v992
  %v994 = vpop.f32.mrb[0].mxu0
  %995 = vmatprep.mubr.bf16.mxu0 0
  %996 = vmatmul.mubr.bf16.gmra.mrb[0].mxu0 %v813
  %v997 = vpop.f32.mrb[0].mxu0
  %v998 = vadd.f32 %v841, %v997
  %v999 = vpop.f32.mrb[0].mxu0
  %v1000 = vpop.f32.mrb[0].mxu0
  %v1001 = vadd.f32 %v841, %v1000
  %v1002 = vpop.f32.mrb[0].mxu0
  %1003 = vmatprep.mubr.bf16.mxu0 0
  %1004 = vmatmul.mubr.bf16.gmra.mrb[0].mxu0 %v814
  %v1005 = vpop.f32.mrb[0].mxu0
  %v1006 = vadd.f32 %v841, %v1005
  %v1007 = vpop.f32.mrb[0].mxu0
  %v1008 = vpop.f32.mrb[0].mxu0
  %v1009 = vadd.f32 %v841, %v1008
  %v1010 = vpop.f32.mrb[0].mxu0
  %1011 = vmatprep.mubr.bf16.mxu0 0
  %1012 = vmatmul.mubr.bf16.gmra.mrb[0].mxu0 %v815
  %v1013 = vpop.f32.mrb[0].mxu0
  %v1014 = vadd.f32 %v841, %v1013
  %v1015 = vpop.f32.mrb[0].mxu0
  %v1016 = vpop.f32.mrb[0].mxu0
  %v1017 = vadd.f32 %v841, %v1016
  %v1018 = vpop.f32.mrb[0].mxu0
  %1019 = vmatprep.mubr.bf16.mxu0 0
  %1020 = vmatmul.mubr.bf16.gmra.mrb[0].mxu0 %v816
  %v1021 = vpop.f32.mrb[0].mxu0
  %v1022 = vadd.f32 %v841, %v1021
  %v1023 = vpop.f32.mrb[0].mxu0
  %v1024 = vpop.f32.mrb[0].mxu0
  %v1025 = vadd.f32 %v841, %v1024
  %v1026 = vpop.f32.mrb[0].mxu0
  %1027 = vmatprep.mubr.bf16.mxu0 0
  %1028 = vmatmul.mubr.bf16.gmra.mrb[0].mxu0 %v817
  %v1029 = vpop.f32.mrb[0].mxu0
  %v1030 = vadd.f32 %v841, %v1029
  %v1031 = vpop.f32.mrb[0].mxu0
  %v1032 = vpop.f32.mrb[0].mxu0
  %v1033 = vadd.f32 %v841, %v1032
  %v1034 = vpop.f32.mrb[0].mxu0
  %1035 = vmatprep.mubr.bf16.mxu0 0
  %1036 = vmatmul.mubr.bf16.gmra.mrb[0].mxu0 %v818
  %v1037 = vpop.f32.mrb[0].mxu0
  %v1038 = vadd.f32 %v841, %v1037
  %v1039 = vpop.f32.mrb[0].mxu0
  %v1040 = vpop.f32.mrb[0].mxu0
  %v1041 = vadd.f32 %v841, %v1040
  %v1042 = vpop.f32.mrb[0].mxu0
  %1043 = vmatprep.mubr.bf16.mxu0 0
  %1044 = vmatmul.mubr.bf16.gmra.mrb[0].mxu0 %v819
  %v1045 = vpop.f32.mrb[0].mxu0
  %v1046 = vadd.f32 %v841, %v1045
  %v1047 = vpop.f32.mrb[0].mxu0
  %v1048 = vpop.f32.mrb[0].mxu0
  %v1049 = vadd.f32 %v841, %v1048
  %v1050 = vpop.f32.mrb[0].mxu0
  %1051 = vdwg.mxu0
  %v1052 = vmax.f32 %v926, 0.0
  %v1053 = vmax.f32 %v929, 0.0
  %v1054 = vmax.f32 %v934, 0.0
  %v1055 = vmax.f32 %v937, 0.0
  %v1056 = vmax.f32 %v942, 0.0
  %v1057 = vmax.f32 %v945, 0.0
  %v1058 = vmax.f32 %v950, 0.0
  %v1059 = vmax.f32 %v953, 0.0
  %v1060 = vmax.f32 %v958, 0.0
  %v1061 = vmax.f32 %v961, 0.0
  %v1062 = vmax.f32 %v966, 0.0
  %v1063 = vmax.f32 %v969, 0.0
  %v1064 = vmax.f32 %v974, 0.0
  %v1065 = vmax.f32 %v977, 0.0
  %v1066 = vmax.f32 %v982, 0.0
  %v1067 = vmax.f32 %v985, 0.0
  %v1068 = vmax.f32 %v990, 0.0
  %v1069 = vmax.f32 %v993, 0.0
  %v1070 = vmax.f32 %v998, 0.0
  %v1071 = vmax.f32 %v1001, 0.0
  %v1072 = vmax.f32 %v1006, 0.0
  %v1073 = vmax.f32 %v1009, 0.0
  %v1074 = vmax.f32 %v1014, 0.0
  %v1075 = vmax.f32 %v1017, 0.0
  %v1076 = vmax.f32 %v1022, 0.0
  %v1077 = vmax.f32 %v1025, 0.0
  %v1078 = vmax.f32 %v1030, 0.0
  %v1079 = vmax.f32 %v1033, 0.0
  %v1080 = vmax.f32 %v1038, 0.0
  %v1081 = vmax.f32 %v1041, 0.0
  %v1082 = vmax.f32 %v1046, 0.0
  %v1083 = vmax.f32 %v1049, 0.0
  %v1084 = vpack.c.bf16 %v1053, %v1052
  %v1085 = vpack.c.bf16 %v1055, %v1054
  %v1086 = vpack.c.bf16 %v1057, %v1056
  %v1087 = vpack.c.bf16 %v1059, %v1058
  %v1088 = vpack.c.bf16 %v1061, %v1060
  %v1089 = vpack.c.bf16 %v1063, %v1062
  %v1090 = vpack.c.bf16 %v1065, %v1064
  %v1091 = vpack.c.bf16 %v1067, %v1066
  %v1092 = vpack.c.bf16 %v1069, %v1068
  %v1093 = vpack.c.bf16 %v1071, %v1070
  %v1094 = vpack.c.bf16 %v1073, %v1072
  %v1095 = vpack.c.bf16 %v1075, %v1074
  %v1096 = vpack.c.bf16 %v1077, %v1076
  %v1097 = vpack.c.bf16 %v1079, %v1078
  %v1098 = vpack.c.bf16 %v1081, %v1080
  %v1099 = vpack.c.bf16 %v1083, %v1082
  %v1116 = vunpack.c.l.b16 %v1084
  %v1117 = vunpack.c.h.b16 %v1084
  %v1118 = vunpack.c.l.b16 %v1085
  %v1119 = vunpack.c.h.b16 %v1085
  %v1120 = vunpack.c.l.b16 %v1086
  %v1121 = vunpack.c.h.b16 %v1086
  %v1122 = vunpack.c.l.b16 %v1087
  %v1123 = vunpack.c.h.b16 %v1087
  %v1124 = vunpack.c.l.b16 %v1088
  %v1125 = vunpack.c.h.b16 %v1088
  %v1126 = vunpack.c.l.b16 %v1089
  %v1127 = vunpack.c.h.b16 %v1089
  %v1128 = vunpack.c.l.b16 %v1090
  %v1129 = vunpack.c.h.b16 %v1090
  %v1130 = vunpack.c.l.b16 %v1091
  %v1131 = vunpack.c.h.b16 %v1091
  %v1132 = vunpack.c.l.b16 %v1092
  %v1133 = vunpack.c.h.b16 %v1092
  %v1134 = vunpack.c.l.b16 %v1093
  %v1135 = vunpack.c.h.b16 %v1093
  %v1136 = vunpack.c.l.b16 %v1094
  %v1137 = vunpack.c.h.b16 %v1094
  %v1138 = vunpack.c.l.b16 %v1095
  %v1139 = vunpack.c.h.b16 %v1095
  %v1140 = vunpack.c.l.b16 %v1096
  %v1141 = vunpack.c.h.b16 %v1096
  %v1142 = vunpack.c.l.b16 %v1097
  %v1143 = vunpack.c.h.b16 %v1097
  %v1144 = vunpack.c.l.b16 %v1098
  %v1145 = vunpack.c.h.b16 %v1098
  %v1146 = vunpack.c.l.b16 %v1099
  %v1147 = vunpack.c.h.b16 %v1099
  %v1148 = vpack.c.b16 %v1116, %v1116
  %v1149 = vpack.c.b16 %v1117, %v1117
  %v1150 = vpack.c.b16 %v1118, %v1118
  %v1151 = vpack.c.b16 %v1119, %v1119
  %v1152 = vpack.c.b16 %v1120, %v1120
  %v1153 = vpack.c.b16 %v1121, %v1121
  %v1154 = vpack.c.b16 %v1122, %v1122
  %v1155 = vpack.c.b16 %v1123, %v1123
  %v1156 = vpack.c.b16 %v1124, %v1124
  %v1157 = vpack.c.b16 %v1125, %v1125
  %v1158 = vpack.c.b16 %v1126, %v1126
  %v1159 = vpack.c.b16 %v1127, %v1127
  %v1160 = vpack.c.b16 %v1128, %v1128
  %v1161 = vpack.c.b16 %v1129, %v1129
  %v1162 = vpack.c.b16 %v1130, %v1130
  %v1163 = vpack.c.b16 %v1131, %v1131
  %v1164 = vpack.c.b16 %v1132, %v1132
  %v1165 = vpack.c.b16 %v1133, %v1133
  %v1166 = vpack.c.b16 %v1134, %v1134
  %v1167 = vpack.c.b16 %v1135, %v1135
  %v1168 = vpack.c.b16 %v1136, %v1136
  %v1169 = vpack.c.b16 %v1137, %v1137
  %v1170 = vpack.c.b16 %v1138, %v1138
  %v1171 = vpack.c.b16 %v1139, %v1139
  %v1172 = vpack.c.b16 %v1140, %v1140
  %v1173 = vpack.c.b16 %v1141, %v1141
  %v1174 = vpack.c.b16 %v1142, %v1142
  %v1175 = vpack.c.b16 %v1143, %v1143
  %v1176 = vpack.c.b16 %v1144, %v1144
  %v1177 = vpack.c.b16 %v1145, %v1145
  %v1178 = vpack.c.b16 %v1146, %v1146
  %v1179 = vpack.c.b16 %v1147, %v1147
  %1212 = vst [vmem:[%s7] sm:$0xf] %v1148
  %1213 = vst [vmem:[%s7 + $0x4] sm:$0xf] %v1149
  %1214 = vst [vmem:[%s7 + $0x8] sm:$0xf] %v1150
  %1215 = vst [vmem:[%s7 + $0xc] sm:$0xf] %v1151
  %1216 = vst [vmem:[%s7 + $0x10] sm:$0xf] %v1152
  %1217 = vst [vmem:[%s7 + $0x14] sm:$0xf] %v1153
  %1218 = vst [vmem:[%s7 + $0x18] sm:$0xf] %v1154
  %1219 = vst [vmem:[%s7 + $0x1c] sm:$0xf] %v1155
  %1220 = vst [vmem:[%s7 + $0x20] sm:$0xf] %v1156
  %1221 = vst [vmem:[%s7 + $0x24] sm:$0xf] %v1157
  %1222 = vst [vmem:[%s7 + $0x28] sm:$0xf] %v1158
  %1223 = vst [vmem:[%s7 + $0x2c] sm:$0xf] %v1159
  %1224 = vst [vmem:[%s7 + $0x30] sm:$0xf] %v1160
  %1225 = vst [vmem:[%s7 + $0x34] sm:$0xf] %v1161
  %1226 = vst [vmem:[%s7 + $0x38] sm:$0xf] %v1162
  %1227 = vst [vmem:[%s7 + $0x3c] sm:$0xf] %v1163
  %1228 = vst [vmem:[%s7 + $0x40] sm:$0xf] %v1164
  %1229 = vst [vmem:[%s7 + $0x44] sm:$0xf] %v1165
  %1230 = vst [vmem:[%s7 + $0x48] sm:$0xf] %v1166
  %1231 = vst [vmem:[%s7 + $0x4c] sm:$0xf] %v1167
  %1232 = vst [vmem:[%s7 + $0x50] sm:$0xf] %v1168
  %1233 = vst [vmem:[%s7 + $0x54] sm:$0xf] %v1169
  %1234 = vst [vmem:[%s7 + $0x58] sm:$0xf] %v1170
  %1235 = vst [vmem:[%s7 + $0x5c] sm:$0xf] %v1171
  %1236 = vst [vmem:[%s7 + $0x60] sm:$0xf] %v1172
  %1237 = vst [vmem:[%s7 + $0x64] sm:$0xf] %v1173
  %1238 = vst [vmem:[%s7 + $0x68] sm:$0xf] %v1174
  %1239 = vst [vmem:[%s7 + $0x6c] sm:$0xf] %v1175
  %1240 = vst [vmem:[%s7 + $0x70] sm:$0xf] %v1176
  %1241 = vst [vmem:[%s7 + $0x74] sm:$0xf] %v1177
  %1242 = vst [vmem:[%s7 + $0x78] sm:$0xf] %v1178
  %1243 = vst [vmem:[%s7 + $0x7c] sm:$0xf] %v1179
  // Predicated region
  $region30: #{_lambda_.10} parent=0 // pred_check
    _
  $region31: #{_lambda_.10} parent=0 // pred_check_branch
    %1245 = sbr.rel (0) target = $region33
  $region32: #{_lambda_.10} parent=0 // pred_region
    _
  $region33: #{_lambda_.10} parent=0 // pred_fallthru
    _
  // Predicated region
  $region34: #{_lambda_.10} parent=0 // pred_check
    _
  $region35: #{_lambda_.10} parent=0 // pred_check_branch
    %1247 = sbr.rel (0) target = $region37
  $region36: #{_lambda_.10} parent=0 // pred_region
    _
  $region37: #{_lambda_.10} parent=0 // pred_fallthru
    _

// kernel: _lambda_.11
$region0: #{_lambda_.11}
  #allocation0 [shape = 'u32[]', space=smem, size = 0x4, offset = 0x4, fixed_abs, tag = 'smem constant byte address 0x4 - core index']
  #allocation1 [shape = 'u32[144,128]{1,0:T(1,128)}', space=vmem, size = 0x12000, scoped, tag = 'internal scratch']
  %s0 = inlined_call_operand.vmem [shape: bf16[256,128], index: 0, kind: input, shape index: {}]
  %s1 = inlined_call_operand.vmem [shape: bf16[128,128], index: 1, kind: input, shape index: {}]
  %s2 = inlined_call_operand.vmem [shape: f32[1,128], index: 2, kind: input, shape index: {}]
  %s3 = inlined_call_operand.vmem [shape: bf16[128,128], index: 3, kind: input, shape index: {}]
  %s4 = inlined_call_operand.vmem [shape: f32[1,128], index: 4, kind: input, shape index: {}]
  %s5 = inlined_call_operand.vmem [shape: f32[256,128], index: 5, kind: output, shape index: {}]
  %s6 = sld [smem:[#allocation0]]
  $region30: #{_lambda_.11} parent=0
    _
  %s8 = ssub.s32 1, %s6
  %s9 = scalar_select 0, %s8, %s6
  // Predicated region
  $region2: #{_lambda_.11} parent=0 // pred_check
    _
  $region3: #{_lambda_.11} parent=0 // pred_check_branch
    %11 = sbr.rel (0) target = $region5
  $region4: #{_lambda_.11} parent=0 // pred_region
    _
  $region5: #{_lambda_.11} parent=0 // pred_fallthru
    _
  // Predicated region
  $region6: #{_lambda_.11} parent=0 // pred_check
    _
  $region7: #{_lambda_.11} parent=0 // pred_check_branch
    %13 = sbr.rel (0) target = $region9
  $region8: #{_lambda_.11} parent=0 // pred_region
    _
  $region9: #{_lambda_.11} parent=0 // pred_fallthru
    _
  // Predicated region
  $region10: #{_lambda_.11} parent=0 // pred_check
    _
  $region11: #{_lambda_.11} parent=0 // pred_check_branch
    %15 = sbr.rel (0) target = $region13
  $region12: #{_lambda_.11} parent=0 // pred_region
    _
  $region13: #{_lambda_.11} parent=0 // pred_fallthru
    _
  // Predicated region
  $region14: #{_lambda_.11} parent=0 // pred_check
    _
  $region15: #{_lambda_.11} parent=0 // pred_check_branch
    %17 = sbr.rel (0) target = $region17
  $region16: #{_lambda_.11} parent=0 // pred_region
    _
  $region17: #{_lambda_.11} parent=0 // pred_fallthru
    _
  // Predicated region
  $region18: #{_lambda_.11} parent=0 // pred_check
    _
  $region19: #{_lambda_.11} parent=0 // pred_check_branch
    %19 = sbr.rel (0) target = $region21
  $region20: #{_lambda_.11} parent=0 // pred_region
    _
  $region21: #{_lambda_.11} parent=0 // pred_fallthru
    _
  %v21 = vld [vmem:[%s0] sm:$0xf]
  %v22 = vld [vmem:[%s0 + $0x4] sm:$0xf]
  %v23 = vld [vmem:[%s0 + $0x8] sm:$0xf]
  %v24 = vld [vmem:[%s0 + $0xc] sm:$0xf]
  %v25 = vld [vmem:[%s0 + $0x10] sm:$0xf]
  %v26 = vld [vmem:[%s0 + $0x14] sm:$0xf]
  %v27 = vld [vmem:[%s0 + $0x18] sm:$0xf]
  %v28 = vld [vmem:[%s0 + $0x1c] sm:$0xf]
  %v29 = vld [vmem:[%s0 + $0x20] sm:$0xf]
  %v30 = vld [vmem:[%s0 + $0x24] sm:$0xf]
  %v31 = vld [vmem:[%s0 + $0x28] sm:$0xf]
  %v32 = vld [vmem:[%s0 + $0x2c] sm:$0xf]
  %v33 = vld [vmem:[%s0 + $0x30] sm:$0xf]
  %v34 = vld [vmem:[%s0 + $0x34] sm:$0xf]
  %v35 = vld [vmem:[%s0 + $0x38] sm:$0xf]
  %v36 = vld [vmem:[%s0 + $0x3c] sm:$0xf]
  %v37 = vld [vmem:[%s0 + $0x40] sm:$0xf]
  %v38 = vld [vmem:[%s0 + $0x44] sm:$0xf]
  %v39 = vld [vmem:[%s0 + $0x48] sm:$0xf]
  %v40 = vld [vmem:[%s0 + $0x4c] sm:$0xf]
  %v41 = vld [vmem:[%s0 + $0x50] sm:$0xf]
  %v42 = vld [vmem:[%s0 + $0x54] sm:$0xf]
  %v43 = vld [vmem:[%s0 + $0x58] sm:$0xf]
  %v44 = vld [vmem:[%s0 + $0x5c] sm:$0xf]
  %v45 = vld [vmem:[%s0 + $0x60] sm:$0xf]
  %v46 = vld [vmem:[%s0 + $0x64] sm:$0xf]
  %v47 = vld [vmem:[%s0 + $0x68] sm:$0xf]
  %v48 = vld [vmem:[%s0 + $0x6c] sm:$0xf]
  %v49 = vld [vmem:[%s0 + $0x70] sm:$0xf]
  %v50 = vld [vmem:[%s0 + $0x74] sm:$0xf]
  %v51 = vld [vmem:[%s0 + $0x78] sm:$0xf]
  %v52 = vld [vmem:[%s0 + $0x7c] sm:$0xf]
  %v53 = vld [vmem:[%s1] sm:$0xf]
  %v54 = vld [vmem:[%s1 + $0x4] sm:$0xf]
  %v55 = vld [vmem:[%s1 + $0x8] sm:$0xf]
  %v56 = vld [vmem:[%s1 + $0xc] sm:$0xf]
  %v57 = vld [vmem:[%s1 + $0x10] sm:$0xf]
  %v58 = vld [vmem:[%s1 + $0x14] sm:$0xf]
  %v59 = vld [vmem:[%s1 + $0x18] sm:$0xf]
  %v60 = vld [vmem:[%s1 + $0x1c] sm:$0xf]
  %v61 = vld [vmem:[%s1 + $0x20] sm:$0xf]
  %v62 = vld [vmem:[%s1 + $0x24] sm:$0xf]
  %v63 = vld [vmem:[%s1 + $0x28] sm:$0xf]
  %v64 = vld [vmem:[%s1 + $0x2c] sm:$0xf]
  %v65 = vld [vmem:[%s1 + $0x30] sm:$0xf]
  %v66 = vld [vmem:[%s1 + $0x34] sm:$0xf]
  %v67 = vld [vmem:[%s1 + $0x38] sm:$0xf]
  %v68 = vld [vmem:[%s1 + $0x3c] sm:$0xf]
  %v69 = vld [vmem:[%s2] sm:$0x1]
  %v71 = vlaneseq
  %v72 = vshrl.u32 %v71, 7
  %v73 = vsub.s32 0, %v72
  %v74 = vrot.slane %v69, %v73
  %v108 = vunpack.c.l.b16 %v21
  %v109 = vunpack.c.l.b16 %v22
  %v110 = vunpack.c.l.b16 %v23
  %v111 = vunpack.c.l.b16 %v24
  %v112 = vunpack.c.l.b16 %v25
  %v113 = vunpack.c.l.b16 %v26
  %v114 = vunpack.c.l.b16 %v27
  %v115 = vunpack.c.l.b16 %v28
  %v116 = vunpack.c.l.b16 %v29
  %v117 = vunpack.c.l.b16 %v30
  %v118 = vunpack.c.l.b16 %v31
  %v119 = vunpack.c.l.b16 %v32
  %v120 = vunpack.c.l.b16 %v33
  %v121 = vunpack.c.l.b16 %v34
  %v122 = vunpack.c.l.b16 %v35
  %v123 = vunpack.c.l.b16 %v36
  %v124 = vunpack.c.l.b16 %v37
  %v125 = vunpack.c.l.b16 %v38
  %v126 = vunpack.c.l.b16 %v39
  %v127 = vunpack.c.l.b16 %v40
  %v128 = vunpack.c.l.b16 %v41
  %v129 = vunpack.c.l.b16 %v42
  %v130 = vunpack.c.l.b16 %v43
  %v131 = vunpack.c.l.b16 %v44
  %v132 = vunpack.c.l.b16 %v45
  %v133 = vunpack.c.l.b16 %v46
  %v134 = vunpack.c.l.b16 %v47
  %v135 = vunpack.c.l.b16 %v48
  %v136 = vunpack.c.l.b16 %v49
  %v137 = vunpack.c.l.b16 %v50
  %v138 = vunpack.c.l.b16 %v51
  %v139 = vunpack.c.l.b16 %v52
  %v140 = vpack.c.b16 %v109, %v108
  %v141 = vpack.c.b16 %v111, %v110
  %v142 = vpack.c.b16 %v113, %v112
  %v143 = vpack.c.b16 %v115, %v114
  %v144 = vpack.c.b16 %v117, %v116
  %v145 = vpack.c.b16 %v119, %v118
  %v146 = vpack.c.b16 %v121, %v120
  %v147 = vpack.c.b16 %v123, %v122
  %v148 = vpack.c.b16 %v125, %v124
  %v149 = vpack.c.b16 %v127, %v126
  %v150 = vpack.c.b16 %v129, %v128
  %v151 = vpack.c.b16 %v131, %v130
  %v152 = vpack.c.b16 %v133, %v132
  %v153 = vpack.c.b16 %v135, %v134
  %v154 = vpack.c.b16 %v137, %v136
  %v155 = vpack.c.b16 %v139, %v138
  %v188 = vunpack.c.l.b16 %v53
  %v189 = vunpack.c.l.b16 %v54
  %v190 = vunpack.c.l.b16 %v55
  %v191 = vunpack.c.l.b16 %v56
  %v192 = vunpack.c.l.b16 %v57
  %v193 = vunpack.c.l.b16 %v58
  %v194 = vunpack.c.l.b16 %v59
  %v195 = vunpack.c.l.b16 %v60
  %v196 = vunpack.c.l.b16 %v61
  %v197 = vunpack.c.l.b16 %v62
  %v198 = vunpack.c.l.b16 %v63
  %v199 = vunpack.c.l.b16 %v64
  %v200 = vunpack.c.l.b16 %v65
  %v201 = vunpack.c.l.b16 %v66
  %v202 = vunpack.c.l.b16 %v67
  %v203 = vunpack.c.l.b16 %v68
  %v204 = vpack.c.b16 %v189, %v188
  %v205 = vpack.c.b16 %v191, %v190
  %v206 = vpack.c.b16 %v193, %v192
  %v207 = vpack.c.b16 %v195, %v194
  %v208 = vpack.c.b16 %v197, %v196
  %v209 = vpack.c.b16 %v199, %v198
  %v210 = vpack.c.b16 %v201, %v200
  %v211 = vpack.c.b16 %v203, %v202
  %220 = vmatprep.subr.bf16.mxu0 0
  %221 = vmatpush1.bf16.msra.mxu0 %v204
  %222 = vmatprep.subr.bf16.mxu0 0
  %223 = vmatpush1.bf16.msra.mxu0 %v205
  %224 = vmatprep.subr.bf16.mxu0 0
  %225 = vmatpush1.bf16.msra.mxu0 %v206
  %226 = vmatprep.subr.bf16.mxu0 0
  %227 = vmatpush1.bf16.msra.mxu0 %v207
  %228 = vmatprep.subr.bf16.mxu0 0
  %229 = vmatpush1.bf16.msra.mxu0 %v208
  %230 = vmatprep.subr.bf16.mxu0 0
  %231 = vmatpush1.bf16.msra.mxu0 %v209
  %232 = vmatprep.subr.bf16.mxu0 0
  %233 = vmatpush1.bf16.msra.mxu0 %v210
  %234 = vmatprep.subr.bf16.mxu0 0
  %235 = vmatpush1.bf16.msra.mxu0 %v211
  %236 = vmatprep.subr.bf16.mxu0 0
  %237 = vmatpush1.bf16.msra.mxu0 0
  %238 = vmatprep.subr.bf16.mxu0 0
  %239 = vmatpush1.bf16.msra.mxu0 0
  %240 = vmatprep.subr.bf16.mxu0 0
  %241 = vmatpush1.bf16.msra.mxu0 0
  %242 = vmatprep.subr.bf16.mxu0 0
  %243 = vmatpush1.bf16.msra.mxu0 0
  %244 = vmatprep.subr.bf16.mxu0 0
  %245 = vmatpush1.bf16.msra.mxu0 0
  %246 = vmatprep.subr.bf16.mxu0 0
  %247 = vmatpush1.bf16.msra.mxu0 0
  %248 = vmatprep.subr.bf16.mxu0 0
  %249 = vmatpush1.bf16.msra.mxu0 0
  %250 = vmatprep.subr.bf16.mxu0 0
  %251 = vmatpush1.bf16.msra.mxu0 0
  %252 = vmatprep.mubr.bf16.mxu0 0
  %253 = vmatmul.mubr.bf16.gmra.mrb[0].mxu0 %v140
  %v254 = vpop.f32.mrb[0].mxu0
  %v255 = vadd.f32 %v74, %v254
  %v256 = vpop.f32.mrb[0].mxu0
  %v257 = vpop.f32.mrb[0].mxu0
  %v258 = vadd.f32 %v74, %v257
  %v259 = vpop.f32.mrb[0].mxu0
  %260 = vmatprep.mubr.bf16.mxu0 0
  %261 = vmatmul.mubr.bf16.gmra.mrb[0].mxu0 %v141
  %v262 = vpop.f32.mrb[0].mxu0
  %v263 = vadd.f32 %v74, %v262
  %v264 = vpop.f32.mrb[0].mxu0
  %v265 = vpop.f32.mrb[0].mxu0
  %v266 = vadd.f32 %v74, %v265
  %v267 = vpop.f32.mrb[0].mxu0
  %268 = vmatprep.mubr.bf16.mxu0 0
  %269 = vmatmul.mubr.bf16.gmra.mrb[0].mxu0 %v142
  %v270 = vpop.f32.mrb[0].mxu0
  %v271 = vadd.f32 %v74, %v270
  %v272 = vpop.f32.mrb[0].mxu0
  %v273 = vpop.f32.mrb[0].mxu0
  %v274 = vadd.f32 %v74, %v273
  %v275 = vpop.f32.mrb[0].mxu0
  %276 = vmatprep.mubr.bf16.mxu0 0
  %277 = vmatmul.mubr.bf16.gmra.mrb[0].mxu0 %v143
  %v278 = vpop.f32.mrb[0].mxu0
  %v279 = vadd.f32 %v74, %v278
  %v280 = vpop.f32.mrb[0].mxu0
  %v281 = vpop.f32.mrb[0].mxu0
  %v282 = vadd.f32 %v74, %v281
  %v283 = vpop.f32.mrb[0].mxu0
  %284 = vmatprep.mubr.bf16.mxu0 0
  %285 = vmatmul.mubr.bf16.gmra.mrb[0].mxu0 %v144
  %v286 = vpop.f32.mrb[0].mxu0
  %v287 = vadd.f32 %v74, %v286
  %v288 = vpop.f32.mrb[0].mxu0
  %v289 = vpop.f32.mrb[0].mxu0
  %v290 = vadd.f32 %v74, %v289
  %v291 = vpop.f32.mrb[0].mxu0
  %292 = vmatprep.mubr.bf16.mxu0 0
  %293 = vmatmul.mubr.bf16.gmra.mrb[0].mxu0 %v145
  %v294 = vpop.f32.mrb[0].mxu0
  %v295 = vadd.f32 %v74, %v294
  %v296 = vpop.f32.mrb[0].mxu0
  %v297 = vpop.f32.mrb[0].mxu0
  %v298 = vadd.f32 %v74, %v297
  %v299 = vpop.f32.mrb[0].mxu0
  %300 = vmatprep.mubr.bf16.mxu0 0
  %301 = vmatmul.mubr.bf16.gmra.mrb[0].mxu0 %v146
  %v302 = vpop.f32.mrb[0].mxu0
  %v303 = vadd.f32 %v74, %v302
  %v304 = vpop.f32.mrb[0].mxu0
  %v305 = vpop.f32.mrb[0].mxu0
  %v306 = vadd.f32 %v74, %v305
  %v307 = vpop.f32.mrb[0].mxu0
  %308 = vmatprep.mubr.bf16.mxu0 0
  %309 = vmatmul.mubr.bf16.gmra.mrb[0].mxu0 %v147
  %v310 = vpop.f32.mrb[0].mxu0
  %v311 = vadd.f32 %v74, %v310
  %v312 = vpop.f32.mrb[0].mxu0
  %v313 = vpop.f32.mrb[0].mxu0
  %v314 = vadd.f32 %v74, %v313
  %v315 = vpop.f32.mrb[0].mxu0
  %316 = vmatprep.mubr.bf16.mxu0 0
  %317 = vmatmul.mubr.bf16.gmra.mrb[0].mxu0 %v148
  %v318 = vpop.f32.mrb[0].mxu0
  %v319 = vadd.f32 %v74, %v318
  %v320 = vpop.f32.mrb[0].mxu0
  %v321 = vpop.f32.mrb[0].mxu0
  %v322 = vadd.f32 %v74, %v321
  %v323 = vpop.f32.mrb[0].mxu0
  %324 = vmatprep.mubr.bf16.mxu0 0
  %325 = vmatmul.mubr.bf16.gmra.mrb[0].mxu0 %v149
  %v326 = vpop.f32.mrb[0].mxu0
  %v327 = vadd.f32 %v74, %v326
  %v328 = vpop.f32.mrb[0].mxu0
  %v329 = vpop.f32.mrb[0].mxu0
  %v330 = vadd.f32 %v74, %v329
  %v331 = vpop.f32.mrb[0].mxu0
  %332 = vmatprep.mubr.bf16.mxu0 0
  %333 = vmatmul.mubr.bf16.gmra.mrb[0].mxu0 %v150
  %v334 = vpop.f32.mrb[0].mxu0
  %v335 = vadd.f32 %v74, %v334
  %v336 = vpop.f32.mrb[0].mxu0
  %v337 = vpop.f32.mrb[0].mxu0
  %v338 = vadd.f32 %v74, %v337
  %v339 = vpop.f32.mrb[0].mxu0
  %340 = vmatprep.mubr.bf16.mxu0 0
  %341 = vmatmul.mubr.bf16.gmra.mrb[0].mxu0 %v151
  %v342 = vpop.f32.mrb[0].mxu0
  %v343 = vadd.f32 %v74, %v342
  %v344 = vpop.f32.mrb[0].mxu0
  %v345 = vpop.f32.mrb[0].mxu0
  %v346 = vadd.f32 %v74, %v345
  %v347 = vpop.f32.mrb[0].mxu0
  %348 = vmatprep.mubr.bf16.mxu0 0
  %349 = vmatmul.mubr.bf16.gmra.mrb[0].mxu0 %v152
  %v350 = vpop.f32.mrb[0].mxu0
  %v351 = vadd.f32 %v74, %v350
  %v352 = vpop.f32.mrb[0].mxu0
  %v353 = vpop.f32.mrb[0].mxu0
  %v354 = vadd.f32 %v74, %v353
  %v355 = vpop.f32.mrb[0].mxu0
  %356 = vmatprep.mubr.bf16.mxu0 0
  %357 = vmatmul.mubr.bf16.gmra.mrb[0].mxu0 %v153
  %v358 = vpop.f32.mrb[0].mxu0
  %v359 = vadd.f32 %v74, %v358
  %v360 = vpop.f32.mrb[0].mxu0
  %v361 = vpop.f32.mrb[0].mxu0
  %v362 = vadd.f32 %v74, %v361
  %v363 = vpop.f32.mrb[0].mxu0
  %364 = vmatprep.mubr.bf16.mxu0 0
  %365 = vmatmul.mubr.bf16.gmra.mrb[0].mxu0 %v154
  %v366 = vpop.f32.mrb[0].mxu0
  %v367 = vadd.f32 %v74, %v366
  %v368 = vpop.f32.mrb[0].mxu0
  %v369 = vpop.f32.mrb[0].mxu0
  %v370 = vadd.f32 %v74, %v369
  %v371 = vpop.f32.mrb[0].mxu0
  %372 = vmatprep.mubr.bf16.mxu0 0
  %373 = vmatmul.mubr.bf16.gmra.mrb[0].mxu0 %v155
  %v374 = vpop.f32.mrb[0].mxu0
  %v375 = vadd.f32 %v74, %v374
  %v376 = vpop.f32.mrb[0].mxu0
  %v377 = vpop.f32.mrb[0].mxu0
  %v378 = vadd.f32 %v74, %v377
  %v379 = vpop.f32.mrb[0].mxu0
  %380 = vdwg.mxu0
  %v381 = vmax.f32 %v255, 0.0
  %v382 = vmax.f32 %v258, 0.0
  %v383 = vmax.f32 %v263, 0.0
  %v384 = vmax.f32 %v266, 0.0
  %v385 = vmax.f32 %v271, 0.0
  %v386 = vmax.f32 %v274, 0.0
  %v387 = vmax.f32 %v279, 0.0
  %v388 = vmax.f32 %v282, 0.0
  %v389 = vmax.f32 %v287, 0.0
  %v390 = vmax.f32 %v290, 0.0
  %v391 = vmax.f32 %v295, 0.0
  %v392 = vmax.f32 %v298, 0.0
  %v393 = vmax.f32 %v303, 0.0
  %v394 = vmax.f32 %v306, 0.0
  %v395 = vmax.f32 %v311, 0.0
  %v396 = vmax.f32 %v314, 0.0
  %v397 = vmax.f32 %v319, 0.0
  %v398 = vmax.f32 %v322, 0.0
  %v399 = vmax.f32 %v327, 0.0
  %v400 = vmax.f32 %v330, 0.0
  %v401 = vmax.f32 %v335, 0.0
  %v402 = vmax.f32 %v338, 0.0
  %v403 = vmax.f32 %v343, 0.0
  %v404 = vmax.f32 %v346, 0.0
  %v405 = vmax.f32 %v351, 0.0
  %v406 = vmax.f32 %v354, 0.0
  %v407 = vmax.f32 %v359, 0.0
  %v408 = vmax.f32 %v362, 0.0
  %v409 = vmax.f32 %v367, 0.0
  %v410 = vmax.f32 %v370, 0.0
  %v411 = vmax.f32 %v375, 0.0
  %v412 = vmax.f32 %v378, 0.0
  %v413 = vpack.c.bf16 %v382, %v381
  %v414 = vpack.c.bf16 %v384, %v383
  %v415 = vpack.c.bf16 %v386, %v385
  %v416 = vpack.c.bf16 %v388, %v387
  %v417 = vpack.c.bf16 %v390, %v389
  %v418 = vpack.c.bf16 %v392, %v391
  %v419 = vpack.c.bf16 %v394, %v393
  %v420 = vpack.c.bf16 %v396, %v395
  %v421 = vpack.c.bf16 %v398, %v397
  %v422 = vpack.c.bf16 %v400, %v399
  %v423 = vpack.c.bf16 %v402, %v401
  %v424 = vpack.c.bf16 %v404, %v403
  %v425 = vpack.c.bf16 %v406, %v405
  %v426 = vpack.c.bf16 %v408, %v407
  %v427 = vpack.c.bf16 %v410, %v409
  %v428 = vpack.c.bf16 %v412, %v411
  %v429 = vld [vmem:[%s3] sm:$0xf]
  %v430 = vld [vmem:[%s3 + $0x4] sm:$0xf]
  %v431 = vld [vmem:[%s3 + $0x8] sm:$0xf]
  %v432 = vld [vmem:[%s3 + $0xc] sm:$0xf]
  %v433 = vld [vmem:[%s3 + $0x10] sm:$0xf]
  %v434 = vld [vmem:[%s3 + $0x14] sm:$0xf]
  %v435 = vld [vmem:[%s3 + $0x18] sm:$0xf]
  %v436 = vld [vmem:[%s3 + $0x1c] sm:$0xf]
  %v437 = vld [vmem:[%s3 + $0x20] sm:$0xf]
  %v438 = vld [vmem:[%s3 + $0x24] sm:$0xf]
  %v439 = vld [vmem:[%s3 + $0x28] sm:$0xf]
  %v440 = vld [vmem:[%s3 + $0x2c] sm:$0xf]
  %v441 = vld [vmem:[%s3 + $0x30] sm:$0xf]
  %v442 = vld [vmem:[%s3 + $0x34] sm:$0xf]
  %v443 = vld [vmem:[%s3 + $0x38] sm:$0xf]
  %v444 = vld [vmem:[%s3 + $0x3c] sm:$0xf]
  %v445 = vld [vmem:[%s4] sm:$0x1]
  %v447 = vlaneseq
  %v448 = vshrl.u32 %v447, 7
  %v449 = vsub.s32 0, %v448
  %v450 = vrot.slane %v445, %v449
  %v468 = vunpack.c.l.b16 %v429
  %v469 = vunpack.c.l.b16 %v430
  %v470 = vunpack.c.l.b16 %v431
  %v471 = vunpack.c.l.b16 %v432
  %v472 = vunpack.c.l.b16 %v433
  %v473 = vunpack.c.l.b16 %v434
  %v474 = vunpack.c.l.b16 %v435
  %v475 = vunpack.c.l.b16 %v436
  %v476 = vunpack.c.l.b16 %v437
  %v477 = vunpack.c.l.b16 %v438
  %v478 = vunpack.c.l.b16 %v439
  %v479 = vunpack.c.l.b16 %v440
  %v480 = vunpack.c.l.b16 %v441
  %v481 = vunpack.c.l.b16 %v442
  %v482 = vunpack.c.l.b16 %v443
  %v483 = vunpack.c.l.b16 %v444
  %v484 = vpack.c.b16 %v469, %v468
  %v485 = vpack.c.b16 %v471, %v470
  %v486 = vpack.c.b16 %v473, %v472
  %v487 = vpack.c.b16 %v475, %v474
  %v488 = vpack.c.b16 %v477, %v476
  %v489 = vpack.c.b16 %v479, %v478
  %v490 = vpack.c.b16 %v481, %v480
  %v491 = vpack.c.b16 %v483, %v482
  %500 = vmatprep.subr.bf16.mxu0 0
  %501 = vmatpush1.bf16.msra.mxu0 %v484
  %502 = vmatprep.subr.bf16.mxu0 0
  %503 = vmatpush1.bf16.msra.mxu0 %v485
  %504 = vmatprep.subr.bf16.mxu0 0
  %505 = vmatpush1.bf16.msra.mxu0 %v486
  %506 = vmatprep.subr.bf16.mxu0 0
  %507 = vmatpush1.bf16.msra.mxu0 %v487
  %508 = vmatprep.subr.bf16.mxu0 0
  %509 = vmatpush1.bf16.msra.mxu0 %v488
  %510 = vmatprep.subr.bf16.mxu0 0
  %511 = vmatpush1.bf16.msra.mxu0 %v489
  %512 = vmatprep.subr.bf16.mxu0 0
  %513 = vmatpush1.bf16.msra.mxu0 %v490
  %514 = vmatprep.subr.bf16.mxu0 0
  %515 = vmatpush1.bf16.msra.mxu0 %v491
  %516 = vmatprep.subr.bf16.mxu0 0
  %517 = vmatpush1.bf16.msra.mxu0 0
  %518 = vmatprep.subr.bf16.mxu0 0
  %519 = vmatpush1.bf16.msra.mxu0 0
  %520 = vmatprep.subr.bf16.mxu0 0
  %521 = vmatpush1.bf16.msra.mxu0 0
  %522 = vmatprep.subr.bf16.mxu0 0
  %523 = vmatpush1.bf16.msra.mxu0 0
  %524 = vmatprep.subr.bf16.mxu0 0
  %525 = vmatpush1.bf16.msra.mxu0 0
  %526 = vmatprep.subr.bf16.mxu0 0
  %527 = vmatpush1.bf16.msra.mxu0 0
  %528 = vmatprep.subr.bf16.mxu0 0
  %529 = vmatpush1.bf16.msra.mxu0 0
  %530 = vmatprep.subr.bf16.mxu0 0
  %531 = vmatpush1.bf16.msra.mxu0 0
  %532 = vmatprep.mubr.bf16.mxu0 0
  %533 = vmatmul.mubr.bf16.gmra.mrb[0].mxu0 %v413
  %v534 = vpop.f32.mrb[0].mxu0
  %v535 = vadd.f32 %v450, %v534
  %v536 = vpop.f32.mrb[0].mxu0
  %v537 = vpop.f32.mrb[0].mxu0
  %v538 = vadd.f32 %v450, %v537
  %v539 = vpop.f32.mrb[0].mxu0
  %540 = vmatprep.mubr.bf16.mxu0 0
  %541 = vmatmul.mubr.bf16.gmra.mrb[0].mxu0 %v414
  %v542 = vpop.f32.mrb[0].mxu0
  %v543 = vadd.f32 %v450, %v542
  %v544 = vpop.f32.mrb[0].mxu0
  %v545 = vpop.f32.mrb[0].mxu0
  %v546 = vadd.f32 %v450, %v545
  %v547 = vpop.f32.mrb[0].mxu0
  %548 = vmatprep.mubr.bf16.mxu0 0
  %549 = vmatmul.mubr.bf16.gmra.mrb[0].mxu0 %v415
  %v550 = vpop.f32.mrb[0].mxu0
  %v551 = vadd.f32 %v450, %v550
  %v552 = vpop.f32.mrb[0].mxu0
  %v553 = vpop.f32.mrb[0].mxu0
  %v554 = vadd.f32 %v450, %v553
  %v555 = vpop.f32.mrb[0].mxu0
  %556 = vmatprep.mubr.bf16.mxu0 0
  %557 = vmatmul.mubr.bf16.gmra.mrb[0].mxu0 %v416
  %v558 = vpop.f32.mrb[0].mxu0
  %v559 = vadd.f32 %v450, %v558
  %v560 = vpop.f32.mrb[0].mxu0
  %v561 = vpop.f32.mrb[0].mxu0
  %v562 = vadd.f32 %v450, %v561
  %v563 = vpop.f32.mrb[0].mxu0
  %564 = vmatprep.mubr.bf16.mxu0 0
  %565 = vmatmul.mubr.bf16.gmra.mrb[0].mxu0 %v417
  %v566 = vpop.f32.mrb[0].mxu0
  %v567 = vadd.f32 %v450, %v566
  %v568 = vpop.f32.mrb[0].mxu0
  %v569 = vpop.f32.mrb[0].mxu0
  %v570 = vadd.f32 %v450, %v569
  %v571 = vpop.f32.mrb[0].mxu0
  %572 = vmatprep.mubr.bf16.mxu0 0
  %573 = vmatmul.mubr.bf16.gmra.mrb[0].mxu0 %v418
  %v574 = vpop.f32.mrb[0].mxu0
  %v575 = vadd.f32 %v450, %v574
  %v576 = vpop.f32.mrb[0].mxu0
  %v577 = vpop.f32.mrb[0].mxu0
  %v578 = vadd.f32 %v450, %v577
  %v579 = vpop.f32.mrb[0].mxu0
  %580 = vmatprep.mubr.bf16.mxu0 0
  %581 = vmatmul.mubr.bf16.gmra.mrb[0].mxu0 %v419
  %v582 = vpop.f32.mrb[0].mxu0
  %v583 = vadd.f32 %v450, %v582
  %v584 = vpop.f32.mrb[0].mxu0
  %v585 = vpop.f32.mrb[0].mxu0
  %v586 = vadd.f32 %v450, %v585
  %v587 = vpop.f32.mrb[0].mxu0
  %588 = vmatprep.mubr.bf16.mxu0 0
  %589 = vmatmul.mubr.bf16.gmra.mrb[0].mxu0 %v420
  %v590 = vpop.f32.mrb[0].mxu0
  %v591 = vadd.f32 %v450, %v590
  %v592 = vpop.f32.mrb[0].mxu0
  %v593 = vpop.f32.mrb[0].mxu0
  %v594 = vadd.f32 %v450, %v593
  %v595 = vpop.f32.mrb[0].mxu0
  %596 = vmatprep.mubr.bf16.mxu0 0
  %597 = vmatmul.mubr.bf16.gmra.mrb[0].mxu0 %v421
  %v598 = vpop.f32.mrb[0].mxu0
  %v599 = vadd.f32 %v450, %v598
  %v600 = vpop.f32.mrb[0].mxu0
  %v601 = vpop.f32.mrb[0].mxu0
  %v602 = vadd.f32 %v450, %v601
  %v603 = vpop.f32.mrb[0].mxu0
  %604 = vmatprep.mubr.bf16.mxu0 0
  %605 = vmatmul.mubr.bf16.gmra.mrb[0].mxu0 %v422
  %v606 = vpop.f32.mrb[0].mxu0
  %v607 = vadd.f32 %v450, %v606
  %v608 = vpop.f32.mrb[0].mxu0
  %v609 = vpop.f32.mrb[0].mxu0
  %v610 = vadd.f32 %v450, %v609
  %v611 = vpop.f32.mrb[0].mxu0
  %612 = vmatprep.mubr.bf16.mxu0 0
  %613 = vmatmul.mubr.bf16.gmra.mrb[0].mxu0 %v423
  %v614 = vpop.f32.mrb[0].mxu0
  %v615 = vadd.f32 %v450, %v614
  %v616 = vpop.f32.mrb[0].mxu0
  %v617 = vpop.f32.mrb[0].mxu0
  %v618 = vadd.f32 %v450, %v617
  %v619 = vpop.f32.mrb[0].mxu0
  %620 = vmatprep.mubr.bf16.mxu0 0
  %621 = vmatmul.mubr.bf16.gmra.mrb[0].mxu0 %v424
  %v622 = vpop.f32.mrb[0].mxu0
  %v623 = vadd.f32 %v450, %v622
  %v624 = vpop.f32.mrb[0].mxu0
  %v625 = vpop.f32.mrb[0].mxu0
  %v626 = vadd.f32 %v450, %v625
  %v627 = vpop.f32.mrb[0].mxu0
  %628 = vmatprep.mubr.bf16.mxu0 0
  %629 = vmatmul.mubr.bf16.gmra.mrb[0].mxu0 %v425
  %v630 = vpop.f32.mrb[0].mxu0
  %v631 = vadd.f32 %v450, %v630
  %v632 = vpop.f32.mrb[0].mxu0
  %v633 = vpop.f32.mrb[0].mxu0
  %v634 = vadd.f32 %v450, %v633
  %v635 = vpop.f32.mrb[0].mxu0
  %636 = vmatprep.mubr.bf16.mxu0 0
  %637 = vmatmul.mubr.bf16.gmra.mrb[0].mxu0 %v426
  %v638 = vpop.f32.mrb[0].mxu0
  %v639 = vadd.f32 %v450, %v638
  %v640 = vpop.f32.mrb[0].mxu0
  %v641 = vpop.f32.mrb[0].mxu0
  %v642 = vadd.f32 %v450, %v641
  %v643 = vpop.f32.mrb[0].mxu0
  %644 = vmatprep.mubr.bf16.mxu0 0
  %645 = vmatmul.mubr.bf16.gmra.mrb[0].mxu0 %v427
  %v646 = vpop.f32.mrb[0].mxu0
  %v647 = vadd.f32 %v450, %v646
  %v648 = vpop.f32.mrb[0].mxu0
  %v649 = vpop.f32.mrb[0].mxu0
  %v650 = vadd.f32 %v450, %v649
  %v651 = vpop.f32.mrb[0].mxu0
  %652 = vmatprep.mubr.bf16.mxu0 0
  %653 = vmatmul.mubr.bf16.gmra.mrb[0].mxu0 %v428
  %v654 = vpop.f32.mrb[0].mxu0
  %v655 = vadd.f32 %v450, %v654
  %v656 = vpop.f32.mrb[0].mxu0
  %v657 = vpop.f32.mrb[0].mxu0
  %v658 = vadd.f32 %v450, %v657
  %v659 = vpop.f32.mrb[0].mxu0
  %660 = vdwg.mxu0
  %661 = vst [vmem:[%s5] sm:$0xff] %v535
  %662 = vst [vmem:[%s5 + $0x8] sm:$0xff] %v538
  %663 = vst [vmem:[%s5 + $0x10] sm:$0xff] %v543
  %664 = vst [vmem:[%s5 + $0x18] sm:$0xff] %v546
  %665 = vst [vmem:[%s5 + $0x20] sm:$0xff] %v551
  %666 = vst [vmem:[%s5 + $0x28] sm:$0xff] %v554
  %667 = vst [vmem:[%s5 + $0x30] sm:$0xff] %v559
  %668 = vst [vmem:[%s5 + $0x38] sm:$0xff] %v562
  %669 = vst [vmem:[%s5 + $0x40] sm:$0xff] %v567
  %670 = vst [vmem:[%s5 + $0x48] sm:$0xff] %v570
  %671 = vst [vmem:[%s5 + $0x50] sm:$0xff] %v575
  %672 = vst [vmem:[%s5 + $0x58] sm:$0xff] %v578
  %673 = vst [vmem:[%s5 + $0x60] sm:$0xff] %v583
  %674 = vst [vmem:[%s5 + $0x68] sm:$0xff] %v586
  %675 = vst [vmem:[%s5 + $0x70] sm:$0xff] %v591
  %676 = vst [vmem:[%s5 + $0x78] sm:$0xff] %v594
  %677 = vst [vmem:[%s5 + $0x80] sm:$0xff] %v599
  %678 = vst [vmem:[%s5 + $0x88] sm:$0xff] %v602
  %679 = vst [vmem:[%s5 + $0x90] sm:$0xff] %v607
  %680 = vst [vmem:[%s5 + $0x98] sm:$0xff] %v610
  %681 = vst [vmem:[%s5 + $0xa0] sm:$0xff] %v615
  %682 = vst [vmem:[%s5 + $0xa8] sm:$0xff] %v618
  %683 = vst [vmem:[%s5 + $0xb0] sm:$0xff] %v623
  %684 = vst [vmem:[%s5 + $0xb8] sm:$0xff] %v626
  %685 = vst [vmem:[%s5 + $0xc0] sm:$0xff] %v631
  %686 = vst [vmem:[%s5 + $0xc8] sm:$0xff] %v634
  %687 = vst [vmem:[%s5 + $0xd0] sm:$0xff] %v639
  %688 = vst [vmem:[%s5 + $0xd8] sm:$0xff] %v642
  %689 = vst [vmem:[%s5 + $0xe0] sm:$0xff] %v647
  %690 = vst [vmem:[%s5 + $0xe8] sm:$0xff] %v650
  %691 = vst [vmem:[%s5 + $0xf0] sm:$0xff] %v655
  %692 = vst [vmem:[%s5 + $0xf8] sm:$0xff] %v658
  // Predicated region
  $region22: #{_lambda_.11} parent=0 // pred_check
    _
  $region23: #{_lambda_.11} parent=0 // pred_check_branch
    %694 = sbr.rel (0) target = $region25
  $region24: #{_lambda_.11} parent=0 // pred_region
    _
  $region25: #{_lambda_.11} parent=0 // pred_fallthru
    _
  // Predicated region
  $region26: #{_lambda_.11} parent=0 // pred_check
    _
  $region27: #{_lambda_.11} parent=0 // pred_check_branch
    %696 = sbr.rel (0) target = $region29
  $region28: #{_lambda_.11} parent=0 // pred_region
    _
  $region29: #{_lambda_.11} parent=0 // pred_fallthru
    _

</llo_original>
